<compile_context>
chip_gen: v7x
topology: tpu7x:2x2x1
jax: 0.10.0
libtpu: 0.0.40
codegen_flags: <defaults>
</compile_context>

<pallas_src>
import functools

import jax
import jax.numpy as jnp
import numpy as np
from jax.experimental import pallas as pl
from jax.experimental.pallas import tpu as pltpu

N_FEATURES = 8          # "n_features" of the synthetic Discriminator
_EPS = 1e-5             # nn.InstanceNorm2d default eps
_SLOPE = 0.2            # LeakyReLU negative slope

# Column layout of the packed gather-matrix block (lane-tile aligned slices).
_G1_COLS = 9 * 256      # layer 1: 9 folded taps x 256 output positions
_G2_COLS = 16 * 128     # layer 2: 16 taps x (64 outputs padded to 128 lanes)
_G3_COLS = 16 * 128     # layer 3: 16 taps x (16 outputs padded to 128 lanes)
_G2_OFF = _G1_COLS
_G3_OFF = _G1_COLS + _G2_COLS
_GP_COLS = _G1_COLS + _G2_COLS + _G3_COLS


# ---------------------------------------------------------------------------
# static (parameter independent) gather matrices, built once with numpy
# ---------------------------------------------------------------------------
def _build_gather(hi, wi, ho, wo, ksize, stride, pad, block_w, n_rows):
    """0/1 matrix G with G[p_in, t*block_w + p_out] = 1 iff input pixel p_in
    feeds tap t of output pixel p_out (all-zero column for padded taps)."""
    pout = np.arange(ho * wo)
    oh, ow = pout // wo, pout % wo
    g = np.zeros((n_rows, ksize * ksize, block_w), np.float32)
    for t in range(ksize * ksize):
        di, dj = t // ksize, t % ksize
        ih = stride * oh + di - pad
        iw = stride * ow + dj - pad
        ok = (ih >= 0) & (ih < hi) & (iw >= 0) & (iw < wi)
        g[(ih * wi + iw)[ok], t, pout[ok]] = 1.0
    return g.reshape(n_rows, ksize * ksize * block_w)


_GPACK = np.concatenate(
    [
        # layer 1: (2x nearest upsample + conv4 s2 p1) == conv3 s1 p1 on 16x16
        _build_gather(16, 16, 16, 16, 3, 1, 1, 256, 256),
        # layer 2: conv4 s2 p1, 16x16 -> 8x8 (tap blocks padded to 128 lanes)
        _build_gather(16, 16, 8, 8, 4, 2, 1, 128, 256),
        # layer 3: conv4 s2 p1, 8x8 -> 4x4 (rows >= 64 stay zero -> the junk
        # lanes of a2 never contribute)
        _build_gather(8, 8, 4, 4, 4, 2, 1, 128, 256),
    ],
    axis=1,
)
assert _GPACK.shape == (256, _GP_COLS)


# ---------------------------------------------------------------------------
# in-kernel helper
# ---------------------------------------------------------------------------
def _instnorm_lrelu(y, n_valid):
    """InstanceNorm2d(affine=False) along the lane (spatial) axis + LeakyReLU.

    y: (rows, lanes); each row is one (sample, channel) pair.  Lanes beyond
    n_valid are exactly zero and therefore do not perturb the statistics.
    """
    inv_n = 1.0 / n_valid
    mean = jnp.sum(y, axis=1, keepdims=True) * inv_n
    meansq = jnp.sum(y * y, axis=1, keepdims=True) * inv_n
    var = jnp.maximum(meansq - mean * mean, 0.0)     # clamp rounding negatives
    yn = (y - mean) * jax.lax.rsqrt(var + _EPS)
    return jnp.where(yn >= 0.0, yn, _SLOPE * yn)


# ---------------------------------------------------------------------------
# the single fused kernel (S samples per grid step, no scratch buffers)
# ---------------------------------------------------------------------------
def _disc_kernel(x_ref, g_ref, w1_ref, w2_ref, w3_ref, hp_ref, o_ref, *, s):
    f32 = jnp.float32
    nf = N_FEATURES

    xc = x_ref[0, 0:3 * s, :]               # (3s, 256)  rows = sample*3 + rgb
    pen = x_ref[0, 3 * s:4 * s, 0:1]        # (s, 1)     packed penalty column

    # ---- layer 1: Upsample(32,32)+Conv(3->nf,4,2,1) folded to 9 taps --------
    acc1 = jnp.zeros((nf * s, 256), f32)
    for grp in range(3):                    # 3 groups of 3 taps (bounds temps)
        cols = jnp.dot(xc, g_ref[:, grp * 768:(grp + 1) * 768],
                       preferred_element_type=f32)             # (3s, 3*256)
        for k in range(3):
            t = grp * 3 + k
            acc1 = acc1 + jnp.dot(w1_ref[t], cols[:, k * 256:(k + 1) * 256],
                                  preferred_element_type=f32)
    a1 = _instnorm_lrelu(acc1, 256.0)       # (8s, 256)

    # ---- layer 2: Conv(nf->2nf,4,2,1), 16 taps, 64 outputs (padded to 128) --
    acc2 = jnp.zeros((2 * nf * s, 128), f32)
    for grp in range(4):
        off = _G2_OFF + grp * 512
        cols = jnp.dot(a1, g_ref[:, off:off + 512],
                       preferred_element_type=f32)             # (8s, 4*128)
        for k in range(4):
            t = grp * 4 + k
            acc2 = acc2 + jnp.dot(w2_ref[t], cols[:, k * 128:(k + 1) * 128],
                                  preferred_element_type=f32)
    a2 = _instnorm_lrelu(acc2, 64.0)        # (16s, 128); lanes >= 64 are junk,
                                            # never read (zero gather rows)

    # ---- layer 3: Conv(2nf->4nf,4,2,1), 16 taps, 16 outputs (padded) --------
    acc3 = jnp.zeros((4 * nf * s, 128), f32)
    for grp in range(4):
        off = _G3_OFF + grp * 512
        cols = jnp.dot(a2, g_ref[0:128, off:off + 512],
                       preferred_element_type=f32)             # (16s, 4*128)
        for k in range(4):
            t = grp * 4 + k
            acc3 = acc3 + jnp.dot(w3_ref[t], cols[:, k * 128:(k + 1) * 128],
                                  preferred_element_type=f32)
    a3 = _instnorm_lrelu(acc3, 16.0)        # (32s, 128); lanes >= 16 are junk

    # ---- Conv(4nf->1,4) + concat(penalty) + Linear(2,32) + Linear(32,1) -----
    wc4 = hp_ref[0:32 * s, :]               # (32s, 128), zero past lane 15
    head = hp_ref[32 * s:32 * s + 5, 0:32]  # (5, 32) fc head rows
    gsum = hp_ref[32 * s + 5:33 * s + 5, 0:32 * s]    # (s, 32s) per-sample sum

    rowsum = jnp.sum(a3 * wc4, axis=1, keepdims=True)            # (32s, 1)
    s_img = jnp.dot(gsum, rowsum, preferred_element_type=f32)    # (s, 1)
    # head rows: 0 fc1 weights on out_img, 1 fc1 weights on penalty,
    #            2 fc1 bias with conv-4 bias folded in, 3 fc2 weights,
    #            4[0] fc2 bias.
    h = s_img * head[0:1, :] + pen * head[1:2, :] + head[2:3, :]  # (s, 32)
    out = jnp.sum(h * head[3:4, :], axis=1, keepdims=True) + head[4:5, 0:1]
    o_ref[0] = out                          # (s, 1)


# ---------------------------------------------------------------------------
# wrapper-side weight re-packing (tiny, runs once inside jit)
# ---------------------------------------------------------------------------
def _fold_upsample_conv_taps(w_oihw):
    """Fold the exact 2x nearest upsample into the first conv:
    conv4_s2_p1(upsample2x(x)) == conv3_s1_p1(x) with rows/cols {0},{1,2},{3}
    summed.  Returns (9, cout, cin), tap (p, q) -> p*3 + q."""
    a = jnp.stack([w_oihw[:, :, 0, :],
                   w_oihw[:, :, 1, :] + w_oihw[:, :, 2, :],
                   w_oihw[:, :, 3, :]], axis=2)                   # (o, c, 3, 4)
    a = jnp.stack([a[:, :, :, 0],
                   a[:, :, :, 1] + a[:, :, :, 2],
                   a[:, :, :, 3]], axis=3)                        # (o, c, 3, 3)
    return jnp.transpose(a, (2, 3, 0, 1)).reshape(9, *w_oihw.shape[:2])


def _conv_taps(w_oihw):
    """(cout, cin, 4, 4) -> (16, cout, cin), tap (i, j) -> i*4 + j."""
    return jnp.transpose(w_oihw, (2, 3, 0, 1)).reshape(16, *w_oihw.shape[:2])


def _kron_eye(wstack, s):
    """Per-tap block-diagonal expansion (I_s kron W) so one matmul covers the
    s samples stacked along the sublane axis."""
    t, a, c = wstack.shape
    eye = jnp.eye(s, dtype=wstack.dtype)
    return jnp.einsum("ij,tac->tiajc", eye, wstack).reshape(t, s * a, s * c)


def _pack_head_and_tail(params, s):
    """One small constant block: conv-4 weights (tiled per sample, lane padded),
    the fc head rows, and the per-sample channel-sum 0/1 matrix."""
    wc = params["c4_w"][0].reshape(4 * N_FEATURES, 16)            # (32, 16)
    wc = jnp.pad(jnp.tile(wc, (s, 1)), ((0, 0), (0, 112)))        # (32s, 128)
    r0 = params["fc1_w"][0]
    r1 = params["fc1_w"][1]
    r2 = params["fc1_b"] + params["c4_b"][0] * r0                 # fold c4 bias
    r3 = params["fc2_w"][:, 0]
    r4 = jnp.zeros((32,), jnp.float32).at[0].set(params["fc2_b"][0])
    head = jnp.pad(jnp.stack([r0, r1, r2, r3, r4], axis=0), ((0, 0), (0, 96)))
    gsum = np.kron(np.eye(s, dtype=np.float32), np.ones((1, 32), np.float32))
    gsum = jnp.pad(jnp.asarray(gsum), ((0, 0), (0, 128 - 32 * s)))
    return jnp.concatenate([wc, head, gsum], axis=0)              # (33s+5, 128)


def _samples_per_step(b):
    # >= 2 grid steps keeps both v7x TensorCores busy ("parallel" grid axis);
    # 2 samples/step bounds the kron'd weight sizes and in-kernel temporaries.
    return 1 if b <= 3 else 2


def init_params(key, nf):
    ks = jax.random.split(key, 10)

    def conv_w(k, cout, cin, kh, kw, scale=0.05):
        return (scale * jax.random.normal(k, (cout, cin, kh, kw))).astype(jnp.float32)

    return {
        # conv biases c1_b/c2_b/c3_b mirror the PyTorch module but are
        # mathematically cancelled by InstanceNorm2d(affine=False).
        "c1_w": conv_w(ks[0], nf, 3, 4, 4),
        "c1_b": (0.01 * jax.random.normal(ks[1], (nf,))).astype(jnp.float32),
        "c2_w": conv_w(ks[2], 2 * nf, nf, 4, 4),
        "c2_b": (0.01 * jax.random.normal(ks[3], (2 * nf,))).astype(jnp.float32),
        "c3_w": conv_w(ks[4], 4 * nf, 2 * nf, 4, 4),
        "c3_b": (0.01 * jax.random.normal(ks[5], (4 * nf,))).astype(jnp.float32),
        "c4_w": conv_w(ks[6], 1, 4 * nf, 4, 4),
        "c4_b": (0.01 * jax.random.normal(ks[7], (1,))).astype(jnp.float32),
        "fc1_w": (0.1 * jax.random.normal(ks[8], (2, 32))).astype(jnp.float32),
        "fc1_b": jnp.zeros((32,), jnp.float32),
        "fc2_w": (0.1 * jax.random.normal(ks[9], (32, 1))).astype(jnp.float32),
        "fc2_b": jnp.zeros((1,), jnp.float32),
    }


@jax.jit
def discriminator_forward(params, img_nchw, penalty):
    b, c, h, w = img_nchw.shape
    assert (c, h, w) == (3, 16, 16), "kernel specialised to 16x16 RGB inputs"
    # TODO(synk): other input sizes need the generic nn.Upsample(size=(32,32))
    # resample (non-2x nearest) folded differently in front of the first conv.
    s = _samples_per_step(b)
    n_steps = pl.cdiv(b, s)
    bp = n_steps * s

    # pack image channels + penalty into ONE per-step block (one DMA per step)
    x = img_nchw.astype(jnp.float32).reshape(b, 3, 256)
    x = jnp.pad(x, ((0, bp - b), (0, 0), (0, 0))).reshape(n_steps, 3 * s, 256)
    pen = jnp.pad(penalty.astype(jnp.float32).reshape(b), (0, bp - b))
    pen = jnp.pad(pen.reshape(n_steps, s, 1), ((0, 0), (0, 0), (0, 255)))
    xpack = jnp.concatenate([x, pen], axis=1)                 # (n_steps, 4s, 256)

    # constants (gather matrices are static; weights re-packed once per call)
    w1k = _kron_eye(_fold_upsample_conv_taps(params["c1_w"]), s)   # (9, 8s, 3s)
    w2k = _kron_eye(_conv_taps(params["c2_w"]), s)                 # (16,16s, 8s)
    w3k = _kron_eye(_conv_taps(params["c3_w"]), s)                 # (16,32s,16s)
    hpack = _pack_head_and_tail(params, s)                         # (33s+5, 128)
    gpack = jnp.asarray(_GPACK)                                    # (256, 6400)

    out = pl.pallas_call(
        functools.partial(_disc_kernel, s=s),
        out_shape=jax.ShapeDtypeStruct((n_steps, s, 1), jnp.float32),
        grid=(n_steps,),
        in_specs=[
            pl.BlockSpec((1, 4 * s, 256), lambda i: (i, 0, 0)),        # per step
            pl.BlockSpec((256, _GP_COLS), lambda i: (0, 0)),           # constant
            pl.BlockSpec((9, 8 * s, 3 * s), lambda i: (0, 0, 0)),      # constant
            pl.BlockSpec((16, 16 * s, 8 * s), lambda i: (0, 0, 0)),    # constant
            pl.BlockSpec((16, 32 * s, 16 * s), lambda i: (0, 0, 0)),   # constant
            pl.BlockSpec((33 * s + 5, 128), lambda i: (0, 0)),         # constant
        ],
        out_specs=pl.BlockSpec((1, s, 1), lambda i: (i, 0, 0)),
        compiler_params=pltpu.CompilerParams(
            dimension_semantics=("parallel",),
            vmem_limit_bytes=32 * 1024 * 1024,
        ),
    )(xpack, gpack, w1k, w2k, w3k, hpack)
    return out.reshape(bp, 1)[:b]


if __name__ == "__main__":
    key = jax.random.PRNGKey(0)
    k_params, k_data = jax.random.split(key)
    params = init_params(k_params, N_FEATURES)

    # batch=2 exercises the 1-sample/step path (2 grid steps for v7x);
    # batch=5 exercises the 2-samples/step path with batch padding.
    for batch in (2, 5):
        k_i, k_p = jax.random.split(jax.random.fold_in(k_data, batch))
        img = jax.random.normal(k_i, (batch, 3, 16, 16), dtype=jnp.float32)
        penalty = jax.random.normal(k_p, (batch, 1), dtype=jnp.float32)
        out = discriminator_forward(params, img, penalty)
        out = jax.block_until_ready(out)
        assert out.shape == (batch, 1), out.shape
        assert bool(jnp.all(jnp.isfinite(out))), "non-finite output"
    print("KERNEL_OK")
</pallas_src>

<mosaic_0001>
module attributes {stable_mosaic.version = 11 : i64} {
  func.func @_disc_kernel(%arg0: i32, %arg1: memref<1x4x256xf32, #tpu.memory_space<vmem>>, %arg2: memref<256x6400xf32, #tpu.memory_space<vmem>>, %arg3: memref<9x8x3xf32, #tpu.memory_space<vmem>>, %arg4: memref<16x16x8xf32, #tpu.memory_space<vmem>>, %arg5: memref<16x32x16xf32, #tpu.memory_space<vmem>>, %arg6: memref<38x128xf32, #tpu.memory_space<vmem>>, %arg7: memref<1x1x1xf32, #tpu.memory_space<vmem>>) attributes {dimension_semantics = [#tpu.dimension_semantics<parallel>], iteration_bounds = array<i64: 2>, scalar_prefetch = 0 : i64, scratch_operands = 0 : i64, tpu.core_type = #tpu.core_type<tc>, window_params = [{transform_indices = @transform_0, window_bounds = array<i64: 1, 4, 256>}, {pipeline_mode = #tpu.pipeline_mode<synchronous>, transform_indices = @transform_1, window_bounds = array<i64: 256, 6400>}, {pipeline_mode = #tpu.pipeline_mode<synchronous>, transform_indices = @transform_2, window_bounds = array<i64: 9, 8, 3>}, {pipeline_mode = #tpu.pipeline_mode<synchronous>, transform_indices = @transform_3, window_bounds = array<i64: 16, 16, 8>}, {pipeline_mode = #tpu.pipeline_mode<synchronous>, transform_indices = @transform_4, window_bounds = array<i64: 16, 32, 16>}, {pipeline_mode = #tpu.pipeline_mode<synchronous>, transform_indices = @transform_5, window_bounds = array<i64: 38, 128>}, {transform_indices = @transform_6, window_bounds = array<i64: 1, 1, 1>}]} {
    %c0 = arith.constant 0 : index
    %c0_0 = arith.constant 0 : index
    %c0_1 = arith.constant 0 : index
    %0 = vector.load %arg1[%c0, %c0_0, %c0_1] : memref<1x4x256xf32, #tpu.memory_space<vmem>>, vector<1x3x256xf32>
    %1 = vector.shape_cast %0 : vector<1x3x256xf32> to vector<3x256xf32>
    %c0_2 = arith.constant 0 : index
    %c3 = arith.constant 3 : index
    %c0_3 = arith.constant 0 : index
    %2 = vector.load %arg1[%c0_2, %c3, %c0_3] : memref<1x4x256xf32, #tpu.memory_space<vmem>>, vector<1x1x1xf32>
    %3 = vector.shape_cast %2 : vector<1x1x1xf32> to vector<1x1xf32>
    %cst = arith.constant 0.000000e+00 : f32
    %4 = vector.broadcast %cst : f32 to vector<8x256xf32>
    %c0_4 = arith.constant 0 : index
    %c0_5 = arith.constant 0 : index
    %5 = vector.load %arg2[%c0_4, %c0_5] : memref<256x6400xf32, #tpu.memory_space<vmem>>, vector<256x768xf32>
    %cst_6 = arith.constant dense<0.000000e+00> : vector<3x768xf32>
    %6 = tpu.matmul %1, %5, %cst_6 {dimension_numbers = #tpu.dot_dimension_numbers<[1], [0], [0], [1], [0, 0, 1, 1], [], []>} : vector<3x256xf32>, vector<256x768xf32>, vector<3x768xf32> -> vector<3x768xf32>
    %c0_7 = arith.constant 0 : index
    %c0_8 = arith.constant 0 : index
    %c0_9 = arith.constant 0 : index
    %7 = vector.load %arg3[%c0_7, %c0_8, %c0_9] : memref<9x8x3xf32, #tpu.memory_space<vmem>>, vector<1x8x3xf32>
    %8 = vector.shape_cast %7 : vector<1x8x3xf32> to vector<8x3xf32>
    %9 = vector.extract_strided_slice %6 {offsets = [0, 0], sizes = [3, 256], strides = [1, 1]} : vector<3x768xf32> to vector<3x256xf32>
    %cst_10 = arith.constant dense<0.000000e+00> : vector<8x256xf32>
    %10 = tpu.matmul %8, %9, %cst_10 {dimension_numbers = #tpu.dot_dimension_numbers<[1], [0], [0], [1], [0, 0, 1, 1], [], []>} : vector<8x3xf32>, vector<3x256xf32>, vector<8x256xf32> -> vector<8x256xf32>
    %11 = arith.addf %4, %10 : vector<8x256xf32>
    %c1 = arith.constant 1 : index
    %c0_11 = arith.constant 0 : index
    %c0_12 = arith.constant 0 : index
    %12 = vector.load %arg3[%c1, %c0_11, %c0_12] : memref<9x8x3xf32, #tpu.memory_space<vmem>>, vector<1x8x3xf32>
    %13 = vector.shape_cast %12 : vector<1x8x3xf32> to vector<8x3xf32>
    %14 = vector.extract_strided_slice %6 {offsets = [0, 256], sizes = [3, 256], strides = [1, 1]} : vector<3x768xf32> to vector<3x256xf32>
    %cst_13 = arith.constant dense<0.000000e+00> : vector<8x256xf32>
    %15 = tpu.matmul %13, %14, %cst_13 {dimension_numbers = #tpu.dot_dimension_numbers<[1], [0], [0], [1], [0, 0, 1, 1], [], []>} : vector<8x3xf32>, vector<3x256xf32>, vector<8x256xf32> -> vector<8x256xf32>
    %16 = arith.addf %11, %15 : vector<8x256xf32>
    %c2 = arith.constant 2 : index
    %c0_14 = arith.constant 0 : index
    %c0_15 = arith.constant 0 : index
    %17 = vector.load %arg3[%c2, %c0_14, %c0_15] : memref<9x8x3xf32, #tpu.memory_space<vmem>>, vector<1x8x3xf32>
    %18 = vector.shape_cast %17 : vector<1x8x3xf32> to vector<8x3xf32>
    %19 = vector.extract_strided_slice %6 {offsets = [0, 512], sizes = [3, 256], strides = [1, 1]} : vector<3x768xf32> to vector<3x256xf32>
    %cst_16 = arith.constant dense<0.000000e+00> : vector<8x256xf32>
    %20 = tpu.matmul %18, %19, %cst_16 {dimension_numbers = #tpu.dot_dimension_numbers<[1], [0], [0], [1], [0, 0, 1, 1], [], []>} : vector<8x3xf32>, vector<3x256xf32>, vector<8x256xf32> -> vector<8x256xf32>
    %21 = arith.addf %16, %20 : vector<8x256xf32>
    %c0_17 = arith.constant 0 : index
    %c768 = arith.constant 768 : index
    %22 = vector.load %arg2[%c0_17, %c768] : memref<256x6400xf32, #tpu.memory_space<vmem>>, vector<256x768xf32>
    %cst_18 = arith.constant dense<0.000000e+00> : vector<3x768xf32>
    %23 = tpu.matmul %1, %22, %cst_18 {dimension_numbers = #tpu.dot_dimension_numbers<[1], [0], [0], [1], [0, 0, 1, 1], [], []>} : vector<3x256xf32>, vector<256x768xf32>, vector<3x768xf32> -> vector<3x768xf32>
    %c3_19 = arith.constant 3 : index
    %c0_20 = arith.constant 0 : index
    %c0_21 = arith.constant 0 : index
    %24 = vector.load %arg3[%c3_19, %c0_20, %c0_21] : memref<9x8x3xf32, #tpu.memory_space<vmem>>, vector<1x8x3xf32>
    %25 = vector.shape_cast %24 : vector<1x8x3xf32> to vector<8x3xf32>
    %26 = vector.extract_strided_slice %23 {offsets = [0, 0], sizes = [3, 256], strides = [1, 1]} : vector<3x768xf32> to vector<3x256xf32>
    %cst_22 = arith.constant dense<0.000000e+00> : vector<8x256xf32>
    %27 = tpu.matmul %25, %26, %cst_22 {dimension_numbers = #tpu.dot_dimension_numbers<[1], [0], [0], [1], [0, 0, 1, 1], [], []>} : vector<8x3xf32>, vector<3x256xf32>, vector<8x256xf32> -> vector<8x256xf32>
    %28 = arith.addf %21, %27 : vector<8x256xf32>
    %c4 = arith.constant 4 : index
    %c0_23 = arith.constant 0 : index
    %c0_24 = arith.constant 0 : index
    %29 = vector.load %arg3[%c4, %c0_23, %c0_24] : memref<9x8x3xf32, #tpu.memory_space<vmem>>, vector<1x8x3xf32>
    %30 = vector.shape_cast %29 : vector<1x8x3xf32> to vector<8x3xf32>
    %31 = vector.extract_strided_slice %23 {offsets = [0, 256], sizes = [3, 256], strides = [1, 1]} : vector<3x768xf32> to vector<3x256xf32>
    %cst_25 = arith.constant dense<0.000000e+00> : vector<8x256xf32>
    %32 = tpu.matmul %30, %31, %cst_25 {dimension_numbers = #tpu.dot_dimension_numbers<[1], [0], [0], [1], [0, 0, 1, 1], [], []>} : vector<8x3xf32>, vector<3x256xf32>, vector<8x256xf32> -> vector<8x256xf32>
    %33 = arith.addf %28, %32 : vector<8x256xf32>
    %c5 = arith.constant 5 : index
    %c0_26 = arith.constant 0 : index
    %c0_27 = arith.constant 0 : index
    %34 = vector.load %arg3[%c5, %c0_26, %c0_27] : memref<9x8x3xf32, #tpu.memory_space<vmem>>, vector<1x8x3xf32>
    %35 = vector.shape_cast %34 : vector<1x8x3xf32> to vector<8x3xf32>
    %36 = vector.extract_strided_slice %23 {offsets = [0, 512], sizes = [3, 256], strides = [1, 1]} : vector<3x768xf32> to vector<3x256xf32>
    %cst_28 = arith.constant dense<0.000000e+00> : vector<8x256xf32>
    %37 = tpu.matmul %35, %36, %cst_28 {dimension_numbers = #tpu.dot_dimension_numbers<[1], [0], [0], [1], [0, 0, 1, 1], [], []>} : vector<8x3xf32>, vector<3x256xf32>, vector<8x256xf32> -> vector<8x256xf32>
    %38 = arith.addf %33, %37 : vector<8x256xf32>
    %c0_29 = arith.constant 0 : index
    %c1536 = arith.constant 1536 : index
    %39 = vector.load %arg2[%c0_29, %c1536] : memref<256x6400xf32, #tpu.memory_space<vmem>>, vector<256x768xf32>
    %cst_30 = arith.constant dense<0.000000e+00> : vector<3x768xf32>
    %40 = tpu.matmul %1, %39, %cst_30 {dimension_numbers = #tpu.dot_dimension_numbers<[1], [0], [0], [1], [0, 0, 1, 1], [], []>} : vector<3x256xf32>, vector<256x768xf32>, vector<3x768xf32> -> vector<3x768xf32>
    %c6 = arith.constant 6 : index
    %c0_31 = arith.constant 0 : index
    %c0_32 = arith.constant 0 : index
    %41 = vector.load %arg3[%c6, %c0_31, %c0_32] : memref<9x8x3xf32, #tpu.memory_space<vmem>>, vector<1x8x3xf32>
    %42 = vector.shape_cast %41 : vector<1x8x3xf32> to vector<8x3xf32>
    %43 = vector.extract_strided_slice %40 {offsets = [0, 0], sizes = [3, 256], strides = [1, 1]} : vector<3x768xf32> to vector<3x256xf32>
    %cst_33 = arith.constant dense<0.000000e+00> : vector<8x256xf32>
    %44 = tpu.matmul %42, %43, %cst_33 {dimension_numbers = #tpu.dot_dimension_numbers<[1], [0], [0], [1], [0, 0, 1, 1], [], []>} : vector<8x3xf32>, vector<3x256xf32>, vector<8x256xf32> -> vector<8x256xf32>
    %45 = arith.addf %38, %44 : vector<8x256xf32>
    %c7 = arith.constant 7 : index
    %c0_34 = arith.constant 0 : index
    %c0_35 = arith.constant 0 : index
    %46 = vector.load %arg3[%c7, %c0_34, %c0_35] : memref<9x8x3xf32, #tpu.memory_space<vmem>>, vector<1x8x3xf32>
    %47 = vector.shape_cast %46 : vector<1x8x3xf32> to vector<8x3xf32>
    %48 = vector.extract_strided_slice %40 {offsets = [0, 256], sizes = [3, 256], strides = [1, 1]} : vector<3x768xf32> to vector<3x256xf32>
    %cst_36 = arith.constant dense<0.000000e+00> : vector<8x256xf32>
    %49 = tpu.matmul %47, %48, %cst_36 {dimension_numbers = #tpu.dot_dimension_numbers<[1], [0], [0], [1], [0, 0, 1, 1], [], []>} : vector<8x3xf32>, vector<3x256xf32>, vector<8x256xf32> -> vector<8x256xf32>
    %50 = arith.addf %45, %49 : vector<8x256xf32>
    %c8 = arith.constant 8 : index
    %c0_37 = arith.constant 0 : index
    %c0_38 = arith.constant 0 : index
    %51 = vector.load %arg3[%c8, %c0_37, %c0_38] : memref<9x8x3xf32, #tpu.memory_space<vmem>>, vector<1x8x3xf32>
    %52 = vector.shape_cast %51 : vector<1x8x3xf32> to vector<8x3xf32>
    %53 = vector.extract_strided_slice %40 {offsets = [0, 512], sizes = [3, 256], strides = [1, 1]} : vector<3x768xf32> to vector<3x256xf32>
    %cst_39 = arith.constant dense<0.000000e+00> : vector<8x256xf32>
    %54 = tpu.matmul %52, %53, %cst_39 {dimension_numbers = #tpu.dot_dimension_numbers<[1], [0], [0], [1], [0, 0, 1, 1], [], []>} : vector<8x3xf32>, vector<3x256xf32>, vector<8x256xf32> -> vector<8x256xf32>
    %55 = arith.addf %50, %54 : vector<8x256xf32>
    %cst_40 = arith.constant dense<0.000000e+00> : vector<8xf32>
    %56 = vector.multi_reduction <add>, %55, %cst_40 [1] : vector<8x256xf32> to vector<8xf32>
    %57 = vector.shape_cast %56 : vector<8xf32> to vector<8x1xf32>
    %cst_41 = arith.constant 3.906250e-03 : f32
    %58 = vector.broadcast %cst_41 : f32 to vector<8x1xf32>
    %59 = arith.mulf %57, %58 : vector<8x1xf32>
    %60 = arith.mulf %55, %55 : vector<8x256xf32>
    %cst_42 = arith.constant dense<0.000000e+00> : vector<8xf32>
    %61 = vector.multi_reduction <add>, %60, %cst_42 [1] : vector<8x256xf32> to vector<8xf32>
    %62 = vector.shape_cast %61 : vector<8xf32> to vector<8x1xf32>
    %cst_43 = arith.constant 3.906250e-03 : f32
    %63 = vector.broadcast %cst_43 : f32 to vector<8x1xf32>
    %64 = arith.mulf %62, %63 : vector<8x1xf32>
    %65 = arith.mulf %59, %59 : vector<8x1xf32>
    %66 = arith.subf %64, %65 : vector<8x1xf32>
    %cst_44 = arith.constant 0.000000e+00 : f32
    %67 = vector.broadcast %cst_44 : f32 to vector<8x1xf32>
    %68 = arith.maximumf %66, %67 : vector<8x1xf32>
    %69 = vector.broadcast %59 : vector<8x1xf32> to vector<8x256xf32>
    %70 = arith.subf %55, %69 : vector<8x256xf32>
    %cst_45 = arith.constant 9.99999974E-6 : f32
    %71 = vector.broadcast %cst_45 : f32 to vector<8x1xf32>
    %72 = arith.addf %68, %71 : vector<8x1xf32>
    %73 = math.rsqrt %72 : vector<8x1xf32>
    %74 = vector.broadcast %73 : vector<8x1xf32> to vector<8x256xf32>
    %75 = arith.mulf %70, %74 : vector<8x256xf32>
    %cst_46 = arith.constant 0.000000e+00 : f32
    %76 = vector.broadcast %cst_46 : f32 to vector<8x256xf32>
    %77 = arith.cmpf oge, %75, %76 : vector<8x256xf32>
    %cst_47 = arith.constant 2.000000e-01 : f32
    %78 = vector.broadcast %cst_47 : f32 to vector<8x256xf32>
    %79 = arith.mulf %78, %75 : vector<8x256xf32>
    %80 = arith.select %77, %75, %79 : vector<8x256xi1>, vector<8x256xf32>
    %cst_48 = arith.constant 0.000000e+00 : f32
    %81 = vector.broadcast %cst_48 : f32 to vector<16x128xf32>
    %c0_49 = arith.constant 0 : index
    %c2304 = arith.constant 2304 : index
    %82 = vector.load %arg2[%c0_49, %c2304] : memref<256x6400xf32, #tpu.memory_space<vmem>>, vector<256x512xf32>
    %cst_50 = arith.constant dense<0.000000e+00> : vector<8x512xf32>
    %83 = tpu.matmul %80, %82, %cst_50 {dimension_numbers = #tpu.dot_dimension_numbers<[1], [0], [0], [1], [0, 0, 1, 1], [], []>} : vector<8x256xf32>, vector<256x512xf32>, vector<8x512xf32> -> vector<8x512xf32>
    %c0_51 = arith.constant 0 : index
    %c0_52 = arith.constant 0 : index
    %c0_53 = arith.constant 0 : index
    %84 = vector.load %arg4[%c0_51, %c0_52, %c0_53] : memref<16x16x8xf32, #tpu.memory_space<vmem>>, vector<1x16x8xf32>
    %85 = vector.shape_cast %84 : vector<1x16x8xf32> to vector<16x8xf32>
    %86 = vector.extract_strided_slice %83 {offsets = [0, 0], sizes = [8, 128], strides = [1, 1]} : vector<8x512xf32> to vector<8x128xf32>
    %cst_54 = arith.constant dense<0.000000e+00> : vector<16x128xf32>
    %87 = tpu.matmul %85, %86, %cst_54 {dimension_numbers = #tpu.dot_dimension_numbers<[1], [0], [0], [1], [0, 0, 1, 1], [], []>} : vector<16x8xf32>, vector<8x128xf32>, vector<16x128xf32> -> vector<16x128xf32>
    %88 = arith.addf %81, %87 : vector<16x128xf32>
    %c1_55 = arith.constant 1 : index
    %c0_56 = arith.constant 0 : index
    %c0_57 = arith.constant 0 : index
    %89 = vector.load %arg4[%c1_55, %c0_56, %c0_57] : memref<16x16x8xf32, #tpu.memory_space<vmem>>, vector<1x16x8xf32>
    %90 = vector.shape_cast %89 : vector<1x16x8xf32> to vector<16x8xf32>
    %91 = vector.extract_strided_slice %83 {offsets = [0, 128], sizes = [8, 128], strides = [1, 1]} : vector<8x512xf32> to vector<8x128xf32>
    %cst_58 = arith.constant dense<0.000000e+00> : vector<16x128xf32>
    %92 = tpu.matmul %90, %91, %cst_58 {dimension_numbers = #tpu.dot_dimension_numbers<[1], [0], [0], [1], [0, 0, 1, 1], [], []>} : vector<16x8xf32>, vector<8x128xf32>, vector<16x128xf32> -> vector<16x128xf32>
    %93 = arith.addf %88, %92 : vector<16x128xf32>
    %c2_59 = arith.constant 2 : index
    %c0_60 = arith.constant 0 : index
    %c0_61 = arith.constant 0 : index
    %94 = vector.load %arg4[%c2_59, %c0_60, %c0_61] : memref<16x16x8xf32, #tpu.memory_space<vmem>>, vector<1x16x8xf32>
    %95 = vector.shape_cast %94 : vector<1x16x8xf32> to vector<16x8xf32>
    %96 = vector.extract_strided_slice %83 {offsets = [0, 256], sizes = [8, 128], strides = [1, 1]} : vector<8x512xf32> to vector<8x128xf32>
    %cst_62 = arith.constant dense<0.000000e+00> : vector<16x128xf32>
    %97 = tpu.matmul %95, %96, %cst_62 {dimension_numbers = #tpu.dot_dimension_numbers<[1], [0], [0], [1], [0, 0, 1, 1], [], []>} : vector<16x8xf32>, vector<8x128xf32>, vector<16x128xf32> -> vector<16x128xf32>
    %98 = arith.addf %93, %97 : vector<16x128xf32>
    %c3_63 = arith.constant 3 : index
    %c0_64 = arith.constant 0 : index
    %c0_65 = arith.constant 0 : index
    %99 = vector.load %arg4[%c3_63, %c0_64, %c0_65] : memref<16x16x8xf32, #tpu.memory_space<vmem>>, vector<1x16x8xf32>
    %100 = vector.shape_cast %99 : vector<1x16x8xf32> to vector<16x8xf32>
    %101 = vector.extract_strided_slice %83 {offsets = [0, 384], sizes = [8, 128], strides = [1, 1]} : vector<8x512xf32> to vector<8x128xf32>
    %cst_66 = arith.constant dense<0.000000e+00> : vector<16x128xf32>
    %102 = tpu.matmul %100, %101, %cst_66 {dimension_numbers = #tpu.dot_dimension_numbers<[1], [0], [0], [1], [0, 0, 1, 1], [], []>} : vector<16x8xf32>, vector<8x128xf32>, vector<16x128xf32> -> vector<16x128xf32>
    %103 = arith.addf %98, %102 : vector<16x128xf32>
    %c0_67 = arith.constant 0 : index
    %c2816 = arith.constant 2816 : index
    %104 = vector.load %arg2[%c0_67, %c2816] : memref<256x6400xf32, #tpu.memory_space<vmem>>, vector<256x512xf32>
    %cst_68 = arith.constant dense<0.000000e+00> : vector<8x512xf32>
    %105 = tpu.matmul %80, %104, %cst_68 {dimension_numbers = #tpu.dot_dimension_numbers<[1], [0], [0], [1], [0, 0, 1, 1], [], []>} : vector<8x256xf32>, vector<256x512xf32>, vector<8x512xf32> -> vector<8x512xf32>
    %c4_69 = arith.constant 4 : index
    %c0_70 = arith.constant 0 : index
    %c0_71 = arith.constant 0 : index
    %106 = vector.load %arg4[%c4_69, %c0_70, %c0_71] : memref<16x16x8xf32, #tpu.memory_space<vmem>>, vector<1x16x8xf32>
    %107 = vector.shape_cast %106 : vector<1x16x8xf32> to vector<16x8xf32>
    %108 = vector.extract_strided_slice %105 {offsets = [0, 0], sizes = [8, 128], strides = [1, 1]} : vector<8x512xf32> to vector<8x128xf32>
    %cst_72 = arith.constant dense<0.000000e+00> : vector<16x128xf32>
    %109 = tpu.matmul %107, %108, %cst_72 {dimension_numbers = #tpu.dot_dimension_numbers<[1], [0], [0], [1], [0, 0, 1, 1], [], []>} : vector<16x8xf32>, vector<8x128xf32>, vector<16x128xf32> -> vector<16x128xf32>
    %110 = arith.addf %103, %109 : vector<16x128xf32>
    %c5_73 = arith.constant 5 : index
    %c0_74 = arith.constant 0 : index
    %c0_75 = arith.constant 0 : index
    %111 = vector.load %arg4[%c5_73, %c0_74, %c0_75] : memref<16x16x8xf32, #tpu.memory_space<vmem>>, vector<1x16x8xf32>
    %112 = vector.shape_cast %111 : vector<1x16x8xf32> to vector<16x8xf32>
    %113 = vector.extract_strided_slice %105 {offsets = [0, 128], sizes = [8, 128], strides = [1, 1]} : vector<8x512xf32> to vector<8x128xf32>
    %cst_76 = arith.constant dense<0.000000e+00> : vector<16x128xf32>
    %114 = tpu.matmul %112, %113, %cst_76 {dimension_numbers = #tpu.dot_dimension_numbers<[1], [0], [0], [1], [0, 0, 1, 1], [], []>} : vector<16x8xf32>, vector<8x128xf32>, vector<16x128xf32> -> vector<16x128xf32>
    %115 = arith.addf %110, %114 : vector<16x128xf32>
    %c6_77 = arith.constant 6 : index
    %c0_78 = arith.constant 0 : index
    %c0_79 = arith.constant 0 : index
    %116 = vector.load %arg4[%c6_77, %c0_78, %c0_79] : memref<16x16x8xf32, #tpu.memory_space<vmem>>, vector<1x16x8xf32>
    %117 = vector.shape_cast %116 : vector<1x16x8xf32> to vector<16x8xf32>
    %118 = vector.extract_strided_slice %105 {offsets = [0, 256], sizes = [8, 128], strides = [1, 1]} : vector<8x512xf32> to vector<8x128xf32>
    %cst_80 = arith.constant dense<0.000000e+00> : vector<16x128xf32>
    %119 = tpu.matmul %117, %118, %cst_80 {dimension_numbers = #tpu.dot_dimension_numbers<[1], [0], [0], [1], [0, 0, 1, 1], [], []>} : vector<16x8xf32>, vector<8x128xf32>, vector<16x128xf32> -> vector<16x128xf32>
    %120 = arith.addf %115, %119 : vector<16x128xf32>
    %c7_81 = arith.constant 7 : index
    %c0_82 = arith.constant 0 : index
    %c0_83 = arith.constant 0 : index
    %121 = vector.load %arg4[%c7_81, %c0_82, %c0_83] : memref<16x16x8xf32, #tpu.memory_space<vmem>>, vector<1x16x8xf32>
    %122 = vector.shape_cast %121 : vector<1x16x8xf32> to vector<16x8xf32>
    %123 = vector.extract_strided_slice %105 {offsets = [0, 384], sizes = [8, 128], strides = [1, 1]} : vector<8x512xf32> to vector<8x128xf32>
    %cst_84 = arith.constant dense<0.000000e+00> : vector<16x128xf32>
    %124 = tpu.matmul %122, %123, %cst_84 {dimension_numbers = #tpu.dot_dimension_numbers<[1], [0], [0], [1], [0, 0, 1, 1], [], []>} : vector<16x8xf32>, vector<8x128xf32>, vector<16x128xf32> -> vector<16x128xf32>
    %125 = arith.addf %120, %124 : vector<16x128xf32>
    %c0_85 = arith.constant 0 : index
    %c3328 = arith.constant 3328 : index
    %126 = vector.load %arg2[%c0_85, %c3328] : memref<256x6400xf32, #tpu.memory_space<vmem>>, vector<256x512xf32>
    %cst_86 = arith.constant dense<0.000000e+00> : vector<8x512xf32>
    %127 = tpu.matmul %80, %126, %cst_86 {dimension_numbers = #tpu.dot_dimension_numbers<[1], [0], [0], [1], [0, 0, 1, 1], [], []>} : vector<8x256xf32>, vector<256x512xf32>, vector<8x512xf32> -> vector<8x512xf32>
    %c8_87 = arith.constant 8 : index
    %c0_88 = arith.constant 0 : index
    %c0_89 = arith.constant 0 : index
    %128 = vector.load %arg4[%c8_87, %c0_88, %c0_89] : memref<16x16x8xf32, #tpu.memory_space<vmem>>, vector<1x16x8xf32>
    %129 = vector.shape_cast %128 : vector<1x16x8xf32> to vector<16x8xf32>
    %130 = vector.extract_strided_slice %127 {offsets = [0, 0], sizes = [8, 128], strides = [1, 1]} : vector<8x512xf32> to vector<8x128xf32>
    %cst_90 = arith.constant dense<0.000000e+00> : vector<16x128xf32>
    %131 = tpu.matmul %129, %130, %cst_90 {dimension_numbers = #tpu.dot_dimension_numbers<[1], [0], [0], [1], [0, 0, 1, 1], [], []>} : vector<16x8xf32>, vector<8x128xf32>, vector<16x128xf32> -> vector<16x128xf32>
    %132 = arith.addf %125, %131 : vector<16x128xf32>
    %c9 = arith.constant 9 : index
    %c0_91 = arith.constant 0 : index
    %c0_92 = arith.constant 0 : index
    %133 = vector.load %arg4[%c9, %c0_91, %c0_92] : memref<16x16x8xf32, #tpu.memory_space<vmem>>, vector<1x16x8xf32>
    %134 = vector.shape_cast %133 : vector<1x16x8xf32> to vector<16x8xf32>
    %135 = vector.extract_strided_slice %127 {offsets = [0, 128], sizes = [8, 128], strides = [1, 1]} : vector<8x512xf32> to vector<8x128xf32>
    %cst_93 = arith.constant dense<0.000000e+00> : vector<16x128xf32>
    %136 = tpu.matmul %134, %135, %cst_93 {dimension_numbers = #tpu.dot_dimension_numbers<[1], [0], [0], [1], [0, 0, 1, 1], [], []>} : vector<16x8xf32>, vector<8x128xf32>, vector<16x128xf32> -> vector<16x128xf32>
    %137 = arith.addf %132, %136 : vector<16x128xf32>
    %c10 = arith.constant 10 : index
    %c0_94 = arith.constant 0 : index
    %c0_95 = arith.constant 0 : index
    %138 = vector.load %arg4[%c10, %c0_94, %c0_95] : memref<16x16x8xf32, #tpu.memory_space<vmem>>, vector<1x16x8xf32>
    %139 = vector.shape_cast %138 : vector<1x16x8xf32> to vector<16x8xf32>
    %140 = vector.extract_strided_slice %127 {offsets = [0, 256], sizes = [8, 128], strides = [1, 1]} : vector<8x512xf32> to vector<8x128xf32>
    %cst_96 = arith.constant dense<0.000000e+00> : vector<16x128xf32>
    %141 = tpu.matmul %139, %140, %cst_96 {dimension_numbers = #tpu.dot_dimension_numbers<[1], [0], [0], [1], [0, 0, 1, 1], [], []>} : vector<16x8xf32>, vector<8x128xf32>, vector<16x128xf32> -> vector<16x128xf32>
    %142 = arith.addf %137, %141 : vector<16x128xf32>
    %c11 = arith.constant 11 : index
    %c0_97 = arith.constant 0 : index
    %c0_98 = arith.constant 0 : index
    %143 = vector.load %arg4[%c11, %c0_97, %c0_98] : memref<16x16x8xf32, #tpu.memory_space<vmem>>, vector<1x16x8xf32>
    %144 = vector.shape_cast %143 : vector<1x16x8xf32> to vector<16x8xf32>
    %145 = vector.extract_strided_slice %127 {offsets = [0, 384], sizes = [8, 128], strides = [1, 1]} : vector<8x512xf32> to vector<8x128xf32>
    %cst_99 = arith.constant dense<0.000000e+00> : vector<16x128xf32>
    %146 = tpu.matmul %144, %145, %cst_99 {dimension_numbers = #tpu.dot_dimension_numbers<[1], [0], [0], [1], [0, 0, 1, 1], [], []>} : vector<16x8xf32>, vector<8x128xf32>, vector<16x128xf32> -> vector<16x128xf32>
    %147 = arith.addf %142, %146 : vector<16x128xf32>
    %c0_100 = arith.constant 0 : index
    %c3840 = arith.constant 3840 : index
    %148 = vector.load %arg2[%c0_100, %c3840] : memref<256x6400xf32, #tpu.memory_space<vmem>>, vector<256x512xf32>
    %cst_101 = arith.constant dense<0.000000e+00> : vector<8x512xf32>
    %149 = tpu.matmul %80, %148, %cst_101 {dimension_numbers = #tpu.dot_dimension_numbers<[1], [0], [0], [1], [0, 0, 1, 1], [], []>} : vector<8x256xf32>, vector<256x512xf32>, vector<8x512xf32> -> vector<8x512xf32>
    %c12 = arith.constant 12 : index
    %c0_102 = arith.constant 0 : index
    %c0_103 = arith.constant 0 : index
    %150 = vector.load %arg4[%c12, %c0_102, %c0_103] : memref<16x16x8xf32, #tpu.memory_space<vmem>>, vector<1x16x8xf32>
    %151 = vector.shape_cast %150 : vector<1x16x8xf32> to vector<16x8xf32>
    %152 = vector.extract_strided_slice %149 {offsets = [0, 0], sizes = [8, 128], strides = [1, 1]} : vector<8x512xf32> to vector<8x128xf32>
    %cst_104 = arith.constant dense<0.000000e+00> : vector<16x128xf32>
    %153 = tpu.matmul %151, %152, %cst_104 {dimension_numbers = #tpu.dot_dimension_numbers<[1], [0], [0], [1], [0, 0, 1, 1], [], []>} : vector<16x8xf32>, vector<8x128xf32>, vector<16x128xf32> -> vector<16x128xf32>
    %154 = arith.addf %147, %153 : vector<16x128xf32>
    %c13 = arith.constant 13 : index
    %c0_105 = arith.constant 0 : index
    %c0_106 = arith.constant 0 : index
    %155 = vector.load %arg4[%c13, %c0_105, %c0_106] : memref<16x16x8xf32, #tpu.memory_space<vmem>>, vector<1x16x8xf32>
    %156 = vector.shape_cast %155 : vector<1x16x8xf32> to vector<16x8xf32>
    %157 = vector.extract_strided_slice %149 {offsets = [0, 128], sizes = [8, 128], strides = [1, 1]} : vector<8x512xf32> to vector<8x128xf32>
    %cst_107 = arith.constant dense<0.000000e+00> : vector<16x128xf32>
    %158 = tpu.matmul %156, %157, %cst_107 {dimension_numbers = #tpu.dot_dimension_numbers<[1], [0], [0], [1], [0, 0, 1, 1], [], []>} : vector<16x8xf32>, vector<8x128xf32>, vector<16x128xf32> -> vector<16x128xf32>
    %159 = arith.addf %154, %158 : vector<16x128xf32>
    %c14 = arith.constant 14 : index
    %c0_108 = arith.constant 0 : index
    %c0_109 = arith.constant 0 : index
    %160 = vector.load %arg4[%c14, %c0_108, %c0_109] : memref<16x16x8xf32, #tpu.memory_space<vmem>>, vector<1x16x8xf32>
    %161 = vector.shape_cast %160 : vector<1x16x8xf32> to vector<16x8xf32>
    %162 = vector.extract_strided_slice %149 {offsets = [0, 256], sizes = [8, 128], strides = [1, 1]} : vector<8x512xf32> to vector<8x128xf32>
    %cst_110 = arith.constant dense<0.000000e+00> : vector<16x128xf32>
    %163 = tpu.matmul %161, %162, %cst_110 {dimension_numbers = #tpu.dot_dimension_numbers<[1], [0], [0], [1], [0, 0, 1, 1], [], []>} : vector<16x8xf32>, vector<8x128xf32>, vector<16x128xf32> -> vector<16x128xf32>
    %164 = arith.addf %159, %163 : vector<16x128xf32>
    %c15 = arith.constant 15 : index
    %c0_111 = arith.constant 0 : index
    %c0_112 = arith.constant 0 : index
    %165 = vector.load %arg4[%c15, %c0_111, %c0_112] : memref<16x16x8xf32, #tpu.memory_space<vmem>>, vector<1x16x8xf32>
    %166 = vector.shape_cast %165 : vector<1x16x8xf32> to vector<16x8xf32>
    %167 = vector.extract_strided_slice %149 {offsets = [0, 384], sizes = [8, 128], strides = [1, 1]} : vector<8x512xf32> to vector<8x128xf32>
    %cst_113 = arith.constant dense<0.000000e+00> : vector<16x128xf32>
    %168 = tpu.matmul %166, %167, %cst_113 {dimension_numbers = #tpu.dot_dimension_numbers<[1], [0], [0], [1], [0, 0, 1, 1], [], []>} : vector<16x8xf32>, vector<8x128xf32>, vector<16x128xf32> -> vector<16x128xf32>
    %169 = arith.addf %164, %168 : vector<16x128xf32>
    %cst_114 = arith.constant dense<0.000000e+00> : vector<16xf32>
    %170 = vector.multi_reduction <add>, %169, %cst_114 [1] : vector<16x128xf32> to vector<16xf32>
    %171 = vector.shape_cast %170 : vector<16xf32> to vector<16x1xf32>
    %cst_115 = arith.constant 1.562500e-02 : f32
    %172 = vector.broadcast %cst_115 : f32 to vector<16x1xf32>
    %173 = arith.mulf %171, %172 : vector<16x1xf32>
    %174 = arith.mulf %169, %169 : vector<16x128xf32>
    %cst_116 = arith.constant dense<0.000000e+00> : vector<16xf32>
    %175 = vector.multi_reduction <add>, %174, %cst_116 [1] : vector<16x128xf32> to vector<16xf32>
    %176 = vector.shape_cast %175 : vector<16xf32> to vector<16x1xf32>
    %cst_117 = arith.constant 1.562500e-02 : f32
    %177 = vector.broadcast %cst_117 : f32 to vector<16x1xf32>
    %178 = arith.mulf %176, %177 : vector<16x1xf32>
    %179 = arith.mulf %173, %173 : vector<16x1xf32>
    %180 = arith.subf %178, %179 : vector<16x1xf32>
    %cst_118 = arith.constant 0.000000e+00 : f32
    %181 = vector.broadcast %cst_118 : f32 to vector<16x1xf32>
    %182 = arith.maximumf %180, %181 : vector<16x1xf32>
    %183 = vector.broadcast %173 : vector<16x1xf32> to vector<16x128xf32>
    %184 = arith.subf %169, %183 : vector<16x128xf32>
    %cst_119 = arith.constant 9.99999974E-6 : f32
    %185 = vector.broadcast %cst_119 : f32 to vector<16x1xf32>
    %186 = arith.addf %182, %185 : vector<16x1xf32>
    %187 = math.rsqrt %186 : vector<16x1xf32>
    %188 = vector.broadcast %187 : vector<16x1xf32> to vector<16x128xf32>
    %189 = arith.mulf %184, %188 : vector<16x128xf32>
    %cst_120 = arith.constant 0.000000e+00 : f32
    %190 = vector.broadcast %cst_120 : f32 to vector<16x128xf32>
    %191 = arith.cmpf oge, %189, %190 : vector<16x128xf32>
    %cst_121 = arith.constant 2.000000e-01 : f32
    %192 = vector.broadcast %cst_121 : f32 to vector<16x128xf32>
    %193 = arith.mulf %192, %189 : vector<16x128xf32>
    %194 = arith.select %191, %189, %193 : vector<16x128xi1>, vector<16x128xf32>
    %cst_122 = arith.constant 0.000000e+00 : f32
    %195 = vector.broadcast %cst_122 : f32 to vector<32x128xf32>
    %c0_123 = arith.constant 0 : index
    %c4352 = arith.constant 4352 : index
    %196 = vector.load %arg2[%c0_123, %c4352] : memref<256x6400xf32, #tpu.memory_space<vmem>>, vector<128x512xf32>
    %cst_124 = arith.constant dense<0.000000e+00> : vector<16x512xf32>
    %197 = tpu.matmul %194, %196, %cst_124 {dimension_numbers = #tpu.dot_dimension_numbers<[1], [0], [0], [1], [0, 0, 1, 1], [], []>} : vector<16x128xf32>, vector<128x512xf32>, vector<16x512xf32> -> vector<16x512xf32>
    %c0_125 = arith.constant 0 : index
    %c0_126 = arith.constant 0 : index
    %c0_127 = arith.constant 0 : index
    %198 = vector.load %arg5[%c0_125, %c0_126, %c0_127] : memref<16x32x16xf32, #tpu.memory_space<vmem>>, vector<1x32x16xf32>
    %199 = vector.shape_cast %198 : vector<1x32x16xf32> to vector<32x16xf32>
    %200 = vector.extract_strided_slice %197 {offsets = [0, 0], sizes = [16, 128], strides = [1, 1]} : vector<16x512xf32> to vector<16x128xf32>
    %cst_128 = arith.constant dense<0.000000e+00> : vector<32x128xf32>
    %201 = tpu.matmul %199, %200, %cst_128 {dimension_numbers = #tpu.dot_dimension_numbers<[1], [0], [0], [1], [0, 0, 1, 1], [], []>} : vector<32x16xf32>, vector<16x128xf32>, vector<32x128xf32> -> vector<32x128xf32>
    %202 = arith.addf %195, %201 : vector<32x128xf32>
    %c1_129 = arith.constant 1 : index
    %c0_130 = arith.constant 0 : index
    %c0_131 = arith.constant 0 : index
    %203 = vector.load %arg5[%c1_129, %c0_130, %c0_131] : memref<16x32x16xf32, #tpu.memory_space<vmem>>, vector<1x32x16xf32>
    %204 = vector.shape_cast %203 : vector<1x32x16xf32> to vector<32x16xf32>
    %205 = vector.extract_strided_slice %197 {offsets = [0, 128], sizes = [16, 128], strides = [1, 1]} : vector<16x512xf32> to vector<16x128xf32>
    %cst_132 = arith.constant dense<0.000000e+00> : vector<32x128xf32>
    %206 = tpu.matmul %204, %205, %cst_132 {dimension_numbers = #tpu.dot_dimension_numbers<[1], [0], [0], [1], [0, 0, 1, 1], [], []>} : vector<32x16xf32>, vector<16x128xf32>, vector<32x128xf32> -> vector<32x128xf32>
    %207 = arith.addf %202, %206 : vector<32x128xf32>
    %c2_133 = arith.constant 2 : index
    %c0_134 = arith.constant 0 : index
    %c0_135 = arith.constant 0 : index
    %208 = vector.load %arg5[%c2_133, %c0_134, %c0_135] : memref<16x32x16xf32, #tpu.memory_space<vmem>>, vector<1x32x16xf32>
    %209 = vector.shape_cast %208 : vector<1x32x16xf32> to vector<32x16xf32>
    %210 = vector.extract_strided_slice %197 {offsets = [0, 256], sizes = [16, 128], strides = [1, 1]} : vector<16x512xf32> to vector<16x128xf32>
    %cst_136 = arith.constant dense<0.000000e+00> : vector<32x128xf32>
    %211 = tpu.matmul %209, %210, %cst_136 {dimension_numbers = #tpu.dot_dimension_numbers<[1], [0], [0], [1], [0, 0, 1, 1], [], []>} : vector<32x16xf32>, vector<16x128xf32>, vector<32x128xf32> -> vector<32x128xf32>
    %212 = arith.addf %207, %211 : vector<32x128xf32>
    %c3_137 = arith.constant 3 : index
    %c0_138 = arith.constant 0 : index
    %c0_139 = arith.constant 0 : index
    %213 = vector.load %arg5[%c3_137, %c0_138, %c0_139] : memref<16x32x16xf32, #tpu.memory_space<vmem>>, vector<1x32x16xf32>
    %214 = vector.shape_cast %213 : vector<1x32x16xf32> to vector<32x16xf32>
    %215 = vector.extract_strided_slice %197 {offsets = [0, 384], sizes = [16, 128], strides = [1, 1]} : vector<16x512xf32> to vector<16x128xf32>
    %cst_140 = arith.constant dense<0.000000e+00> : vector<32x128xf32>
    %216 = tpu.matmul %214, %215, %cst_140 {dimension_numbers = #tpu.dot_dimension_numbers<[1], [0], [0], [1], [0, 0, 1, 1], [], []>} : vector<32x16xf32>, vector<16x128xf32>, vector<32x128xf32> -> vector<32x128xf32>
    %217 = arith.addf %212, %216 : vector<32x128xf32>
    %c0_141 = arith.constant 0 : index
    %c4864 = arith.constant 4864 : index
    %218 = vector.load %arg2[%c0_141, %c4864] : memref<256x6400xf32, #tpu.memory_space<vmem>>, vector<128x512xf32>
    %cst_142 = arith.constant dense<0.000000e+00> : vector<16x512xf32>
    %219 = tpu.matmul %194, %218, %cst_142 {dimension_numbers = #tpu.dot_dimension_numbers<[1], [0], [0], [1], [0, 0, 1, 1], [], []>} : vector<16x128xf32>, vector<128x512xf32>, vector<16x512xf32> -> vector<16x512xf32>
    %c4_143 = arith.constant 4 : index
    %c0_144 = arith.constant 0 : index
    %c0_145 = arith.constant 0 : index
    %220 = vector.load %arg5[%c4_143, %c0_144, %c0_145] : memref<16x32x16xf32, #tpu.memory_space<vmem>>, vector<1x32x16xf32>
    %221 = vector.shape_cast %220 : vector<1x32x16xf32> to vector<32x16xf32>
    %222 = vector.extract_strided_slice %219 {offsets = [0, 0], sizes = [16, 128], strides = [1, 1]} : vector<16x512xf32> to vector<16x128xf32>
    %cst_146 = arith.constant dense<0.000000e+00> : vector<32x128xf32>
    %223 = tpu.matmul %221, %222, %cst_146 {dimension_numbers = #tpu.dot_dimension_numbers<[1], [0], [0], [1], [0, 0, 1, 1], [], []>} : vector<32x16xf32>, vector<16x128xf32>, vector<32x128xf32> -> vector<32x128xf32>
    %224 = arith.addf %217, %223 : vector<32x128xf32>
    %c5_147 = arith.constant 5 : index
    %c0_148 = arith.constant 0 : index
    %c0_149 = arith.constant 0 : index
    %225 = vector.load %arg5[%c5_147, %c0_148, %c0_149] : memref<16x32x16xf32, #tpu.memory_space<vmem>>, vector<1x32x16xf32>
    %226 = vector.shape_cast %225 : vector<1x32x16xf32> to vector<32x16xf32>
    %227 = vector.extract_strided_slice %219 {offsets = [0, 128], sizes = [16, 128], strides = [1, 1]} : vector<16x512xf32> to vector<16x128xf32>
    %cst_150 = arith.constant dense<0.000000e+00> : vector<32x128xf32>
    %228 = tpu.matmul %226, %227, %cst_150 {dimension_numbers = #tpu.dot_dimension_numbers<[1], [0], [0], [1], [0, 0, 1, 1], [], []>} : vector<32x16xf32>, vector<16x128xf32>, vector<32x128xf32> -> vector<32x128xf32>
    %229 = arith.addf %224, %228 : vector<32x128xf32>
    %c6_151 = arith.constant 6 : index
    %c0_152 = arith.constant 0 : index
    %c0_153 = arith.constant 0 : index
    %230 = vector.load %arg5[%c6_151, %c0_152, %c0_153] : memref<16x32x16xf32, #tpu.memory_space<vmem>>, vector<1x32x16xf32>
    %231 = vector.shape_cast %230 : vector<1x32x16xf32> to vector<32x16xf32>
    %232 = vector.extract_strided_slice %219 {offsets = [0, 256], sizes = [16, 128], strides = [1, 1]} : vector<16x512xf32> to vector<16x128xf32>
    %cst_154 = arith.constant dense<0.000000e+00> : vector<32x128xf32>
    %233 = tpu.matmul %231, %232, %cst_154 {dimension_numbers = #tpu.dot_dimension_numbers<[1], [0], [0], [1], [0, 0, 1, 1], [], []>} : vector<32x16xf32>, vector<16x128xf32>, vector<32x128xf32> -> vector<32x128xf32>
    %234 = arith.addf %229, %233 : vector<32x128xf32>
    %c7_155 = arith.constant 7 : index
    %c0_156 = arith.constant 0 : index
    %c0_157 = arith.constant 0 : index
    %235 = vector.load %arg5[%c7_155, %c0_156, %c0_157] : memref<16x32x16xf32, #tpu.memory_space<vmem>>, vector<1x32x16xf32>
    %236 = vector.shape_cast %235 : vector<1x32x16xf32> to vector<32x16xf32>
    %237 = vector.extract_strided_slice %219 {offsets = [0, 384], sizes = [16, 128], strides = [1, 1]} : vector<16x512xf32> to vector<16x128xf32>
    %cst_158 = arith.constant dense<0.000000e+00> : vector<32x128xf32>
    %238 = tpu.matmul %236, %237, %cst_158 {dimension_numbers = #tpu.dot_dimension_numbers<[1], [0], [0], [1], [0, 0, 1, 1], [], []>} : vector<32x16xf32>, vector<16x128xf32>, vector<32x128xf32> -> vector<32x128xf32>
    %239 = arith.addf %234, %238 : vector<32x128xf32>
    %c0_159 = arith.constant 0 : index
    %c5376 = arith.constant 5376 : index
    %240 = vector.load %arg2[%c0_159, %c5376] : memref<256x6400xf32, #tpu.memory_space<vmem>>, vector<128x512xf32>
    %cst_160 = arith.constant dense<0.000000e+00> : vector<16x512xf32>
    %241 = tpu.matmul %194, %240, %cst_160 {dimension_numbers = #tpu.dot_dimension_numbers<[1], [0], [0], [1], [0, 0, 1, 1], [], []>} : vector<16x128xf32>, vector<128x512xf32>, vector<16x512xf32> -> vector<16x512xf32>
    %c8_161 = arith.constant 8 : index
    %c0_162 = arith.constant 0 : index
    %c0_163 = arith.constant 0 : index
    %242 = vector.load %arg5[%c8_161, %c0_162, %c0_163] : memref<16x32x16xf32, #tpu.memory_space<vmem>>, vector<1x32x16xf32>
    %243 = vector.shape_cast %242 : vector<1x32x16xf32> to vector<32x16xf32>
    %244 = vector.extract_strided_slice %241 {offsets = [0, 0], sizes = [16, 128], strides = [1, 1]} : vector<16x512xf32> to vector<16x128xf32>
    %cst_164 = arith.constant dense<0.000000e+00> : vector<32x128xf32>
    %245 = tpu.matmul %243, %244, %cst_164 {dimension_numbers = #tpu.dot_dimension_numbers<[1], [0], [0], [1], [0, 0, 1, 1], [], []>} : vector<32x16xf32>, vector<16x128xf32>, vector<32x128xf32> -> vector<32x128xf32>
    %246 = arith.addf %239, %245 : vector<32x128xf32>
    %c9_165 = arith.constant 9 : index
    %c0_166 = arith.constant 0 : index
    %c0_167 = arith.constant 0 : index
    %247 = vector.load %arg5[%c9_165, %c0_166, %c0_167] : memref<16x32x16xf32, #tpu.memory_space<vmem>>, vector<1x32x16xf32>
    %248 = vector.shape_cast %247 : vector<1x32x16xf32> to vector<32x16xf32>
    %249 = vector.extract_strided_slice %241 {offsets = [0, 128], sizes = [16, 128], strides = [1, 1]} : vector<16x512xf32> to vector<16x128xf32>
    %cst_168 = arith.constant dense<0.000000e+00> : vector<32x128xf32>
    %250 = tpu.matmul %248, %249, %cst_168 {dimension_numbers = #tpu.dot_dimension_numbers<[1], [0], [0], [1], [0, 0, 1, 1], [], []>} : vector<32x16xf32>, vector<16x128xf32>, vector<32x128xf32> -> vector<32x128xf32>
    %251 = arith.addf %246, %250 : vector<32x128xf32>
    %c10_169 = arith.constant 10 : index
    %c0_170 = arith.constant 0 : index
    %c0_171 = arith.constant 0 : index
    %252 = vector.load %arg5[%c10_169, %c0_170, %c0_171] : memref<16x32x16xf32, #tpu.memory_space<vmem>>, vector<1x32x16xf32>
    %253 = vector.shape_cast %252 : vector<1x32x16xf32> to vector<32x16xf32>
    %254 = vector.extract_strided_slice %241 {offsets = [0, 256], sizes = [16, 128], strides = [1, 1]} : vector<16x512xf32> to vector<16x128xf32>
    %cst_172 = arith.constant dense<0.000000e+00> : vector<32x128xf32>
    %255 = tpu.matmul %253, %254, %cst_172 {dimension_numbers = #tpu.dot_dimension_numbers<[1], [0], [0], [1], [0, 0, 1, 1], [], []>} : vector<32x16xf32>, vector<16x128xf32>, vector<32x128xf32> -> vector<32x128xf32>
    %256 = arith.addf %251, %255 : vector<32x128xf32>
    %c11_173 = arith.constant 11 : index
    %c0_174 = arith.constant 0 : index
    %c0_175 = arith.constant 0 : index
    %257 = vector.load %arg5[%c11_173, %c0_174, %c0_175] : memref<16x32x16xf32, #tpu.memory_space<vmem>>, vector<1x32x16xf32>
    %258 = vector.shape_cast %257 : vector<1x32x16xf32> to vector<32x16xf32>
    %259 = vector.extract_strided_slice %241 {offsets = [0, 384], sizes = [16, 128], strides = [1, 1]} : vector<16x512xf32> to vector<16x128xf32>
    %cst_176 = arith.constant dense<0.000000e+00> : vector<32x128xf32>
    %260 = tpu.matmul %258, %259, %cst_176 {dimension_numbers = #tpu.dot_dimension_numbers<[1], [0], [0], [1], [0, 0, 1, 1], [], []>} : vector<32x16xf32>, vector<16x128xf32>, vector<32x128xf32> -> vector<32x128xf32>
    %261 = arith.addf %256, %260 : vector<32x128xf32>
    %c0_177 = arith.constant 0 : index
    %c5888 = arith.constant 5888 : index
    %262 = vector.load %arg2[%c0_177, %c5888] : memref<256x6400xf32, #tpu.memory_space<vmem>>, vector<128x512xf32>
    %cst_178 = arith.constant dense<0.000000e+00> : vector<16x512xf32>
    %263 = tpu.matmul %194, %262, %cst_178 {dimension_numbers = #tpu.dot_dimension_numbers<[1], [0], [0], [1], [0, 0, 1, 1], [], []>} : vector<16x128xf32>, vector<128x512xf32>, vector<16x512xf32> -> vector<16x512xf32>
    %c12_179 = arith.constant 12 : index
    %c0_180 = arith.constant 0 : index
    %c0_181 = arith.constant 0 : index
    %264 = vector.load %arg5[%c12_179, %c0_180, %c0_181] : memref<16x32x16xf32, #tpu.memory_space<vmem>>, vector<1x32x16xf32>
    %265 = vector.shape_cast %264 : vector<1x32x16xf32> to vector<32x16xf32>
    %266 = vector.extract_strided_slice %263 {offsets = [0, 0], sizes = [16, 128], strides = [1, 1]} : vector<16x512xf32> to vector<16x128xf32>
    %cst_182 = arith.constant dense<0.000000e+00> : vector<32x128xf32>
    %267 = tpu.matmul %265, %266, %cst_182 {dimension_numbers = #tpu.dot_dimension_numbers<[1], [0], [0], [1], [0, 0, 1, 1], [], []>} : vector<32x16xf32>, vector<16x128xf32>, vector<32x128xf32> -> vector<32x128xf32>
    %268 = arith.addf %261, %267 : vector<32x128xf32>
    %c13_183 = arith.constant 13 : index
    %c0_184 = arith.constant 0 : index
    %c0_185 = arith.constant 0 : index
    %269 = vector.load %arg5[%c13_183, %c0_184, %c0_185] : memref<16x32x16xf32, #tpu.memory_space<vmem>>, vector<1x32x16xf32>
    %270 = vector.shape_cast %269 : vector<1x32x16xf32> to vector<32x16xf32>
    %271 = vector.extract_strided_slice %263 {offsets = [0, 128], sizes = [16, 128], strides = [1, 1]} : vector<16x512xf32> to vector<16x128xf32>
    %cst_186 = arith.constant dense<0.000000e+00> : vector<32x128xf32>
    %272 = tpu.matmul %270, %271, %cst_186 {dimension_numbers = #tpu.dot_dimension_numbers<[1], [0], [0], [1], [0, 0, 1, 1], [], []>} : vector<32x16xf32>, vector<16x128xf32>, vector<32x128xf32> -> vector<32x128xf32>
    %273 = arith.addf %268, %272 : vector<32x128xf32>
    %c14_187 = arith.constant 14 : index
    %c0_188 = arith.constant 0 : index
    %c0_189 = arith.constant 0 : index
    %274 = vector.load %arg5[%c14_187, %c0_188, %c0_189] : memref<16x32x16xf32, #tpu.memory_space<vmem>>, vector<1x32x16xf32>
    %275 = vector.shape_cast %274 : vector<1x32x16xf32> to vector<32x16xf32>
    %276 = vector.extract_strided_slice %263 {offsets = [0, 256], sizes = [16, 128], strides = [1, 1]} : vector<16x512xf32> to vector<16x128xf32>
    %cst_190 = arith.constant dense<0.000000e+00> : vector<32x128xf32>
    %277 = tpu.matmul %275, %276, %cst_190 {dimension_numbers = #tpu.dot_dimension_numbers<[1], [0], [0], [1], [0, 0, 1, 1], [], []>} : vector<32x16xf32>, vector<16x128xf32>, vector<32x128xf32> -> vector<32x128xf32>
    %278 = arith.addf %273, %277 : vector<32x128xf32>
    %c15_191 = arith.constant 15 : index
    %c0_192 = arith.constant 0 : index
    %c0_193 = arith.constant 0 : index
    %279 = vector.load %arg5[%c15_191, %c0_192, %c0_193] : memref<16x32x16xf32, #tpu.memory_space<vmem>>, vector<1x32x16xf32>
    %280 = vector.shape_cast %279 : vector<1x32x16xf32> to vector<32x16xf32>
    %281 = vector.extract_strided_slice %263 {offsets = [0, 384], sizes = [16, 128], strides = [1, 1]} : vector<16x512xf32> to vector<16x128xf32>
    %cst_194 = arith.constant dense<0.000000e+00> : vector<32x128xf32>
    %282 = tpu.matmul %280, %281, %cst_194 {dimension_numbers = #tpu.dot_dimension_numbers<[1], [0], [0], [1], [0, 0, 1, 1], [], []>} : vector<32x16xf32>, vector<16x128xf32>, vector<32x128xf32> -> vector<32x128xf32>
    %283 = arith.addf %278, %282 : vector<32x128xf32>
    %cst_195 = arith.constant dense<0.000000e+00> : vector<32xf32>
    %284 = vector.multi_reduction <add>, %283, %cst_195 [1] : vector<32x128xf32> to vector<32xf32>
    %285 = vector.shape_cast %284 : vector<32xf32> to vector<32x1xf32>
    %cst_196 = arith.constant 6.250000e-02 : f32
    %286 = vector.broadcast %cst_196 : f32 to vector<32x1xf32>
    %287 = arith.mulf %285, %286 : vector<32x1xf32>
    %288 = arith.mulf %283, %283 : vector<32x128xf32>
    %cst_197 = arith.constant dense<0.000000e+00> : vector<32xf32>
    %289 = vector.multi_reduction <add>, %288, %cst_197 [1] : vector<32x128xf32> to vector<32xf32>
    %290 = vector.shape_cast %289 : vector<32xf32> to vector<32x1xf32>
    %cst_198 = arith.constant 6.250000e-02 : f32
    %291 = vector.broadcast %cst_198 : f32 to vector<32x1xf32>
    %292 = arith.mulf %290, %291 : vector<32x1xf32>
    %293 = arith.mulf %287, %287 : vector<32x1xf32>
    %294 = arith.subf %292, %293 : vector<32x1xf32>
    %cst_199 = arith.constant 0.000000e+00 : f32
    %295 = vector.broadcast %cst_199 : f32 to vector<32x1xf32>
    %296 = arith.maximumf %294, %295 : vector<32x1xf32>
    %297 = vector.broadcast %287 : vector<32x1xf32> to vector<32x128xf32>
    %298 = arith.subf %283, %297 : vector<32x128xf32>
    %cst_200 = arith.constant 9.99999974E-6 : f32
    %299 = vector.broadcast %cst_200 : f32 to vector<32x1xf32>
    %300 = arith.addf %296, %299 : vector<32x1xf32>
    %301 = math.rsqrt %300 : vector<32x1xf32>
    %302 = vector.broadcast %301 : vector<32x1xf32> to vector<32x128xf32>
    %303 = arith.mulf %298, %302 : vector<32x128xf32>
    %cst_201 = arith.constant 0.000000e+00 : f32
    %304 = vector.broadcast %cst_201 : f32 to vector<32x128xf32>
    %305 = arith.cmpf oge, %303, %304 : vector<32x128xf32>
    %cst_202 = arith.constant 2.000000e-01 : f32
    %306 = vector.broadcast %cst_202 : f32 to vector<32x128xf32>
    %307 = arith.mulf %306, %303 : vector<32x128xf32>
    %308 = arith.select %305, %303, %307 : vector<32x128xi1>, vector<32x128xf32>
    %c0_203 = arith.constant 0 : index
    %c0_204 = arith.constant 0 : index
    %309 = vector.load %arg6[%c0_203, %c0_204] : memref<38x128xf32, #tpu.memory_space<vmem>>, vector<32x128xf32>
    %c32 = arith.constant 32 : index
    %c0_205 = arith.constant 0 : index
    %310 = vector.load %arg6[%c32, %c0_205] : memref<38x128xf32, #tpu.memory_space<vmem>>, vector<5x32xf32>
    %c37 = arith.constant 37 : index
    %c0_206 = arith.constant 0 : index
    %311 = vector.load %arg6[%c37, %c0_206] : memref<38x128xf32, #tpu.memory_space<vmem>>, vector<1x32xf32>
    %312 = arith.mulf %308, %309 : vector<32x128xf32>
    %cst_207 = arith.constant dense<0.000000e+00> : vector<32xf32>
    %313 = vector.multi_reduction <add>, %312, %cst_207 [1] : vector<32x128xf32> to vector<32xf32>
    %314 = vector.shape_cast %313 : vector<32xf32> to vector<32x1xf32>
    %cst_208 = arith.constant dense<0.000000e+00> : vector<1x1xf32>
    %315 = tpu.matmul %311, %314, %cst_208 {dimension_numbers = #tpu.dot_dimension_numbers<[1], [0], [0], [1], [0, 0, 1, 1], [], []>} : vector<1x32xf32>, vector<32x1xf32>, vector<1x1xf32> -> vector<1x1xf32>
    %316 = vector.extract_strided_slice %310 {offsets = [0, 0], sizes = [1, 32], strides = [1, 1]} : vector<5x32xf32> to vector<1x32xf32>
    %317 = vector.broadcast %315 : vector<1x1xf32> to vector<1x32xf32>
    %318 = arith.mulf %317, %316 : vector<1x32xf32>
    %319 = vector.extract_strided_slice %310 {offsets = [1, 0], sizes = [1, 32], strides = [1, 1]} : vector<5x32xf32> to vector<1x32xf32>
    %320 = vector.broadcast %3 : vector<1x1xf32> to vector<1x32xf32>
    %321 = arith.mulf %320, %319 : vector<1x32xf32>
    %322 = arith.addf %318, %321 : vector<1x32xf32>
    %323 = vector.extract_strided_slice %310 {offsets = [2, 0], sizes = [1, 32], strides = [1, 1]} : vector<5x32xf32> to vector<1x32xf32>
    %324 = arith.addf %322, %323 : vector<1x32xf32>
    %325 = vector.extract_strided_slice %310 {offsets = [3, 0], sizes = [1, 32], strides = [1, 1]} : vector<5x32xf32> to vector<1x32xf32>
    %326 = arith.mulf %324, %325 : vector<1x32xf32>
    %cst_209 = arith.constant dense<0.000000e+00> : vector<1xf32>
    %327 = vector.multi_reduction <add>, %326, %cst_209 [1] : vector<1x32xf32> to vector<1xf32>
    %328 = vector.shape_cast %327 : vector<1xf32> to vector<1x1xf32>
    %329 = vector.extract_strided_slice %310 {offsets = [4, 0], sizes = [1, 1], strides = [1, 1]} : vector<5x32xf32> to vector<1x1xf32>
    %330 = arith.addf %328, %329 : vector<1x1xf32>
    %c0_210 = arith.constant 0 : index
    %c0_211 = arith.constant 0 : index
    %c0_212 = arith.constant 0 : index
    %331 = vector.load %arg7[%c0_210, %c0_211, %c0_212] : memref<1x1x1xf32, #tpu.memory_space<vmem>>, vector<1x1x1xf32>
    %332 = vector.shape_cast %331 : vector<1x1x1xf32> to vector<1x1xf32>
    %333 = vector.shape_cast %330 : vector<1x1xf32> to vector<1x1x1xf32>
    tpu.vector_store %arg7[%c0_210, %c0_211, %c0_212], %333 {strides = array<i32>} : memref<1x1x1xf32, #tpu.memory_space<vmem>>, vector<1x1x1xf32>,
    return
  }
  func.func @transform_0(%arg0: i32) -> (i32, i32, i32) {
    %c0_i32 = arith.constant 0 : i32
    %c0_i32_0 = arith.constant 0 : i32
    %c0_i32_1 = arith.constant 0 : i32
    return %arg0, %c0_i32, %c0_i32_0 : i32, i32, i32
  }
  func.func @transform_1(%arg0: i32) -> (i32, i32) {
    %c0_i32 = arith.constant 0 : i32
    %c0_i32_0 = arith.constant 0 : i32
    %c0_i32_1 = arith.constant 0 : i32
    return %c0_i32, %c0_i32_0 : i32, i32
  }
  func.func @transform_2(%arg0: i32) -> (i32, i32, i32) {
    %c0_i32 = arith.constant 0 : i32
    %c0_i32_0 = arith.constant 0 : i32
    %c0_i32_1 = arith.constant 0 : i32
    %c0_i32_2 = arith.constant 0 : i32
    return %c0_i32, %c0_i32_0, %c0_i32_1 : i32, i32, i32
  }
  func.func @transform_3(%arg0: i32) -> (i32, i32, i32) {
    %c0_i32 = arith.constant 0 : i32
    %c0_i32_0 = arith.constant 0 : i32
    %c0_i32_1 = arith.constant 0 : i32
    %c0_i32_2 = arith.constant 0 : i32
    return %c0_i32, %c0_i32_0, %c0_i32_1 : i32, i32, i32
  }
  func.func @transform_4(%arg0: i32) -> (i32, i32, i32) {
    %c0_i32 = arith.constant 0 : i32
    %c0_i32_0 = arith.constant 0 : i32
    %c0_i32_1 = arith.constant 0 : i32
    %c0_i32_2 = arith.constant 0 : i32
    return %c0_i32, %c0_i32_0, %c0_i32_1 : i32, i32, i32
  }
  func.func @transform_5(%arg0: i32) -> (i32, i32) {
    %c0_i32 = arith.constant 0 : i32
    %c0_i32_0 = arith.constant 0 : i32
    %c0_i32_1 = arith.constant 0 : i32
    return %c0_i32, %c0_i32_0 : i32, i32
  }
  func.func @transform_6(%arg0: i32) -> (i32, i32, i32) {
    %c0_i32 = arith.constant 0 : i32
    %c0_i32_0 = arith.constant 0 : i32
    %c0_i32_1 = arith.constant 0 : i32
    return %arg0, %c0_i32, %c0_i32_0 : i32, i32, i32
  }
}

</mosaic_0001>

<llo_original>
// kernel: discriminator_forward.1
$region0: #{discriminator_forward.1}
  #allocation0 [shape = 'u32[]', space=smem, size = 0x4, offset = 0x4, fixed_abs, tag = 'smem constant byte address 0x4 - core index']
  #allocation1 [shape = 'u32[144,128]{1,0:T(1,128)}', space=vmem, size = 0x12000, scoped, tag = 'internal scratch']
  %s0 = inlined_call_operand.vmem [shape: f32[2,4,256], index: 0, kind: input, shape index: {}]
  %s1 = inlined_call_operand.hbm [shape: f32[256,6400], index: 1, kind: input, shape index: {}]
  %s2 = inlined_call_operand.vmem [shape: f32[9,8,3], index: 2, kind: input, shape index: {}]
  %s3 = inlined_call_operand.vmem [shape: f32[16,16,8], index: 3, kind: input, shape index: {}]
  %s4 = inlined_call_operand.vmem [shape: f32[16,32,16], index: 4, kind: input, shape index: {}]
  %s5 = inlined_call_operand.vmem [shape: f32[38,128], index: 5, kind: input, shape index: {}]
  %s6 = inlined_call_operand.vmem [shape: f32[2,1,1], index: 6, kind: output, shape index: {}]
  %s7 = sld [smem:[#allocation0]]
  $region61: #{discriminator_forward.1} parent=0
    _
  %s9 = ssub.s32 1, %s7
  %s10 = scalar_select 0, %s9, %s7
  $region1: #{discriminator_forward.1} parent=0
    #allocation2 [shape = 'u8[6553600]{0}', space=vmem, size = 0x640000, scoped, tag = 'input window, operand 1, single buffered']
    #allocation3 [shape = 's32[2]{0}', space=sflag, size = 0x8, scoped, tag = 'scoped memory for discriminator_forward.1']
    %11 = vsyncpa [#allocation3], 0
    loop: start=0, step=1, limit=4
    $region2: #{discriminator_forward.1} parent=1 // loop_pre_header
      _
    $region3: #{discriminator_forward.1} parent=1 // loop_header
      %s13 = sphi 0, %s17
      %p14 = scmp.ge.s32.totalorder %s13, 4
      %s23 = sphi 0, %s25
      %s26 = sphi 0, %s23
      %s27 = sphi 0, %s26
      %s43 = sphi 0, %s27
      %s47 = sphi 0, %s47
      %s49 = sphi 0, %s47
      %s50 = sphi 0, %s49
      %s64 = sphi 0, %s50
      %s68 = sphi 0, %s68
      %s70 = sphi 0, %s68
      %s71 = sphi 0, %s70
      %s85 = sphi 0, %s71
      %s89 = sphi 0, %s89
      %s91 = sphi 0, %s89
      %s92 = sphi 0, %s91
      %s106 = sphi 0, %s92
      %s110 = sphi 0, %s110
      %s112 = sphi 0, %s110
      %s113 = sphi 0, %s112
      %s127 = sphi 0, %s113
      %s131 = sphi 0, %s131
      %s133 = sphi 0, %s131
      %s134 = sphi 0, %s133
      %s148 = sphi 0, %s134
      %s154 = sphi 0, %s156
      %s157 = sphi 0, %s154
      %s158 = sphi 0, %s157
      %s174 = sphi 0, %s158
    $region4: #{discriminator_forward.1} parent=1 // loop_header_branch
      %16 = sbr.rel (%p14) target = $region8
    $region5: #{discriminator_forward.1} parent=1 // loop_body
      %s18 = ssub.s32 %s13, 1
      %s19 = ssub.s32 %s13, 2
      %s20 = sadd.s32 %s13, 1
      %s21 = ssub.s32 %s13, %s20
      %p22 = scmp.eq.s32.totalorder %s21, 0
      %s24 = sadd.s32 %s23, 1
      %s25 = scalar_select %p22, %s23, %s24
      %p28 = pneg %p22
      %p29 = scmp.eq.s32.totalorder %s13, 1
      %p30 = por %p28, %p29
      %p31 = scmp.ne.s32.totalorder %s23, %s26
      %p32 = scmp.eq.s32.totalorder %s13, 0
      %p33 = por %p31, %p32
      %p34 = scmp.ne.s32.totalorder %s23, %s26
      %p35 = scmp.eq.s32.totalorder %s18, 1
      %p36 = por %p34, %p35
      %p37 = scmp.ne.s32.totalorder %s26, %s27
      %p38 = scmp.eq.s32.totalorder %s18, 0
      %p39 = por %p37, %p38
      %p40 = scmp.ne.s32.totalorder %s26, %s27
      %p41 = scmp.eq.s32.totalorder %s19, 1
      %p42 = por %p40, %p41
      %p44 = scmp.ne.s32.totalorder %s27, %s43
      %p45 = scmp.eq.s32.totalorder %s19, 0
      %p46 = por %p44, %p45
      %s48 = sadd.s32 %s47, 1
      %p51 = scmp.eq.s32.totalorder %s13, 1
      %p52 = scmp.ne.s32.totalorder %s47, %s49
      %p53 = scmp.eq.s32.totalorder %s13, 0
      %p54 = por %p52, %p53
      %p55 = scmp.ne.s32.totalorder %s47, %s49
      %p56 = scmp.eq.s32.totalorder %s18, 1
      %p57 = por %p55, %p56
      %p58 = scmp.ne.s32.totalorder %s49, %s50
      %p59 = scmp.eq.s32.totalorder %s18, 0
      %p60 = por %p58, %p59
      %p61 = scmp.ne.s32.totalorder %s49, %s50
      %p62 = scmp.eq.s32.totalorder %s19, 1
      %p63 = por %p61, %p62
      %p65 = scmp.ne.s32.totalorder %s50, %s64
      %p66 = scmp.eq.s32.totalorder %s19, 0
      %p67 = por %p65, %p66
      %s69 = sadd.s32 %s68, 1
      %p72 = scmp.eq.s32.totalorder %s13, 1
      %p73 = scmp.ne.s32.totalorder %s68, %s70
      %p74 = scmp.eq.s32.totalorder %s13, 0
      %p75 = por %p73, %p74
      %p76 = scmp.ne.s32.totalorder %s68, %s70
      %p77 = scmp.eq.s32.totalorder %s18, 1
      %p78 = por %p76, %p77
      %p79 = scmp.ne.s32.totalorder %s70, %s71
      %p80 = scmp.eq.s32.totalorder %s18, 0
      %p81 = por %p79, %p80
      %p82 = scmp.ne.s32.totalorder %s70, %s71
      %p83 = scmp.eq.s32.totalorder %s19, 1
      %p84 = por %p82, %p83
      %p86 = scmp.ne.s32.totalorder %s71, %s85
      %p87 = scmp.eq.s32.totalorder %s19, 0
      %p88 = por %p86, %p87
      %s90 = sadd.s32 %s89, 1
      %p93 = scmp.eq.s32.totalorder %s13, 1
      %p94 = scmp.ne.s32.totalorder %s89, %s91
      %p95 = scmp.eq.s32.totalorder %s13, 0
      %p96 = por %p94, %p95
      %p97 = scmp.ne.s32.totalorder %s89, %s91
      %p98 = scmp.eq.s32.totalorder %s18, 1
      %p99 = por %p97, %p98
      %p100 = scmp.ne.s32.totalorder %s91, %s92
      %p101 = scmp.eq.s32.totalorder %s18, 0
      %p102 = por %p100, %p101
      %p103 = scmp.ne.s32.totalorder %s91, %s92
      %p104 = scmp.eq.s32.totalorder %s19, 1
      %p105 = por %p103, %p104
      %p107 = scmp.ne.s32.totalorder %s92, %s106
      %p108 = scmp.eq.s32.totalorder %s19, 0
      %p109 = por %p107, %p108
      %s111 = sadd.s32 %s110, 1
      %p114 = scmp.eq.s32.totalorder %s13, 1
      %p115 = scmp.ne.s32.totalorder %s110, %s112
      %p116 = scmp.eq.s32.totalorder %s13, 0
      %p117 = por %p115, %p116
      %p118 = scmp.ne.s32.totalorder %s110, %s112
      %p119 = scmp.eq.s32.totalorder %s18, 1
      %p120 = por %p118, %p119
      %p121 = scmp.ne.s32.totalorder %s112, %s113
      %p122 = scmp.eq.s32.totalorder %s18, 0
      %p123 = por %p121, %p122
      %p124 = scmp.ne.s32.totalorder %s112, %s113
      %p125 = scmp.eq.s32.totalorder %s19, 1
      %p126 = por %p124, %p125
      %p128 = scmp.ne.s32.totalorder %s113, %s127
      %p129 = scmp.eq.s32.totalorder %s19, 0
      %p130 = por %p128, %p129
      %s132 = sadd.s32 %s131, 1
      %p135 = scmp.eq.s32.totalorder %s13, 1
      %p136 = scmp.ne.s32.totalorder %s131, %s133
      %p137 = scmp.eq.s32.totalorder %s13, 0
      %p138 = por %p136, %p137
      %p139 = scmp.ne.s32.totalorder %s131, %s133
      %p140 = scmp.eq.s32.totalorder %s18, 1
      %p141 = por %p139, %p140
      %p142 = scmp.ne.s32.totalorder %s133, %s134
      %p143 = scmp.eq.s32.totalorder %s18, 0
      %p144 = por %p142, %p143
      %p145 = scmp.ne.s32.totalorder %s133, %s134
      %p146 = scmp.eq.s32.totalorder %s19, 1
      %p147 = por %p145, %p146
      %p149 = scmp.ne.s32.totalorder %s134, %s148
      %p150 = scmp.eq.s32.totalorder %s19, 0
      %p151 = por %p149, %p150
      %s152 = ssub.s32 %s13, %s20
      %p153 = scmp.eq.s32.totalorder %s152, 0
      %s155 = sadd.s32 %s154, 1
      %s156 = scalar_select %p153, %s154, %s155
      %p159 = pneg %p153
      %p160 = scmp.eq.s32.totalorder %s13, 1
      %p161 = por %p159, %p160
      %p162 = scmp.ne.s32.totalorder %s154, %s157
      %p163 = scmp.eq.s32.totalorder %s13, 0
      %p164 = por %p162, %p163
      %p165 = scmp.ne.s32.totalorder %s154, %s157
      %p166 = scmp.eq.s32.totalorder %s18, 1
      %p167 = por %p165, %p166
      %p168 = scmp.ne.s32.totalorder %s157, %s158
      %p169 = scmp.eq.s32.totalorder %s18, 0
      %p170 = por %p168, %p169
      %p171 = scmp.ne.s32.totalorder %s157, %s158
      %p172 = scmp.eq.s32.totalorder %s19, 1
      %p173 = por %p171, %p172
      %p175 = scmp.ne.s32.totalorder %s158, %s174
      %p176 = scmp.eq.s32.totalorder %s19, 0
      %p177 = por %p175, %p176
      %p178 = scmp.le.s32.totalorder 1, %s13
      %p179 = scmp.lt.s32.totalorder %s13, 3
      %p180 = pnand %p178, %p179
      %p181 = pneg %p180
      // Predicated region
      $region9: #{discriminator_forward.1} parent=5 // pred_check
        _
      $region10: #{discriminator_forward.1} parent=5 // pred_check_branch
        %183 = sbr.rel (%p180) target = $region12
      $region11: #{discriminator_forward.1} parent=5 // pred_region
        %s184 = ssub.s32 %s13, 1
        // Predicated region
        $region13: #{discriminator_forward.1} parent=11 // pred_check
          %p185 = pneg %p60
        $region14: #{discriminator_forward.1} parent=11 // pred_check_branch
          %187 = sbr.rel (%p185) target = $region16
        $region15: #{discriminator_forward.1} parent=11 // pred_region
          %s189 = ssub.s32 204800, 204800
          %190 = vsyncadd [#allocation3], %s189
          %s191 = sshll.u32 [#allocation2], 4
          %s192 = int_to_ptr.vmem [resolvable:$true] %s191
          %197 = dma.hbm_to_vmem [thread:$0]  %s1, 204800, %s192, [#allocation3], 6400, 6400, 400
        $region16: #{discriminator_forward.1} parent=11 // pred_fallthru
          _
        // Predicated region
        $region17: #{discriminator_forward.1} parent=11 // pred_check
          %p198 = pneg %p81
        $region18: #{discriminator_forward.1} parent=11 // pred_check_branch
          %200 = sbr.rel (%p198) target = $region20
        $region19: #{discriminator_forward.1} parent=11 // pred_region
          _
        $region20: #{discriminator_forward.1} parent=11 // pred_fallthru
          _
        // Predicated region
        $region21: #{discriminator_forward.1} parent=11 // pred_check
          %p201 = pneg %p102
        $region22: #{discriminator_forward.1} parent=11 // pred_check_branch
          %203 = sbr.rel (%p201) target = $region24
        $region23: #{discriminator_forward.1} parent=11 // pred_region
          _
        $region24: #{discriminator_forward.1} parent=11 // pred_fallthru
          _
        // Predicated region
        $region25: #{discriminator_forward.1} parent=11 // pred_check
          %p204 = pneg %p123
        $region26: #{discriminator_forward.1} parent=11 // pred_check_branch
          %206 = sbr.rel (%p204) target = $region28
        $region27: #{discriminator_forward.1} parent=11 // pred_region
          _
        $region28: #{discriminator_forward.1} parent=11 // pred_fallthru
          _
        // Predicated region
        $region29: #{discriminator_forward.1} parent=11 // pred_check
          %p207 = pneg %p144
        $region30: #{discriminator_forward.1} parent=11 // pred_check_branch
          %209 = sbr.rel (%p207) target = $region32
        $region31: #{discriminator_forward.1} parent=11 // pred_region
          _
        $region32: #{discriminator_forward.1} parent=11 // pred_fallthru
          _
      $region12: #{discriminator_forward.1} parent=5 // pred_fallthru
        _
      %p210 = scmp.lt.s32.totalorder %s13, 2
      // Predicated region
      $region33: #{discriminator_forward.1} parent=5 // pred_check
        %p211 = pneg %p210
      $region34: #{discriminator_forward.1} parent=5 // pred_check_branch
        %213 = sbr.rel (%p211) target = $region36
      $region35: #{discriminator_forward.1} parent=5 // pred_region
        // Predicated region
        $region37: #{discriminator_forward.1} parent=35 // pred_check
          %p214 = pneg %p33
        $region38: #{discriminator_forward.1} parent=35 // pred_check_branch
          %216 = sbr.rel (%p214) target = $region40
        $region39: #{discriminator_forward.1} parent=35 // pred_region
          %p217 = scmp.lt.s32.totalorder %s13, 1
          %s218 = scalar_select %p217, %s13, 1
          %s219 = smul.addr %s218, 2
          %s220 = smul.addr %s219, 4
          %s221 = scalar_lea.vmem %s0, %s220
        $region40: #{discriminator_forward.1} parent=35 // pred_fallthru
          _
      $region36: #{discriminator_forward.1} parent=5 // pred_fallthru
        _
      %p222 = scmp.le.s32.totalorder 1, %s13
      %p223 = scmp.lt.s32.totalorder %s13, 3
      %p224 = pnand %p222, %p223
      %p225 = pneg %p224
      // Predicated region
      $region41: #{discriminator_forward.1} parent=5 // pred_check
        _
      $region42: #{discriminator_forward.1} parent=5 // pred_check_branch
        %227 = sbr.rel (%p224) target = $region44
      $region43: #{discriminator_forward.1} parent=5 // pred_region
        %s228 = ssub.s32 %s13, 1
        // Predicated region
        $region45: #{discriminator_forward.1} parent=43 // pred_check
          %p229 = pneg %p60
        $region46: #{discriminator_forward.1} parent=43 // pred_check_branch
          %231 = sbr.rel (%p229) target = $region48
        $region47: #{discriminator_forward.1} parent=43 // pred_region
          %232 = dma.done [#allocation3], 204800
        $region48: #{discriminator_forward.1} parent=43 // pred_fallthru
          _
        %p233 = scmp.lt.s32.totalorder %s18, 1
        %s234 = scalar_select %p233, %s18, 1
        %s235 = smul.addr %s234, 2
        %s236 = smul.addr %s235, 4
        %s237 = scalar_lea.vmem %s0, %s236
        %p238 = pneg %p39
        %p239 = pneg %p36
        %p240 = pneg %p60
        %p241 = pneg %p57
        %p242 = pneg %p81
        %p243 = pneg %p78
        %p244 = pneg %p102
        %p245 = pneg %p99
        %p246 = pneg %p123
        %p247 = pneg %p120
        %p248 = pneg %p144
        %p249 = pneg %p141
        %p250 = pneg %p170
        %p251 = pneg %p167
        %p252 = scmp.lt.s32.totalorder %s18, 1
        %s253 = scalar_select %p252, %s18, 1
        %s254 = scalar_lea.vmem %s6, %s253
        %p255 = scmp.lt.s32.totalorder %s18, 1
        %s256 = scalar_select %p255, %s18, 1
        %s257 = smul.addr %s256, 2
        %s258 = smul.addr %s257, 4
        %s259 = scalar_lea.vmem %s0, %s258
        %p260 = scmp.lt.s32.totalorder %s18, 1
        %s261 = scalar_select %p260, %s18, 1
        %s262 = scalar_lea.vmem %s6, %s261
        %v263 = vld [vmem:[%s259] sm:$0x77]
        %v264 = vld [vmem:[%s259 + $0x3] sm:$0x1]
        %v265 = vld [vmem:[#allocation2] sm:$0xff]
        %v266 = vld [vmem:[#allocation2 + $0x8] sm:$0xff]
        %v267 = vld [vmem:[#allocation2 + $0x10] sm:$0xff]
        %v268 = vld [vmem:[#allocation2 + $0x18] sm:$0xff]
        %v269 = vld [vmem:[#allocation2 + $0x20] sm:$0xff]
        %v270 = vld [vmem:[#allocation2 + $0x28] sm:$0xff]
        %v271 = vld [vmem:[#allocation2 + $0x190] sm:$0xff]
        %v272 = vld [vmem:[#allocation2 + $0x198] sm:$0xff]
        %v273 = vld [vmem:[#allocation2 + $0x1a0] sm:$0xff]
        %v274 = vld [vmem:[#allocation2 + $0x1a8] sm:$0xff]
        %v275 = vld [vmem:[#allocation2 + $0x1b0] sm:$0xff]
        %v276 = vld [vmem:[#allocation2 + $0x1b8] sm:$0xff]
        %v277 = vld [vmem:[#allocation2 + $0x320] sm:$0xff]
        %v278 = vld [vmem:[#allocation2 + $0x328] sm:$0xff]
        %v279 = vld [vmem:[#allocation2 + $0x330] sm:$0xff]
        %v280 = vld [vmem:[#allocation2 + $0x338] sm:$0xff]
        %v281 = vld [vmem:[#allocation2 + $0x340] sm:$0xff]
        %v282 = vld [vmem:[#allocation2 + $0x348] sm:$0xff]
        %v283 = vld [vmem:[#allocation2 + $0x4b0] sm:$0xff]
        %v284 = vld [vmem:[#allocation2 + $0x4b8] sm:$0xff]
        %v285 = vld [vmem:[#allocation2 + $0x4c0] sm:$0xff]
        %v286 = vld [vmem:[#allocation2 + $0x4c8] sm:$0xff]
        %v287 = vld [vmem:[#allocation2 + $0x4d0] sm:$0xff]
        %v288 = vld [vmem:[#allocation2 + $0x4d8] sm:$0xff]
        %v289 = vld [vmem:[#allocation2 + $0x640] sm:$0xff]
        %v290 = vld [vmem:[#allocation2 + $0x648] sm:$0xff]
        %v291 = vld [vmem:[#allocation2 + $0x650] sm:$0xff]
        %v292 = vld [vmem:[#allocation2 + $0x658] sm:$0xff]
        %v293 = vld [vmem:[#allocation2 + $0x660] sm:$0xff]
        %v294 = vld [vmem:[#allocation2 + $0x668] sm:$0xff]
        %v295 = vld [vmem:[#allocation2 + $0x7d0] sm:$0xff]
        %v296 = vld [vmem:[#allocation2 + $0x7d8] sm:$0xff]
        %v297 = vld [vmem:[#allocation2 + $0x7e0] sm:$0xff]
        %v298 = vld [vmem:[#allocation2 + $0x7e8] sm:$0xff]
        %v299 = vld [vmem:[#allocation2 + $0x7f0] sm:$0xff]
        %v300 = vld [vmem:[#allocation2 + $0x7f8] sm:$0xff]
        %v301 = vld [vmem:[#allocation2 + $0x960] sm:$0xff]
        %v302 = vld [vmem:[#allocation2 + $0x968] sm:$0xff]
        %v303 = vld [vmem:[#allocation2 + $0x970] sm:$0xff]
        %v304 = vld [vmem:[#allocation2 + $0x978] sm:$0xff]
        %v305 = vld [vmem:[#allocation2 + $0x980] sm:$0xff]
        %v306 = vld [vmem:[#allocation2 + $0x988] sm:$0xff]
        %v307 = vld [vmem:[#allocation2 + $0xaf0] sm:$0xff]
        %v308 = vld [vmem:[#allocation2 + $0xaf8] sm:$0xff]
        %v309 = vld [vmem:[#allocation2 + $0xb00] sm:$0xff]
        %v310 = vld [vmem:[#allocation2 + $0xb08] sm:$0xff]
        %v311 = vld [vmem:[#allocation2 + $0xb10] sm:$0xff]
        %v312 = vld [vmem:[#allocation2 + $0xb18] sm:$0xff]
        %v313 = vld [vmem:[#allocation2 + $0xc80] sm:$0xff]
        %v314 = vld [vmem:[#allocation2 + $0xc88] sm:$0xff]
        %v315 = vld [vmem:[#allocation2 + $0xc90] sm:$0xff]
        %v316 = vld [vmem:[#allocation2 + $0xc98] sm:$0xff]
        %v317 = vld [vmem:[#allocation2 + $0xca0] sm:$0xff]
        %v318 = vld [vmem:[#allocation2 + $0xca8] sm:$0xff]
        %v319 = vld [vmem:[#allocation2 + $0xe10] sm:$0xff]
        %v320 = vld [vmem:[#allocation2 + $0xe18] sm:$0xff]
        %v321 = vld [vmem:[#allocation2 + $0xe20] sm:$0xff]
        %v322 = vld [vmem:[#allocation2 + $0xe28] sm:$0xff]
        %v323 = vld [vmem:[#allocation2 + $0xe30] sm:$0xff]
        %v324 = vld [vmem:[#allocation2 + $0xe38] sm:$0xff]
        %v325 = vld [vmem:[#allocation2 + $0xfa0] sm:$0xff]
        %v326 = vld [vmem:[#allocation2 + $0xfa8] sm:$0xff]
        %v327 = vld [vmem:[#allocation2 + $0xfb0] sm:$0xff]
        %v328 = vld [vmem:[#allocation2 + $0xfb8] sm:$0xff]
        %v329 = vld [vmem:[#allocation2 + $0xfc0] sm:$0xff]
        %v330 = vld [vmem:[#allocation2 + $0xfc8] sm:$0xff]
        %v331 = vld [vmem:[#allocation2 + $0x1130] sm:$0xff]
        %v332 = vld [vmem:[#allocation2 + $0x1138] sm:$0xff]
        %v333 = vld [vmem:[#allocation2 + $0x1140] sm:$0xff]
        %v334 = vld [vmem:[#allocation2 + $0x1148] sm:$0xff]
        %v335 = vld [vmem:[#allocation2 + $0x1150] sm:$0xff]
        %v336 = vld [vmem:[#allocation2 + $0x1158] sm:$0xff]
        %v337 = vld [vmem:[#allocation2 + $0x12c0] sm:$0xff]
        %v338 = vld [vmem:[#allocation2 + $0x12c8] sm:$0xff]
        %v339 = vld [vmem:[#allocation2 + $0x12d0] sm:$0xff]
        %v340 = vld [vmem:[#allocation2 + $0x12d8] sm:$0xff]
        %v341 = vld [vmem:[#allocation2 + $0x12e0] sm:$0xff]
        %v342 = vld [vmem:[#allocation2 + $0x12e8] sm:$0xff]
        %v343 = vld [vmem:[#allocation2 + $0x1450] sm:$0xff]
        %v344 = vld [vmem:[#allocation2 + $0x1458] sm:$0xff]
        %v345 = vld [vmem:[#allocation2 + $0x1460] sm:$0xff]
        %v346 = vld [vmem:[#allocation2 + $0x1468] sm:$0xff]
        %v347 = vld [vmem:[#allocation2 + $0x1470] sm:$0xff]
        %v348 = vld [vmem:[#allocation2 + $0x1478] sm:$0xff]
        %v349 = vld [vmem:[#allocation2 + $0x15e0] sm:$0xff]
        %v350 = vld [vmem:[#allocation2 + $0x15e8] sm:$0xff]
        %v351 = vld [vmem:[#allocation2 + $0x15f0] sm:$0xff]
        %v352 = vld [vmem:[#allocation2 + $0x15f8] sm:$0xff]
        %v353 = vld [vmem:[#allocation2 + $0x1600] sm:$0xff]
        %v354 = vld [vmem:[#allocation2 + $0x1608] sm:$0xff]
        %v355 = vld [vmem:[#allocation2 + $0x1770] sm:$0xff]
        %v356 = vld [vmem:[#allocation2 + $0x1778] sm:$0xff]
        %v357 = vld [vmem:[#allocation2 + $0x1780] sm:$0xff]
        %v358 = vld [vmem:[#allocation2 + $0x1788] sm:$0xff]
        %v359 = vld [vmem:[#allocation2 + $0x1790] sm:$0xff]
        %v360 = vld [vmem:[#allocation2 + $0x1798] sm:$0xff]
        %v361 = vld [vmem:[#allocation2 + $0x1900] sm:$0xff]
        %v362 = vld [vmem:[#allocation2 + $0x1908] sm:$0xff]
        %v363 = vld [vmem:[#allocation2 + $0x1910] sm:$0xff]
        %v364 = vld [vmem:[#allocation2 + $0x1918] sm:$0xff]
        %v365 = vld [vmem:[#allocation2 + $0x1920] sm:$0xff]
        %v366 = vld [vmem:[#allocation2 + $0x1928] sm:$0xff]
        %v367 = vld [vmem:[#allocation2 + $0x1a90] sm:$0xff]
        %v368 = vld [vmem:[#allocation2 + $0x1a98] sm:$0xff]
        %v369 = vld [vmem:[#allocation2 + $0x1aa0] sm:$0xff]
        %v370 = vld [vmem:[#allocation2 + $0x1aa8] sm:$0xff]
        %v371 = vld [vmem:[#allocation2 + $0x1ab0] sm:$0xff]
        %v372 = vld [vmem:[#allocation2 + $0x1ab8] sm:$0xff]
        %v373 = vld [vmem:[#allocation2 + $0x1c20] sm:$0xff]
        %v374 = vld [vmem:[#allocation2 + $0x1c28] sm:$0xff]
        %v375 = vld [vmem:[#allocation2 + $0x1c30] sm:$0xff]
        %v376 = vld [vmem:[#allocation2 + $0x1c38] sm:$0xff]
        %v377 = vld [vmem:[#allocation2 + $0x1c40] sm:$0xff]
        %v378 = vld [vmem:[#allocation2 + $0x1c48] sm:$0xff]
        %v379 = vld [vmem:[#allocation2 + $0x1db0] sm:$0xff]
        %v380 = vld [vmem:[#allocation2 + $0x1db8] sm:$0xff]
        %v381 = vld [vmem:[#allocation2 + $0x1dc0] sm:$0xff]
        %v382 = vld [vmem:[#allocation2 + $0x1dc8] sm:$0xff]
        %v383 = vld [vmem:[#allocation2 + $0x1dd0] sm:$0xff]
        %v384 = vld [vmem:[#allocation2 + $0x1dd8] sm:$0xff]
        %v385 = vld [vmem:[#allocation2 + $0x1f40] sm:$0xff]
        %v386 = vld [vmem:[#allocation2 + $0x1f48] sm:$0xff]
        %v387 = vld [vmem:[#allocation2 + $0x1f50] sm:$0xff]
        %v388 = vld [vmem:[#allocation2 + $0x1f58] sm:$0xff]
        %v389 = vld [vmem:[#allocation2 + $0x1f60] sm:$0xff]
        %v390 = vld [vmem:[#allocation2 + $0x1f68] sm:$0xff]
        %v391 = vld [vmem:[#allocation2 + $0x20d0] sm:$0xff]
        %v392 = vld [vmem:[#allocation2 + $0x20d8] sm:$0xff]
        %v393 = vld [vmem:[#allocation2 + $0x20e0] sm:$0xff]
        %v394 = vld [vmem:[#allocation2 + $0x20e8] sm:$0xff]
        %v395 = vld [vmem:[#allocation2 + $0x20f0] sm:$0xff]
        %v396 = vld [vmem:[#allocation2 + $0x20f8] sm:$0xff]
        %v397 = vld [vmem:[#allocation2 + $0x2260] sm:$0xff]
        %v398 = vld [vmem:[#allocation2 + $0x2268] sm:$0xff]
        %v399 = vld [vmem:[#allocation2 + $0x2270] sm:$0xff]
        %v400 = vld [vmem:[#allocation2 + $0x2278] sm:$0xff]
        %v401 = vld [vmem:[#allocation2 + $0x2280] sm:$0xff]
        %v402 = vld [vmem:[#allocation2 + $0x2288] sm:$0xff]
        %v403 = vld [vmem:[#allocation2 + $0x23f0] sm:$0xff]
        %v404 = vld [vmem:[#allocation2 + $0x23f8] sm:$0xff]
        %v405 = vld [vmem:[#allocation2 + $0x2400] sm:$0xff]
        %v406 = vld [vmem:[#allocation2 + $0x2408] sm:$0xff]
        %v407 = vld [vmem:[#allocation2 + $0x2410] sm:$0xff]
        %v408 = vld [vmem:[#allocation2 + $0x2418] sm:$0xff]
        %v409 = vld [vmem:[#allocation2 + $0x2580] sm:$0xff]
        %v410 = vld [vmem:[#allocation2 + $0x2588] sm:$0xff]
        %v411 = vld [vmem:[#allocation2 + $0x2590] sm:$0xff]
        %v412 = vld [vmem:[#allocation2 + $0x2598] sm:$0xff]
        %v413 = vld [vmem:[#allocation2 + $0x25a0] sm:$0xff]
        %v414 = vld [vmem:[#allocation2 + $0x25a8] sm:$0xff]
        %v415 = vld [vmem:[#allocation2 + $0x2710] sm:$0xff]
        %v416 = vld [vmem:[#allocation2 + $0x2718] sm:$0xff]
        %v417 = vld [vmem:[#allocation2 + $0x2720] sm:$0xff]
        %v418 = vld [vmem:[#allocation2 + $0x2728] sm:$0xff]
        %v419 = vld [vmem:[#allocation2 + $0x2730] sm:$0xff]
        %v420 = vld [vmem:[#allocation2 + $0x2738] sm:$0xff]
        %v421 = vld [vmem:[#allocation2 + $0x28a0] sm:$0xff]
        %v422 = vld [vmem:[#allocation2 + $0x28a8] sm:$0xff]
        %v423 = vld [vmem:[#allocation2 + $0x28b0] sm:$0xff]
        %v424 = vld [vmem:[#allocation2 + $0x28b8] sm:$0xff]
        %v425 = vld [vmem:[#allocation2 + $0x28c0] sm:$0xff]
        %v426 = vld [vmem:[#allocation2 + $0x28c8] sm:$0xff]
        %v427 = vld [vmem:[#allocation2 + $0x2a30] sm:$0xff]
        %v428 = vld [vmem:[#allocation2 + $0x2a38] sm:$0xff]
        %v429 = vld [vmem:[#allocation2 + $0x2a40] sm:$0xff]
        %v430 = vld [vmem:[#allocation2 + $0x2a48] sm:$0xff]
        %v431 = vld [vmem:[#allocation2 + $0x2a50] sm:$0xff]
        %v432 = vld [vmem:[#allocation2 + $0x2a58] sm:$0xff]
        %v433 = vld [vmem:[#allocation2 + $0x2bc0] sm:$0xff]
        %v434 = vld [vmem:[#allocation2 + $0x2bc8] sm:$0xff]
        %v435 = vld [vmem:[#allocation2 + $0x2bd0] sm:$0xff]
        %v436 = vld [vmem:[#allocation2 + $0x2bd8] sm:$0xff]
        %v437 = vld [vmem:[#allocation2 + $0x2be0] sm:$0xff]
        %v438 = vld [vmem:[#allocation2 + $0x2be8] sm:$0xff]
        %v439 = vld [vmem:[#allocation2 + $0x2d50] sm:$0xff]
        %v440 = vld [vmem:[#allocation2 + $0x2d58] sm:$0xff]
        %v441 = vld [vmem:[#allocation2 + $0x2d60] sm:$0xff]
        %v442 = vld [vmem:[#allocation2 + $0x2d68] sm:$0xff]
        %v443 = vld [vmem:[#allocation2 + $0x2d70] sm:$0xff]
        %v444 = vld [vmem:[#allocation2 + $0x2d78] sm:$0xff]
        %v445 = vld [vmem:[#allocation2 + $0x2ee0] sm:$0xff]
        %v446 = vld [vmem:[#allocation2 + $0x2ee8] sm:$0xff]
        %v447 = vld [vmem:[#allocation2 + $0x2ef0] sm:$0xff]
        %v448 = vld [vmem:[#allocation2 + $0x2ef8] sm:$0xff]
        %v449 = vld [vmem:[#allocation2 + $0x2f00] sm:$0xff]
        %v450 = vld [vmem:[#allocation2 + $0x2f08] sm:$0xff]
        %v451 = vld [vmem:[#allocation2 + $0x3070] sm:$0xff]
        %v452 = vld [vmem:[#allocation2 + $0x3078] sm:$0xff]
        %v453 = vld [vmem:[#allocation2 + $0x3080] sm:$0xff]
        %v454 = vld [vmem:[#allocation2 + $0x3088] sm:$0xff]
        %v455 = vld [vmem:[#allocation2 + $0x3090] sm:$0xff]
        %v456 = vld [vmem:[#allocation2 + $0x3098] sm:$0xff]
        %v458 = vcombine.high %v263, %v263
        %460 = vmatprep.subr.mxu0 %v266
        %461 = vmatpush1.msra.mxu0 %v265
        %462 = vmatprep.subr.mxu0 %v272
        %463 = vmatpush1.msra.mxu0 %v271
        %464 = vmatprep.subr.mxu0 %v278
        %465 = vmatpush1.msra.mxu0 %v277
        %466 = vmatprep.subr.mxu0 %v284
        %467 = vmatpush1.msra.mxu0 %v283
        %468 = vmatprep.subr.mxu0 %v290
        %469 = vmatpush1.msra.mxu0 %v289
        %470 = vmatprep.subr.mxu0 %v296
        %471 = vmatpush1.msra.mxu0 %v295
        %472 = vmatprep.subr.mxu0 %v302
        %473 = vmatpush1.msra.mxu0 %v301
        %474 = vmatprep.subr.mxu0 %v308
        %475 = vmatpush1.msra.mxu0 %v307
        %476 = vmatprep.subr.mxu0 %v314
        %477 = vmatpush1.msra.mxu0 %v313
        %478 = vmatprep.subr.mxu0 %v320
        %479 = vmatpush1.msra.mxu0 %v319
        %480 = vmatprep.subr.mxu0 %v326
        %481 = vmatpush1.msra.mxu0 %v325
        %482 = vmatprep.subr.mxu0 %v332
        %483 = vmatpush1.msra.mxu0 %v331
        %484 = vmatprep.subr.mxu0 %v338
        %485 = vmatpush1.msra.mxu0 %v337
        %486 = vmatprep.subr.mxu0 %v344
        %487 = vmatpush1.msra.mxu0 %v343
        %488 = vmatprep.subr.mxu0 %v350
        %489 = vmatpush1.msra.mxu0 %v349
        %490 = vmatprep.subr.mxu0 %v356
        %491 = vmatpush1.msra.mxu0 %v355
        %492 = vmatprep.subr.mxu0 %v362
        %493 = vmatpush1.msra.mxu0 %v361
        %494 = vmatprep.subr.mxu0 %v368
        %495 = vmatpush1.msra.mxu0 %v367
        %496 = vmatprep.subr.mxu0 %v374
        %497 = vmatpush1.msra.mxu0 %v373
        %498 = vmatprep.subr.mxu0 %v380
        %499 = vmatpush1.msra.mxu0 %v379
        %500 = vmatprep.subr.mxu0 %v386
        %501 = vmatpush1.msra.mxu0 %v385
        %502 = vmatprep.subr.mxu0 %v392
        %503 = vmatpush1.msra.mxu0 %v391
        %504 = vmatprep.subr.mxu0 %v398
        %505 = vmatpush1.msra.mxu0 %v397
        %506 = vmatprep.subr.mxu0 %v404
        %507 = vmatpush1.msra.mxu0 %v403
        %508 = vmatprep.subr.mxu0 %v410
        %509 = vmatpush1.msra.mxu0 %v409
        %510 = vmatprep.subr.mxu0 %v416
        %511 = vmatpush1.msra.mxu0 %v415
        %512 = vmatprep.subr.mxu0 %v422
        %513 = vmatpush1.msra.mxu0 %v421
        %514 = vmatprep.subr.mxu0 %v428
        %515 = vmatpush1.msra.mxu0 %v427
        %516 = vmatprep.subr.mxu0 %v434
        %517 = vmatpush1.msra.mxu0 %v433
        %518 = vmatprep.subr.mxu0 %v440
        %519 = vmatpush1.msra.mxu0 %v439
        %520 = vmatprep.subr.mxu0 %v446
        %521 = vmatpush1.msra.mxu0 %v445
        %522 = vmatprep.subr.mxu0 %v452
        %523 = vmatpush1.msra.mxu0 %v451
        %524 = vmatprep.mubr.f32.mxu0 %v458
        %525 = vmatmul.mubr.f32.gmra.mrb[0].mxu0 %v263
        %v526 = vpop.f32.mrb[0].mxu0
        %v527 = vadd.f32 0.0, %v526
        %v528 = vpop.f32.mrb[0].mxu0
        %v529 = vadd.f32 0.0, %v528
        %530 = vdwg.mxu0
        %531 = vmatprep.subr.mxu0 %v268
        %532 = vmatpush1.msra.mxu0 %v267
        %533 = vmatprep.subr.mxu0 %v274
        %534 = vmatpush1.msra.mxu0 %v273
        %535 = vmatprep.subr.mxu0 %v280
        %536 = vmatpush1.msra.mxu0 %v279
        %537 = vmatprep.subr.mxu0 %v286
        %538 = vmatpush1.msra.mxu0 %v285
        %539 = vmatprep.subr.mxu0 %v292
        %540 = vmatpush1.msra.mxu0 %v291
        %541 = vmatprep.subr.mxu0 %v298
        %542 = vmatpush1.msra.mxu0 %v297
        %543 = vmatprep.subr.mxu0 %v304
        %544 = vmatpush1.msra.mxu0 %v303
        %545 = vmatprep.subr.mxu0 %v310
        %546 = vmatpush1.msra.mxu0 %v309
        %547 = vmatprep.subr.mxu0 %v316
        %548 = vmatpush1.msra.mxu0 %v315
        %549 = vmatprep.subr.mxu0 %v322
        %550 = vmatpush1.msra.mxu0 %v321
        %551 = vmatprep.subr.mxu0 %v328
        %552 = vmatpush1.msra.mxu0 %v327
        %553 = vmatprep.subr.mxu0 %v334
        %554 = vmatpush1.msra.mxu0 %v333
        %555 = vmatprep.subr.mxu0 %v340
        %556 = vmatpush1.msra.mxu0 %v339
        %557 = vmatprep.subr.mxu0 %v346
        %558 = vmatpush1.msra.mxu0 %v345
        %559 = vmatprep.subr.mxu0 %v352
        %560 = vmatpush1.msra.mxu0 %v351
        %561 = vmatprep.subr.mxu0 %v358
        %562 = vmatpush1.msra.mxu0 %v357
        %563 = vmatprep.subr.mxu0 %v364
        %564 = vmatpush1.msra.mxu0 %v363
        %565 = vmatprep.subr.mxu0 %v370
        %566 = vmatpush1.msra.mxu0 %v369
        %567 = vmatprep.subr.mxu0 %v376
        %568 = vmatpush1.msra.mxu0 %v375
        %569 = vmatprep.subr.mxu0 %v382
        %570 = vmatpush1.msra.mxu0 %v381
        %571 = vmatprep.subr.mxu0 %v388
        %572 = vmatpush1.msra.mxu0 %v387
        %573 = vmatprep.subr.mxu0 %v394
        %574 = vmatpush1.msra.mxu0 %v393
        %575 = vmatprep.subr.mxu0 %v400
        %576 = vmatpush1.msra.mxu0 %v399
        %577 = vmatprep.subr.mxu0 %v406
        %578 = vmatpush1.msra.mxu0 %v405
        %579 = vmatprep.subr.mxu0 %v412
        %580 = vmatpush1.msra.mxu0 %v411
        %581 = vmatprep.subr.mxu0 %v418
        %582 = vmatpush1.msra.mxu0 %v417
        %583 = vmatprep.subr.mxu0 %v424
        %584 = vmatpush1.msra.mxu0 %v423
        %585 = vmatprep.subr.mxu0 %v430
        %586 = vmatpush1.msra.mxu0 %v429
        %587 = vmatprep.subr.mxu0 %v436
        %588 = vmatpush1.msra.mxu0 %v435
        %589 = vmatprep.subr.mxu0 %v442
        %590 = vmatpush1.msra.mxu0 %v441
        %591 = vmatprep.subr.mxu0 %v448
        %592 = vmatpush1.msra.mxu0 %v447
        %593 = vmatprep.subr.mxu0 %v454
        %594 = vmatpush1.msra.mxu0 %v453
        %595 = vmatprep.mubr.f32.mxu0 %v458
        %596 = vmatmul.mubr.f32.gmra.mrb[0].mxu0 %v263
        %v597 = vpop.f32.mrb[0].mxu0
        %v598 = vadd.f32 0.0, %v597
        %v599 = vpop.f32.mrb[0].mxu0
        %v600 = vadd.f32 0.0, %v599
        %601 = vdwg.mxu0
        %602 = vmatprep.subr.mxu0 %v270
        %603 = vmatpush1.msra.mxu0 %v269
        %604 = vmatprep.subr.mxu0 %v276
        %605 = vmatpush1.msra.mxu0 %v275
        %606 = vmatprep.subr.mxu0 %v282
        %607 = vmatpush1.msra.mxu0 %v281
        %608 = vmatprep.subr.mxu0 %v288
        %609 = vmatpush1.msra.mxu0 %v287
        %610 = vmatprep.subr.mxu0 %v294
        %611 = vmatpush1.msra.mxu0 %v293
        %612 = vmatprep.subr.mxu0 %v300
        %613 = vmatpush1.msra.mxu0 %v299
        %614 = vmatprep.subr.mxu0 %v306
        %615 = vmatpush1.msra.mxu0 %v305
        %616 = vmatprep.subr.mxu0 %v312
        %617 = vmatpush1.msra.mxu0 %v311
        %618 = vmatprep.subr.mxu0 %v318
        %619 = vmatpush1.msra.mxu0 %v317
        %620 = vmatprep.subr.mxu0 %v324
        %621 = vmatpush1.msra.mxu0 %v323
        %622 = vmatprep.subr.mxu0 %v330
        %623 = vmatpush1.msra.mxu0 %v329
        %624 = vmatprep.subr.mxu0 %v336
        %625 = vmatpush1.msra.mxu0 %v335
        %626 = vmatprep.subr.mxu0 %v342
        %627 = vmatpush1.msra.mxu0 %v341
        %628 = vmatprep.subr.mxu0 %v348
        %629 = vmatpush1.msra.mxu0 %v347
        %630 = vmatprep.subr.mxu0 %v354
        %631 = vmatpush1.msra.mxu0 %v353
        %632 = vmatprep.subr.mxu0 %v360
        %633 = vmatpush1.msra.mxu0 %v359
        %634 = vmatprep.subr.mxu0 %v366
        %635 = vmatpush1.msra.mxu0 %v365
        %636 = vmatprep.subr.mxu0 %v372
        %637 = vmatpush1.msra.mxu0 %v371
        %638 = vmatprep.subr.mxu0 %v378
        %639 = vmatpush1.msra.mxu0 %v377
        %640 = vmatprep.subr.mxu0 %v384
        %641 = vmatpush1.msra.mxu0 %v383
        %642 = vmatprep.subr.mxu0 %v390
        %643 = vmatpush1.msra.mxu0 %v389
        %644 = vmatprep.subr.mxu0 %v396
        %645 = vmatpush1.msra.mxu0 %v395
        %646 = vmatprep.subr.mxu0 %v402
        %647 = vmatpush1.msra.mxu0 %v401
        %648 = vmatprep.subr.mxu0 %v408
        %649 = vmatpush1.msra.mxu0 %v407
        %650 = vmatprep.subr.mxu0 %v414
        %651 = vmatpush1.msra.mxu0 %v413
        %652 = vmatprep.subr.mxu0 %v420
        %653 = vmatpush1.msra.mxu0 %v419
        %654 = vmatprep.subr.mxu0 %v426
        %655 = vmatpush1.msra.mxu0 %v425
        %656 = vmatprep.subr.mxu0 %v432
        %657 = vmatpush1.msra.mxu0 %v431
        %658 = vmatprep.subr.mxu0 %v438
        %659 = vmatpush1.msra.mxu0 %v437
        %660 = vmatprep.subr.mxu0 %v444
        %661 = vmatpush1.msra.mxu0 %v443
        %662 = vmatprep.subr.mxu0 %v450
        %663 = vmatpush1.msra.mxu0 %v449
        %664 = vmatprep.subr.mxu0 %v456
        %665 = vmatpush1.msra.mxu0 %v455
        %666 = vmatprep.mubr.f32.mxu0 %v458
        %667 = vmatmul.mubr.f32.gmra.mrb[0].mxu0 %v263
        %v668 = vpop.f32.mrb[0].mxu0
        %v669 = vadd.f32 0.0, %v668
        %v670 = vpop.f32.mrb[0].mxu0
        %v671 = vadd.f32 0.0, %v670
        %672 = vdwg.mxu0
        %v673 = vld [vmem:[%s2] sm:$0xff]
        %s674 = scalar_lea.vmem %s2, 8
        %v675 = vld [vmem:[%s674] sm:$0xff]
        %vm676 = vcmask 23552
        %v678 = vsel %vm676, %v675, 0
        %vm680 = vcmask 1042432
        %v682 = vsel %vm680, %v598, 0
        %v685 = vsel %vm680, %v600, 0
        %687 = vmatprep.subr.mxu0 %v685
        %688 = vmatpush1.msra.mxu0 %v682
        %689 = vmatprep.subr.mxu0 0.0
        %690 = vmatpush1.msra.mxu0 0.0
        %691 = vmatprep.subr.mxu0 0.0
        %692 = vmatpush1.msra.mxu0 0.0
        %693 = vmatprep.subr.mxu0 0.0
        %694 = vmatpush1.msra.mxu0 0.0
        %695 = vmatprep.subr.mxu0 0.0
        %696 = vmatpush1.msra.mxu0 0.0
        %697 = vmatprep.subr.mxu0 0.0
        %698 = vmatpush1.msra.mxu0 0.0
        %699 = vmatprep.subr.mxu0 0.0
        %700 = vmatpush1.msra.mxu0 0.0
        %701 = vmatprep.subr.mxu0 0.0
        %702 = vmatpush1.msra.mxu0 0.0
        %703 = vmatprep.subr.mxu0 0.0
        %704 = vmatpush1.msra.mxu0 0.0
        %705 = vmatprep.subr.mxu0 0.0
        %706 = vmatpush1.msra.mxu0 0.0
        %707 = vmatprep.subr.mxu0 0.0
        %708 = vmatpush1.msra.mxu0 0.0
        %709 = vmatprep.subr.mxu0 0.0
        %710 = vmatpush1.msra.mxu0 0.0
        %711 = vmatprep.subr.mxu0 0.0
        %712 = vmatpush1.msra.mxu0 0.0
        %713 = vmatprep.subr.mxu0 0.0
        %714 = vmatpush1.msra.mxu0 0.0
        %715 = vmatprep.subr.mxu0 0.0
        %716 = vmatpush1.msra.mxu0 0.0
        %717 = vmatprep.subr.mxu0 0.0
        %718 = vmatpush1.msra.mxu0 0.0
        %719 = vmatprep.subr.mxu0 0.0
        %720 = vmatpush1.msra.mxu0 0.0
        %721 = vmatprep.subr.mxu0 0.0
        %722 = vmatpush1.msra.mxu0 0.0
        %723 = vmatprep.subr.mxu0 0.0
        %724 = vmatpush1.msra.mxu0 0.0
        %725 = vmatprep.subr.mxu0 0.0
        %726 = vmatpush1.msra.mxu0 0.0
        %727 = vmatprep.subr.mxu0 0.0
        %728 = vmatpush1.msra.mxu0 0.0
        %729 = vmatprep.subr.mxu0 0.0
        %730 = vmatpush1.msra.mxu0 0.0
        %731 = vmatprep.subr.mxu0 0.0
        %732 = vmatpush1.msra.mxu0 0.0
        %733 = vmatprep.subr.mxu0 0.0
        %734 = vmatpush1.msra.mxu0 0.0
        %735 = vmatprep.subr.mxu0 0.0
        %736 = vmatpush1.msra.mxu0 0.0
        %737 = vmatprep.subr.mxu0 0.0
        %738 = vmatpush1.msra.mxu0 0.0
        %739 = vmatprep.subr.mxu0 0.0
        %740 = vmatpush1.msra.mxu0 0.0
        %741 = vmatprep.subr.mxu0 0.0
        %742 = vmatpush1.msra.mxu0 0.0
        %743 = vmatprep.subr.mxu0 0.0
        %744 = vmatpush1.msra.mxu0 0.0
        %745 = vmatprep.subr.mxu0 0.0
        %746 = vmatpush1.msra.mxu0 0.0
        %747 = vmatprep.subr.mxu0 0.0
        %748 = vmatpush1.msra.mxu0 0.0
        %749 = vmatprep.subr.mxu0 0.0
        %750 = vmatpush1.msra.mxu0 0.0
        %751 = vmatprep.mubr.f32.mxu0 0.0
        %752 = vmatmul.mubr.f32.gmra.mrb[0].mxu0 %v678
        %v753 = vpop.f32.mrb[0].mxu0
        %v754 = vadd.f32 0.0, %v753
        %v755 = vpop.f32.mrb[0].mxu0
        %v756 = vadd.f32 0.0, %v755
        %757 = vdwg.mxu0
        %v759 = vsel %vm676, %v673, 0
        %v762 = vsel %vm680, %v527, 0
        %v765 = vsel %vm680, %v529, 0
        %767 = vmatprep.subr.mxu0 %v765
        %768 = vmatpush1.msra.mxu0 %v762
        %769 = vmatprep.subr.mxu0 0.0
        %770 = vmatpush1.msra.mxu0 0.0
        %771 = vmatprep.subr.mxu0 0.0
        %772 = vmatpush1.msra.mxu0 0.0
        %773 = vmatprep.subr.mxu0 0.0
        %774 = vmatpush1.msra.mxu0 0.0
        %775 = vmatprep.subr.mxu0 0.0
        %776 = vmatpush1.msra.mxu0 0.0
        %777 = vmatprep.subr.mxu0 0.0
        %778 = vmatpush1.msra.mxu0 0.0
        %779 = vmatprep.subr.mxu0 0.0
        %780 = vmatpush1.msra.mxu0 0.0
        %781 = vmatprep.subr.mxu0 0.0
        %782 = vmatpush1.msra.mxu0 0.0
        %783 = vmatprep.subr.mxu0 0.0
        %784 = vmatpush1.msra.mxu0 0.0
        %785 = vmatprep.subr.mxu0 0.0
        %786 = vmatpush1.msra.mxu0 0.0
        %787 = vmatprep.subr.mxu0 0.0
        %788 = vmatpush1.msra.mxu0 0.0
        %789 = vmatprep.subr.mxu0 0.0
        %790 = vmatpush1.msra.mxu0 0.0
        %791 = vmatprep.subr.mxu0 0.0
        %792 = vmatpush1.msra.mxu0 0.0
        %793 = vmatprep.subr.mxu0 0.0
        %794 = vmatpush1.msra.mxu0 0.0
        %795 = vmatprep.subr.mxu0 0.0
        %796 = vmatpush1.msra.mxu0 0.0
        %797 = vmatprep.subr.mxu0 0.0
        %798 = vmatpush1.msra.mxu0 0.0
        %799 = vmatprep.subr.mxu0 0.0
        %800 = vmatpush1.msra.mxu0 0.0
        %801 = vmatprep.subr.mxu0 0.0
        %802 = vmatpush1.msra.mxu0 0.0
        %803 = vmatprep.subr.mxu0 0.0
        %804 = vmatpush1.msra.mxu0 0.0
        %805 = vmatprep.subr.mxu0 0.0
        %806 = vmatpush1.msra.mxu0 0.0
        %807 = vmatprep.subr.mxu0 0.0
        %808 = vmatpush1.msra.mxu0 0.0
        %809 = vmatprep.subr.mxu0 0.0
        %810 = vmatpush1.msra.mxu0 0.0
        %811 = vmatprep.subr.mxu0 0.0
        %812 = vmatpush1.msra.mxu0 0.0
        %813 = vmatprep.subr.mxu0 0.0
        %814 = vmatpush1.msra.mxu0 0.0
        %815 = vmatprep.subr.mxu0 0.0
        %816 = vmatpush1.msra.mxu0 0.0
        %817 = vmatprep.subr.mxu0 0.0
        %818 = vmatpush1.msra.mxu0 0.0
        %819 = vmatprep.subr.mxu0 0.0
        %820 = vmatpush1.msra.mxu0 0.0
        %821 = vmatprep.subr.mxu0 0.0
        %822 = vmatpush1.msra.mxu0 0.0
        %823 = vmatprep.subr.mxu0 0.0
        %824 = vmatpush1.msra.mxu0 0.0
        %825 = vmatprep.subr.mxu0 0.0
        %826 = vmatpush1.msra.mxu0 0.0
        %827 = vmatprep.subr.mxu0 0.0
        %828 = vmatpush1.msra.mxu0 0.0
        %829 = vmatprep.subr.mxu0 0.0
        %830 = vmatpush1.msra.mxu0 0.0
        %831 = vmatprep.mubr.f32.mxu0 0.0
        %832 = vmatmul.mubr.f32.gmra.mrb[0].mxu0 %v759
        %v833 = vpop.f32.mrb[0].mxu0
        %v834 = vadd.f32 %v754, %v833
        %v835 = vpop.f32.mrb[0].mxu0
        %v836 = vadd.f32 %v756, %v835
        %837 = vdwg.mxu0
        %s838 = scalar_lea.vmem %s2, 16
        %v839 = vld [vmem:[%s838] sm:$0xff]
        %v841 = vsel %vm676, %v839, 0
        %v844 = vsel %vm680, %v669, 0
        %v847 = vsel %vm680, %v671, 0
        %849 = vmatprep.subr.mxu0 %v847
        %850 = vmatpush1.msra.mxu0 %v844
        %851 = vmatprep.subr.mxu0 0.0
        %852 = vmatpush1.msra.mxu0 0.0
        %853 = vmatprep.subr.mxu0 0.0
        %854 = vmatpush1.msra.mxu0 0.0
        %855 = vmatprep.subr.mxu0 0.0
        %856 = vmatpush1.msra.mxu0 0.0
        %857 = vmatprep.subr.mxu0 0.0
        %858 = vmatpush1.msra.mxu0 0.0
        %859 = vmatprep.subr.mxu0 0.0
        %860 = vmatpush1.msra.mxu0 0.0
        %861 = vmatprep.subr.mxu0 0.0
        %862 = vmatpush1.msra.mxu0 0.0
        %863 = vmatprep.subr.mxu0 0.0
        %864 = vmatpush1.msra.mxu0 0.0
        %865 = vmatprep.subr.mxu0 0.0
        %866 = vmatpush1.msra.mxu0 0.0
        %867 = vmatprep.subr.mxu0 0.0
        %868 = vmatpush1.msra.mxu0 0.0
        %869 = vmatprep.subr.mxu0 0.0
        %870 = vmatpush1.msra.mxu0 0.0
        %871 = vmatprep.subr.mxu0 0.0
        %872 = vmatpush1.msra.mxu0 0.0
        %873 = vmatprep.subr.mxu0 0.0
        %874 = vmatpush1.msra.mxu0 0.0
        %875 = vmatprep.subr.mxu0 0.0
        %876 = vmatpush1.msra.mxu0 0.0
        %877 = vmatprep.subr.mxu0 0.0
        %878 = vmatpush1.msra.mxu0 0.0
        %879 = vmatprep.subr.mxu0 0.0
        %880 = vmatpush1.msra.mxu0 0.0
        %881 = vmatprep.subr.mxu0 0.0
        %882 = vmatpush1.msra.mxu0 0.0
        %883 = vmatprep.subr.mxu0 0.0
        %884 = vmatpush1.msra.mxu0 0.0
        %885 = vmatprep.subr.mxu0 0.0
        %886 = vmatpush1.msra.mxu0 0.0
        %887 = vmatprep.subr.mxu0 0.0
        %888 = vmatpush1.msra.mxu0 0.0
        %889 = vmatprep.subr.mxu0 0.0
        %890 = vmatpush1.msra.mxu0 0.0
        %891 = vmatprep.subr.mxu0 0.0
        %892 = vmatpush1.msra.mxu0 0.0
        %893 = vmatprep.subr.mxu0 0.0
        %894 = vmatpush1.msra.mxu0 0.0
        %895 = vmatprep.subr.mxu0 0.0
        %896 = vmatpush1.msra.mxu0 0.0
        %897 = vmatprep.subr.mxu0 0.0
        %898 = vmatpush1.msra.mxu0 0.0
        %899 = vmatprep.subr.mxu0 0.0
        %900 = vmatpush1.msra.mxu0 0.0
        %901 = vmatprep.subr.mxu0 0.0
        %902 = vmatpush1.msra.mxu0 0.0
        %903 = vmatprep.subr.mxu0 0.0
        %904 = vmatpush1.msra.mxu0 0.0
        %905 = vmatprep.subr.mxu0 0.0
        %906 = vmatpush1.msra.mxu0 0.0
        %907 = vmatprep.subr.mxu0 0.0
        %908 = vmatpush1.msra.mxu0 0.0
        %909 = vmatprep.subr.mxu0 0.0
        %910 = vmatpush1.msra.mxu0 0.0
        %911 = vmatprep.subr.mxu0 0.0
        %912 = vmatpush1.msra.mxu0 0.0
        %913 = vmatprep.mubr.f32.mxu0 0.0
        %914 = vmatmul.mubr.f32.gmra.mrb[0].mxu0 %v841
        %v915 = vpop.f32.mrb[0].mxu0
        %v916 = vadd.f32 0.0, %v915
        %v917 = vpop.f32.mrb[0].mxu0
        %v918 = vadd.f32 0.0, %v917
        %919 = vdwg.mxu0
        %v920 = vadd.f32 %v834, %v916
        %v921 = vadd.f32 %v836, %v918
        %v922 = vld [vmem:[#allocation2 + $0x30] sm:$0xff]
        %v923 = vld [vmem:[#allocation2 + $0x38] sm:$0xff]
        %v924 = vld [vmem:[#allocation2 + $0x40] sm:$0xff]
        %v925 = vld [vmem:[#allocation2 + $0x48] sm:$0xff]
        %v926 = vld [vmem:[#allocation2 + $0x50] sm:$0xff]
        %v927 = vld [vmem:[#allocation2 + $0x58] sm:$0xff]
        %v928 = vld [vmem:[#allocation2 + $0x1c0] sm:$0xff]
        %v929 = vld [vmem:[#allocation2 + $0x1c8] sm:$0xff]
        %v930 = vld [vmem:[#allocation2 + $0x1d0] sm:$0xff]
        %v931 = vld [vmem:[#allocation2 + $0x1d8] sm:$0xff]
        %v932 = vld [vmem:[#allocation2 + $0x1e0] sm:$0xff]
        %v933 = vld [vmem:[#allocation2 + $0x1e8] sm:$0xff]
        %v934 = vld [vmem:[#allocation2 + $0x350] sm:$0xff]
        %v935 = vld [vmem:[#allocation2 + $0x358] sm:$0xff]
        %v936 = vld [vmem:[#allocation2 + $0x360] sm:$0xff]
        %v937 = vld [vmem:[#allocation2 + $0x368] sm:$0xff]
        %v938 = vld [vmem:[#allocation2 + $0x370] sm:$0xff]
        %v939 = vld [vmem:[#allocation2 + $0x378] sm:$0xff]
        %v940 = vld [vmem:[#allocation2 + $0x4e0] sm:$0xff]
        %v941 = vld [vmem:[#allocation2 + $0x4e8] sm:$0xff]
        %v942 = vld [vmem:[#allocation2 + $0x4f0] sm:$0xff]
        %v943 = vld [vmem:[#allocation2 + $0x4f8] sm:$0xff]
        %v944 = vld [vmem:[#allocation2 + $0x500] sm:$0xff]
        %v945 = vld [vmem:[#allocation2 + $0x508] sm:$0xff]
        %v946 = vld [vmem:[#allocation2 + $0x670] sm:$0xff]
        %v947 = vld [vmem:[#allocation2 + $0x678] sm:$0xff]
        %v948 = vld [vmem:[#allocation2 + $0x680] sm:$0xff]
        %v949 = vld [vmem:[#allocation2 + $0x688] sm:$0xff]
        %v950 = vld [vmem:[#allocation2 + $0x690] sm:$0xff]
        %v951 = vld [vmem:[#allocation2 + $0x698] sm:$0xff]
        %v952 = vld [vmem:[#allocation2 + $0x800] sm:$0xff]
        %v953 = vld [vmem:[#allocation2 + $0x808] sm:$0xff]
        %v954 = vld [vmem:[#allocation2 + $0x810] sm:$0xff]
        %v955 = vld [vmem:[#allocation2 + $0x818] sm:$0xff]
        %v956 = vld [vmem:[#allocation2 + $0x820] sm:$0xff]
        %v957 = vld [vmem:[#allocation2 + $0x828] sm:$0xff]
        %v958 = vld [vmem:[#allocation2 + $0x990] sm:$0xff]
        %v959 = vld [vmem:[#allocation2 + $0x998] sm:$0xff]
        %v960 = vld [vmem:[#allocation2 + $0x9a0] sm:$0xff]
        %v961 = vld [vmem:[#allocation2 + $0x9a8] sm:$0xff]
        %v962 = vld [vmem:[#allocation2 + $0x9b0] sm:$0xff]
        %v963 = vld [vmem:[#allocation2 + $0x9b8] sm:$0xff]
        %v964 = vld [vmem:[#allocation2 + $0xb20] sm:$0xff]
        %v965 = vld [vmem:[#allocation2 + $0xb28] sm:$0xff]
        %v966 = vld [vmem:[#allocation2 + $0xb30] sm:$0xff]
        %v967 = vld [vmem:[#allocation2 + $0xb38] sm:$0xff]
        %v968 = vld [vmem:[#allocation2 + $0xb40] sm:$0xff]
        %v969 = vld [vmem:[#allocation2 + $0xb48] sm:$0xff]
        %v970 = vld [vmem:[#allocation2 + $0xcb0] sm:$0xff]
        %v971 = vld [vmem:[#allocation2 + $0xcb8] sm:$0xff]
        %v972 = vld [vmem:[#allocation2 + $0xcc0] sm:$0xff]
        %v973 = vld [vmem:[#allocation2 + $0xcc8] sm:$0xff]
        %v974 = vld [vmem:[#allocation2 + $0xcd0] sm:$0xff]
        %v975 = vld [vmem:[#allocation2 + $0xcd8] sm:$0xff]
        %v976 = vld [vmem:[#allocation2 + $0xe40] sm:$0xff]
        %v977 = vld [vmem:[#allocation2 + $0xe48] sm:$0xff]
        %v978 = vld [vmem:[#allocation2 + $0xe50] sm:$0xff]
        %v979 = vld [vmem:[#allocation2 + $0xe58] sm:$0xff]
        %v980 = vld [vmem:[#allocation2 + $0xe60] sm:$0xff]
        %v981 = vld [vmem:[#allocation2 + $0xe68] sm:$0xff]
        %v982 = vld [vmem:[#allocation2 + $0xfd0] sm:$0xff]
        %v983 = vld [vmem:[#allocation2 + $0xfd8] sm:$0xff]
        %v984 = vld [vmem:[#allocation2 + $0xfe0] sm:$0xff]
        %v985 = vld [vmem:[#allocation2 + $0xfe8] sm:$0xff]
        %v986 = vld [vmem:[#allocation2 + $0xff0] sm:$0xff]
        %v987 = vld [vmem:[#allocation2 + $0xff8] sm:$0xff]
        %v988 = vld [vmem:[#allocation2 + $0x1160] sm:$0xff]
        %v989 = vld [vmem:[#allocation2 + $0x1168] sm:$0xff]
        %v990 = vld [vmem:[#allocation2 + $0x1170] sm:$0xff]
        %v991 = vld [vmem:[#allocation2 + $0x1178] sm:$0xff]
        %v992 = vld [vmem:[#allocation2 + $0x1180] sm:$0xff]
        %v993 = vld [vmem:[#allocation2 + $0x1188] sm:$0xff]
        %v994 = vld [vmem:[#allocation2 + $0x12f0] sm:$0xff]
        %v995 = vld [vmem:[#allocation2 + $0x12f8] sm:$0xff]
        %v996 = vld [vmem:[#allocation2 + $0x1300] sm:$0xff]
        %v997 = vld [vmem:[#allocation2 + $0x1308] sm:$0xff]
        %v998 = vld [vmem:[#allocation2 + $0x1310] sm:$0xff]
        %v999 = vld [vmem:[#allocation2 + $0x1318] sm:$0xff]
        %v1000 = vld [vmem:[#allocation2 + $0x1480] sm:$0xff]
        %v1001 = vld [vmem:[#allocation2 + $0x1488] sm:$0xff]
        %v1002 = vld [vmem:[#allocation2 + $0x1490] sm:$0xff]
        %v1003 = vld [vmem:[#allocation2 + $0x1498] sm:$0xff]
        %v1004 = vld [vmem:[#allocation2 + $0x14a0] sm:$0xff]
        %v1005 = vld [vmem:[#allocation2 + $0x14a8] sm:$0xff]
        %v1006 = vld [vmem:[#allocation2 + $0x1610] sm:$0xff]
        %v1007 = vld [vmem:[#allocation2 + $0x1618] sm:$0xff]
        %v1008 = vld [vmem:[#allocation2 + $0x1620] sm:$0xff]
        %v1009 = vld [vmem:[#allocation2 + $0x1628] sm:$0xff]
        %v1010 = vld [vmem:[#allocation2 + $0x1630] sm:$0xff]
        %v1011 = vld [vmem:[#allocation2 + $0x1638] sm:$0xff]
        %v1012 = vld [vmem:[#allocation2 + $0x17a0] sm:$0xff]
        %v1013 = vld [vmem:[#allocation2 + $0x17a8] sm:$0xff]
        %v1014 = vld [vmem:[#allocation2 + $0x17b0] sm:$0xff]
        %v1015 = vld [vmem:[#allocation2 + $0x17b8] sm:$0xff]
        %v1016 = vld [vmem:[#allocation2 + $0x17c0] sm:$0xff]
        %v1017 = vld [vmem:[#allocation2 + $0x17c8] sm:$0xff]
        %v1018 = vld [vmem:[#allocation2 + $0x1930] sm:$0xff]
        %v1019 = vld [vmem:[#allocation2 + $0x1938] sm:$0xff]
        %v1020 = vld [vmem:[#allocation2 + $0x1940] sm:$0xff]
        %v1021 = vld [vmem:[#allocation2 + $0x1948] sm:$0xff]
        %v1022 = vld [vmem:[#allocation2 + $0x1950] sm:$0xff]
        %v1023 = vld [vmem:[#allocation2 + $0x1958] sm:$0xff]
        %v1024 = vld [vmem:[#allocation2 + $0x1ac0] sm:$0xff]
        %v1025 = vld [vmem:[#allocation2 + $0x1ac8] sm:$0xff]
        %v1026 = vld [vmem:[#allocation2 + $0x1ad0] sm:$0xff]
        %v1027 = vld [vmem:[#allocation2 + $0x1ad8] sm:$0xff]
        %v1028 = vld [vmem:[#allocation2 + $0x1ae0] sm:$0xff]
        %v1029 = vld [vmem:[#allocation2 + $0x1ae8] sm:$0xff]
        %v1030 = vld [vmem:[#allocation2 + $0x1c50] sm:$0xff]
        %v1031 = vld [vmem:[#allocation2 + $0x1c58] sm:$0xff]
        %v1032 = vld [vmem:[#allocation2 + $0x1c60] sm:$0xff]
        %v1033 = vld [vmem:[#allocation2 + $0x1c68] sm:$0xff]
        %v1034 = vld [vmem:[#allocation2 + $0x1c70] sm:$0xff]
        %v1035 = vld [vmem:[#allocation2 + $0x1c78] sm:$0xff]
        %v1036 = vld [vmem:[#allocation2 + $0x1de0] sm:$0xff]
        %v1037 = vld [vmem:[#allocation2 + $0x1de8] sm:$0xff]
        %v1038 = vld [vmem:[#allocation2 + $0x1df0] sm:$0xff]
        %v1039 = vld [vmem:[#allocation2 + $0x1df8] sm:$0xff]
        %v1040 = vld [vmem:[#allocation2 + $0x1e00] sm:$0xff]
        %v1041 = vld [vmem:[#allocation2 + $0x1e08] sm:$0xff]
        %v1042 = vld [vmem:[#allocation2 + $0x1f70] sm:$0xff]
        %v1043 = vld [vmem:[#allocation2 + $0x1f78] sm:$0xff]
        %v1044 = vld [vmem:[#allocation2 + $0x1f80] sm:$0xff]
        %v1045 = vld [vmem:[#allocation2 + $0x1f88] sm:$0xff]
        %v1046 = vld [vmem:[#allocation2 + $0x1f90] sm:$0xff]
        %v1047 = vld [vmem:[#allocation2 + $0x1f98] sm:$0xff]
        %v1048 = vld [vmem:[#allocation2 + $0x2100] sm:$0xff]
        %v1049 = vld [vmem:[#allocation2 + $0x2108] sm:$0xff]
        %v1050 = vld [vmem:[#allocation2 + $0x2110] sm:$0xff]
        %v1051 = vld [vmem:[#allocation2 + $0x2118] sm:$0xff]
        %v1052 = vld [vmem:[#allocation2 + $0x2120] sm:$0xff]
        %v1053 = vld [vmem:[#allocation2 + $0x2128] sm:$0xff]
        %v1054 = vld [vmem:[#allocation2 + $0x2290] sm:$0xff]
        %v1055 = vld [vmem:[#allocation2 + $0x2298] sm:$0xff]
        %v1056 = vld [vmem:[#allocation2 + $0x22a0] sm:$0xff]
        %v1057 = vld [vmem:[#allocation2 + $0x22a8] sm:$0xff]
        %v1058 = vld [vmem:[#allocation2 + $0x22b0] sm:$0xff]
        %v1059 = vld [vmem:[#allocation2 + $0x22b8] sm:$0xff]
        %v1060 = vld [vmem:[#allocation2 + $0x2420] sm:$0xff]
        %v1061 = vld [vmem:[#allocation2 + $0x2428] sm:$0xff]
        %v1062 = vld [vmem:[#allocation2 + $0x2430] sm:$0xff]
        %v1063 = vld [vmem:[#allocation2 + $0x2438] sm:$0xff]
        %v1064 = vld [vmem:[#allocation2 + $0x2440] sm:$0xff]
        %v1065 = vld [vmem:[#allocation2 + $0x2448] sm:$0xff]
        %v1066 = vld [vmem:[#allocation2 + $0x25b0] sm:$0xff]
        %v1067 = vld [vmem:[#allocation2 + $0x25b8] sm:$0xff]
        %v1068 = vld [vmem:[#allocation2 + $0x25c0] sm:$0xff]
        %v1069 = vld [vmem:[#allocation2 + $0x25c8] sm:$0xff]
        %v1070 = vld [vmem:[#allocation2 + $0x25d0] sm:$0xff]
        %v1071 = vld [vmem:[#allocation2 + $0x25d8] sm:$0xff]
        %v1072 = vld [vmem:[#allocation2 + $0x2740] sm:$0xff]
        %v1073 = vld [vmem:[#allocation2 + $0x2748] sm:$0xff]
        %v1074 = vld [vmem:[#allocation2 + $0x2750] sm:$0xff]
        %v1075 = vld [vmem:[#allocation2 + $0x2758] sm:$0xff]
        %v1076 = vld [vmem:[#allocation2 + $0x2760] sm:$0xff]
        %v1077 = vld [vmem:[#allocation2 + $0x2768] sm:$0xff]
        %v1078 = vld [vmem:[#allocation2 + $0x28d0] sm:$0xff]
        %v1079 = vld [vmem:[#allocation2 + $0x28d8] sm:$0xff]
        %v1080 = vld [vmem:[#allocation2 + $0x28e0] sm:$0xff]
        %v1081 = vld [vmem:[#allocation2 + $0x28e8] sm:$0xff]
        %v1082 = vld [vmem:[#allocation2 + $0x28f0] sm:$0xff]
        %v1083 = vld [vmem:[#allocation2 + $0x28f8] sm:$0xff]
        %v1084 = vld [vmem:[#allocation2 + $0x2a60] sm:$0xff]
        %v1085 = vld [vmem:[#allocation2 + $0x2a68] sm:$0xff]
        %v1086 = vld [vmem:[#allocation2 + $0x2a70] sm:$0xff]
        %v1087 = vld [vmem:[#allocation2 + $0x2a78] sm:$0xff]
        %v1088 = vld [vmem:[#allocation2 + $0x2a80] sm:$0xff]
        %v1089 = vld [vmem:[#allocation2 + $0x2a88] sm:$0xff]
        %v1090 = vld [vmem:[#allocation2 + $0x2bf0] sm:$0xff]
        %v1091 = vld [vmem:[#allocation2 + $0x2bf8] sm:$0xff]
        %v1092 = vld [vmem:[#allocation2 + $0x2c00] sm:$0xff]
        %v1093 = vld [vmem:[#allocation2 + $0x2c08] sm:$0xff]
        %v1094 = vld [vmem:[#allocation2 + $0x2c10] sm:$0xff]
        %v1095 = vld [vmem:[#allocation2 + $0x2c18] sm:$0xff]
        %v1096 = vld [vmem:[#allocation2 + $0x2d80] sm:$0xff]
        %v1097 = vld [vmem:[#allocation2 + $0x2d88] sm:$0xff]
        %v1098 = vld [vmem:[#allocation2 + $0x2d90] sm:$0xff]
        %v1099 = vld [vmem:[#allocation2 + $0x2d98] sm:$0xff]
        %v1100 = vld [vmem:[#allocation2 + $0x2da0] sm:$0xff]
        %v1101 = vld [vmem:[#allocation2 + $0x2da8] sm:$0xff]
        %v1102 = vld [vmem:[#allocation2 + $0x2f10] sm:$0xff]
        %v1103 = vld [vmem:[#allocation2 + $0x2f18] sm:$0xff]
        %v1104 = vld [vmem:[#allocation2 + $0x2f20] sm:$0xff]
        %v1105 = vld [vmem:[#allocation2 + $0x2f28] sm:$0xff]
        %v1106 = vld [vmem:[#allocation2 + $0x2f30] sm:$0xff]
        %v1107 = vld [vmem:[#allocation2 + $0x2f38] sm:$0xff]
        %v1108 = vld [vmem:[#allocation2 + $0x30a0] sm:$0xff]
        %v1109 = vld [vmem:[#allocation2 + $0x30a8] sm:$0xff]
        %v1110 = vld [vmem:[#allocation2 + $0x30b0] sm:$0xff]
        %v1111 = vld [vmem:[#allocation2 + $0x30b8] sm:$0xff]
        %v1112 = vld [vmem:[#allocation2 + $0x30c0] sm:$0xff]
        %v1113 = vld [vmem:[#allocation2 + $0x30c8] sm:$0xff]
        %1114 = vmatprep.subr.mxu0 %v923
        %1115 = vmatpush1.msra.mxu0 %v922
        %1116 = vmatprep.subr.mxu0 %v929
        %1117 = vmatpush1.msra.mxu0 %v928
        %1118 = vmatprep.subr.mxu0 %v935
        %1119 = vmatpush1.msra.mxu0 %v934
        %1120 = vmatprep.subr.mxu0 %v941
        %1121 = vmatpush1.msra.mxu0 %v940
        %1122 = vmatprep.subr.mxu0 %v947
        %1123 = vmatpush1.msra.mxu0 %v946
        %1124 = vmatprep.subr.mxu0 %v953
        %1125 = vmatpush1.msra.mxu0 %v952
        %1126 = vmatprep.subr.mxu0 %v959
        %1127 = vmatpush1.msra.mxu0 %v958
        %1128 = vmatprep.subr.mxu0 %v965
        %1129 = vmatpush1.msra.mxu0 %v964
        %1130 = vmatprep.subr.mxu0 %v971
        %1131 = vmatpush1.msra.mxu0 %v970
        %1132 = vmatprep.subr.mxu0 %v977
        %1133 = vmatpush1.msra.mxu0 %v976
        %1134 = vmatprep.subr.mxu0 %v983
        %1135 = vmatpush1.msra.mxu0 %v982
        %1136 = vmatprep.subr.mxu0 %v989
        %1137 = vmatpush1.msra.mxu0 %v988
        %1138 = vmatprep.subr.mxu0 %v995
        %1139 = vmatpush1.msra.mxu0 %v994
        %1140 = vmatprep.subr.mxu0 %v1001
        %1141 = vmatpush1.msra.mxu0 %v1000
        %1142 = vmatprep.subr.mxu0 %v1007
        %1143 = vmatpush1.msra.mxu0 %v1006
        %1144 = vmatprep.subr.mxu0 %v1013
        %1145 = vmatpush1.msra.mxu0 %v1012
        %1146 = vmatprep.subr.mxu0 %v1019
        %1147 = vmatpush1.msra.mxu0 %v1018
        %1148 = vmatprep.subr.mxu0 %v1025
        %1149 = vmatpush1.msra.mxu0 %v1024
        %1150 = vmatprep.subr.mxu0 %v1031
        %1151 = vmatpush1.msra.mxu0 %v1030
        %1152 = vmatprep.subr.mxu0 %v1037
        %1153 = vmatpush1.msra.mxu0 %v1036
        %1154 = vmatprep.subr.mxu0 %v1043
        %1155 = vmatpush1.msra.mxu0 %v1042
        %1156 = vmatprep.subr.mxu0 %v1049
        %1157 = vmatpush1.msra.mxu0 %v1048
        %1158 = vmatprep.subr.mxu0 %v1055
        %1159 = vmatpush1.msra.mxu0 %v1054
        %1160 = vmatprep.subr.mxu0 %v1061
        %1161 = vmatpush1.msra.mxu0 %v1060
        %1162 = vmatprep.subr.mxu0 %v1067
        %1163 = vmatpush1.msra.mxu0 %v1066
        %1164 = vmatprep.subr.mxu0 %v1073
        %1165 = vmatpush1.msra.mxu0 %v1072
        %1166 = vmatprep.subr.mxu0 %v1079
        %1167 = vmatpush1.msra.mxu0 %v1078
        %1168 = vmatprep.subr.mxu0 %v1085
        %1169 = vmatpush1.msra.mxu0 %v1084
        %1170 = vmatprep.subr.mxu0 %v1091
        %1171 = vmatpush1.msra.mxu0 %v1090
        %1172 = vmatprep.subr.mxu0 %v1097
        %1173 = vmatpush1.msra.mxu0 %v1096
        %1174 = vmatprep.subr.mxu0 %v1103
        %1175 = vmatpush1.msra.mxu0 %v1102
        %1176 = vmatprep.subr.mxu0 %v1109
        %1177 = vmatpush1.msra.mxu0 %v1108
        %1178 = vmatprep.mubr.f32.mxu0 %v458
        %1179 = vmatmul.mubr.f32.gmra.mrb[0].mxu0 %v263
        %v1180 = vpop.f32.mrb[0].mxu0
        %v1181 = vadd.f32 0.0, %v1180
        %v1182 = vpop.f32.mrb[0].mxu0
        %v1183 = vadd.f32 0.0, %v1182
        %1184 = vdwg.mxu0
        %1185 = vmatprep.subr.mxu0 %v925
        %1186 = vmatpush1.msra.mxu0 %v924
        %1187 = vmatprep.subr.mxu0 %v931
        %1188 = vmatpush1.msra.mxu0 %v930
        %1189 = vmatprep.subr.mxu0 %v937
        %1190 = vmatpush1.msra.mxu0 %v936
        %1191 = vmatprep.subr.mxu0 %v943
        %1192 = vmatpush1.msra.mxu0 %v942
        %1193 = vmatprep.subr.mxu0 %v949
        %1194 = vmatpush1.msra.mxu0 %v948
        %1195 = vmatprep.subr.mxu0 %v955
        %1196 = vmatpush1.msra.mxu0 %v954
        %1197 = vmatprep.subr.mxu0 %v961
        %1198 = vmatpush1.msra.mxu0 %v960
        %1199 = vmatprep.subr.mxu0 %v967
        %1200 = vmatpush1.msra.mxu0 %v966
        %1201 = vmatprep.subr.mxu0 %v973
        %1202 = vmatpush1.msra.mxu0 %v972
        %1203 = vmatprep.subr.mxu0 %v979
        %1204 = vmatpush1.msra.mxu0 %v978
        %1205 = vmatprep.subr.mxu0 %v985
        %1206 = vmatpush1.msra.mxu0 %v984
        %1207 = vmatprep.subr.mxu0 %v991
        %1208 = vmatpush1.msra.mxu0 %v990
        %1209 = vmatprep.subr.mxu0 %v997
        %1210 = vmatpush1.msra.mxu0 %v996
        %1211 = vmatprep.subr.mxu0 %v1003
        %1212 = vmatpush1.msra.mxu0 %v1002
        %1213 = vmatprep.subr.mxu0 %v1009
        %1214 = vmatpush1.msra.mxu0 %v1008
        %1215 = vmatprep.subr.mxu0 %v1015
        %1216 = vmatpush1.msra.mxu0 %v1014
        %1217 = vmatprep.subr.mxu0 %v1021
        %1218 = vmatpush1.msra.mxu0 %v1020
        %1219 = vmatprep.subr.mxu0 %v1027
        %1220 = vmatpush1.msra.mxu0 %v1026
        %1221 = vmatprep.subr.mxu0 %v1033
        %1222 = vmatpush1.msra.mxu0 %v1032
        %1223 = vmatprep.subr.mxu0 %v1039
        %1224 = vmatpush1.msra.mxu0 %v1038
        %1225 = vmatprep.subr.mxu0 %v1045
        %1226 = vmatpush1.msra.mxu0 %v1044
        %1227 = vmatprep.subr.mxu0 %v1051
        %1228 = vmatpush1.msra.mxu0 %v1050
        %1229 = vmatprep.subr.mxu0 %v1057
        %1230 = vmatpush1.msra.mxu0 %v1056
        %1231 = vmatprep.subr.mxu0 %v1063
        %1232 = vmatpush1.msra.mxu0 %v1062
        %1233 = vmatprep.subr.mxu0 %v1069
        %1234 = vmatpush1.msra.mxu0 %v1068
        %1235 = vmatprep.subr.mxu0 %v1075
        %1236 = vmatpush1.msra.mxu0 %v1074
        %1237 = vmatprep.subr.mxu0 %v1081
        %1238 = vmatpush1.msra.mxu0 %v1080
        %1239 = vmatprep.subr.mxu0 %v1087
        %1240 = vmatpush1.msra.mxu0 %v1086
        %1241 = vmatprep.subr.mxu0 %v1093
        %1242 = vmatpush1.msra.mxu0 %v1092
        %1243 = vmatprep.subr.mxu0 %v1099
        %1244 = vmatpush1.msra.mxu0 %v1098
        %1245 = vmatprep.subr.mxu0 %v1105
        %1246 = vmatpush1.msra.mxu0 %v1104
        %1247 = vmatprep.subr.mxu0 %v1111
        %1248 = vmatpush1.msra.mxu0 %v1110
        %1249 = vmatprep.mubr.f32.mxu0 %v458
        %1250 = vmatmul.mubr.f32.gmra.mrb[0].mxu0 %v263
        %v1251 = vpop.f32.mrb[0].mxu0
        %v1252 = vadd.f32 0.0, %v1251
        %v1253 = vpop.f32.mrb[0].mxu0
        %v1254 = vadd.f32 0.0, %v1253
        %1255 = vdwg.mxu0
        %1256 = vmatprep.subr.mxu0 %v927
        %1257 = vmatpush1.msra.mxu0 %v926
        %1258 = vmatprep.subr.mxu0 %v933
        %1259 = vmatpush1.msra.mxu0 %v932
        %1260 = vmatprep.subr.mxu0 %v939
        %1261 = vmatpush1.msra.mxu0 %v938
        %1262 = vmatprep.subr.mxu0 %v945
        %1263 = vmatpush1.msra.mxu0 %v944
        %1264 = vmatprep.subr.mxu0 %v951
        %1265 = vmatpush1.msra.mxu0 %v950
        %1266 = vmatprep.subr.mxu0 %v957
        %1267 = vmatpush1.msra.mxu0 %v956
        %1268 = vmatprep.subr.mxu0 %v963
        %1269 = vmatpush1.msra.mxu0 %v962
        %1270 = vmatprep.subr.mxu0 %v969
        %1271 = vmatpush1.msra.mxu0 %v968
        %1272 = vmatprep.subr.mxu0 %v975
        %1273 = vmatpush1.msra.mxu0 %v974
        %1274 = vmatprep.subr.mxu0 %v981
        %1275 = vmatpush1.msra.mxu0 %v980
        %1276 = vmatprep.subr.mxu0 %v987
        %1277 = vmatpush1.msra.mxu0 %v986
        %1278 = vmatprep.subr.mxu0 %v993
        %1279 = vmatpush1.msra.mxu0 %v992
        %1280 = vmatprep.subr.mxu0 %v999
        %1281 = vmatpush1.msra.mxu0 %v998
        %1282 = vmatprep.subr.mxu0 %v1005
        %1283 = vmatpush1.msra.mxu0 %v1004
        %1284 = vmatprep.subr.mxu0 %v1011
        %1285 = vmatpush1.msra.mxu0 %v1010
        %1286 = vmatprep.subr.mxu0 %v1017
        %1287 = vmatpush1.msra.mxu0 %v1016
        %1288 = vmatprep.subr.mxu0 %v1023
        %1289 = vmatpush1.msra.mxu0 %v1022
        %1290 = vmatprep.subr.mxu0 %v1029
        %1291 = vmatpush1.msra.mxu0 %v1028
        %1292 = vmatprep.subr.mxu0 %v1035
        %1293 = vmatpush1.msra.mxu0 %v1034
        %1294 = vmatprep.subr.mxu0 %v1041
        %1295 = vmatpush1.msra.mxu0 %v1040
        %1296 = vmatprep.subr.mxu0 %v1047
        %1297 = vmatpush1.msra.mxu0 %v1046
        %1298 = vmatprep.subr.mxu0 %v1053
        %1299 = vmatpush1.msra.mxu0 %v1052
        %1300 = vmatprep.subr.mxu0 %v1059
        %1301 = vmatpush1.msra.mxu0 %v1058
        %1302 = vmatprep.subr.mxu0 %v1065
        %1303 = vmatpush1.msra.mxu0 %v1064
        %1304 = vmatprep.subr.mxu0 %v1071
        %1305 = vmatpush1.msra.mxu0 %v1070
        %1306 = vmatprep.subr.mxu0 %v1077
        %1307 = vmatpush1.msra.mxu0 %v1076
        %1308 = vmatprep.subr.mxu0 %v1083
        %1309 = vmatpush1.msra.mxu0 %v1082
        %1310 = vmatprep.subr.mxu0 %v1089
        %1311 = vmatpush1.msra.mxu0 %v1088
        %1312 = vmatprep.subr.mxu0 %v1095
        %1313 = vmatpush1.msra.mxu0 %v1094
        %1314 = vmatprep.subr.mxu0 %v1101
        %1315 = vmatpush1.msra.mxu0 %v1100
        %1316 = vmatprep.subr.mxu0 %v1107
        %1317 = vmatpush1.msra.mxu0 %v1106
        %1318 = vmatprep.subr.mxu0 %v1113
        %1319 = vmatpush1.msra.mxu0 %v1112
        %1320 = vmatprep.mubr.f32.mxu0 %v458
        %1321 = vmatmul.mubr.f32.gmra.mrb[0].mxu0 %v263
        %v1322 = vpop.f32.mrb[0].mxu0
        %v1323 = vadd.f32 0.0, %v1322
        %v1324 = vpop.f32.mrb[0].mxu0
        %v1325 = vadd.f32 0.0, %v1324
        %1326 = vdwg.mxu0
        %s1327 = scalar_lea.vmem %s2, 24
        %v1328 = vld [vmem:[%s1327] sm:$0xff]
        %v1330 = vsel %vm676, %v1328, 0
        %v1333 = vsel %vm680, %v1181, 0
        %v1336 = vsel %vm680, %v1183, 0
        %1338 = vmatprep.subr.mxu0 %v1336
        %1339 = vmatpush1.msra.mxu0 %v1333
        %1340 = vmatprep.subr.mxu0 0.0
        %1341 = vmatpush1.msra.mxu0 0.0
        %1342 = vmatprep.subr.mxu0 0.0
        %1343 = vmatpush1.msra.mxu0 0.0
        %1344 = vmatprep.subr.mxu0 0.0
        %1345 = vmatpush1.msra.mxu0 0.0
        %1346 = vmatprep.subr.mxu0 0.0
        %1347 = vmatpush1.msra.mxu0 0.0
        %1348 = vmatprep.subr.mxu0 0.0
        %1349 = vmatpush1.msra.mxu0 0.0
        %1350 = vmatprep.subr.mxu0 0.0
        %1351 = vmatpush1.msra.mxu0 0.0
        %1352 = vmatprep.subr.mxu0 0.0
        %1353 = vmatpush1.msra.mxu0 0.0
        %1354 = vmatprep.subr.mxu0 0.0
        %1355 = vmatpush1.msra.mxu0 0.0
        %1356 = vmatprep.subr.mxu0 0.0
        %1357 = vmatpush1.msra.mxu0 0.0
        %1358 = vmatprep.subr.mxu0 0.0
        %1359 = vmatpush1.msra.mxu0 0.0
        %1360 = vmatprep.subr.mxu0 0.0
        %1361 = vmatpush1.msra.mxu0 0.0
        %1362 = vmatprep.subr.mxu0 0.0
        %1363 = vmatpush1.msra.mxu0 0.0
        %1364 = vmatprep.subr.mxu0 0.0
        %1365 = vmatpush1.msra.mxu0 0.0
        %1366 = vmatprep.subr.mxu0 0.0
        %1367 = vmatpush1.msra.mxu0 0.0
        %1368 = vmatprep.subr.mxu0 0.0
        %1369 = vmatpush1.msra.mxu0 0.0
        %1370 = vmatprep.subr.mxu0 0.0
        %1371 = vmatpush1.msra.mxu0 0.0
        %1372 = vmatprep.subr.mxu0 0.0
        %1373 = vmatpush1.msra.mxu0 0.0
        %1374 = vmatprep.subr.mxu0 0.0
        %1375 = vmatpush1.msra.mxu0 0.0
        %1376 = vmatprep.subr.mxu0 0.0
        %1377 = vmatpush1.msra.mxu0 0.0
        %1378 = vmatprep.subr.mxu0 0.0
        %1379 = vmatpush1.msra.mxu0 0.0
        %1380 = vmatprep.subr.mxu0 0.0
        %1381 = vmatpush1.msra.mxu0 0.0
        %1382 = vmatprep.subr.mxu0 0.0
        %1383 = vmatpush1.msra.mxu0 0.0
        %1384 = vmatprep.subr.mxu0 0.0
        %1385 = vmatpush1.msra.mxu0 0.0
        %1386 = vmatprep.subr.mxu0 0.0
        %1387 = vmatpush1.msra.mxu0 0.0
        %1388 = vmatprep.subr.mxu0 0.0
        %1389 = vmatpush1.msra.mxu0 0.0
        %1390 = vmatprep.subr.mxu0 0.0
        %1391 = vmatpush1.msra.mxu0 0.0
        %1392 = vmatprep.subr.mxu0 0.0
        %1393 = vmatpush1.msra.mxu0 0.0
        %1394 = vmatprep.subr.mxu0 0.0
        %1395 = vmatpush1.msra.mxu0 0.0
        %1396 = vmatprep.subr.mxu0 0.0
        %1397 = vmatpush1.msra.mxu0 0.0
        %1398 = vmatprep.subr.mxu0 0.0
        %1399 = vmatpush1.msra.mxu0 0.0
        %1400 = vmatprep.subr.mxu0 0.0
        %1401 = vmatpush1.msra.mxu0 0.0
        %1402 = vmatprep.mubr.f32.mxu0 0.0
        %1403 = vmatmul.mubr.f32.gmra.mrb[0].mxu0 %v1330
        %v1404 = vpop.f32.mrb[0].mxu0
        %v1405 = vadd.f32 0.0, %v1404
        %v1406 = vpop.f32.mrb[0].mxu0
        %v1407 = vadd.f32 0.0, %v1406
        %1408 = vdwg.mxu0
        %v1409 = vadd.f32 %v920, %v1405
        %v1410 = vadd.f32 %v921, %v1407
        %s1411 = scalar_lea.vmem %s2, 32
        %v1412 = vld [vmem:[%s1411] sm:$0xff]
        %v1414 = vsel %vm676, %v1412, 0
        %v1417 = vsel %vm680, %v1252, 0
        %v1420 = vsel %vm680, %v1254, 0
        %1422 = vmatprep.subr.mxu0 %v1420
        %1423 = vmatpush1.msra.mxu0 %v1417
        %1424 = vmatprep.subr.mxu0 0.0
        %1425 = vmatpush1.msra.mxu0 0.0
        %1426 = vmatprep.subr.mxu0 0.0
        %1427 = vmatpush1.msra.mxu0 0.0
        %1428 = vmatprep.subr.mxu0 0.0
        %1429 = vmatpush1.msra.mxu0 0.0
        %1430 = vmatprep.subr.mxu0 0.0
        %1431 = vmatpush1.msra.mxu0 0.0
        %1432 = vmatprep.subr.mxu0 0.0
        %1433 = vmatpush1.msra.mxu0 0.0
        %1434 = vmatprep.subr.mxu0 0.0
        %1435 = vmatpush1.msra.mxu0 0.0
        %1436 = vmatprep.subr.mxu0 0.0
        %1437 = vmatpush1.msra.mxu0 0.0
        %1438 = vmatprep.subr.mxu0 0.0
        %1439 = vmatpush1.msra.mxu0 0.0
        %1440 = vmatprep.subr.mxu0 0.0
        %1441 = vmatpush1.msra.mxu0 0.0
        %1442 = vmatprep.subr.mxu0 0.0
        %1443 = vmatpush1.msra.mxu0 0.0
        %1444 = vmatprep.subr.mxu0 0.0
        %1445 = vmatpush1.msra.mxu0 0.0
        %1446 = vmatprep.subr.mxu0 0.0
        %1447 = vmatpush1.msra.mxu0 0.0
        %1448 = vmatprep.subr.mxu0 0.0
        %1449 = vmatpush1.msra.mxu0 0.0
        %1450 = vmatprep.subr.mxu0 0.0
        %1451 = vmatpush1.msra.mxu0 0.0
        %1452 = vmatprep.subr.mxu0 0.0
        %1453 = vmatpush1.msra.mxu0 0.0
        %1454 = vmatprep.subr.mxu0 0.0
        %1455 = vmatpush1.msra.mxu0 0.0
        %1456 = vmatprep.subr.mxu0 0.0
        %1457 = vmatpush1.msra.mxu0 0.0
        %1458 = vmatprep.subr.mxu0 0.0
        %1459 = vmatpush1.msra.mxu0 0.0
        %1460 = vmatprep.subr.mxu0 0.0
        %1461 = vmatpush1.msra.mxu0 0.0
        %1462 = vmatprep.subr.mxu0 0.0
        %1463 = vmatpush1.msra.mxu0 0.0
        %1464 = vmatprep.subr.mxu0 0.0
        %1465 = vmatpush1.msra.mxu0 0.0
        %1466 = vmatprep.subr.mxu0 0.0
        %1467 = vmatpush1.msra.mxu0 0.0
        %1468 = vmatprep.subr.mxu0 0.0
        %1469 = vmatpush1.msra.mxu0 0.0
        %1470 = vmatprep.subr.mxu0 0.0
        %1471 = vmatpush1.msra.mxu0 0.0
        %1472 = vmatprep.subr.mxu0 0.0
        %1473 = vmatpush1.msra.mxu0 0.0
        %1474 = vmatprep.subr.mxu0 0.0
        %1475 = vmatpush1.msra.mxu0 0.0
        %1476 = vmatprep.subr.mxu0 0.0
        %1477 = vmatpush1.msra.mxu0 0.0
        %1478 = vmatprep.subr.mxu0 0.0
        %1479 = vmatpush1.msra.mxu0 0.0
        %1480 = vmatprep.subr.mxu0 0.0
        %1481 = vmatpush1.msra.mxu0 0.0
        %1482 = vmatprep.subr.mxu0 0.0
        %1483 = vmatpush1.msra.mxu0 0.0
        %1484 = vmatprep.subr.mxu0 0.0
        %1485 = vmatpush1.msra.mxu0 0.0
        %1486 = vmatprep.mubr.f32.mxu0 0.0
        %1487 = vmatmul.mubr.f32.gmra.mrb[0].mxu0 %v1414
        %v1488 = vpop.f32.mrb[0].mxu0
        %v1489 = vadd.f32 0.0, %v1488
        %v1490 = vpop.f32.mrb[0].mxu0
        %v1491 = vadd.f32 0.0, %v1490
        %1492 = vdwg.mxu0
        %v1493 = vadd.f32 %v1409, %v1489
        %v1494 = vadd.f32 %v1410, %v1491
        %s1495 = scalar_lea.vmem %s2, 40
        %v1496 = vld [vmem:[%s1495] sm:$0xff]
        %v1498 = vsel %vm676, %v1496, 0
        %v1501 = vsel %vm680, %v1323, 0
        %v1504 = vsel %vm680, %v1325, 0
        %1506 = vmatprep.subr.mxu0 %v1504
        %1507 = vmatpush1.msra.mxu0 %v1501
        %1508 = vmatprep.subr.mxu0 0.0
        %1509 = vmatpush1.msra.mxu0 0.0
        %1510 = vmatprep.subr.mxu0 0.0
        %1511 = vmatpush1.msra.mxu0 0.0
        %1512 = vmatprep.subr.mxu0 0.0
        %1513 = vmatpush1.msra.mxu0 0.0
        %1514 = vmatprep.subr.mxu0 0.0
        %1515 = vmatpush1.msra.mxu0 0.0
        %1516 = vmatprep.subr.mxu0 0.0
        %1517 = vmatpush1.msra.mxu0 0.0
        %1518 = vmatprep.subr.mxu0 0.0
        %1519 = vmatpush1.msra.mxu0 0.0
        %1520 = vmatprep.subr.mxu0 0.0
        %1521 = vmatpush1.msra.mxu0 0.0
        %1522 = vmatprep.subr.mxu0 0.0
        %1523 = vmatpush1.msra.mxu0 0.0
        %1524 = vmatprep.subr.mxu0 0.0
        %1525 = vmatpush1.msra.mxu0 0.0
        %1526 = vmatprep.subr.mxu0 0.0
        %1527 = vmatpush1.msra.mxu0 0.0
        %1528 = vmatprep.subr.mxu0 0.0
        %1529 = vmatpush1.msra.mxu0 0.0
        %1530 = vmatprep.subr.mxu0 0.0
        %1531 = vmatpush1.msra.mxu0 0.0
        %1532 = vmatprep.subr.mxu0 0.0
        %1533 = vmatpush1.msra.mxu0 0.0
        %1534 = vmatprep.subr.mxu0 0.0
        %1535 = vmatpush1.msra.mxu0 0.0
        %1536 = vmatprep.subr.mxu0 0.0
        %1537 = vmatpush1.msra.mxu0 0.0
        %1538 = vmatprep.subr.mxu0 0.0
        %1539 = vmatpush1.msra.mxu0 0.0
        %1540 = vmatprep.subr.mxu0 0.0
        %1541 = vmatpush1.msra.mxu0 0.0
        %1542 = vmatprep.subr.mxu0 0.0
        %1543 = vmatpush1.msra.mxu0 0.0
        %1544 = vmatprep.subr.mxu0 0.0
        %1545 = vmatpush1.msra.mxu0 0.0
        %1546 = vmatprep.subr.mxu0 0.0
        %1547 = vmatpush1.msra.mxu0 0.0
        %1548 = vmatprep.subr.mxu0 0.0
        %1549 = vmatpush1.msra.mxu0 0.0
        %1550 = vmatprep.subr.mxu0 0.0
        %1551 = vmatpush1.msra.mxu0 0.0
        %1552 = vmatprep.subr.mxu0 0.0
        %1553 = vmatpush1.msra.mxu0 0.0
        %1554 = vmatprep.subr.mxu0 0.0
        %1555 = vmatpush1.msra.mxu0 0.0
        %1556 = vmatprep.subr.mxu0 0.0
        %1557 = vmatpush1.msra.mxu0 0.0
        %1558 = vmatprep.subr.mxu0 0.0
        %1559 = vmatpush1.msra.mxu0 0.0
        %1560 = vmatprep.subr.mxu0 0.0
        %1561 = vmatpush1.msra.mxu0 0.0
        %1562 = vmatprep.subr.mxu0 0.0
        %1563 = vmatpush1.msra.mxu0 0.0
        %1564 = vmatprep.subr.mxu0 0.0
        %1565 = vmatpush1.msra.mxu0 0.0
        %1566 = vmatprep.subr.mxu0 0.0
        %1567 = vmatpush1.msra.mxu0 0.0
        %1568 = vmatprep.subr.mxu0 0.0
        %1569 = vmatpush1.msra.mxu0 0.0
        %1570 = vmatprep.mubr.f32.mxu0 0.0
        %1571 = vmatmul.mubr.f32.gmra.mrb[0].mxu0 %v1498
        %v1572 = vpop.f32.mrb[0].mxu0
        %v1573 = vadd.f32 0.0, %v1572
        %v1574 = vpop.f32.mrb[0].mxu0
        %v1575 = vadd.f32 0.0, %v1574
        %1576 = vdwg.mxu0
        %v1577 = vadd.f32 %v1493, %v1573
        %v1578 = vadd.f32 %v1494, %v1575
        %v1579 = vld [vmem:[#allocation2 + $0x60] sm:$0xff]
        %v1580 = vld [vmem:[#allocation2 + $0x68] sm:$0xff]
        %v1581 = vld [vmem:[#allocation2 + $0x70] sm:$0xff]
        %v1582 = vld [vmem:[#allocation2 + $0x78] sm:$0xff]
        %v1583 = vld [vmem:[#allocation2 + $0x80] sm:$0xff]
        %v1584 = vld [vmem:[#allocation2 + $0x88] sm:$0xff]
        %v1585 = vld [vmem:[#allocation2 + $0x1f0] sm:$0xff]
        %v1586 = vld [vmem:[#allocation2 + $0x1f8] sm:$0xff]
        %v1587 = vld [vmem:[#allocation2 + $0x200] sm:$0xff]
        %v1588 = vld [vmem:[#allocation2 + $0x208] sm:$0xff]
        %v1589 = vld [vmem:[#allocation2 + $0x210] sm:$0xff]
        %v1590 = vld [vmem:[#allocation2 + $0x218] sm:$0xff]
        %v1591 = vld [vmem:[#allocation2 + $0x380] sm:$0xff]
        %v1592 = vld [vmem:[#allocation2 + $0x388] sm:$0xff]
        %v1593 = vld [vmem:[#allocation2 + $0x390] sm:$0xff]
        %v1594 = vld [vmem:[#allocation2 + $0x398] sm:$0xff]
        %v1595 = vld [vmem:[#allocation2 + $0x3a0] sm:$0xff]
        %v1596 = vld [vmem:[#allocation2 + $0x3a8] sm:$0xff]
        %v1597 = vld [vmem:[#allocation2 + $0x510] sm:$0xff]
        %v1598 = vld [vmem:[#allocation2 + $0x518] sm:$0xff]
        %v1599 = vld [vmem:[#allocation2 + $0x520] sm:$0xff]
        %v1600 = vld [vmem:[#allocation2 + $0x528] sm:$0xff]
        %v1601 = vld [vmem:[#allocation2 + $0x530] sm:$0xff]
        %v1602 = vld [vmem:[#allocation2 + $0x538] sm:$0xff]
        %v1603 = vld [vmem:[#allocation2 + $0x6a0] sm:$0xff]
        %v1604 = vld [vmem:[#allocation2 + $0x6a8] sm:$0xff]
        %v1605 = vld [vmem:[#allocation2 + $0x6b0] sm:$0xff]
        %v1606 = vld [vmem:[#allocation2 + $0x6b8] sm:$0xff]
        %v1607 = vld [vmem:[#allocation2 + $0x6c0] sm:$0xff]
        %v1608 = vld [vmem:[#allocation2 + $0x6c8] sm:$0xff]
        %v1609 = vld [vmem:[#allocation2 + $0x830] sm:$0xff]
        %v1610 = vld [vmem:[#allocation2 + $0x838] sm:$0xff]
        %v1611 = vld [vmem:[#allocation2 + $0x840] sm:$0xff]
        %v1612 = vld [vmem:[#allocation2 + $0x848] sm:$0xff]
        %v1613 = vld [vmem:[#allocation2 + $0x850] sm:$0xff]
        %v1614 = vld [vmem:[#allocation2 + $0x858] sm:$0xff]
        %v1615 = vld [vmem:[#allocation2 + $0x9c0] sm:$0xff]
        %v1616 = vld [vmem:[#allocation2 + $0x9c8] sm:$0xff]
        %v1617 = vld [vmem:[#allocation2 + $0x9d0] sm:$0xff]
        %v1618 = vld [vmem:[#allocation2 + $0x9d8] sm:$0xff]
        %v1619 = vld [vmem:[#allocation2 + $0x9e0] sm:$0xff]
        %v1620 = vld [vmem:[#allocation2 + $0x9e8] sm:$0xff]
        %v1621 = vld [vmem:[#allocation2 + $0xb50] sm:$0xff]
        %v1622 = vld [vmem:[#allocation2 + $0xb58] sm:$0xff]
        %v1623 = vld [vmem:[#allocation2 + $0xb60] sm:$0xff]
        %v1624 = vld [vmem:[#allocation2 + $0xb68] sm:$0xff]
        %v1625 = vld [vmem:[#allocation2 + $0xb70] sm:$0xff]
        %v1626 = vld [vmem:[#allocation2 + $0xb78] sm:$0xff]
        %v1627 = vld [vmem:[#allocation2 + $0xce0] sm:$0xff]
        %v1628 = vld [vmem:[#allocation2 + $0xce8] sm:$0xff]
        %v1629 = vld [vmem:[#allocation2 + $0xcf0] sm:$0xff]
        %v1630 = vld [vmem:[#allocation2 + $0xcf8] sm:$0xff]
        %v1631 = vld [vmem:[#allocation2 + $0xd00] sm:$0xff]
        %v1632 = vld [vmem:[#allocation2 + $0xd08] sm:$0xff]
        %v1633 = vld [vmem:[#allocation2 + $0xe70] sm:$0xff]
        %v1634 = vld [vmem:[#allocation2 + $0xe78] sm:$0xff]
        %v1635 = vld [vmem:[#allocation2 + $0xe80] sm:$0xff]
        %v1636 = vld [vmem:[#allocation2 + $0xe88] sm:$0xff]
        %v1637 = vld [vmem:[#allocation2 + $0xe90] sm:$0xff]
        %v1638 = vld [vmem:[#allocation2 + $0xe98] sm:$0xff]
        %v1639 = vld [vmem:[#allocation2 + $0x1000] sm:$0xff]
        %v1640 = vld [vmem:[#allocation2 + $0x1008] sm:$0xff]
        %v1641 = vld [vmem:[#allocation2 + $0x1010] sm:$0xff]
        %v1642 = vld [vmem:[#allocation2 + $0x1018] sm:$0xff]
        %v1643 = vld [vmem:[#allocation2 + $0x1020] sm:$0xff]
        %v1644 = vld [vmem:[#allocation2 + $0x1028] sm:$0xff]
        %v1645 = vld [vmem:[#allocation2 + $0x1190] sm:$0xff]
        %v1646 = vld [vmem:[#allocation2 + $0x1198] sm:$0xff]
        %v1647 = vld [vmem:[#allocation2 + $0x11a0] sm:$0xff]
        %v1648 = vld [vmem:[#allocation2 + $0x11a8] sm:$0xff]
        %v1649 = vld [vmem:[#allocation2 + $0x11b0] sm:$0xff]
        %v1650 = vld [vmem:[#allocation2 + $0x11b8] sm:$0xff]
        %v1651 = vld [vmem:[#allocation2 + $0x1320] sm:$0xff]
        %v1652 = vld [vmem:[#allocation2 + $0x1328] sm:$0xff]
        %v1653 = vld [vmem:[#allocation2 + $0x1330] sm:$0xff]
        %v1654 = vld [vmem:[#allocation2 + $0x1338] sm:$0xff]
        %v1655 = vld [vmem:[#allocation2 + $0x1340] sm:$0xff]
        %v1656 = vld [vmem:[#allocation2 + $0x1348] sm:$0xff]
        %v1657 = vld [vmem:[#allocation2 + $0x14b0] sm:$0xff]
        %v1658 = vld [vmem:[#allocation2 + $0x14b8] sm:$0xff]
        %v1659 = vld [vmem:[#allocation2 + $0x14c0] sm:$0xff]
        %v1660 = vld [vmem:[#allocation2 + $0x14c8] sm:$0xff]
        %v1661 = vld [vmem:[#allocation2 + $0x14d0] sm:$0xff]
        %v1662 = vld [vmem:[#allocation2 + $0x14d8] sm:$0xff]
        %v1663 = vld [vmem:[#allocation2 + $0x1640] sm:$0xff]
        %v1664 = vld [vmem:[#allocation2 + $0x1648] sm:$0xff]
        %v1665 = vld [vmem:[#allocation2 + $0x1650] sm:$0xff]
        %v1666 = vld [vmem:[#allocation2 + $0x1658] sm:$0xff]
        %v1667 = vld [vmem:[#allocation2 + $0x1660] sm:$0xff]
        %v1668 = vld [vmem:[#allocation2 + $0x1668] sm:$0xff]
        %v1669 = vld [vmem:[#allocation2 + $0x17d0] sm:$0xff]
        %v1670 = vld [vmem:[#allocation2 + $0x17d8] sm:$0xff]
        %v1671 = vld [vmem:[#allocation2 + $0x17e0] sm:$0xff]
        %v1672 = vld [vmem:[#allocation2 + $0x17e8] sm:$0xff]
        %v1673 = vld [vmem:[#allocation2 + $0x17f0] sm:$0xff]
        %v1674 = vld [vmem:[#allocation2 + $0x17f8] sm:$0xff]
        %v1675 = vld [vmem:[#allocation2 + $0x1960] sm:$0xff]
        %v1676 = vld [vmem:[#allocation2 + $0x1968] sm:$0xff]
        %v1677 = vld [vmem:[#allocation2 + $0x1970] sm:$0xff]
        %v1678 = vld [vmem:[#allocation2 + $0x1978] sm:$0xff]
        %v1679 = vld [vmem:[#allocation2 + $0x1980] sm:$0xff]
        %v1680 = vld [vmem:[#allocation2 + $0x1988] sm:$0xff]
        %v1681 = vld [vmem:[#allocation2 + $0x1af0] sm:$0xff]
        %v1682 = vld [vmem:[#allocation2 + $0x1af8] sm:$0xff]
        %v1683 = vld [vmem:[#allocation2 + $0x1b00] sm:$0xff]
        %v1684 = vld [vmem:[#allocation2 + $0x1b08] sm:$0xff]
        %v1685 = vld [vmem:[#allocation2 + $0x1b10] sm:$0xff]
        %v1686 = vld [vmem:[#allocation2 + $0x1b18] sm:$0xff]
        %v1687 = vld [vmem:[#allocation2 + $0x1c80] sm:$0xff]
        %v1688 = vld [vmem:[#allocation2 + $0x1c88] sm:$0xff]
        %v1689 = vld [vmem:[#allocation2 + $0x1c90] sm:$0xff]
        %v1690 = vld [vmem:[#allocation2 + $0x1c98] sm:$0xff]
        %v1691 = vld [vmem:[#allocation2 + $0x1ca0] sm:$0xff]
        %v1692 = vld [vmem:[#allocation2 + $0x1ca8] sm:$0xff]
        %v1693 = vld [vmem:[#allocation2 + $0x1e10] sm:$0xff]
        %v1694 = vld [vmem:[#allocation2 + $0x1e18] sm:$0xff]
        %v1695 = vld [vmem:[#allocation2 + $0x1e20] sm:$0xff]
        %v1696 = vld [vmem:[#allocation2 + $0x1e28] sm:$0xff]
        %v1697 = vld [vmem:[#allocation2 + $0x1e30] sm:$0xff]
        %v1698 = vld [vmem:[#allocation2 + $0x1e38] sm:$0xff]
        %v1699 = vld [vmem:[#allocation2 + $0x1fa0] sm:$0xff]
        %v1700 = vld [vmem:[#allocation2 + $0x1fa8] sm:$0xff]
        %v1701 = vld [vmem:[#allocation2 + $0x1fb0] sm:$0xff]
        %v1702 = vld [vmem:[#allocation2 + $0x1fb8] sm:$0xff]
        %v1703 = vld [vmem:[#allocation2 + $0x1fc0] sm:$0xff]
        %v1704 = vld [vmem:[#allocation2 + $0x1fc8] sm:$0xff]
        %v1705 = vld [vmem:[#allocation2 + $0x2130] sm:$0xff]
        %v1706 = vld [vmem:[#allocation2 + $0x2138] sm:$0xff]
        %v1707 = vld [vmem:[#allocation2 + $0x2140] sm:$0xff]
        %v1708 = vld [vmem:[#allocation2 + $0x2148] sm:$0xff]
        %v1709 = vld [vmem:[#allocation2 + $0x2150] sm:$0xff]
        %v1710 = vld [vmem:[#allocation2 + $0x2158] sm:$0xff]
        %v1711 = vld [vmem:[#allocation2 + $0x22c0] sm:$0xff]
        %v1712 = vld [vmem:[#allocation2 + $0x22c8] sm:$0xff]
        %v1713 = vld [vmem:[#allocation2 + $0x22d0] sm:$0xff]
        %v1714 = vld [vmem:[#allocation2 + $0x22d8] sm:$0xff]
        %v1715 = vld [vmem:[#allocation2 + $0x22e0] sm:$0xff]
        %v1716 = vld [vmem:[#allocation2 + $0x22e8] sm:$0xff]
        %v1717 = vld [vmem:[#allocation2 + $0x2450] sm:$0xff]
        %v1718 = vld [vmem:[#allocation2 + $0x2458] sm:$0xff]
        %v1719 = vld [vmem:[#allocation2 + $0x2460] sm:$0xff]
        %v1720 = vld [vmem:[#allocation2 + $0x2468] sm:$0xff]
        %v1721 = vld [vmem:[#allocation2 + $0x2470] sm:$0xff]
        %v1722 = vld [vmem:[#allocation2 + $0x2478] sm:$0xff]
        %v1723 = vld [vmem:[#allocation2 + $0x25e0] sm:$0xff]
        %v1724 = vld [vmem:[#allocation2 + $0x25e8] sm:$0xff]
        %v1725 = vld [vmem:[#allocation2 + $0x25f0] sm:$0xff]
        %v1726 = vld [vmem:[#allocation2 + $0x25f8] sm:$0xff]
        %v1727 = vld [vmem:[#allocation2 + $0x2600] sm:$0xff]
        %v1728 = vld [vmem:[#allocation2 + $0x2608] sm:$0xff]
        %v1729 = vld [vmem:[#allocation2 + $0x2770] sm:$0xff]
        %v1730 = vld [vmem:[#allocation2 + $0x2778] sm:$0xff]
        %v1731 = vld [vmem:[#allocation2 + $0x2780] sm:$0xff]
        %v1732 = vld [vmem:[#allocation2 + $0x2788] sm:$0xff]
        %v1733 = vld [vmem:[#allocation2 + $0x2790] sm:$0xff]
        %v1734 = vld [vmem:[#allocation2 + $0x2798] sm:$0xff]
        %v1735 = vld [vmem:[#allocation2 + $0x2900] sm:$0xff]
        %v1736 = vld [vmem:[#allocation2 + $0x2908] sm:$0xff]
        %v1737 = vld [vmem:[#allocation2 + $0x2910] sm:$0xff]
        %v1738 = vld [vmem:[#allocation2 + $0x2918] sm:$0xff]
        %v1739 = vld [vmem:[#allocation2 + $0x2920] sm:$0xff]
        %v1740 = vld [vmem:[#allocation2 + $0x2928] sm:$0xff]
        %v1741 = vld [vmem:[#allocation2 + $0x2a90] sm:$0xff]
        %v1742 = vld [vmem:[#allocation2 + $0x2a98] sm:$0xff]
        %v1743 = vld [vmem:[#allocation2 + $0x2aa0] sm:$0xff]
        %v1744 = vld [vmem:[#allocation2 + $0x2aa8] sm:$0xff]
        %v1745 = vld [vmem:[#allocation2 + $0x2ab0] sm:$0xff]
        %v1746 = vld [vmem:[#allocation2 + $0x2ab8] sm:$0xff]
        %v1747 = vld [vmem:[#allocation2 + $0x2c20] sm:$0xff]
        %v1748 = vld [vmem:[#allocation2 + $0x2c28] sm:$0xff]
        %v1749 = vld [vmem:[#allocation2 + $0x2c30] sm:$0xff]
        %v1750 = vld [vmem:[#allocation2 + $0x2c38] sm:$0xff]
        %v1751 = vld [vmem:[#allocation2 + $0x2c40] sm:$0xff]
        %v1752 = vld [vmem:[#allocation2 + $0x2c48] sm:$0xff]
        %v1753 = vld [vmem:[#allocation2 + $0x2db0] sm:$0xff]
        %v1754 = vld [vmem:[#allocation2 + $0x2db8] sm:$0xff]
        %v1755 = vld [vmem:[#allocation2 + $0x2dc0] sm:$0xff]
        %v1756 = vld [vmem:[#allocation2 + $0x2dc8] sm:$0xff]
        %v1757 = vld [vmem:[#allocation2 + $0x2dd0] sm:$0xff]
        %v1758 = vld [vmem:[#allocation2 + $0x2dd8] sm:$0xff]
        %v1759 = vld [vmem:[#allocation2 + $0x2f40] sm:$0xff]
        %v1760 = vld [vmem:[#allocation2 + $0x2f48] sm:$0xff]
        %v1761 = vld [vmem:[#allocation2 + $0x2f50] sm:$0xff]
        %v1762 = vld [vmem:[#allocation2 + $0x2f58] sm:$0xff]
        %v1763 = vld [vmem:[#allocation2 + $0x2f60] sm:$0xff]
        %v1764 = vld [vmem:[#allocation2 + $0x2f68] sm:$0xff]
        %v1765 = vld [vmem:[#allocation2 + $0x30d0] sm:$0xff]
        %v1766 = vld [vmem:[#allocation2 + $0x30d8] sm:$0xff]
        %v1767 = vld [vmem:[#allocation2 + $0x30e0] sm:$0xff]
        %v1768 = vld [vmem:[#allocation2 + $0x30e8] sm:$0xff]
        %v1769 = vld [vmem:[#allocation2 + $0x30f0] sm:$0xff]
        %v1770 = vld [vmem:[#allocation2 + $0x30f8] sm:$0xff]
        %1771 = vmatprep.subr.mxu0 %v1580
        %1772 = vmatpush1.msra.mxu0 %v1579
        %1773 = vmatprep.subr.mxu0 %v1586
        %1774 = vmatpush1.msra.mxu0 %v1585
        %1775 = vmatprep.subr.mxu0 %v1592
        %1776 = vmatpush1.msra.mxu0 %v1591
        %1777 = vmatprep.subr.mxu0 %v1598
        %1778 = vmatpush1.msra.mxu0 %v1597
        %1779 = vmatprep.subr.mxu0 %v1604
        %1780 = vmatpush1.msra.mxu0 %v1603
        %1781 = vmatprep.subr.mxu0 %v1610
        %1782 = vmatpush1.msra.mxu0 %v1609
        %1783 = vmatprep.subr.mxu0 %v1616
        %1784 = vmatpush1.msra.mxu0 %v1615
        %1785 = vmatprep.subr.mxu0 %v1622
        %1786 = vmatpush1.msra.mxu0 %v1621
        %1787 = vmatprep.subr.mxu0 %v1628
        %1788 = vmatpush1.msra.mxu0 %v1627
        %1789 = vmatprep.subr.mxu0 %v1634
        %1790 = vmatpush1.msra.mxu0 %v1633
        %1791 = vmatprep.subr.mxu0 %v1640
        %1792 = vmatpush1.msra.mxu0 %v1639
        %1793 = vmatprep.subr.mxu0 %v1646
        %1794 = vmatpush1.msra.mxu0 %v1645
        %1795 = vmatprep.subr.mxu0 %v1652
        %1796 = vmatpush1.msra.mxu0 %v1651
        %1797 = vmatprep.subr.mxu0 %v1658
        %1798 = vmatpush1.msra.mxu0 %v1657
        %1799 = vmatprep.subr.mxu0 %v1664
        %1800 = vmatpush1.msra.mxu0 %v1663
        %1801 = vmatprep.subr.mxu0 %v1670
        %1802 = vmatpush1.msra.mxu0 %v1669
        %1803 = vmatprep.subr.mxu0 %v1676
        %1804 = vmatpush1.msra.mxu0 %v1675
        %1805 = vmatprep.subr.mxu0 %v1682
        %1806 = vmatpush1.msra.mxu0 %v1681
        %1807 = vmatprep.subr.mxu0 %v1688
        %1808 = vmatpush1.msra.mxu0 %v1687
        %1809 = vmatprep.subr.mxu0 %v1694
        %1810 = vmatpush1.msra.mxu0 %v1693
        %1811 = vmatprep.subr.mxu0 %v1700
        %1812 = vmatpush1.msra.mxu0 %v1699
        %1813 = vmatprep.subr.mxu0 %v1706
        %1814 = vmatpush1.msra.mxu0 %v1705
        %1815 = vmatprep.subr.mxu0 %v1712
        %1816 = vmatpush1.msra.mxu0 %v1711
        %1817 = vmatprep.subr.mxu0 %v1718
        %1818 = vmatpush1.msra.mxu0 %v1717
        %1819 = vmatprep.subr.mxu0 %v1724
        %1820 = vmatpush1.msra.mxu0 %v1723
        %1821 = vmatprep.subr.mxu0 %v1730
        %1822 = vmatpush1.msra.mxu0 %v1729
        %1823 = vmatprep.subr.mxu0 %v1736
        %1824 = vmatpush1.msra.mxu0 %v1735
        %1825 = vmatprep.subr.mxu0 %v1742
        %1826 = vmatpush1.msra.mxu0 %v1741
        %1827 = vmatprep.subr.mxu0 %v1748
        %1828 = vmatpush1.msra.mxu0 %v1747
        %1829 = vmatprep.subr.mxu0 %v1754
        %1830 = vmatpush1.msra.mxu0 %v1753
        %1831 = vmatprep.subr.mxu0 %v1760
        %1832 = vmatpush1.msra.mxu0 %v1759
        %1833 = vmatprep.subr.mxu0 %v1766
        %1834 = vmatpush1.msra.mxu0 %v1765
        %1835 = vmatprep.mubr.f32.mxu0 %v458
        %1836 = vmatmul.mubr.f32.gmra.mrb[0].mxu0 %v263
        %v1837 = vpop.f32.mrb[0].mxu0
        %v1838 = vadd.f32 0.0, %v1837
        %v1839 = vpop.f32.mrb[0].mxu0
        %v1840 = vadd.f32 0.0, %v1839
        %1841 = vdwg.mxu0
        %1842 = vmatprep.subr.mxu0 %v1582
        %1843 = vmatpush1.msra.mxu0 %v1581
        %1844 = vmatprep.subr.mxu0 %v1588
        %1845 = vmatpush1.msra.mxu0 %v1587
        %1846 = vmatprep.subr.mxu0 %v1594
        %1847 = vmatpush1.msra.mxu0 %v1593
        %1848 = vmatprep.subr.mxu0 %v1600
        %1849 = vmatpush1.msra.mxu0 %v1599
        %1850 = vmatprep.subr.mxu0 %v1606
        %1851 = vmatpush1.msra.mxu0 %v1605
        %1852 = vmatprep.subr.mxu0 %v1612
        %1853 = vmatpush1.msra.mxu0 %v1611
        %1854 = vmatprep.subr.mxu0 %v1618
        %1855 = vmatpush1.msra.mxu0 %v1617
        %1856 = vmatprep.subr.mxu0 %v1624
        %1857 = vmatpush1.msra.mxu0 %v1623
        %1858 = vmatprep.subr.mxu0 %v1630
        %1859 = vmatpush1.msra.mxu0 %v1629
        %1860 = vmatprep.subr.mxu0 %v1636
        %1861 = vmatpush1.msra.mxu0 %v1635
        %1862 = vmatprep.subr.mxu0 %v1642
        %1863 = vmatpush1.msra.mxu0 %v1641
        %1864 = vmatprep.subr.mxu0 %v1648
        %1865 = vmatpush1.msra.mxu0 %v1647
        %1866 = vmatprep.subr.mxu0 %v1654
        %1867 = vmatpush1.msra.mxu0 %v1653
        %1868 = vmatprep.subr.mxu0 %v1660
        %1869 = vmatpush1.msra.mxu0 %v1659
        %1870 = vmatprep.subr.mxu0 %v1666
        %1871 = vmatpush1.msra.mxu0 %v1665
        %1872 = vmatprep.subr.mxu0 %v1672
        %1873 = vmatpush1.msra.mxu0 %v1671
        %1874 = vmatprep.subr.mxu0 %v1678
        %1875 = vmatpush1.msra.mxu0 %v1677
        %1876 = vmatprep.subr.mxu0 %v1684
        %1877 = vmatpush1.msra.mxu0 %v1683
        %1878 = vmatprep.subr.mxu0 %v1690
        %1879 = vmatpush1.msra.mxu0 %v1689
        %1880 = vmatprep.subr.mxu0 %v1696
        %1881 = vmatpush1.msra.mxu0 %v1695
        %1882 = vmatprep.subr.mxu0 %v1702
        %1883 = vmatpush1.msra.mxu0 %v1701
        %1884 = vmatprep.subr.mxu0 %v1708
        %1885 = vmatpush1.msra.mxu0 %v1707
        %1886 = vmatprep.subr.mxu0 %v1714
        %1887 = vmatpush1.msra.mxu0 %v1713
        %1888 = vmatprep.subr.mxu0 %v1720
        %1889 = vmatpush1.msra.mxu0 %v1719
        %1890 = vmatprep.subr.mxu0 %v1726
        %1891 = vmatpush1.msra.mxu0 %v1725
        %1892 = vmatprep.subr.mxu0 %v1732
        %1893 = vmatpush1.msra.mxu0 %v1731
        %1894 = vmatprep.subr.mxu0 %v1738
        %1895 = vmatpush1.msra.mxu0 %v1737
        %1896 = vmatprep.subr.mxu0 %v1744
        %1897 = vmatpush1.msra.mxu0 %v1743
        %1898 = vmatprep.subr.mxu0 %v1750
        %1899 = vmatpush1.msra.mxu0 %v1749
        %1900 = vmatprep.subr.mxu0 %v1756
        %1901 = vmatpush1.msra.mxu0 %v1755
        %1902 = vmatprep.subr.mxu0 %v1762
        %1903 = vmatpush1.msra.mxu0 %v1761
        %1904 = vmatprep.subr.mxu0 %v1768
        %1905 = vmatpush1.msra.mxu0 %v1767
        %1906 = vmatprep.mubr.f32.mxu0 %v458
        %1907 = vmatmul.mubr.f32.gmra.mrb[0].mxu0 %v263
        %v1908 = vpop.f32.mrb[0].mxu0
        %v1909 = vadd.f32 0.0, %v1908
        %v1910 = vpop.f32.mrb[0].mxu0
        %v1911 = vadd.f32 0.0, %v1910
        %1912 = vdwg.mxu0
        %1913 = vmatprep.subr.mxu0 %v1584
        %1914 = vmatpush1.msra.mxu0 %v1583
        %1915 = vmatprep.subr.mxu0 %v1590
        %1916 = vmatpush1.msra.mxu0 %v1589
        %1917 = vmatprep.subr.mxu0 %v1596
        %1918 = vmatpush1.msra.mxu0 %v1595
        %1919 = vmatprep.subr.mxu0 %v1602
        %1920 = vmatpush1.msra.mxu0 %v1601
        %1921 = vmatprep.subr.mxu0 %v1608
        %1922 = vmatpush1.msra.mxu0 %v1607
        %1923 = vmatprep.subr.mxu0 %v1614
        %1924 = vmatpush1.msra.mxu0 %v1613
        %1925 = vmatprep.subr.mxu0 %v1620
        %1926 = vmatpush1.msra.mxu0 %v1619
        %1927 = vmatprep.subr.mxu0 %v1626
        %1928 = vmatpush1.msra.mxu0 %v1625
        %1929 = vmatprep.subr.mxu0 %v1632
        %1930 = vmatpush1.msra.mxu0 %v1631
        %1931 = vmatprep.subr.mxu0 %v1638
        %1932 = vmatpush1.msra.mxu0 %v1637
        %1933 = vmatprep.subr.mxu0 %v1644
        %1934 = vmatpush1.msra.mxu0 %v1643
        %1935 = vmatprep.subr.mxu0 %v1650
        %1936 = vmatpush1.msra.mxu0 %v1649
        %1937 = vmatprep.subr.mxu0 %v1656
        %1938 = vmatpush1.msra.mxu0 %v1655
        %1939 = vmatprep.subr.mxu0 %v1662
        %1940 = vmatpush1.msra.mxu0 %v1661
        %1941 = vmatprep.subr.mxu0 %v1668
        %1942 = vmatpush1.msra.mxu0 %v1667
        %1943 = vmatprep.subr.mxu0 %v1674
        %1944 = vmatpush1.msra.mxu0 %v1673
        %1945 = vmatprep.subr.mxu0 %v1680
        %1946 = vmatpush1.msra.mxu0 %v1679
        %1947 = vmatprep.subr.mxu0 %v1686
        %1948 = vmatpush1.msra.mxu0 %v1685
        %1949 = vmatprep.subr.mxu0 %v1692
        %1950 = vmatpush1.msra.mxu0 %v1691
        %1951 = vmatprep.subr.mxu0 %v1698
        %1952 = vmatpush1.msra.mxu0 %v1697
        %1953 = vmatprep.subr.mxu0 %v1704
        %1954 = vmatpush1.msra.mxu0 %v1703
        %1955 = vmatprep.subr.mxu0 %v1710
        %1956 = vmatpush1.msra.mxu0 %v1709
        %1957 = vmatprep.subr.mxu0 %v1716
        %1958 = vmatpush1.msra.mxu0 %v1715
        %1959 = vmatprep.subr.mxu0 %v1722
        %1960 = vmatpush1.msra.mxu0 %v1721
        %1961 = vmatprep.subr.mxu0 %v1728
        %1962 = vmatpush1.msra.mxu0 %v1727
        %1963 = vmatprep.subr.mxu0 %v1734
        %1964 = vmatpush1.msra.mxu0 %v1733
        %1965 = vmatprep.subr.mxu0 %v1740
        %1966 = vmatpush1.msra.mxu0 %v1739
        %1967 = vmatprep.subr.mxu0 %v1746
        %1968 = vmatpush1.msra.mxu0 %v1745
        %1969 = vmatprep.subr.mxu0 %v1752
        %1970 = vmatpush1.msra.mxu0 %v1751
        %1971 = vmatprep.subr.mxu0 %v1758
        %1972 = vmatpush1.msra.mxu0 %v1757
        %1973 = vmatprep.subr.mxu0 %v1764
        %1974 = vmatpush1.msra.mxu0 %v1763
        %1975 = vmatprep.subr.mxu0 %v1770
        %1976 = vmatpush1.msra.mxu0 %v1769
        %1977 = vmatprep.mubr.f32.mxu0 %v458
        %1978 = vmatmul.mubr.f32.gmra.mrb[0].mxu0 %v263
        %v1979 = vpop.f32.mrb[0].mxu0
        %v1980 = vadd.f32 0.0, %v1979
        %v1981 = vpop.f32.mrb[0].mxu0
        %v1982 = vadd.f32 0.0, %v1981
        %1983 = vdwg.mxu0
        %s1984 = scalar_lea.vmem %s2, 48
        %v1985 = vld [vmem:[%s1984] sm:$0xff]
        %v1987 = vsel %vm676, %v1985, 0
        %v1990 = vsel %vm680, %v1838, 0
        %v1993 = vsel %vm680, %v1840, 0
        %1995 = vmatprep.subr.mxu0 %v1993
        %1996 = vmatpush1.msra.mxu0 %v1990
        %1997 = vmatprep.subr.mxu0 0.0
        %1998 = vmatpush1.msra.mxu0 0.0
        %1999 = vmatprep.subr.mxu0 0.0
        %2000 = vmatpush1.msra.mxu0 0.0
        %2001 = vmatprep.subr.mxu0 0.0
        %2002 = vmatpush1.msra.mxu0 0.0
        %2003 = vmatprep.subr.mxu0 0.0
        %2004 = vmatpush1.msra.mxu0 0.0
        %2005 = vmatprep.subr.mxu0 0.0
        %2006 = vmatpush1.msra.mxu0 0.0
        %2007 = vmatprep.subr.mxu0 0.0
        %2008 = vmatpush1.msra.mxu0 0.0
        %2009 = vmatprep.subr.mxu0 0.0
        %2010 = vmatpush1.msra.mxu0 0.0
        %2011 = vmatprep.subr.mxu0 0.0
        %2012 = vmatpush1.msra.mxu0 0.0
        %2013 = vmatprep.subr.mxu0 0.0
        %2014 = vmatpush1.msra.mxu0 0.0
        %2015 = vmatprep.subr.mxu0 0.0
        %2016 = vmatpush1.msra.mxu0 0.0
        %2017 = vmatprep.subr.mxu0 0.0
        %2018 = vmatpush1.msra.mxu0 0.0
        %2019 = vmatprep.subr.mxu0 0.0
        %2020 = vmatpush1.msra.mxu0 0.0
        %2021 = vmatprep.subr.mxu0 0.0
        %2022 = vmatpush1.msra.mxu0 0.0
        %2023 = vmatprep.subr.mxu0 0.0
        %2024 = vmatpush1.msra.mxu0 0.0
        %2025 = vmatprep.subr.mxu0 0.0
        %2026 = vmatpush1.msra.mxu0 0.0
        %2027 = vmatprep.subr.mxu0 0.0
        %2028 = vmatpush1.msra.mxu0 0.0
        %2029 = vmatprep.subr.mxu0 0.0
        %2030 = vmatpush1.msra.mxu0 0.0
        %2031 = vmatprep.subr.mxu0 0.0
        %2032 = vmatpush1.msra.mxu0 0.0
        %2033 = vmatprep.subr.mxu0 0.0
        %2034 = vmatpush1.msra.mxu0 0.0
        %2035 = vmatprep.subr.mxu0 0.0
        %2036 = vmatpush1.msra.mxu0 0.0
        %2037 = vmatprep.subr.mxu0 0.0
        %2038 = vmatpush1.msra.mxu0 0.0
        %2039 = vmatprep.subr.mxu0 0.0
        %2040 = vmatpush1.msra.mxu0 0.0
        %2041 = vmatprep.subr.mxu0 0.0
        %2042 = vmatpush1.msra.mxu0 0.0
        %2043 = vmatprep.subr.mxu0 0.0
        %2044 = vmatpush1.msra.mxu0 0.0
        %2045 = vmatprep.subr.mxu0 0.0
        %2046 = vmatpush1.msra.mxu0 0.0
        %2047 = vmatprep.subr.mxu0 0.0
        %2048 = vmatpush1.msra.mxu0 0.0
        %2049 = vmatprep.subr.mxu0 0.0
        %2050 = vmatpush1.msra.mxu0 0.0
        %2051 = vmatprep.subr.mxu0 0.0
        %2052 = vmatpush1.msra.mxu0 0.0
        %2053 = vmatprep.subr.mxu0 0.0
        %2054 = vmatpush1.msra.mxu0 0.0
        %2055 = vmatprep.subr.mxu0 0.0
        %2056 = vmatpush1.msra.mxu0 0.0
        %2057 = vmatprep.subr.mxu0 0.0
        %2058 = vmatpush1.msra.mxu0 0.0
        %2059 = vmatprep.mubr.f32.mxu0 0.0
        %2060 = vmatmul.mubr.f32.gmra.mrb[0].mxu0 %v1987
        %v2061 = vpop.f32.mrb[0].mxu0
        %v2062 = vadd.f32 0.0, %v2061
        %v2063 = vpop.f32.mrb[0].mxu0
        %v2064 = vadd.f32 0.0, %v2063
        %2065 = vdwg.mxu0
        %v2066 = vadd.f32 %v1577, %v2062
        %v2067 = vadd.f32 %v1578, %v2064
        %s2068 = scalar_lea.vmem %s2, 56
        %v2069 = vld [vmem:[%s2068] sm:$0xff]
        %v2071 = vsel %vm676, %v2069, 0
        %v2074 = vsel %vm680, %v1909, 0
        %v2077 = vsel %vm680, %v1911, 0
        %2079 = vmatprep.subr.mxu0 %v2077
        %2080 = vmatpush1.msra.mxu0 %v2074
        %2081 = vmatprep.subr.mxu0 0.0
        %2082 = vmatpush1.msra.mxu0 0.0
        %2083 = vmatprep.subr.mxu0 0.0
        %2084 = vmatpush1.msra.mxu0 0.0
        %2085 = vmatprep.subr.mxu0 0.0
        %2086 = vmatpush1.msra.mxu0 0.0
        %2087 = vmatprep.subr.mxu0 0.0
        %2088 = vmatpush1.msra.mxu0 0.0
        %2089 = vmatprep.subr.mxu0 0.0
        %2090 = vmatpush1.msra.mxu0 0.0
        %2091 = vmatprep.subr.mxu0 0.0
        %2092 = vmatpush1.msra.mxu0 0.0
        %2093 = vmatprep.subr.mxu0 0.0
        %2094 = vmatpush1.msra.mxu0 0.0
        %2095 = vmatprep.subr.mxu0 0.0
        %2096 = vmatpush1.msra.mxu0 0.0
        %2097 = vmatprep.subr.mxu0 0.0
        %2098 = vmatpush1.msra.mxu0 0.0
        %2099 = vmatprep.subr.mxu0 0.0
        %2100 = vmatpush1.msra.mxu0 0.0
        %2101 = vmatprep.subr.mxu0 0.0
        %2102 = vmatpush1.msra.mxu0 0.0
        %2103 = vmatprep.subr.mxu0 0.0
        %2104 = vmatpush1.msra.mxu0 0.0
        %2105 = vmatprep.subr.mxu0 0.0
        %2106 = vmatpush1.msra.mxu0 0.0
        %2107 = vmatprep.subr.mxu0 0.0
        %2108 = vmatpush1.msra.mxu0 0.0
        %2109 = vmatprep.subr.mxu0 0.0
        %2110 = vmatpush1.msra.mxu0 0.0
        %2111 = vmatprep.subr.mxu0 0.0
        %2112 = vmatpush1.msra.mxu0 0.0
        %2113 = vmatprep.subr.mxu0 0.0
        %2114 = vmatpush1.msra.mxu0 0.0
        %2115 = vmatprep.subr.mxu0 0.0
        %2116 = vmatpush1.msra.mxu0 0.0
        %2117 = vmatprep.subr.mxu0 0.0
        %2118 = vmatpush1.msra.mxu0 0.0
        %2119 = vmatprep.subr.mxu0 0.0
        %2120 = vmatpush1.msra.mxu0 0.0
        %2121 = vmatprep.subr.mxu0 0.0
        %2122 = vmatpush1.msra.mxu0 0.0
        %2123 = vmatprep.subr.mxu0 0.0
        %2124 = vmatpush1.msra.mxu0 0.0
        %2125 = vmatprep.subr.mxu0 0.0
        %2126 = vmatpush1.msra.mxu0 0.0
        %2127 = vmatprep.subr.mxu0 0.0
        %2128 = vmatpush1.msra.mxu0 0.0
        %2129 = vmatprep.subr.mxu0 0.0
        %2130 = vmatpush1.msra.mxu0 0.0
        %2131 = vmatprep.subr.mxu0 0.0
        %2132 = vmatpush1.msra.mxu0 0.0
        %2133 = vmatprep.subr.mxu0 0.0
        %2134 = vmatpush1.msra.mxu0 0.0
        %2135 = vmatprep.subr.mxu0 0.0
        %2136 = vmatpush1.msra.mxu0 0.0
        %2137 = vmatprep.subr.mxu0 0.0
        %2138 = vmatpush1.msra.mxu0 0.0
        %2139 = vmatprep.subr.mxu0 0.0
        %2140 = vmatpush1.msra.mxu0 0.0
        %2141 = vmatprep.subr.mxu0 0.0
        %2142 = vmatpush1.msra.mxu0 0.0
        %2143 = vmatprep.mubr.f32.mxu0 0.0
        %2144 = vmatmul.mubr.f32.gmra.mrb[0].mxu0 %v2071
        %v2145 = vpop.f32.mrb[0].mxu0
        %v2146 = vadd.f32 0.0, %v2145
        %v2147 = vpop.f32.mrb[0].mxu0
        %v2148 = vadd.f32 0.0, %v2147
        %2149 = vdwg.mxu0
        %v2150 = vadd.f32 %v2066, %v2146
        %v2151 = vadd.f32 %v2067, %v2148
        %s2152 = scalar_lea.vmem %s2, 64
        %v2153 = vld [vmem:[%s2152] sm:$0xff]
        %v2155 = vsel %vm676, %v2153, 0
        %v2158 = vsel %vm680, %v1980, 0
        %v2161 = vsel %vm680, %v1982, 0
        %2163 = vmatprep.subr.mxu0 %v2161
        %2164 = vmatpush1.msra.mxu0 %v2158
        %2165 = vmatprep.subr.mxu0 0.0
        %2166 = vmatpush1.msra.mxu0 0.0
        %2167 = vmatprep.subr.mxu0 0.0
        %2168 = vmatpush1.msra.mxu0 0.0
        %2169 = vmatprep.subr.mxu0 0.0
        %2170 = vmatpush1.msra.mxu0 0.0
        %2171 = vmatprep.subr.mxu0 0.0
        %2172 = vmatpush1.msra.mxu0 0.0
        %2173 = vmatprep.subr.mxu0 0.0
        %2174 = vmatpush1.msra.mxu0 0.0
        %2175 = vmatprep.subr.mxu0 0.0
        %2176 = vmatpush1.msra.mxu0 0.0
        %2177 = vmatprep.subr.mxu0 0.0
        %2178 = vmatpush1.msra.mxu0 0.0
        %2179 = vmatprep.subr.mxu0 0.0
        %2180 = vmatpush1.msra.mxu0 0.0
        %2181 = vmatprep.subr.mxu0 0.0
        %2182 = vmatpush1.msra.mxu0 0.0
        %2183 = vmatprep.subr.mxu0 0.0
        %2184 = vmatpush1.msra.mxu0 0.0
        %2185 = vmatprep.subr.mxu0 0.0
        %2186 = vmatpush1.msra.mxu0 0.0
        %2187 = vmatprep.subr.mxu0 0.0
        %2188 = vmatpush1.msra.mxu0 0.0
        %2189 = vmatprep.subr.mxu0 0.0
        %2190 = vmatpush1.msra.mxu0 0.0
        %2191 = vmatprep.subr.mxu0 0.0
        %2192 = vmatpush1.msra.mxu0 0.0
        %2193 = vmatprep.subr.mxu0 0.0
        %2194 = vmatpush1.msra.mxu0 0.0
        %2195 = vmatprep.subr.mxu0 0.0
        %2196 = vmatpush1.msra.mxu0 0.0
        %2197 = vmatprep.subr.mxu0 0.0
        %2198 = vmatpush1.msra.mxu0 0.0
        %2199 = vmatprep.subr.mxu0 0.0
        %2200 = vmatpush1.msra.mxu0 0.0
        %2201 = vmatprep.subr.mxu0 0.0
        %2202 = vmatpush1.msra.mxu0 0.0
        %2203 = vmatprep.subr.mxu0 0.0
        %2204 = vmatpush1.msra.mxu0 0.0
        %2205 = vmatprep.subr.mxu0 0.0
        %2206 = vmatpush1.msra.mxu0 0.0
        %2207 = vmatprep.subr.mxu0 0.0
        %2208 = vmatpush1.msra.mxu0 0.0
        %2209 = vmatprep.subr.mxu0 0.0
        %2210 = vmatpush1.msra.mxu0 0.0
        %2211 = vmatprep.subr.mxu0 0.0
        %2212 = vmatpush1.msra.mxu0 0.0
        %2213 = vmatprep.subr.mxu0 0.0
        %2214 = vmatpush1.msra.mxu0 0.0
        %2215 = vmatprep.subr.mxu0 0.0
        %2216 = vmatpush1.msra.mxu0 0.0
        %2217 = vmatprep.subr.mxu0 0.0
        %2218 = vmatpush1.msra.mxu0 0.0
        %2219 = vmatprep.subr.mxu0 0.0
        %2220 = vmatpush1.msra.mxu0 0.0
        %2221 = vmatprep.subr.mxu0 0.0
        %2222 = vmatpush1.msra.mxu0 0.0
        %2223 = vmatprep.subr.mxu0 0.0
        %2224 = vmatpush1.msra.mxu0 0.0
        %2225 = vmatprep.subr.mxu0 0.0
        %2226 = vmatpush1.msra.mxu0 0.0
        %2227 = vmatprep.mubr.f32.mxu0 0.0
        %2228 = vmatmul.mubr.f32.gmra.mrb[0].mxu0 %v2155
        %v2229 = vpop.f32.mrb[0].mxu0
        %v2230 = vadd.f32 0.0, %v2229
        %v2231 = vpop.f32.mrb[0].mxu0
        %v2232 = vadd.f32 0.0, %v2231
        %2233 = vdwg.mxu0
        %v2234 = vadd.f32 %v2150, %v2230
        %v2235 = vadd.f32 %v2151, %v2232
        %v2236 = vadd.f32 %v2234, %v2235
        %2237 = vadd.xlane.f32.xlu0 %v2236
        %v2238 = vpop.xlane.xlu0 %2237
        %v2239 = vmul.f32 %v2238, 0.00390625
        %v2240 = vmul.f32 %v2234, %v2234
        %v2241 = vmul.f32 %v2235, %v2235
        %v2242 = vadd.f32 %v2240, %v2241
        %2243 = vadd.xlane.f32.xlu0 %v2242
        %v2244 = vpop.xlane.xlu0 %2243
        %v2245 = vmul.f32 %v2244, 0.00390625
        %v2246 = vmul.f32 %v2239, %v2239
        %v2247 = vsub.f32 %v2245, %v2246
        %v2248 = vmax.f32 %v2247, 0.0
        %v2249 = vsub.f32 %v2234, %v2239
        %v2250 = vsub.f32 %v2235, %v2239
        %v2251 = vadd.f32 %v2248, 1e-05
        %v2252 = vrsqrt.pop %v2251
        %v2253 = vmul.f32 %v2249, %v2252
        %v2254 = vmul.f32 %v2250, %v2252
        %vm2255 = vcmp.ge.f32.partialorder %v2253, 0.0
        %vm2256 = vcmp.ge.f32.partialorder %v2254, 0.0
        %v2257 = vmul.f32 %v2253, 0.2
        %v2258 = vmul.f32 %v2254, 0.2
        %v2259 = vsel %vm2255, %v2253, %v2257
        %v2260 = vsel %vm2256, %v2254, %v2258
        %v2261 = vld [vmem:[#allocation2 + $0x90] sm:$0xff]
        %v2262 = vld [vmem:[#allocation2 + $0x98] sm:$0xff]
        %v2263 = vld [vmem:[#allocation2 + $0xa0] sm:$0xff]
        %v2264 = vld [vmem:[#allocation2 + $0xa8] sm:$0xff]
        %v2265 = vld [vmem:[#allocation2 + $0x220] sm:$0xff]
        %v2266 = vld [vmem:[#allocation2 + $0x228] sm:$0xff]
        %v2267 = vld [vmem:[#allocation2 + $0x230] sm:$0xff]
        %v2268 = vld [vmem:[#allocation2 + $0x238] sm:$0xff]
        %v2269 = vld [vmem:[#allocation2 + $0x3b0] sm:$0xff]
        %v2270 = vld [vmem:[#allocation2 + $0x3b8] sm:$0xff]
        %v2271 = vld [vmem:[#allocation2 + $0x3c0] sm:$0xff]
        %v2272 = vld [vmem:[#allocation2 + $0x3c8] sm:$0xff]
        %v2273 = vld [vmem:[#allocation2 + $0x540] sm:$0xff]
        %v2274 = vld [vmem:[#allocation2 + $0x548] sm:$0xff]
        %v2275 = vld [vmem:[#allocation2 + $0x550] sm:$0xff]
        %v2276 = vld [vmem:[#allocation2 + $0x558] sm:$0xff]
        %v2277 = vld [vmem:[#allocation2 + $0x6d0] sm:$0xff]
        %v2278 = vld [vmem:[#allocation2 + $0x6d8] sm:$0xff]
        %v2279 = vld [vmem:[#allocation2 + $0x6e0] sm:$0xff]
        %v2280 = vld [vmem:[#allocation2 + $0x6e8] sm:$0xff]
        %v2281 = vld [vmem:[#allocation2 + $0x860] sm:$0xff]
        %v2282 = vld [vmem:[#allocation2 + $0x868] sm:$0xff]
        %v2283 = vld [vmem:[#allocation2 + $0x870] sm:$0xff]
        %v2284 = vld [vmem:[#allocation2 + $0x878] sm:$0xff]
        %v2285 = vld [vmem:[#allocation2 + $0x9f0] sm:$0xff]
        %v2286 = vld [vmem:[#allocation2 + $0x9f8] sm:$0xff]
        %v2287 = vld [vmem:[#allocation2 + $0xa00] sm:$0xff]
        %v2288 = vld [vmem:[#allocation2 + $0xa08] sm:$0xff]
        %v2289 = vld [vmem:[#allocation2 + $0xb80] sm:$0xff]
        %v2290 = vld [vmem:[#allocation2 + $0xb88] sm:$0xff]
        %v2291 = vld [vmem:[#allocation2 + $0xb90] sm:$0xff]
        %v2292 = vld [vmem:[#allocation2 + $0xb98] sm:$0xff]
        %v2293 = vld [vmem:[#allocation2 + $0xd10] sm:$0xff]
        %v2294 = vld [vmem:[#allocation2 + $0xd18] sm:$0xff]
        %v2295 = vld [vmem:[#allocation2 + $0xd20] sm:$0xff]
        %v2296 = vld [vmem:[#allocation2 + $0xd28] sm:$0xff]
        %v2297 = vld [vmem:[#allocation2 + $0xea0] sm:$0xff]
        %v2298 = vld [vmem:[#allocation2 + $0xea8] sm:$0xff]
        %v2299 = vld [vmem:[#allocation2 + $0xeb0] sm:$0xff]
        %v2300 = vld [vmem:[#allocation2 + $0xeb8] sm:$0xff]
        %v2301 = vld [vmem:[#allocation2 + $0x1030] sm:$0xff]
        %v2302 = vld [vmem:[#allocation2 + $0x1038] sm:$0xff]
        %v2303 = vld [vmem:[#allocation2 + $0x1040] sm:$0xff]
        %v2304 = vld [vmem:[#allocation2 + $0x1048] sm:$0xff]
        %v2305 = vld [vmem:[#allocation2 + $0x11c0] sm:$0xff]
        %v2306 = vld [vmem:[#allocation2 + $0x11c8] sm:$0xff]
        %v2307 = vld [vmem:[#allocation2 + $0x11d0] sm:$0xff]
        %v2308 = vld [vmem:[#allocation2 + $0x11d8] sm:$0xff]
        %v2309 = vld [vmem:[#allocation2 + $0x1350] sm:$0xff]
        %v2310 = vld [vmem:[#allocation2 + $0x1358] sm:$0xff]
        %v2311 = vld [vmem:[#allocation2 + $0x1360] sm:$0xff]
        %v2312 = vld [vmem:[#allocation2 + $0x1368] sm:$0xff]
        %v2313 = vld [vmem:[#allocation2 + $0x14e0] sm:$0xff]
        %v2314 = vld [vmem:[#allocation2 + $0x14e8] sm:$0xff]
        %v2315 = vld [vmem:[#allocation2 + $0x14f0] sm:$0xff]
        %v2316 = vld [vmem:[#allocation2 + $0x14f8] sm:$0xff]
        %v2317 = vld [vmem:[#allocation2 + $0x1670] sm:$0xff]
        %v2318 = vld [vmem:[#allocation2 + $0x1678] sm:$0xff]
        %v2319 = vld [vmem:[#allocation2 + $0x1680] sm:$0xff]
        %v2320 = vld [vmem:[#allocation2 + $0x1688] sm:$0xff]
        %v2321 = vld [vmem:[#allocation2 + $0x1800] sm:$0xff]
        %v2322 = vld [vmem:[#allocation2 + $0x1808] sm:$0xff]
        %v2323 = vld [vmem:[#allocation2 + $0x1810] sm:$0xff]
        %v2324 = vld [vmem:[#allocation2 + $0x1818] sm:$0xff]
        %v2325 = vld [vmem:[#allocation2 + $0x1990] sm:$0xff]
        %v2326 = vld [vmem:[#allocation2 + $0x1998] sm:$0xff]
        %v2327 = vld [vmem:[#allocation2 + $0x19a0] sm:$0xff]
        %v2328 = vld [vmem:[#allocation2 + $0x19a8] sm:$0xff]
        %v2329 = vld [vmem:[#allocation2 + $0x1b20] sm:$0xff]
        %v2330 = vld [vmem:[#allocation2 + $0x1b28] sm:$0xff]
        %v2331 = vld [vmem:[#allocation2 + $0x1b30] sm:$0xff]
        %v2332 = vld [vmem:[#allocation2 + $0x1b38] sm:$0xff]
        %v2333 = vld [vmem:[#allocation2 + $0x1cb0] sm:$0xff]
        %v2334 = vld [vmem:[#allocation2 + $0x1cb8] sm:$0xff]
        %v2335 = vld [vmem:[#allocation2 + $0x1cc0] sm:$0xff]
        %v2336 = vld [vmem:[#allocation2 + $0x1cc8] sm:$0xff]
        %v2337 = vld [vmem:[#allocation2 + $0x1e40] sm:$0xff]
        %v2338 = vld [vmem:[#allocation2 + $0x1e48] sm:$0xff]
        %v2339 = vld [vmem:[#allocation2 + $0x1e50] sm:$0xff]
        %v2340 = vld [vmem:[#allocation2 + $0x1e58] sm:$0xff]
        %v2341 = vld [vmem:[#allocation2 + $0x1fd0] sm:$0xff]
        %v2342 = vld [vmem:[#allocation2 + $0x1fd8] sm:$0xff]
        %v2343 = vld [vmem:[#allocation2 + $0x1fe0] sm:$0xff]
        %v2344 = vld [vmem:[#allocation2 + $0x1fe8] sm:$0xff]
        %v2345 = vld [vmem:[#allocation2 + $0x2160] sm:$0xff]
        %v2346 = vld [vmem:[#allocation2 + $0x2168] sm:$0xff]
        %v2347 = vld [vmem:[#allocation2 + $0x2170] sm:$0xff]
        %v2348 = vld [vmem:[#allocation2 + $0x2178] sm:$0xff]
        %v2349 = vld [vmem:[#allocation2 + $0x22f0] sm:$0xff]
        %v2350 = vld [vmem:[#allocation2 + $0x22f8] sm:$0xff]
        %v2351 = vld [vmem:[#allocation2 + $0x2300] sm:$0xff]
        %v2352 = vld [vmem:[#allocation2 + $0x2308] sm:$0xff]
        %v2353 = vld [vmem:[#allocation2 + $0x2480] sm:$0xff]
        %v2354 = vld [vmem:[#allocation2 + $0x2488] sm:$0xff]
        %v2355 = vld [vmem:[#allocation2 + $0x2490] sm:$0xff]
        %v2356 = vld [vmem:[#allocation2 + $0x2498] sm:$0xff]
        %v2357 = vld [vmem:[#allocation2 + $0x2610] sm:$0xff]
        %v2358 = vld [vmem:[#allocation2 + $0x2618] sm:$0xff]
        %v2359 = vld [vmem:[#allocation2 + $0x2620] sm:$0xff]
        %v2360 = vld [vmem:[#allocation2 + $0x2628] sm:$0xff]
        %v2361 = vld [vmem:[#allocation2 + $0x27a0] sm:$0xff]
        %v2362 = vld [vmem:[#allocation2 + $0x27a8] sm:$0xff]
        %v2363 = vld [vmem:[#allocation2 + $0x27b0] sm:$0xff]
        %v2364 = vld [vmem:[#allocation2 + $0x27b8] sm:$0xff]
        %v2365 = vld [vmem:[#allocation2 + $0x2930] sm:$0xff]
        %v2366 = vld [vmem:[#allocation2 + $0x2938] sm:$0xff]
        %v2367 = vld [vmem:[#allocation2 + $0x2940] sm:$0xff]
        %v2368 = vld [vmem:[#allocation2 + $0x2948] sm:$0xff]
        %v2369 = vld [vmem:[#allocation2 + $0x2ac0] sm:$0xff]
        %v2370 = vld [vmem:[#allocation2 + $0x2ac8] sm:$0xff]
        %v2371 = vld [vmem:[#allocation2 + $0x2ad0] sm:$0xff]
        %v2372 = vld [vmem:[#allocation2 + $0x2ad8] sm:$0xff]
        %v2373 = vld [vmem:[#allocation2 + $0x2c50] sm:$0xff]
        %v2374 = vld [vmem:[#allocation2 + $0x2c58] sm:$0xff]
        %v2375 = vld [vmem:[#allocation2 + $0x2c60] sm:$0xff]
        %v2376 = vld [vmem:[#allocation2 + $0x2c68] sm:$0xff]
        %v2377 = vld [vmem:[#allocation2 + $0x2de0] sm:$0xff]
        %v2378 = vld [vmem:[#allocation2 + $0x2de8] sm:$0xff]
        %v2379 = vld [vmem:[#allocation2 + $0x2df0] sm:$0xff]
        %v2380 = vld [vmem:[#allocation2 + $0x2df8] sm:$0xff]
        %v2381 = vld [vmem:[#allocation2 + $0x2f70] sm:$0xff]
        %v2382 = vld [vmem:[#allocation2 + $0x2f78] sm:$0xff]
        %v2383 = vld [vmem:[#allocation2 + $0x2f80] sm:$0xff]
        %v2384 = vld [vmem:[#allocation2 + $0x2f88] sm:$0xff]
        %v2385 = vld [vmem:[#allocation2 + $0x3100] sm:$0xff]
        %v2386 = vld [vmem:[#allocation2 + $0x3108] sm:$0xff]
        %v2387 = vld [vmem:[#allocation2 + $0x3110] sm:$0xff]
        %v2388 = vld [vmem:[#allocation2 + $0x3118] sm:$0xff]
        %2389 = vmatprep.subr.mxu0 %v2262
        %2390 = vmatpush1.msra.mxu0 %v2261
        %2391 = vmatprep.subr.mxu0 %v2266
        %2392 = vmatpush1.msra.mxu0 %v2265
        %2393 = vmatprep.subr.mxu0 %v2270
        %2394 = vmatpush1.msra.mxu0 %v2269
        %2395 = vmatprep.subr.mxu0 %v2274
        %2396 = vmatpush1.msra.mxu0 %v2273
        %2397 = vmatprep.subr.mxu0 %v2278
        %2398 = vmatpush1.msra.mxu0 %v2277
        %2399 = vmatprep.subr.mxu0 %v2282
        %2400 = vmatpush1.msra.mxu0 %v2281
        %2401 = vmatprep.subr.mxu0 %v2286
        %2402 = vmatpush1.msra.mxu0 %v2285
        %2403 = vmatprep.subr.mxu0 %v2290
        %2404 = vmatpush1.msra.mxu0 %v2289
        %2405 = vmatprep.subr.mxu0 %v2294
        %2406 = vmatpush1.msra.mxu0 %v2293
        %2407 = vmatprep.subr.mxu0 %v2298
        %2408 = vmatpush1.msra.mxu0 %v2297
        %2409 = vmatprep.subr.mxu0 %v2302
        %2410 = vmatpush1.msra.mxu0 %v2301
        %2411 = vmatprep.subr.mxu0 %v2306
        %2412 = vmatpush1.msra.mxu0 %v2305
        %2413 = vmatprep.subr.mxu0 %v2310
        %2414 = vmatpush1.msra.mxu0 %v2309
        %2415 = vmatprep.subr.mxu0 %v2314
        %2416 = vmatpush1.msra.mxu0 %v2313
        %2417 = vmatprep.subr.mxu0 %v2318
        %2418 = vmatpush1.msra.mxu0 %v2317
        %2419 = vmatprep.subr.mxu0 %v2322
        %2420 = vmatpush1.msra.mxu0 %v2321
        %2421 = vmatprep.subr.mxu0 %v2326
        %2422 = vmatpush1.msra.mxu0 %v2325
        %2423 = vmatprep.subr.mxu0 %v2330
        %2424 = vmatpush1.msra.mxu0 %v2329
        %2425 = vmatprep.subr.mxu0 %v2334
        %2426 = vmatpush1.msra.mxu0 %v2333
        %2427 = vmatprep.subr.mxu0 %v2338
        %2428 = vmatpush1.msra.mxu0 %v2337
        %2429 = vmatprep.subr.mxu0 %v2342
        %2430 = vmatpush1.msra.mxu0 %v2341
        %2431 = vmatprep.subr.mxu0 %v2346
        %2432 = vmatpush1.msra.mxu0 %v2345
        %2433 = vmatprep.subr.mxu0 %v2350
        %2434 = vmatpush1.msra.mxu0 %v2349
        %2435 = vmatprep.subr.mxu0 %v2354
        %2436 = vmatpush1.msra.mxu0 %v2353
        %2437 = vmatprep.subr.mxu0 %v2358
        %2438 = vmatpush1.msra.mxu0 %v2357
        %2439 = vmatprep.subr.mxu0 %v2362
        %2440 = vmatpush1.msra.mxu0 %v2361
        %2441 = vmatprep.subr.mxu0 %v2366
        %2442 = vmatpush1.msra.mxu0 %v2365
        %2443 = vmatprep.subr.mxu0 %v2370
        %2444 = vmatpush1.msra.mxu0 %v2369
        %2445 = vmatprep.subr.mxu0 %v2374
        %2446 = vmatpush1.msra.mxu0 %v2373
        %2447 = vmatprep.subr.mxu0 %v2378
        %2448 = vmatpush1.msra.mxu0 %v2377
        %2449 = vmatprep.subr.mxu0 %v2382
        %2450 = vmatpush1.msra.mxu0 %v2381
        %2451 = vmatprep.subr.mxu0 %v2386
        %2452 = vmatpush1.msra.mxu0 %v2385
        %2453 = vmatprep.mubr.f32.mxu0 %v2260
        %2454 = vmatmul.mubr.f32.gmra.mrb[0].mxu0 %v2259
        %v2455 = vpop.f32.mrb[0].mxu0
        %v2456 = vadd.f32 0.0, %v2455
        %v2457 = vpop.f32.mrb[0].mxu0
        %v2458 = vadd.f32 0.0, %v2457
        %2459 = vdwg.mxu0
        %2460 = vmatprep.subr.mxu0 %v2264
        %2461 = vmatpush1.msra.mxu0 %v2263
        %2462 = vmatprep.subr.mxu0 %v2268
        %2463 = vmatpush1.msra.mxu0 %v2267
        %2464 = vmatprep.subr.mxu0 %v2272
        %2465 = vmatpush1.msra.mxu0 %v2271
        %2466 = vmatprep.subr.mxu0 %v2276
        %2467 = vmatpush1.msra.mxu0 %v2275
        %2468 = vmatprep.subr.mxu0 %v2280
        %2469 = vmatpush1.msra.mxu0 %v2279
        %2470 = vmatprep.subr.mxu0 %v2284
        %2471 = vmatpush1.msra.mxu0 %v2283
        %2472 = vmatprep.subr.mxu0 %v2288
        %2473 = vmatpush1.msra.mxu0 %v2287
        %2474 = vmatprep.subr.mxu0 %v2292
        %2475 = vmatpush1.msra.mxu0 %v2291
        %2476 = vmatprep.subr.mxu0 %v2296
        %2477 = vmatpush1.msra.mxu0 %v2295
        %2478 = vmatprep.subr.mxu0 %v2300
        %2479 = vmatpush1.msra.mxu0 %v2299
        %2480 = vmatprep.subr.mxu0 %v2304
        %2481 = vmatpush1.msra.mxu0 %v2303
        %2482 = vmatprep.subr.mxu0 %v2308
        %2483 = vmatpush1.msra.mxu0 %v2307
        %2484 = vmatprep.subr.mxu0 %v2312
        %2485 = vmatpush1.msra.mxu0 %v2311
        %2486 = vmatprep.subr.mxu0 %v2316
        %2487 = vmatpush1.msra.mxu0 %v2315
        %2488 = vmatprep.subr.mxu0 %v2320
        %2489 = vmatpush1.msra.mxu0 %v2319
        %2490 = vmatprep.subr.mxu0 %v2324
        %2491 = vmatpush1.msra.mxu0 %v2323
        %2492 = vmatprep.subr.mxu0 %v2328
        %2493 = vmatpush1.msra.mxu0 %v2327
        %2494 = vmatprep.subr.mxu0 %v2332
        %2495 = vmatpush1.msra.mxu0 %v2331
        %2496 = vmatprep.subr.mxu0 %v2336
        %2497 = vmatpush1.msra.mxu0 %v2335
        %2498 = vmatprep.subr.mxu0 %v2340
        %2499 = vmatpush1.msra.mxu0 %v2339
        %2500 = vmatprep.subr.mxu0 %v2344
        %2501 = vmatpush1.msra.mxu0 %v2343
        %2502 = vmatprep.subr.mxu0 %v2348
        %2503 = vmatpush1.msra.mxu0 %v2347
        %2504 = vmatprep.subr.mxu0 %v2352
        %2505 = vmatpush1.msra.mxu0 %v2351
        %2506 = vmatprep.subr.mxu0 %v2356
        %2507 = vmatpush1.msra.mxu0 %v2355
        %2508 = vmatprep.subr.mxu0 %v2360
        %2509 = vmatpush1.msra.mxu0 %v2359
        %2510 = vmatprep.subr.mxu0 %v2364
        %2511 = vmatpush1.msra.mxu0 %v2363
        %2512 = vmatprep.subr.mxu0 %v2368
        %2513 = vmatpush1.msra.mxu0 %v2367
        %2514 = vmatprep.subr.mxu0 %v2372
        %2515 = vmatpush1.msra.mxu0 %v2371
        %2516 = vmatprep.subr.mxu0 %v2376
        %2517 = vmatpush1.msra.mxu0 %v2375
        %2518 = vmatprep.subr.mxu0 %v2380
        %2519 = vmatpush1.msra.mxu0 %v2379
        %2520 = vmatprep.subr.mxu0 %v2384
        %2521 = vmatpush1.msra.mxu0 %v2383
        %2522 = vmatprep.subr.mxu0 %v2388
        %2523 = vmatpush1.msra.mxu0 %v2387
        %2524 = vmatprep.mubr.f32.mxu0 %v2260
        %2525 = vmatmul.mubr.f32.gmra.mrb[0].mxu0 %v2259
        %v2526 = vpop.f32.mrb[0].mxu0
        %v2527 = vadd.f32 0.0, %v2526
        %v2528 = vpop.f32.mrb[0].mxu0
        %v2529 = vadd.f32 0.0, %v2528
        %2530 = vdwg.mxu0
        %v2531 = vld [vmem:[%s3] sm:$0xff]
        %v2532 = vld [vmem:[%s3 + $0x8] sm:$0xff]
        %s2533 = scalar_lea.vmem %s3, 16
        %v2534 = vld [vmem:[%s2533] sm:$0xff]
        %v2535 = vld [vmem:[%s2533 + $0x8] sm:$0xff]
        %vm2536 = vcmask 64512
        %v2538 = vsel %vm2536, %v2534, 0
        %v2541 = vsel %vm2536, %v2535, 0
        %2543 = vmatprep.subr.mxu0 0.0
        %2544 = vmatpush1.msra.mxu0 %v2458
        %2545 = vmatprep.subr.mxu0 0.0
        %2546 = vmatpush1.msra.mxu0 0.0
        %2547 = vmatprep.subr.mxu0 0.0
        %2548 = vmatpush1.msra.mxu0 0.0
        %2549 = vmatprep.subr.mxu0 0.0
        %2550 = vmatpush1.msra.mxu0 0.0
        %2551 = vmatprep.subr.mxu0 0.0
        %2552 = vmatpush1.msra.mxu0 0.0
        %2553 = vmatprep.subr.mxu0 0.0
        %2554 = vmatpush1.msra.mxu0 0.0
        %2555 = vmatprep.subr.mxu0 0.0
        %2556 = vmatpush1.msra.mxu0 0.0
        %2557 = vmatprep.subr.mxu0 0.0
        %2558 = vmatpush1.msra.mxu0 0.0
        %2559 = vmatprep.subr.mxu0 0.0
        %2560 = vmatpush1.msra.mxu0 0.0
        %2561 = vmatprep.subr.mxu0 0.0
        %2562 = vmatpush1.msra.mxu0 0.0
        %2563 = vmatprep.subr.mxu0 0.0
        %2564 = vmatpush1.msra.mxu0 0.0
        %2565 = vmatprep.subr.mxu0 0.0
        %2566 = vmatpush1.msra.mxu0 0.0
        %2567 = vmatprep.subr.mxu0 0.0
        %2568 = vmatpush1.msra.mxu0 0.0
        %2569 = vmatprep.subr.mxu0 0.0
        %2570 = vmatpush1.msra.mxu0 0.0
        %2571 = vmatprep.subr.mxu0 0.0
        %2572 = vmatpush1.msra.mxu0 0.0
        %2573 = vmatprep.subr.mxu0 0.0
        %2574 = vmatpush1.msra.mxu0 0.0
        %2575 = vmatprep.subr.mxu0 0.0
        %2576 = vmatpush1.msra.mxu0 0.0
        %2577 = vmatprep.subr.mxu0 0.0
        %2578 = vmatpush1.msra.mxu0 0.0
        %2579 = vmatprep.subr.mxu0 0.0
        %2580 = vmatpush1.msra.mxu0 0.0
        %2581 = vmatprep.subr.mxu0 0.0
        %2582 = vmatpush1.msra.mxu0 0.0
        %2583 = vmatprep.subr.mxu0 0.0
        %2584 = vmatpush1.msra.mxu0 0.0
        %2585 = vmatprep.subr.mxu0 0.0
        %2586 = vmatpush1.msra.mxu0 0.0
        %2587 = vmatprep.subr.mxu0 0.0
        %2588 = vmatpush1.msra.mxu0 0.0
        %2589 = vmatprep.subr.mxu0 0.0
        %2590 = vmatpush1.msra.mxu0 0.0
        %2591 = vmatprep.subr.mxu0 0.0
        %2592 = vmatpush1.msra.mxu0 0.0
        %2593 = vmatprep.subr.mxu0 0.0
        %2594 = vmatpush1.msra.mxu0 0.0
        %2595 = vmatprep.subr.mxu0 0.0
        %2596 = vmatpush1.msra.mxu0 0.0
        %2597 = vmatprep.subr.mxu0 0.0
        %2598 = vmatpush1.msra.mxu0 0.0
        %2599 = vmatprep.subr.mxu0 0.0
        %2600 = vmatpush1.msra.mxu0 0.0
        %2601 = vmatprep.subr.mxu0 0.0
        %2602 = vmatpush1.msra.mxu0 0.0
        %2603 = vmatprep.subr.mxu0 0.0
        %2604 = vmatpush1.msra.mxu0 0.0
        %2605 = vmatprep.subr.mxu0 0.0
        %2606 = vmatpush1.msra.mxu0 0.0
        %2607 = vmatprep.mubr.f32.mxu0 0.0
        %2608 = vmatmul.mubr.f32.gmra.mrb[0].mxu0 %v2538
        %v2609 = vpop.f32.mrb[0].mxu0
        %v2610 = vadd.f32 0.0, %v2609
        %v2611 = vpop.f32.mrb[0].mxu0
        %2612 = vmatprep.mubr.f32.mxu0 0.0
        %2613 = vmatmul.mubr.f32.gmra.mrb[0].mxu0 %v2541
        %v2614 = vpop.f32.mrb[0].mxu0
        %v2615 = vadd.f32 0.0, %v2614
        %v2616 = vpop.f32.mrb[0].mxu0
        %2617 = vdwg.mxu0
        %v2619 = vsel %vm2536, %v2531, 0
        %v2622 = vsel %vm2536, %v2532, 0
        %2624 = vmatprep.subr.mxu0 0.0
        %2625 = vmatpush1.msra.mxu0 %v2456
        %2626 = vmatprep.subr.mxu0 0.0
        %2627 = vmatpush1.msra.mxu0 0.0
        %2628 = vmatprep.subr.mxu0 0.0
        %2629 = vmatpush1.msra.mxu0 0.0
        %2630 = vmatprep.subr.mxu0 0.0
        %2631 = vmatpush1.msra.mxu0 0.0
        %2632 = vmatprep.subr.mxu0 0.0
        %2633 = vmatpush1.msra.mxu0 0.0
        %2634 = vmatprep.subr.mxu0 0.0
        %2635 = vmatpush1.msra.mxu0 0.0
        %2636 = vmatprep.subr.mxu0 0.0
        %2637 = vmatpush1.msra.mxu0 0.0
        %2638 = vmatprep.subr.mxu0 0.0
        %2639 = vmatpush1.msra.mxu0 0.0
        %2640 = vmatprep.subr.mxu0 0.0
        %2641 = vmatpush1.msra.mxu0 0.0
        %2642 = vmatprep.subr.mxu0 0.0
        %2643 = vmatpush1.msra.mxu0 0.0
        %2644 = vmatprep.subr.mxu0 0.0
        %2645 = vmatpush1.msra.mxu0 0.0
        %2646 = vmatprep.subr.mxu0 0.0
        %2647 = vmatpush1.msra.mxu0 0.0
        %2648 = vmatprep.subr.mxu0 0.0
        %2649 = vmatpush1.msra.mxu0 0.0
        %2650 = vmatprep.subr.mxu0 0.0
        %2651 = vmatpush1.msra.mxu0 0.0
        %2652 = vmatprep.subr.mxu0 0.0
        %2653 = vmatpush1.msra.mxu0 0.0
        %2654 = vmatprep.subr.mxu0 0.0
        %2655 = vmatpush1.msra.mxu0 0.0
        %2656 = vmatprep.subr.mxu0 0.0
        %2657 = vmatpush1.msra.mxu0 0.0
        %2658 = vmatprep.subr.mxu0 0.0
        %2659 = vmatpush1.msra.mxu0 0.0
        %2660 = vmatprep.subr.mxu0 0.0
        %2661 = vmatpush1.msra.mxu0 0.0
        %2662 = vmatprep.subr.mxu0 0.0
        %2663 = vmatpush1.msra.mxu0 0.0
        %2664 = vmatprep.subr.mxu0 0.0
        %2665 = vmatpush1.msra.mxu0 0.0
        %2666 = vmatprep.subr.mxu0 0.0
        %2667 = vmatpush1.msra.mxu0 0.0
        %2668 = vmatprep.subr.mxu0 0.0
        %2669 = vmatpush1.msra.mxu0 0.0
        %2670 = vmatprep.subr.mxu0 0.0
        %2671 = vmatpush1.msra.mxu0 0.0
        %2672 = vmatprep.subr.mxu0 0.0
        %2673 = vmatpush1.msra.mxu0 0.0
        %2674 = vmatprep.subr.mxu0 0.0
        %2675 = vmatpush1.msra.mxu0 0.0
        %2676 = vmatprep.subr.mxu0 0.0
        %2677 = vmatpush1.msra.mxu0 0.0
        %2678 = vmatprep.subr.mxu0 0.0
        %2679 = vmatpush1.msra.mxu0 0.0
        %2680 = vmatprep.subr.mxu0 0.0
        %2681 = vmatpush1.msra.mxu0 0.0
        %2682 = vmatprep.subr.mxu0 0.0
        %2683 = vmatpush1.msra.mxu0 0.0
        %2684 = vmatprep.subr.mxu0 0.0
        %2685 = vmatpush1.msra.mxu0 0.0
        %2686 = vmatprep.subr.mxu0 0.0
        %2687 = vmatpush1.msra.mxu0 0.0
        %2688 = vmatprep.mubr.f32.mxu0 0.0
        %2689 = vmatmul.mubr.f32.gmra.mrb[0].mxu0 %v2619
        %v2690 = vpop.f32.mrb[0].mxu0
        %v2691 = vadd.f32 %v2610, %v2690
        %v2692 = vpop.f32.mrb[0].mxu0
        %2693 = vmatprep.mubr.f32.mxu0 0.0
        %2694 = vmatmul.mubr.f32.gmra.mrb[0].mxu0 %v2622
        %v2695 = vpop.f32.mrb[0].mxu0
        %v2696 = vadd.f32 %v2615, %v2695
        %v2697 = vpop.f32.mrb[0].mxu0
        %2698 = vdwg.mxu0
        %s2699 = scalar_lea.vmem %s3, 32
        %v2700 = vld [vmem:[%s2699] sm:$0xff]
        %v2701 = vld [vmem:[%s2699 + $0x8] sm:$0xff]
        %v2703 = vsel %vm2536, %v2700, 0
        %v2706 = vsel %vm2536, %v2701, 0
        %2708 = vmatprep.subr.mxu0 0.0
        %2709 = vmatpush1.msra.mxu0 %v2527
        %2710 = vmatprep.subr.mxu0 0.0
        %2711 = vmatpush1.msra.mxu0 0.0
        %2712 = vmatprep.subr.mxu0 0.0
        %2713 = vmatpush1.msra.mxu0 0.0
        %2714 = vmatprep.subr.mxu0 0.0
        %2715 = vmatpush1.msra.mxu0 0.0
        %2716 = vmatprep.subr.mxu0 0.0
        %2717 = vmatpush1.msra.mxu0 0.0
        %2718 = vmatprep.subr.mxu0 0.0
        %2719 = vmatpush1.msra.mxu0 0.0
        %2720 = vmatprep.subr.mxu0 0.0
        %2721 = vmatpush1.msra.mxu0 0.0
        %2722 = vmatprep.subr.mxu0 0.0
        %2723 = vmatpush1.msra.mxu0 0.0
        %2724 = vmatprep.subr.mxu0 0.0
        %2725 = vmatpush1.msra.mxu0 0.0
        %2726 = vmatprep.subr.mxu0 0.0
        %2727 = vmatpush1.msra.mxu0 0.0
        %2728 = vmatprep.subr.mxu0 0.0
        %2729 = vmatpush1.msra.mxu0 0.0
        %2730 = vmatprep.subr.mxu0 0.0
        %2731 = vmatpush1.msra.mxu0 0.0
        %2732 = vmatprep.subr.mxu0 0.0
        %2733 = vmatpush1.msra.mxu0 0.0
        %2734 = vmatprep.subr.mxu0 0.0
        %2735 = vmatpush1.msra.mxu0 0.0
        %2736 = vmatprep.subr.mxu0 0.0
        %2737 = vmatpush1.msra.mxu0 0.0
        %2738 = vmatprep.subr.mxu0 0.0
        %2739 = vmatpush1.msra.mxu0 0.0
        %2740 = vmatprep.subr.mxu0 0.0
        %2741 = vmatpush1.msra.mxu0 0.0
        %2742 = vmatprep.subr.mxu0 0.0
        %2743 = vmatpush1.msra.mxu0 0.0
        %2744 = vmatprep.subr.mxu0 0.0
        %2745 = vmatpush1.msra.mxu0 0.0
        %2746 = vmatprep.subr.mxu0 0.0
        %2747 = vmatpush1.msra.mxu0 0.0
        %2748 = vmatprep.subr.mxu0 0.0
        %2749 = vmatpush1.msra.mxu0 0.0
        %2750 = vmatprep.subr.mxu0 0.0
        %2751 = vmatpush1.msra.mxu0 0.0
        %2752 = vmatprep.subr.mxu0 0.0
        %2753 = vmatpush1.msra.mxu0 0.0
        %2754 = vmatprep.subr.mxu0 0.0
        %2755 = vmatpush1.msra.mxu0 0.0
        %2756 = vmatprep.subr.mxu0 0.0
        %2757 = vmatpush1.msra.mxu0 0.0
        %2758 = vmatprep.subr.mxu0 0.0
        %2759 = vmatpush1.msra.mxu0 0.0
        %2760 = vmatprep.subr.mxu0 0.0
        %2761 = vmatpush1.msra.mxu0 0.0
        %2762 = vmatprep.subr.mxu0 0.0
        %2763 = vmatpush1.msra.mxu0 0.0
        %2764 = vmatprep.subr.mxu0 0.0
        %2765 = vmatpush1.msra.mxu0 0.0
        %2766 = vmatprep.subr.mxu0 0.0
        %2767 = vmatpush1.msra.mxu0 0.0
        %2768 = vmatprep.subr.mxu0 0.0
        %2769 = vmatpush1.msra.mxu0 0.0
        %2770 = vmatprep.subr.mxu0 0.0
        %2771 = vmatpush1.msra.mxu0 0.0
        %2772 = vmatprep.mubr.f32.mxu0 0.0
        %2773 = vmatmul.mubr.f32.gmra.mrb[0].mxu0 %v2703
        %v2774 = vpop.f32.mrb[0].mxu0
        %v2775 = vadd.f32 0.0, %v2774
        %v2776 = vpop.f32.mrb[0].mxu0
        %2777 = vmatprep.mubr.f32.mxu0 0.0
        %2778 = vmatmul.mubr.f32.gmra.mrb[0].mxu0 %v2706
        %v2779 = vpop.f32.mrb[0].mxu0
        %v2780 = vadd.f32 0.0, %v2779
        %v2781 = vpop.f32.mrb[0].mxu0
        %2782 = vdwg.mxu0
        %v2783 = vadd.f32 %v2691, %v2775
        %v2784 = vadd.f32 %v2696, %v2780
        %s2785 = scalar_lea.vmem %s3, 48
        %v2786 = vld [vmem:[%s2785] sm:$0xff]
        %v2787 = vld [vmem:[%s2785 + $0x8] sm:$0xff]
        %v2789 = vsel %vm2536, %v2786, 0
        %v2792 = vsel %vm2536, %v2787, 0
        %2794 = vmatprep.subr.mxu0 0.0
        %2795 = vmatpush1.msra.mxu0 %v2529
        %2796 = vmatprep.subr.mxu0 0.0
        %2797 = vmatpush1.msra.mxu0 0.0
        %2798 = vmatprep.subr.mxu0 0.0
        %2799 = vmatpush1.msra.mxu0 0.0
        %2800 = vmatprep.subr.mxu0 0.0
        %2801 = vmatpush1.msra.mxu0 0.0
        %2802 = vmatprep.subr.mxu0 0.0
        %2803 = vmatpush1.msra.mxu0 0.0
        %2804 = vmatprep.subr.mxu0 0.0
        %2805 = vmatpush1.msra.mxu0 0.0
        %2806 = vmatprep.subr.mxu0 0.0
        %2807 = vmatpush1.msra.mxu0 0.0
        %2808 = vmatprep.subr.mxu0 0.0
        %2809 = vmatpush1.msra.mxu0 0.0
        %2810 = vmatprep.subr.mxu0 0.0
        %2811 = vmatpush1.msra.mxu0 0.0
        %2812 = vmatprep.subr.mxu0 0.0
        %2813 = vmatpush1.msra.mxu0 0.0
        %2814 = vmatprep.subr.mxu0 0.0
        %2815 = vmatpush1.msra.mxu0 0.0
        %2816 = vmatprep.subr.mxu0 0.0
        %2817 = vmatpush1.msra.mxu0 0.0
        %2818 = vmatprep.subr.mxu0 0.0
        %2819 = vmatpush1.msra.mxu0 0.0
        %2820 = vmatprep.subr.mxu0 0.0
        %2821 = vmatpush1.msra.mxu0 0.0
        %2822 = vmatprep.subr.mxu0 0.0
        %2823 = vmatpush1.msra.mxu0 0.0
        %2824 = vmatprep.subr.mxu0 0.0
        %2825 = vmatpush1.msra.mxu0 0.0
        %2826 = vmatprep.subr.mxu0 0.0
        %2827 = vmatpush1.msra.mxu0 0.0
        %2828 = vmatprep.subr.mxu0 0.0
        %2829 = vmatpush1.msra.mxu0 0.0
        %2830 = vmatprep.subr.mxu0 0.0
        %2831 = vmatpush1.msra.mxu0 0.0
        %2832 = vmatprep.subr.mxu0 0.0
        %2833 = vmatpush1.msra.mxu0 0.0
        %2834 = vmatprep.subr.mxu0 0.0
        %2835 = vmatpush1.msra.mxu0 0.0
        %2836 = vmatprep.subr.mxu0 0.0
        %2837 = vmatpush1.msra.mxu0 0.0
        %2838 = vmatprep.subr.mxu0 0.0
        %2839 = vmatpush1.msra.mxu0 0.0
        %2840 = vmatprep.subr.mxu0 0.0
        %2841 = vmatpush1.msra.mxu0 0.0
        %2842 = vmatprep.subr.mxu0 0.0
        %2843 = vmatpush1.msra.mxu0 0.0
        %2844 = vmatprep.subr.mxu0 0.0
        %2845 = vmatpush1.msra.mxu0 0.0
        %2846 = vmatprep.subr.mxu0 0.0
        %2847 = vmatpush1.msra.mxu0 0.0
        %2848 = vmatprep.subr.mxu0 0.0
        %2849 = vmatpush1.msra.mxu0 0.0
        %2850 = vmatprep.subr.mxu0 0.0
        %2851 = vmatpush1.msra.mxu0 0.0
        %2852 = vmatprep.subr.mxu0 0.0
        %2853 = vmatpush1.msra.mxu0 0.0
        %2854 = vmatprep.subr.mxu0 0.0
        %2855 = vmatpush1.msra.mxu0 0.0
        %2856 = vmatprep.subr.mxu0 0.0
        %2857 = vmatpush1.msra.mxu0 0.0
        %2858 = vmatprep.mubr.f32.mxu0 0.0
        %2859 = vmatmul.mubr.f32.gmra.mrb[0].mxu0 %v2789
        %v2860 = vpop.f32.mrb[0].mxu0
        %v2861 = vadd.f32 0.0, %v2860
        %v2862 = vpop.f32.mrb[0].mxu0
        %2863 = vmatprep.mubr.f32.mxu0 0.0
        %2864 = vmatmul.mubr.f32.gmra.mrb[0].mxu0 %v2792
        %v2865 = vpop.f32.mrb[0].mxu0
        %v2866 = vadd.f32 0.0, %v2865
        %v2867 = vpop.f32.mrb[0].mxu0
        %2868 = vdwg.mxu0
        %v2869 = vadd.f32 %v2783, %v2861
        %v2870 = vadd.f32 %v2784, %v2866
        %v2871 = vld [vmem:[#allocation2 + $0xb0] sm:$0xff]
        %v2872 = vld [vmem:[#allocation2 + $0xb8] sm:$0xff]
        %v2873 = vld [vmem:[#allocation2 + $0xc0] sm:$0xff]
        %v2874 = vld [vmem:[#allocation2 + $0xc8] sm:$0xff]
        %v2875 = vld [vmem:[#allocation2 + $0x240] sm:$0xff]
        %v2876 = vld [vmem:[#allocation2 + $0x248] sm:$0xff]
        %v2877 = vld [vmem:[#allocation2 + $0x250] sm:$0xff]
        %v2878 = vld [vmem:[#allocation2 + $0x258] sm:$0xff]
        %v2879 = vld [vmem:[#allocation2 + $0x3d0] sm:$0xff]
        %v2880 = vld [vmem:[#allocation2 + $0x3d8] sm:$0xff]
        %v2881 = vld [vmem:[#allocation2 + $0x3e0] sm:$0xff]
        %v2882 = vld [vmem:[#allocation2 + $0x3e8] sm:$0xff]
        %v2883 = vld [vmem:[#allocation2 + $0x560] sm:$0xff]
        %v2884 = vld [vmem:[#allocation2 + $0x568] sm:$0xff]
        %v2885 = vld [vmem:[#allocation2 + $0x570] sm:$0xff]
        %v2886 = vld [vmem:[#allocation2 + $0x578] sm:$0xff]
        %v2887 = vld [vmem:[#allocation2 + $0x6f0] sm:$0xff]
        %v2888 = vld [vmem:[#allocation2 + $0x6f8] sm:$0xff]
        %v2889 = vld [vmem:[#allocation2 + $0x700] sm:$0xff]
        %v2890 = vld [vmem:[#allocation2 + $0x708] sm:$0xff]
        %v2891 = vld [vmem:[#allocation2 + $0x880] sm:$0xff]
        %v2892 = vld [vmem:[#allocation2 + $0x888] sm:$0xff]
        %v2893 = vld [vmem:[#allocation2 + $0x890] sm:$0xff]
        %v2894 = vld [vmem:[#allocation2 + $0x898] sm:$0xff]
        %v2895 = vld [vmem:[#allocation2 + $0xa10] sm:$0xff]
        %v2896 = vld [vmem:[#allocation2 + $0xa18] sm:$0xff]
        %v2897 = vld [vmem:[#allocation2 + $0xa20] sm:$0xff]
        %v2898 = vld [vmem:[#allocation2 + $0xa28] sm:$0xff]
        %v2899 = vld [vmem:[#allocation2 + $0xba0] sm:$0xff]
        %v2900 = vld [vmem:[#allocation2 + $0xba8] sm:$0xff]
        %v2901 = vld [vmem:[#allocation2 + $0xbb0] sm:$0xff]
        %v2902 = vld [vmem:[#allocation2 + $0xbb8] sm:$0xff]
        %v2903 = vld [vmem:[#allocation2 + $0xd30] sm:$0xff]
        %v2904 = vld [vmem:[#allocation2 + $0xd38] sm:$0xff]
        %v2905 = vld [vmem:[#allocation2 + $0xd40] sm:$0xff]
        %v2906 = vld [vmem:[#allocation2 + $0xd48] sm:$0xff]
        %v2907 = vld [vmem:[#allocation2 + $0xec0] sm:$0xff]
        %v2908 = vld [vmem:[#allocation2 + $0xec8] sm:$0xff]
        %v2909 = vld [vmem:[#allocation2 + $0xed0] sm:$0xff]
        %v2910 = vld [vmem:[#allocation2 + $0xed8] sm:$0xff]
        %v2911 = vld [vmem:[#allocation2 + $0x1050] sm:$0xff]
        %v2912 = vld [vmem:[#allocation2 + $0x1058] sm:$0xff]
        %v2913 = vld [vmem:[#allocation2 + $0x1060] sm:$0xff]
        %v2914 = vld [vmem:[#allocation2 + $0x1068] sm:$0xff]
        %v2915 = vld [vmem:[#allocation2 + $0x11e0] sm:$0xff]
        %v2916 = vld [vmem:[#allocation2 + $0x11e8] sm:$0xff]
        %v2917 = vld [vmem:[#allocation2 + $0x11f0] sm:$0xff]
        %v2918 = vld [vmem:[#allocation2 + $0x11f8] sm:$0xff]
        %v2919 = vld [vmem:[#allocation2 + $0x1370] sm:$0xff]
        %v2920 = vld [vmem:[#allocation2 + $0x1378] sm:$0xff]
        %v2921 = vld [vmem:[#allocation2 + $0x1380] sm:$0xff]
        %v2922 = vld [vmem:[#allocation2 + $0x1388] sm:$0xff]
        %v2923 = vld [vmem:[#allocation2 + $0x1500] sm:$0xff]
        %v2924 = vld [vmem:[#allocation2 + $0x1508] sm:$0xff]
        %v2925 = vld [vmem:[#allocation2 + $0x1510] sm:$0xff]
        %v2926 = vld [vmem:[#allocation2 + $0x1518] sm:$0xff]
        %v2927 = vld [vmem:[#allocation2 + $0x1690] sm:$0xff]
        %v2928 = vld [vmem:[#allocation2 + $0x1698] sm:$0xff]
        %v2929 = vld [vmem:[#allocation2 + $0x16a0] sm:$0xff]
        %v2930 = vld [vmem:[#allocation2 + $0x16a8] sm:$0xff]
        %v2931 = vld [vmem:[#allocation2 + $0x1820] sm:$0xff]
        %v2932 = vld [vmem:[#allocation2 + $0x1828] sm:$0xff]
        %v2933 = vld [vmem:[#allocation2 + $0x1830] sm:$0xff]
        %v2934 = vld [vmem:[#allocation2 + $0x1838] sm:$0xff]
        %v2935 = vld [vmem:[#allocation2 + $0x19b0] sm:$0xff]
        %v2936 = vld [vmem:[#allocation2 + $0x19b8] sm:$0xff]
        %v2937 = vld [vmem:[#allocation2 + $0x19c0] sm:$0xff]
        %v2938 = vld [vmem:[#allocation2 + $0x19c8] sm:$0xff]
        %v2939 = vld [vmem:[#allocation2 + $0x1b40] sm:$0xff]
        %v2940 = vld [vmem:[#allocation2 + $0x1b48] sm:$0xff]
        %v2941 = vld [vmem:[#allocation2 + $0x1b50] sm:$0xff]
        %v2942 = vld [vmem:[#allocation2 + $0x1b58] sm:$0xff]
        %v2943 = vld [vmem:[#allocation2 + $0x1cd0] sm:$0xff]
        %v2944 = vld [vmem:[#allocation2 + $0x1cd8] sm:$0xff]
        %v2945 = vld [vmem:[#allocation2 + $0x1ce0] sm:$0xff]
        %v2946 = vld [vmem:[#allocation2 + $0x1ce8] sm:$0xff]
        %v2947 = vld [vmem:[#allocation2 + $0x1e60] sm:$0xff]
        %v2948 = vld [vmem:[#allocation2 + $0x1e68] sm:$0xff]
        %v2949 = vld [vmem:[#allocation2 + $0x1e70] sm:$0xff]
        %v2950 = vld [vmem:[#allocation2 + $0x1e78] sm:$0xff]
        %v2951 = vld [vmem:[#allocation2 + $0x1ff0] sm:$0xff]
        %v2952 = vld [vmem:[#allocation2 + $0x1ff8] sm:$0xff]
        %v2953 = vld [vmem:[#allocation2 + $0x2000] sm:$0xff]
        %v2954 = vld [vmem:[#allocation2 + $0x2008] sm:$0xff]
        %v2955 = vld [vmem:[#allocation2 + $0x2180] sm:$0xff]
        %v2956 = vld [vmem:[#allocation2 + $0x2188] sm:$0xff]
        %v2957 = vld [vmem:[#allocation2 + $0x2190] sm:$0xff]
        %v2958 = vld [vmem:[#allocation2 + $0x2198] sm:$0xff]
        %v2959 = vld [vmem:[#allocation2 + $0x2310] sm:$0xff]
        %v2960 = vld [vmem:[#allocation2 + $0x2318] sm:$0xff]
        %v2961 = vld [vmem:[#allocation2 + $0x2320] sm:$0xff]
        %v2962 = vld [vmem:[#allocation2 + $0x2328] sm:$0xff]
        %v2963 = vld [vmem:[#allocation2 + $0x24a0] sm:$0xff]
        %v2964 = vld [vmem:[#allocation2 + $0x24a8] sm:$0xff]
        %v2965 = vld [vmem:[#allocation2 + $0x24b0] sm:$0xff]
        %v2966 = vld [vmem:[#allocation2 + $0x24b8] sm:$0xff]
        %v2967 = vld [vmem:[#allocation2 + $0x2630] sm:$0xff]
        %v2968 = vld [vmem:[#allocation2 + $0x2638] sm:$0xff]
        %v2969 = vld [vmem:[#allocation2 + $0x2640] sm:$0xff]
        %v2970 = vld [vmem:[#allocation2 + $0x2648] sm:$0xff]
        %v2971 = vld [vmem:[#allocation2 + $0x27c0] sm:$0xff]
        %v2972 = vld [vmem:[#allocation2 + $0x27c8] sm:$0xff]
        %v2973 = vld [vmem:[#allocation2 + $0x27d0] sm:$0xff]
        %v2974 = vld [vmem:[#allocation2 + $0x27d8] sm:$0xff]
        %v2975 = vld [vmem:[#allocation2 + $0x2950] sm:$0xff]
        %v2976 = vld [vmem:[#allocation2 + $0x2958] sm:$0xff]
        %v2977 = vld [vmem:[#allocation2 + $0x2960] sm:$0xff]
        %v2978 = vld [vmem:[#allocation2 + $0x2968] sm:$0xff]
        %v2979 = vld [vmem:[#allocation2 + $0x2ae0] sm:$0xff]
        %v2980 = vld [vmem:[#allocation2 + $0x2ae8] sm:$0xff]
        %v2981 = vld [vmem:[#allocation2 + $0x2af0] sm:$0xff]
        %v2982 = vld [vmem:[#allocation2 + $0x2af8] sm:$0xff]
        %v2983 = vld [vmem:[#allocation2 + $0x2c70] sm:$0xff]
        %v2984 = vld [vmem:[#allocation2 + $0x2c78] sm:$0xff]
        %v2985 = vld [vmem:[#allocation2 + $0x2c80] sm:$0xff]
        %v2986 = vld [vmem:[#allocation2 + $0x2c88] sm:$0xff]
        %v2987 = vld [vmem:[#allocation2 + $0x2e00] sm:$0xff]
        %v2988 = vld [vmem:[#allocation2 + $0x2e08] sm:$0xff]
        %v2989 = vld [vmem:[#allocation2 + $0x2e10] sm:$0xff]
        %v2990 = vld [vmem:[#allocation2 + $0x2e18] sm:$0xff]
        %v2991 = vld [vmem:[#allocation2 + $0x2f90] sm:$0xff]
        %v2992 = vld [vmem:[#allocation2 + $0x2f98] sm:$0xff]
        %v2993 = vld [vmem:[#allocation2 + $0x2fa0] sm:$0xff]
        %v2994 = vld [vmem:[#allocation2 + $0x2fa8] sm:$0xff]
        %v2995 = vld [vmem:[#allocation2 + $0x3120] sm:$0xff]
        %v2996 = vld [vmem:[#allocation2 + $0x3128] sm:$0xff]
        %v2997 = vld [vmem:[#allocation2 + $0x3130] sm:$0xff]
        %v2998 = vld [vmem:[#allocation2 + $0x3138] sm:$0xff]
        %2999 = vmatprep.subr.mxu0 %v2872
        %3000 = vmatpush1.msra.mxu0 %v2871
        %3001 = vmatprep.subr.mxu0 %v2876
        %3002 = vmatpush1.msra.mxu0 %v2875
        %3003 = vmatprep.subr.mxu0 %v2880
        %3004 = vmatpush1.msra.mxu0 %v2879
        %3005 = vmatprep.subr.mxu0 %v2884
        %3006 = vmatpush1.msra.mxu0 %v2883
        %3007 = vmatprep.subr.mxu0 %v2888
        %3008 = vmatpush1.msra.mxu0 %v2887
        %3009 = vmatprep.subr.mxu0 %v2892
        %3010 = vmatpush1.msra.mxu0 %v2891
        %3011 = vmatprep.subr.mxu0 %v2896
        %3012 = vmatpush1.msra.mxu0 %v2895
        %3013 = vmatprep.subr.mxu0 %v2900
        %3014 = vmatpush1.msra.mxu0 %v2899
        %3015 = vmatprep.subr.mxu0 %v2904
        %3016 = vmatpush1.msra.mxu0 %v2903
        %3017 = vmatprep.subr.mxu0 %v2908
        %3018 = vmatpush1.msra.mxu0 %v2907
        %3019 = vmatprep.subr.mxu0 %v2912
        %3020 = vmatpush1.msra.mxu0 %v2911
        %3021 = vmatprep.subr.mxu0 %v2916
        %3022 = vmatpush1.msra.mxu0 %v2915
        %3023 = vmatprep.subr.mxu0 %v2920
        %3024 = vmatpush1.msra.mxu0 %v2919
        %3025 = vmatprep.subr.mxu0 %v2924
        %3026 = vmatpush1.msra.mxu0 %v2923
        %3027 = vmatprep.subr.mxu0 %v2928
        %3028 = vmatpush1.msra.mxu0 %v2927
        %3029 = vmatprep.subr.mxu0 %v2932
        %3030 = vmatpush1.msra.mxu0 %v2931
        %3031 = vmatprep.subr.mxu0 %v2936
        %3032 = vmatpush1.msra.mxu0 %v2935
        %3033 = vmatprep.subr.mxu0 %v2940
        %3034 = vmatpush1.msra.mxu0 %v2939
        %3035 = vmatprep.subr.mxu0 %v2944
        %3036 = vmatpush1.msra.mxu0 %v2943
        %3037 = vmatprep.subr.mxu0 %v2948
        %3038 = vmatpush1.msra.mxu0 %v2947
        %3039 = vmatprep.subr.mxu0 %v2952
        %3040 = vmatpush1.msra.mxu0 %v2951
        %3041 = vmatprep.subr.mxu0 %v2956
        %3042 = vmatpush1.msra.mxu0 %v2955
        %3043 = vmatprep.subr.mxu0 %v2960
        %3044 = vmatpush1.msra.mxu0 %v2959
        %3045 = vmatprep.subr.mxu0 %v2964
        %3046 = vmatpush1.msra.mxu0 %v2963
        %3047 = vmatprep.subr.mxu0 %v2968
        %3048 = vmatpush1.msra.mxu0 %v2967
        %3049 = vmatprep.subr.mxu0 %v2972
        %3050 = vmatpush1.msra.mxu0 %v2971
        %3051 = vmatprep.subr.mxu0 %v2976
        %3052 = vmatpush1.msra.mxu0 %v2975
        %3053 = vmatprep.subr.mxu0 %v2980
        %3054 = vmatpush1.msra.mxu0 %v2979
        %3055 = vmatprep.subr.mxu0 %v2984
        %3056 = vmatpush1.msra.mxu0 %v2983
        %3057 = vmatprep.subr.mxu0 %v2988
        %3058 = vmatpush1.msra.mxu0 %v2987
        %3059 = vmatprep.subr.mxu0 %v2992
        %3060 = vmatpush1.msra.mxu0 %v2991
        %3061 = vmatprep.subr.mxu0 %v2996
        %3062 = vmatpush1.msra.mxu0 %v2995
        %3063 = vmatprep.mubr.f32.mxu0 %v2260
        %3064 = vmatmul.mubr.f32.gmra.mrb[0].mxu0 %v2259
        %v3065 = vpop.f32.mrb[0].mxu0
        %v3066 = vadd.f32 0.0, %v3065
        %v3067 = vpop.f32.mrb[0].mxu0
        %v3068 = vadd.f32 0.0, %v3067
        %3069 = vdwg.mxu0
        %3070 = vmatprep.subr.mxu0 %v2874
        %3071 = vmatpush1.msra.mxu0 %v2873
        %3072 = vmatprep.subr.mxu0 %v2878
        %3073 = vmatpush1.msra.mxu0 %v2877
        %3074 = vmatprep.subr.mxu0 %v2882
        %3075 = vmatpush1.msra.mxu0 %v2881
        %3076 = vmatprep.subr.mxu0 %v2886
        %3077 = vmatpush1.msra.mxu0 %v2885
        %3078 = vmatprep.subr.mxu0 %v2890
        %3079 = vmatpush1.msra.mxu0 %v2889
        %3080 = vmatprep.subr.mxu0 %v2894
        %3081 = vmatpush1.msra.mxu0 %v2893
        %3082 = vmatprep.subr.mxu0 %v2898
        %3083 = vmatpush1.msra.mxu0 %v2897
        %3084 = vmatprep.subr.mxu0 %v2902
        %3085 = vmatpush1.msra.mxu0 %v2901
        %3086 = vmatprep.subr.mxu0 %v2906
        %3087 = vmatpush1.msra.mxu0 %v2905
        %3088 = vmatprep.subr.mxu0 %v2910
        %3089 = vmatpush1.msra.mxu0 %v2909
        %3090 = vmatprep.subr.mxu0 %v2914
        %3091 = vmatpush1.msra.mxu0 %v2913
        %3092 = vmatprep.subr.mxu0 %v2918
        %3093 = vmatpush1.msra.mxu0 %v2917
        %3094 = vmatprep.subr.mxu0 %v2922
        %3095 = vmatpush1.msra.mxu0 %v2921
        %3096 = vmatprep.subr.mxu0 %v2926
        %3097 = vmatpush1.msra.mxu0 %v2925
        %3098 = vmatprep.subr.mxu0 %v2930
        %3099 = vmatpush1.msra.mxu0 %v2929
        %3100 = vmatprep.subr.mxu0 %v2934
        %3101 = vmatpush1.msra.mxu0 %v2933
        %3102 = vmatprep.subr.mxu0 %v2938
        %3103 = vmatpush1.msra.mxu0 %v2937
        %3104 = vmatprep.subr.mxu0 %v2942
        %3105 = vmatpush1.msra.mxu0 %v2941
        %3106 = vmatprep.subr.mxu0 %v2946
        %3107 = vmatpush1.msra.mxu0 %v2945
        %3108 = vmatprep.subr.mxu0 %v2950
        %3109 = vmatpush1.msra.mxu0 %v2949
        %3110 = vmatprep.subr.mxu0 %v2954
        %3111 = vmatpush1.msra.mxu0 %v2953
        %3112 = vmatprep.subr.mxu0 %v2958
        %3113 = vmatpush1.msra.mxu0 %v2957
        %3114 = vmatprep.subr.mxu0 %v2962
        %3115 = vmatpush1.msra.mxu0 %v2961
        %3116 = vmatprep.subr.mxu0 %v2966
        %3117 = vmatpush1.msra.mxu0 %v2965
        %3118 = vmatprep.subr.mxu0 %v2970
        %3119 = vmatpush1.msra.mxu0 %v2969
        %3120 = vmatprep.subr.mxu0 %v2974
        %3121 = vmatpush1.msra.mxu0 %v2973
        %3122 = vmatprep.subr.mxu0 %v2978
        %3123 = vmatpush1.msra.mxu0 %v2977
        %3124 = vmatprep.subr.mxu0 %v2982
        %3125 = vmatpush1.msra.mxu0 %v2981
        %3126 = vmatprep.subr.mxu0 %v2986
        %3127 = vmatpush1.msra.mxu0 %v2985
        %3128 = vmatprep.subr.mxu0 %v2990
        %3129 = vmatpush1.msra.mxu0 %v2989
        %3130 = vmatprep.subr.mxu0 %v2994
        %3131 = vmatpush1.msra.mxu0 %v2993
        %3132 = vmatprep.subr.mxu0 %v2998
        %3133 = vmatpush1.msra.mxu0 %v2997
        %3134 = vmatprep.mubr.f32.mxu0 %v2260
        %3135 = vmatmul.mubr.f32.gmra.mrb[0].mxu0 %v2259
        %v3136 = vpop.f32.mrb[0].mxu0
        %v3137 = vadd.f32 0.0, %v3136
        %v3138 = vpop.f32.mrb[0].mxu0
        %v3139 = vadd.f32 0.0, %v3138
        %3140 = vdwg.mxu0
        %s3141 = scalar_lea.vmem %s3, 64
        %v3142 = vld [vmem:[%s3141] sm:$0xff]
        %v3143 = vld [vmem:[%s3141 + $0x8] sm:$0xff]
        %v3145 = vsel %vm2536, %v3142, 0
        %v3148 = vsel %vm2536, %v3143, 0
        %3150 = vmatprep.subr.mxu0 0.0
        %3151 = vmatpush1.msra.mxu0 %v3066
        %3152 = vmatprep.subr.mxu0 0.0
        %3153 = vmatpush1.msra.mxu0 0.0
        %3154 = vmatprep.subr.mxu0 0.0
        %3155 = vmatpush1.msra.mxu0 0.0
        %3156 = vmatprep.subr.mxu0 0.0
        %3157 = vmatpush1.msra.mxu0 0.0
        %3158 = vmatprep.subr.mxu0 0.0
        %3159 = vmatpush1.msra.mxu0 0.0
        %3160 = vmatprep.subr.mxu0 0.0
        %3161 = vmatpush1.msra.mxu0 0.0
        %3162 = vmatprep.subr.mxu0 0.0
        %3163 = vmatpush1.msra.mxu0 0.0
        %3164 = vmatprep.subr.mxu0 0.0
        %3165 = vmatpush1.msra.mxu0 0.0
        %3166 = vmatprep.subr.mxu0 0.0
        %3167 = vmatpush1.msra.mxu0 0.0
        %3168 = vmatprep.subr.mxu0 0.0
        %3169 = vmatpush1.msra.mxu0 0.0
        %3170 = vmatprep.subr.mxu0 0.0
        %3171 = vmatpush1.msra.mxu0 0.0
        %3172 = vmatprep.subr.mxu0 0.0
        %3173 = vmatpush1.msra.mxu0 0.0
        %3174 = vmatprep.subr.mxu0 0.0
        %3175 = vmatpush1.msra.mxu0 0.0
        %3176 = vmatprep.subr.mxu0 0.0
        %3177 = vmatpush1.msra.mxu0 0.0
        %3178 = vmatprep.subr.mxu0 0.0
        %3179 = vmatpush1.msra.mxu0 0.0
        %3180 = vmatprep.subr.mxu0 0.0
        %3181 = vmatpush1.msra.mxu0 0.0
        %3182 = vmatprep.subr.mxu0 0.0
        %3183 = vmatpush1.msra.mxu0 0.0
        %3184 = vmatprep.subr.mxu0 0.0
        %3185 = vmatpush1.msra.mxu0 0.0
        %3186 = vmatprep.subr.mxu0 0.0
        %3187 = vmatpush1.msra.mxu0 0.0
        %3188 = vmatprep.subr.mxu0 0.0
        %3189 = vmatpush1.msra.mxu0 0.0
        %3190 = vmatprep.subr.mxu0 0.0
        %3191 = vmatpush1.msra.mxu0 0.0
        %3192 = vmatprep.subr.mxu0 0.0
        %3193 = vmatpush1.msra.mxu0 0.0
        %3194 = vmatprep.subr.mxu0 0.0
        %3195 = vmatpush1.msra.mxu0 0.0
        %3196 = vmatprep.subr.mxu0 0.0
        %3197 = vmatpush1.msra.mxu0 0.0
        %3198 = vmatprep.subr.mxu0 0.0
        %3199 = vmatpush1.msra.mxu0 0.0
        %3200 = vmatprep.subr.mxu0 0.0
        %3201 = vmatpush1.msra.mxu0 0.0
        %3202 = vmatprep.subr.mxu0 0.0
        %3203 = vmatpush1.msra.mxu0 0.0
        %3204 = vmatprep.subr.mxu0 0.0
        %3205 = vmatpush1.msra.mxu0 0.0
        %3206 = vmatprep.subr.mxu0 0.0
        %3207 = vmatpush1.msra.mxu0 0.0
        %3208 = vmatprep.subr.mxu0 0.0
        %3209 = vmatpush1.msra.mxu0 0.0
        %3210 = vmatprep.subr.mxu0 0.0
        %3211 = vmatpush1.msra.mxu0 0.0
        %3212 = vmatprep.subr.mxu0 0.0
        %3213 = vmatpush1.msra.mxu0 0.0
        %3214 = vmatprep.mubr.f32.mxu0 0.0
        %3215 = vmatmul.mubr.f32.gmra.mrb[0].mxu0 %v3145
        %v3216 = vpop.f32.mrb[0].mxu0
        %v3217 = vadd.f32 0.0, %v3216
        %v3218 = vpop.f32.mrb[0].mxu0
        %3219 = vmatprep.mubr.f32.mxu0 0.0
        %3220 = vmatmul.mubr.f32.gmra.mrb[0].mxu0 %v3148
        %v3221 = vpop.f32.mrb[0].mxu0
        %v3222 = vadd.f32 0.0, %v3221
        %v3223 = vpop.f32.mrb[0].mxu0
        %3224 = vdwg.mxu0
        %v3225 = vadd.f32 %v2869, %v3217
        %v3226 = vadd.f32 %v2870, %v3222
        %s3227 = scalar_lea.vmem %s3, 80
        %v3228 = vld [vmem:[%s3227] sm:$0xff]
        %v3229 = vld [vmem:[%s3227 + $0x8] sm:$0xff]
        %v3231 = vsel %vm2536, %v3228, 0
        %v3234 = vsel %vm2536, %v3229, 0
        %3236 = vmatprep.subr.mxu0 0.0
        %3237 = vmatpush1.msra.mxu0 %v3068
        %3238 = vmatprep.subr.mxu0 0.0
        %3239 = vmatpush1.msra.mxu0 0.0
        %3240 = vmatprep.subr.mxu0 0.0
        %3241 = vmatpush1.msra.mxu0 0.0
        %3242 = vmatprep.subr.mxu0 0.0
        %3243 = vmatpush1.msra.mxu0 0.0
        %3244 = vmatprep.subr.mxu0 0.0
        %3245 = vmatpush1.msra.mxu0 0.0
        %3246 = vmatprep.subr.mxu0 0.0
        %3247 = vmatpush1.msra.mxu0 0.0
        %3248 = vmatprep.subr.mxu0 0.0
        %3249 = vmatpush1.msra.mxu0 0.0
        %3250 = vmatprep.subr.mxu0 0.0
        %3251 = vmatpush1.msra.mxu0 0.0
        %3252 = vmatprep.subr.mxu0 0.0
        %3253 = vmatpush1.msra.mxu0 0.0
        %3254 = vmatprep.subr.mxu0 0.0
        %3255 = vmatpush1.msra.mxu0 0.0
        %3256 = vmatprep.subr.mxu0 0.0
        %3257 = vmatpush1.msra.mxu0 0.0
        %3258 = vmatprep.subr.mxu0 0.0
        %3259 = vmatpush1.msra.mxu0 0.0
        %3260 = vmatprep.subr.mxu0 0.0
        %3261 = vmatpush1.msra.mxu0 0.0
        %3262 = vmatprep.subr.mxu0 0.0
        %3263 = vmatpush1.msra.mxu0 0.0
        %3264 = vmatprep.subr.mxu0 0.0
        %3265 = vmatpush1.msra.mxu0 0.0
        %3266 = vmatprep.subr.mxu0 0.0
        %3267 = vmatpush1.msra.mxu0 0.0
        %3268 = vmatprep.subr.mxu0 0.0
        %3269 = vmatpush1.msra.mxu0 0.0
        %3270 = vmatprep.subr.mxu0 0.0
        %3271 = vmatpush1.msra.mxu0 0.0
        %3272 = vmatprep.subr.mxu0 0.0
        %3273 = vmatpush1.msra.mxu0 0.0
        %3274 = vmatprep.subr.mxu0 0.0
        %3275 = vmatpush1.msra.mxu0 0.0
        %3276 = vmatprep.subr.mxu0 0.0
        %3277 = vmatpush1.msra.mxu0 0.0
        %3278 = vmatprep.subr.mxu0 0.0
        %3279 = vmatpush1.msra.mxu0 0.0
        %3280 = vmatprep.subr.mxu0 0.0
        %3281 = vmatpush1.msra.mxu0 0.0
        %3282 = vmatprep.subr.mxu0 0.0
        %3283 = vmatpush1.msra.mxu0 0.0
        %3284 = vmatprep.subr.mxu0 0.0
        %3285 = vmatpush1.msra.mxu0 0.0
        %3286 = vmatprep.subr.mxu0 0.0
        %3287 = vmatpush1.msra.mxu0 0.0
        %3288 = vmatprep.subr.mxu0 0.0
        %3289 = vmatpush1.msra.mxu0 0.0
        %3290 = vmatprep.subr.mxu0 0.0
        %3291 = vmatpush1.msra.mxu0 0.0
        %3292 = vmatprep.subr.mxu0 0.0
        %3293 = vmatpush1.msra.mxu0 0.0
        %3294 = vmatprep.subr.mxu0 0.0
        %3295 = vmatpush1.msra.mxu0 0.0
        %3296 = vmatprep.subr.mxu0 0.0
        %3297 = vmatpush1.msra.mxu0 0.0
        %3298 = vmatprep.subr.mxu0 0.0
        %3299 = vmatpush1.msra.mxu0 0.0
        %3300 = vmatprep.mubr.f32.mxu0 0.0
        %3301 = vmatmul.mubr.f32.gmra.mrb[0].mxu0 %v3231
        %v3302 = vpop.f32.mrb[0].mxu0
        %v3303 = vadd.f32 0.0, %v3302
        %v3304 = vpop.f32.mrb[0].mxu0
        %3305 = vmatprep.mubr.f32.mxu0 0.0
        %3306 = vmatmul.mubr.f32.gmra.mrb[0].mxu0 %v3234
        %v3307 = vpop.f32.mrb[0].mxu0
        %v3308 = vadd.f32 0.0, %v3307
        %v3309 = vpop.f32.mrb[0].mxu0
        %3310 = vdwg.mxu0
        %v3311 = vadd.f32 %v3225, %v3303
        %v3312 = vadd.f32 %v3226, %v3308
        %s3313 = scalar_lea.vmem %s3, 96
        %v3314 = vld [vmem:[%s3313] sm:$0xff]
        %v3315 = vld [vmem:[%s3313 + $0x8] sm:$0xff]
        %v3317 = vsel %vm2536, %v3314, 0
        %v3320 = vsel %vm2536, %v3315, 0
        %3322 = vmatprep.subr.mxu0 0.0
        %3323 = vmatpush1.msra.mxu0 %v3137
        %3324 = vmatprep.subr.mxu0 0.0
        %3325 = vmatpush1.msra.mxu0 0.0
        %3326 = vmatprep.subr.mxu0 0.0
        %3327 = vmatpush1.msra.mxu0 0.0
        %3328 = vmatprep.subr.mxu0 0.0
        %3329 = vmatpush1.msra.mxu0 0.0
        %3330 = vmatprep.subr.mxu0 0.0
        %3331 = vmatpush1.msra.mxu0 0.0
        %3332 = vmatprep.subr.mxu0 0.0
        %3333 = vmatpush1.msra.mxu0 0.0
        %3334 = vmatprep.subr.mxu0 0.0
        %3335 = vmatpush1.msra.mxu0 0.0
        %3336 = vmatprep.subr.mxu0 0.0
        %3337 = vmatpush1.msra.mxu0 0.0
        %3338 = vmatprep.subr.mxu0 0.0
        %3339 = vmatpush1.msra.mxu0 0.0
        %3340 = vmatprep.subr.mxu0 0.0
        %3341 = vmatpush1.msra.mxu0 0.0
        %3342 = vmatprep.subr.mxu0 0.0
        %3343 = vmatpush1.msra.mxu0 0.0
        %3344 = vmatprep.subr.mxu0 0.0
        %3345 = vmatpush1.msra.mxu0 0.0
        %3346 = vmatprep.subr.mxu0 0.0
        %3347 = vmatpush1.msra.mxu0 0.0
        %3348 = vmatprep.subr.mxu0 0.0
        %3349 = vmatpush1.msra.mxu0 0.0
        %3350 = vmatprep.subr.mxu0 0.0
        %3351 = vmatpush1.msra.mxu0 0.0
        %3352 = vmatprep.subr.mxu0 0.0
        %3353 = vmatpush1.msra.mxu0 0.0
        %3354 = vmatprep.subr.mxu0 0.0
        %3355 = vmatpush1.msra.mxu0 0.0
        %3356 = vmatprep.subr.mxu0 0.0
        %3357 = vmatpush1.msra.mxu0 0.0
        %3358 = vmatprep.subr.mxu0 0.0
        %3359 = vmatpush1.msra.mxu0 0.0
        %3360 = vmatprep.subr.mxu0 0.0
        %3361 = vmatpush1.msra.mxu0 0.0
        %3362 = vmatprep.subr.mxu0 0.0
        %3363 = vmatpush1.msra.mxu0 0.0
        %3364 = vmatprep.subr.mxu0 0.0
        %3365 = vmatpush1.msra.mxu0 0.0
        %3366 = vmatprep.subr.mxu0 0.0
        %3367 = vmatpush1.msra.mxu0 0.0
        %3368 = vmatprep.subr.mxu0 0.0
        %3369 = vmatpush1.msra.mxu0 0.0
        %3370 = vmatprep.subr.mxu0 0.0
        %3371 = vmatpush1.msra.mxu0 0.0
        %3372 = vmatprep.subr.mxu0 0.0
        %3373 = vmatpush1.msra.mxu0 0.0
        %3374 = vmatprep.subr.mxu0 0.0
        %3375 = vmatpush1.msra.mxu0 0.0
        %3376 = vmatprep.subr.mxu0 0.0
        %3377 = vmatpush1.msra.mxu0 0.0
        %3378 = vmatprep.subr.mxu0 0.0
        %3379 = vmatpush1.msra.mxu0 0.0
        %3380 = vmatprep.subr.mxu0 0.0
        %3381 = vmatpush1.msra.mxu0 0.0
        %3382 = vmatprep.subr.mxu0 0.0
        %3383 = vmatpush1.msra.mxu0 0.0
        %3384 = vmatprep.subr.mxu0 0.0
        %3385 = vmatpush1.msra.mxu0 0.0
        %3386 = vmatprep.mubr.f32.mxu0 0.0
        %3387 = vmatmul.mubr.f32.gmra.mrb[0].mxu0 %v3317
        %v3388 = vpop.f32.mrb[0].mxu0
        %v3389 = vadd.f32 0.0, %v3388
        %v3390 = vpop.f32.mrb[0].mxu0
        %3391 = vmatprep.mubr.f32.mxu0 0.0
        %3392 = vmatmul.mubr.f32.gmra.mrb[0].mxu0 %v3320
        %v3393 = vpop.f32.mrb[0].mxu0
        %v3394 = vadd.f32 0.0, %v3393
        %v3395 = vpop.f32.mrb[0].mxu0
        %3396 = vdwg.mxu0
        %v3397 = vadd.f32 %v3311, %v3389
        %v3398 = vadd.f32 %v3312, %v3394
        %s3399 = scalar_lea.vmem %s3, 112
        %v3400 = vld [vmem:[%s3399] sm:$0xff]
        %v3401 = vld [vmem:[%s3399 + $0x8] sm:$0xff]
        %v3403 = vsel %vm2536, %v3400, 0
        %v3406 = vsel %vm2536, %v3401, 0
        %3408 = vmatprep.subr.mxu0 0.0
        %3409 = vmatpush1.msra.mxu0 %v3139
        %3410 = vmatprep.subr.mxu0 0.0
        %3411 = vmatpush1.msra.mxu0 0.0
        %3412 = vmatprep.subr.mxu0 0.0
        %3413 = vmatpush1.msra.mxu0 0.0
        %3414 = vmatprep.subr.mxu0 0.0
        %3415 = vmatpush1.msra.mxu0 0.0
        %3416 = vmatprep.subr.mxu0 0.0
        %3417 = vmatpush1.msra.mxu0 0.0
        %3418 = vmatprep.subr.mxu0 0.0
        %3419 = vmatpush1.msra.mxu0 0.0
        %3420 = vmatprep.subr.mxu0 0.0
        %3421 = vmatpush1.msra.mxu0 0.0
        %3422 = vmatprep.subr.mxu0 0.0
        %3423 = vmatpush1.msra.mxu0 0.0
        %3424 = vmatprep.subr.mxu0 0.0
        %3425 = vmatpush1.msra.mxu0 0.0
        %3426 = vmatprep.subr.mxu0 0.0
        %3427 = vmatpush1.msra.mxu0 0.0
        %3428 = vmatprep.subr.mxu0 0.0
        %3429 = vmatpush1.msra.mxu0 0.0
        %3430 = vmatprep.subr.mxu0 0.0
        %3431 = vmatpush1.msra.mxu0 0.0
        %3432 = vmatprep.subr.mxu0 0.0
        %3433 = vmatpush1.msra.mxu0 0.0
        %3434 = vmatprep.subr.mxu0 0.0
        %3435 = vmatpush1.msra.mxu0 0.0
        %3436 = vmatprep.subr.mxu0 0.0
        %3437 = vmatpush1.msra.mxu0 0.0
        %3438 = vmatprep.subr.mxu0 0.0
        %3439 = vmatpush1.msra.mxu0 0.0
        %3440 = vmatprep.subr.mxu0 0.0
        %3441 = vmatpush1.msra.mxu0 0.0
        %3442 = vmatprep.subr.mxu0 0.0
        %3443 = vmatpush1.msra.mxu0 0.0
        %3444 = vmatprep.subr.mxu0 0.0
        %3445 = vmatpush1.msra.mxu0 0.0
        %3446 = vmatprep.subr.mxu0 0.0
        %3447 = vmatpush1.msra.mxu0 0.0
        %3448 = vmatprep.subr.mxu0 0.0
        %3449 = vmatpush1.msra.mxu0 0.0
        %3450 = vmatprep.subr.mxu0 0.0
        %3451 = vmatpush1.msra.mxu0 0.0
        %3452 = vmatprep.subr.mxu0 0.0
        %3453 = vmatpush1.msra.mxu0 0.0
        %3454 = vmatprep.subr.mxu0 0.0
        %3455 = vmatpush1.msra.mxu0 0.0
        %3456 = vmatprep.subr.mxu0 0.0
        %3457 = vmatpush1.msra.mxu0 0.0
        %3458 = vmatprep.subr.mxu0 0.0
        %3459 = vmatpush1.msra.mxu0 0.0
        %3460 = vmatprep.subr.mxu0 0.0
        %3461 = vmatpush1.msra.mxu0 0.0
        %3462 = vmatprep.subr.mxu0 0.0
        %3463 = vmatpush1.msra.mxu0 0.0
        %3464 = vmatprep.subr.mxu0 0.0
        %3465 = vmatpush1.msra.mxu0 0.0
        %3466 = vmatprep.subr.mxu0 0.0
        %3467 = vmatpush1.msra.mxu0 0.0
        %3468 = vmatprep.subr.mxu0 0.0
        %3469 = vmatpush1.msra.mxu0 0.0
        %3470 = vmatprep.subr.mxu0 0.0
        %3471 = vmatpush1.msra.mxu0 0.0
        %3472 = vmatprep.mubr.f32.mxu0 0.0
        %3473 = vmatmul.mubr.f32.gmra.mrb[0].mxu0 %v3403
        %v3474 = vpop.f32.mrb[0].mxu0
        %v3475 = vadd.f32 0.0, %v3474
        %v3476 = vpop.f32.mrb[0].mxu0
        %3477 = vmatprep.mubr.f32.mxu0 0.0
        %3478 = vmatmul.mubr.f32.gmra.mrb[0].mxu0 %v3406
        %v3479 = vpop.f32.mrb[0].mxu0
        %v3480 = vadd.f32 0.0, %v3479
        %v3481 = vpop.f32.mrb[0].mxu0
        %3482 = vdwg.mxu0
        %v3483 = vadd.f32 %v3397, %v3475
        %v3484 = vadd.f32 %v3398, %v3480
        %v3485 = vld [vmem:[#allocation2 + $0xd0] sm:$0xff]
        %v3486 = vld [vmem:[#allocation2 + $0xd8] sm:$0xff]
        %v3487 = vld [vmem:[#allocation2 + $0xe0] sm:$0xff]
        %v3488 = vld [vmem:[#allocation2 + $0xe8] sm:$0xff]
        %v3489 = vld [vmem:[#allocation2 + $0x260] sm:$0xff]
        %v3490 = vld [vmem:[#allocation2 + $0x268] sm:$0xff]
        %v3491 = vld [vmem:[#allocation2 + $0x270] sm:$0xff]
        %v3492 = vld [vmem:[#allocation2 + $0x278] sm:$0xff]
        %v3493 = vld [vmem:[#allocation2 + $0x3f0] sm:$0xff]
        %v3494 = vld [vmem:[#allocation2 + $0x3f8] sm:$0xff]
        %v3495 = vld [vmem:[#allocation2 + $0x400] sm:$0xff]
        %v3496 = vld [vmem:[#allocation2 + $0x408] sm:$0xff]
        %v3497 = vld [vmem:[#allocation2 + $0x580] sm:$0xff]
        %v3498 = vld [vmem:[#allocation2 + $0x588] sm:$0xff]
        %v3499 = vld [vmem:[#allocation2 + $0x590] sm:$0xff]
        %v3500 = vld [vmem:[#allocation2 + $0x598] sm:$0xff]
        %v3501 = vld [vmem:[#allocation2 + $0x710] sm:$0xff]
        %v3502 = vld [vmem:[#allocation2 + $0x718] sm:$0xff]
        %v3503 = vld [vmem:[#allocation2 + $0x720] sm:$0xff]
        %v3504 = vld [vmem:[#allocation2 + $0x728] sm:$0xff]
        %v3505 = vld [vmem:[#allocation2 + $0x8a0] sm:$0xff]
        %v3506 = vld [vmem:[#allocation2 + $0x8a8] sm:$0xff]
        %v3507 = vld [vmem:[#allocation2 + $0x8b0] sm:$0xff]
        %v3508 = vld [vmem:[#allocation2 + $0x8b8] sm:$0xff]
        %v3509 = vld [vmem:[#allocation2 + $0xa30] sm:$0xff]
        %v3510 = vld [vmem:[#allocation2 + $0xa38] sm:$0xff]
        %v3511 = vld [vmem:[#allocation2 + $0xa40] sm:$0xff]
        %v3512 = vld [vmem:[#allocation2 + $0xa48] sm:$0xff]
        %v3513 = vld [vmem:[#allocation2 + $0xbc0] sm:$0xff]
        %v3514 = vld [vmem:[#allocation2 + $0xbc8] sm:$0xff]
        %v3515 = vld [vmem:[#allocation2 + $0xbd0] sm:$0xff]
        %v3516 = vld [vmem:[#allocation2 + $0xbd8] sm:$0xff]
        %v3517 = vld [vmem:[#allocation2 + $0xd50] sm:$0xff]
        %v3518 = vld [vmem:[#allocation2 + $0xd58] sm:$0xff]
        %v3519 = vld [vmem:[#allocation2 + $0xd60] sm:$0xff]
        %v3520 = vld [vmem:[#allocation2 + $0xd68] sm:$0xff]
        %v3521 = vld [vmem:[#allocation2 + $0xee0] sm:$0xff]
        %v3522 = vld [vmem:[#allocation2 + $0xee8] sm:$0xff]
        %v3523 = vld [vmem:[#allocation2 + $0xef0] sm:$0xff]
        %v3524 = vld [vmem:[#allocation2 + $0xef8] sm:$0xff]
        %v3525 = vld [vmem:[#allocation2 + $0x1070] sm:$0xff]
        %v3526 = vld [vmem:[#allocation2 + $0x1078] sm:$0xff]
        %v3527 = vld [vmem:[#allocation2 + $0x1080] sm:$0xff]
        %v3528 = vld [vmem:[#allocation2 + $0x1088] sm:$0xff]
        %v3529 = vld [vmem:[#allocation2 + $0x1200] sm:$0xff]
        %v3530 = vld [vmem:[#allocation2 + $0x1208] sm:$0xff]
        %v3531 = vld [vmem:[#allocation2 + $0x1210] sm:$0xff]
        %v3532 = vld [vmem:[#allocation2 + $0x1218] sm:$0xff]
        %v3533 = vld [vmem:[#allocation2 + $0x1390] sm:$0xff]
        %v3534 = vld [vmem:[#allocation2 + $0x1398] sm:$0xff]
        %v3535 = vld [vmem:[#allocation2 + $0x13a0] sm:$0xff]
        %v3536 = vld [vmem:[#allocation2 + $0x13a8] sm:$0xff]
        %v3537 = vld [vmem:[#allocation2 + $0x1520] sm:$0xff]
        %v3538 = vld [vmem:[#allocation2 + $0x1528] sm:$0xff]
        %v3539 = vld [vmem:[#allocation2 + $0x1530] sm:$0xff]
        %v3540 = vld [vmem:[#allocation2 + $0x1538] sm:$0xff]
        %v3541 = vld [vmem:[#allocation2 + $0x16b0] sm:$0xff]
        %v3542 = vld [vmem:[#allocation2 + $0x16b8] sm:$0xff]
        %v3543 = vld [vmem:[#allocation2 + $0x16c0] sm:$0xff]
        %v3544 = vld [vmem:[#allocation2 + $0x16c8] sm:$0xff]
        %v3545 = vld [vmem:[#allocation2 + $0x1840] sm:$0xff]
        %v3546 = vld [vmem:[#allocation2 + $0x1848] sm:$0xff]
        %v3547 = vld [vmem:[#allocation2 + $0x1850] sm:$0xff]
        %v3548 = vld [vmem:[#allocation2 + $0x1858] sm:$0xff]
        %v3549 = vld [vmem:[#allocation2 + $0x19d0] sm:$0xff]
        %v3550 = vld [vmem:[#allocation2 + $0x19d8] sm:$0xff]
        %v3551 = vld [vmem:[#allocation2 + $0x19e0] sm:$0xff]
        %v3552 = vld [vmem:[#allocation2 + $0x19e8] sm:$0xff]
        %v3553 = vld [vmem:[#allocation2 + $0x1b60] sm:$0xff]
        %v3554 = vld [vmem:[#allocation2 + $0x1b68] sm:$0xff]
        %v3555 = vld [vmem:[#allocation2 + $0x1b70] sm:$0xff]
        %v3556 = vld [vmem:[#allocation2 + $0x1b78] sm:$0xff]
        %v3557 = vld [vmem:[#allocation2 + $0x1cf0] sm:$0xff]
        %v3558 = vld [vmem:[#allocation2 + $0x1cf8] sm:$0xff]
        %v3559 = vld [vmem:[#allocation2 + $0x1d00] sm:$0xff]
        %v3560 = vld [vmem:[#allocation2 + $0x1d08] sm:$0xff]
        %v3561 = vld [vmem:[#allocation2 + $0x1e80] sm:$0xff]
        %v3562 = vld [vmem:[#allocation2 + $0x1e88] sm:$0xff]
        %v3563 = vld [vmem:[#allocation2 + $0x1e90] sm:$0xff]
        %v3564 = vld [vmem:[#allocation2 + $0x1e98] sm:$0xff]
        %v3565 = vld [vmem:[#allocation2 + $0x2010] sm:$0xff]
        %v3566 = vld [vmem:[#allocation2 + $0x2018] sm:$0xff]
        %v3567 = vld [vmem:[#allocation2 + $0x2020] sm:$0xff]
        %v3568 = vld [vmem:[#allocation2 + $0x2028] sm:$0xff]
        %v3569 = vld [vmem:[#allocation2 + $0x21a0] sm:$0xff]
        %v3570 = vld [vmem:[#allocation2 + $0x21a8] sm:$0xff]
        %v3571 = vld [vmem:[#allocation2 + $0x21b0] sm:$0xff]
        %v3572 = vld [vmem:[#allocation2 + $0x21b8] sm:$0xff]
        %v3573 = vld [vmem:[#allocation2 + $0x2330] sm:$0xff]
        %v3574 = vld [vmem:[#allocation2 + $0x2338] sm:$0xff]
        %v3575 = vld [vmem:[#allocation2 + $0x2340] sm:$0xff]
        %v3576 = vld [vmem:[#allocation2 + $0x2348] sm:$0xff]
        %v3577 = vld [vmem:[#allocation2 + $0x24c0] sm:$0xff]
        %v3578 = vld [vmem:[#allocation2 + $0x24c8] sm:$0xff]
        %v3579 = vld [vmem:[#allocation2 + $0x24d0] sm:$0xff]
        %v3580 = vld [vmem:[#allocation2 + $0x24d8] sm:$0xff]
        %v3581 = vld [vmem:[#allocation2 + $0x2650] sm:$0xff]
        %v3582 = vld [vmem:[#allocation2 + $0x2658] sm:$0xff]
        %v3583 = vld [vmem:[#allocation2 + $0x2660] sm:$0xff]
        %v3584 = vld [vmem:[#allocation2 + $0x2668] sm:$0xff]
        %v3585 = vld [vmem:[#allocation2 + $0x27e0] sm:$0xff]
        %v3586 = vld [vmem:[#allocation2 + $0x27e8] sm:$0xff]
        %v3587 = vld [vmem:[#allocation2 + $0x27f0] sm:$0xff]
        %v3588 = vld [vmem:[#allocation2 + $0x27f8] sm:$0xff]
        %v3589 = vld [vmem:[#allocation2 + $0x2970] sm:$0xff]
        %v3590 = vld [vmem:[#allocation2 + $0x2978] sm:$0xff]
        %v3591 = vld [vmem:[#allocation2 + $0x2980] sm:$0xff]
        %v3592 = vld [vmem:[#allocation2 + $0x2988] sm:$0xff]
        %v3593 = vld [vmem:[#allocation2 + $0x2b00] sm:$0xff]
        %v3594 = vld [vmem:[#allocation2 + $0x2b08] sm:$0xff]
        %v3595 = vld [vmem:[#allocation2 + $0x2b10] sm:$0xff]
        %v3596 = vld [vmem:[#allocation2 + $0x2b18] sm:$0xff]
        %v3597 = vld [vmem:[#allocation2 + $0x2c90] sm:$0xff]
        %v3598 = vld [vmem:[#allocation2 + $0x2c98] sm:$0xff]
        %v3599 = vld [vmem:[#allocation2 + $0x2ca0] sm:$0xff]
        %v3600 = vld [vmem:[#allocation2 + $0x2ca8] sm:$0xff]
        %v3601 = vld [vmem:[#allocation2 + $0x2e20] sm:$0xff]
        %v3602 = vld [vmem:[#allocation2 + $0x2e28] sm:$0xff]
        %v3603 = vld [vmem:[#allocation2 + $0x2e30] sm:$0xff]
        %v3604 = vld [vmem:[#allocation2 + $0x2e38] sm:$0xff]
        %v3605 = vld [vmem:[#allocation2 + $0x2fb0] sm:$0xff]
        %v3606 = vld [vmem:[#allocation2 + $0x2fb8] sm:$0xff]
        %v3607 = vld [vmem:[#allocation2 + $0x2fc0] sm:$0xff]
        %v3608 = vld [vmem:[#allocation2 + $0x2fc8] sm:$0xff]
        %v3609 = vld [vmem:[#allocation2 + $0x3140] sm:$0xff]
        %v3610 = vld [vmem:[#allocation2 + $0x3148] sm:$0xff]
        %v3611 = vld [vmem:[#allocation2 + $0x3150] sm:$0xff]
        %v3612 = vld [vmem:[#allocation2 + $0x3158] sm:$0xff]
        %3613 = vmatprep.subr.mxu0 %v3486
        %3614 = vmatpush1.msra.mxu0 %v3485
        %3615 = vmatprep.subr.mxu0 %v3490
        %3616 = vmatpush1.msra.mxu0 %v3489
        %3617 = vmatprep.subr.mxu0 %v3494
        %3618 = vmatpush1.msra.mxu0 %v3493
        %3619 = vmatprep.subr.mxu0 %v3498
        %3620 = vmatpush1.msra.mxu0 %v3497
        %3621 = vmatprep.subr.mxu0 %v3502
        %3622 = vmatpush1.msra.mxu0 %v3501
        %3623 = vmatprep.subr.mxu0 %v3506
        %3624 = vmatpush1.msra.mxu0 %v3505
        %3625 = vmatprep.subr.mxu0 %v3510
        %3626 = vmatpush1.msra.mxu0 %v3509
        %3627 = vmatprep.subr.mxu0 %v3514
        %3628 = vmatpush1.msra.mxu0 %v3513
        %3629 = vmatprep.subr.mxu0 %v3518
        %3630 = vmatpush1.msra.mxu0 %v3517
        %3631 = vmatprep.subr.mxu0 %v3522
        %3632 = vmatpush1.msra.mxu0 %v3521
        %3633 = vmatprep.subr.mxu0 %v3526
        %3634 = vmatpush1.msra.mxu0 %v3525
        %3635 = vmatprep.subr.mxu0 %v3530
        %3636 = vmatpush1.msra.mxu0 %v3529
        %3637 = vmatprep.subr.mxu0 %v3534
        %3638 = vmatpush1.msra.mxu0 %v3533
        %3639 = vmatprep.subr.mxu0 %v3538
        %3640 = vmatpush1.msra.mxu0 %v3537
        %3641 = vmatprep.subr.mxu0 %v3542
        %3642 = vmatpush1.msra.mxu0 %v3541
        %3643 = vmatprep.subr.mxu0 %v3546
        %3644 = vmatpush1.msra.mxu0 %v3545
        %3645 = vmatprep.subr.mxu0 %v3550
        %3646 = vmatpush1.msra.mxu0 %v3549
        %3647 = vmatprep.subr.mxu0 %v3554
        %3648 = vmatpush1.msra.mxu0 %v3553
        %3649 = vmatprep.subr.mxu0 %v3558
        %3650 = vmatpush1.msra.mxu0 %v3557
        %3651 = vmatprep.subr.mxu0 %v3562
        %3652 = vmatpush1.msra.mxu0 %v3561
        %3653 = vmatprep.subr.mxu0 %v3566
        %3654 = vmatpush1.msra.mxu0 %v3565
        %3655 = vmatprep.subr.mxu0 %v3570
        %3656 = vmatpush1.msra.mxu0 %v3569
        %3657 = vmatprep.subr.mxu0 %v3574
        %3658 = vmatpush1.msra.mxu0 %v3573
        %3659 = vmatprep.subr.mxu0 %v3578
        %3660 = vmatpush1.msra.mxu0 %v3577
        %3661 = vmatprep.subr.mxu0 %v3582
        %3662 = vmatpush1.msra.mxu0 %v3581
        %3663 = vmatprep.subr.mxu0 %v3586
        %3664 = vmatpush1.msra.mxu0 %v3585
        %3665 = vmatprep.subr.mxu0 %v3590
        %3666 = vmatpush1.msra.mxu0 %v3589
        %3667 = vmatprep.subr.mxu0 %v3594
        %3668 = vmatpush1.msra.mxu0 %v3593
        %3669 = vmatprep.subr.mxu0 %v3598
        %3670 = vmatpush1.msra.mxu0 %v3597
        %3671 = vmatprep.subr.mxu0 %v3602
        %3672 = vmatpush1.msra.mxu0 %v3601
        %3673 = vmatprep.subr.mxu0 %v3606
        %3674 = vmatpush1.msra.mxu0 %v3605
        %3675 = vmatprep.subr.mxu0 %v3610
        %3676 = vmatpush1.msra.mxu0 %v3609
        %3677 = vmatprep.mubr.f32.mxu0 %v2260
        %3678 = vmatmul.mubr.f32.gmra.mrb[0].mxu0 %v2259
        %v3679 = vpop.f32.mrb[0].mxu0
        %v3680 = vadd.f32 0.0, %v3679
        %v3681 = vpop.f32.mrb[0].mxu0
        %v3682 = vadd.f32 0.0, %v3681
        %3683 = vdwg.mxu0
        %3684 = vmatprep.subr.mxu0 %v3488
        %3685 = vmatpush1.msra.mxu0 %v3487
        %3686 = vmatprep.subr.mxu0 %v3492
        %3687 = vmatpush1.msra.mxu0 %v3491
        %3688 = vmatprep.subr.mxu0 %v3496
        %3689 = vmatpush1.msra.mxu0 %v3495
        %3690 = vmatprep.subr.mxu0 %v3500
        %3691 = vmatpush1.msra.mxu0 %v3499
        %3692 = vmatprep.subr.mxu0 %v3504
        %3693 = vmatpush1.msra.mxu0 %v3503
        %3694 = vmatprep.subr.mxu0 %v3508
        %3695 = vmatpush1.msra.mxu0 %v3507
        %3696 = vmatprep.subr.mxu0 %v3512
        %3697 = vmatpush1.msra.mxu0 %v3511
        %3698 = vmatprep.subr.mxu0 %v3516
        %3699 = vmatpush1.msra.mxu0 %v3515
        %3700 = vmatprep.subr.mxu0 %v3520
        %3701 = vmatpush1.msra.mxu0 %v3519
        %3702 = vmatprep.subr.mxu0 %v3524
        %3703 = vmatpush1.msra.mxu0 %v3523
        %3704 = vmatprep.subr.mxu0 %v3528
        %3705 = vmatpush1.msra.mxu0 %v3527
        %3706 = vmatprep.subr.mxu0 %v3532
        %3707 = vmatpush1.msra.mxu0 %v3531
        %3708 = vmatprep.subr.mxu0 %v3536
        %3709 = vmatpush1.msra.mxu0 %v3535
        %3710 = vmatprep.subr.mxu0 %v3540
        %3711 = vmatpush1.msra.mxu0 %v3539
        %3712 = vmatprep.subr.mxu0 %v3544
        %3713 = vmatpush1.msra.mxu0 %v3543
        %3714 = vmatprep.subr.mxu0 %v3548
        %3715 = vmatpush1.msra.mxu0 %v3547
        %3716 = vmatprep.subr.mxu0 %v3552
        %3717 = vmatpush1.msra.mxu0 %v3551
        %3718 = vmatprep.subr.mxu0 %v3556
        %3719 = vmatpush1.msra.mxu0 %v3555
        %3720 = vmatprep.subr.mxu0 %v3560
        %3721 = vmatpush1.msra.mxu0 %v3559
        %3722 = vmatprep.subr.mxu0 %v3564
        %3723 = vmatpush1.msra.mxu0 %v3563
        %3724 = vmatprep.subr.mxu0 %v3568
        %3725 = vmatpush1.msra.mxu0 %v3567
        %3726 = vmatprep.subr.mxu0 %v3572
        %3727 = vmatpush1.msra.mxu0 %v3571
        %3728 = vmatprep.subr.mxu0 %v3576
        %3729 = vmatpush1.msra.mxu0 %v3575
        %3730 = vmatprep.subr.mxu0 %v3580
        %3731 = vmatpush1.msra.mxu0 %v3579
        %3732 = vmatprep.subr.mxu0 %v3584
        %3733 = vmatpush1.msra.mxu0 %v3583
        %3734 = vmatprep.subr.mxu0 %v3588
        %3735 = vmatpush1.msra.mxu0 %v3587
        %3736 = vmatprep.subr.mxu0 %v3592
        %3737 = vmatpush1.msra.mxu0 %v3591
        %3738 = vmatprep.subr.mxu0 %v3596
        %3739 = vmatpush1.msra.mxu0 %v3595
        %3740 = vmatprep.subr.mxu0 %v3600
        %3741 = vmatpush1.msra.mxu0 %v3599
        %3742 = vmatprep.subr.mxu0 %v3604
        %3743 = vmatpush1.msra.mxu0 %v3603
        %3744 = vmatprep.subr.mxu0 %v3608
        %3745 = vmatpush1.msra.mxu0 %v3607
        %3746 = vmatprep.subr.mxu0 %v3612
        %3747 = vmatpush1.msra.mxu0 %v3611
        %3748 = vmatprep.mubr.f32.mxu0 %v2260
        %3749 = vmatmul.mubr.f32.gmra.mrb[0].mxu0 %v2259
        %v3750 = vpop.f32.mrb[0].mxu0
        %v3751 = vadd.f32 0.0, %v3750
        %v3752 = vpop.f32.mrb[0].mxu0
        %v3753 = vadd.f32 0.0, %v3752
        %3754 = vdwg.mxu0
        %s3755 = scalar_lea.vmem %s3, 128
        %v3756 = vld [vmem:[%s3755] sm:$0xff]
        %v3757 = vld [vmem:[%s3755 + $0x8] sm:$0xff]
        %v3759 = vsel %vm2536, %v3756, 0
        %v3762 = vsel %vm2536, %v3757, 0
        %3764 = vmatprep.subr.mxu0 0.0
        %3765 = vmatpush1.msra.mxu0 %v3680
        %3766 = vmatprep.subr.mxu0 0.0
        %3767 = vmatpush1.msra.mxu0 0.0
        %3768 = vmatprep.subr.mxu0 0.0
        %3769 = vmatpush1.msra.mxu0 0.0
        %3770 = vmatprep.subr.mxu0 0.0
        %3771 = vmatpush1.msra.mxu0 0.0
        %3772 = vmatprep.subr.mxu0 0.0
        %3773 = vmatpush1.msra.mxu0 0.0
        %3774 = vmatprep.subr.mxu0 0.0
        %3775 = vmatpush1.msra.mxu0 0.0
        %3776 = vmatprep.subr.mxu0 0.0
        %3777 = vmatpush1.msra.mxu0 0.0
        %3778 = vmatprep.subr.mxu0 0.0
        %3779 = vmatpush1.msra.mxu0 0.0
        %3780 = vmatprep.subr.mxu0 0.0
        %3781 = vmatpush1.msra.mxu0 0.0
        %3782 = vmatprep.subr.mxu0 0.0
        %3783 = vmatpush1.msra.mxu0 0.0
        %3784 = vmatprep.subr.mxu0 0.0
        %3785 = vmatpush1.msra.mxu0 0.0
        %3786 = vmatprep.subr.mxu0 0.0
        %3787 = vmatpush1.msra.mxu0 0.0
        %3788 = vmatprep.subr.mxu0 0.0
        %3789 = vmatpush1.msra.mxu0 0.0
        %3790 = vmatprep.subr.mxu0 0.0
        %3791 = vmatpush1.msra.mxu0 0.0
        %3792 = vmatprep.subr.mxu0 0.0
        %3793 = vmatpush1.msra.mxu0 0.0
        %3794 = vmatprep.subr.mxu0 0.0
        %3795 = vmatpush1.msra.mxu0 0.0
        %3796 = vmatprep.subr.mxu0 0.0
        %3797 = vmatpush1.msra.mxu0 0.0
        %3798 = vmatprep.subr.mxu0 0.0
        %3799 = vmatpush1.msra.mxu0 0.0
        %3800 = vmatprep.subr.mxu0 0.0
        %3801 = vmatpush1.msra.mxu0 0.0
        %3802 = vmatprep.subr.mxu0 0.0
        %3803 = vmatpush1.msra.mxu0 0.0
        %3804 = vmatprep.subr.mxu0 0.0
        %3805 = vmatpush1.msra.mxu0 0.0
        %3806 = vmatprep.subr.mxu0 0.0
        %3807 = vmatpush1.msra.mxu0 0.0
        %3808 = vmatprep.subr.mxu0 0.0
        %3809 = vmatpush1.msra.mxu0 0.0
        %3810 = vmatprep.subr.mxu0 0.0
        %3811 = vmatpush1.msra.mxu0 0.0
        %3812 = vmatprep.subr.mxu0 0.0
        %3813 = vmatpush1.msra.mxu0 0.0
        %3814 = vmatprep.subr.mxu0 0.0
        %3815 = vmatpush1.msra.mxu0 0.0
        %3816 = vmatprep.subr.mxu0 0.0
        %3817 = vmatpush1.msra.mxu0 0.0
        %3818 = vmatprep.subr.mxu0 0.0
        %3819 = vmatpush1.msra.mxu0 0.0
        %3820 = vmatprep.subr.mxu0 0.0
        %3821 = vmatpush1.msra.mxu0 0.0
        %3822 = vmatprep.subr.mxu0 0.0
        %3823 = vmatpush1.msra.mxu0 0.0
        %3824 = vmatprep.subr.mxu0 0.0
        %3825 = vmatpush1.msra.mxu0 0.0
        %3826 = vmatprep.subr.mxu0 0.0
        %3827 = vmatpush1.msra.mxu0 0.0
        %3828 = vmatprep.mubr.f32.mxu0 0.0
        %3829 = vmatmul.mubr.f32.gmra.mrb[0].mxu0 %v3759
        %v3830 = vpop.f32.mrb[0].mxu0
        %v3831 = vadd.f32 0.0, %v3830
        %v3832 = vpop.f32.mrb[0].mxu0
        %3833 = vmatprep.mubr.f32.mxu0 0.0
        %3834 = vmatmul.mubr.f32.gmra.mrb[0].mxu0 %v3762
        %v3835 = vpop.f32.mrb[0].mxu0
        %v3836 = vadd.f32 0.0, %v3835
        %v3837 = vpop.f32.mrb[0].mxu0
        %3838 = vdwg.mxu0
        %v3839 = vadd.f32 %v3483, %v3831
        %v3840 = vadd.f32 %v3484, %v3836
        %s3841 = scalar_lea.vmem %s3, 144
        %v3842 = vld [vmem:[%s3841] sm:$0xff]
        %v3843 = vld [vmem:[%s3841 + $0x8] sm:$0xff]
        %v3845 = vsel %vm2536, %v3842, 0
        %v3848 = vsel %vm2536, %v3843, 0
        %3850 = vmatprep.subr.mxu0 0.0
        %3851 = vmatpush1.msra.mxu0 %v3682
        %3852 = vmatprep.subr.mxu0 0.0
        %3853 = vmatpush1.msra.mxu0 0.0
        %3854 = vmatprep.subr.mxu0 0.0
        %3855 = vmatpush1.msra.mxu0 0.0
        %3856 = vmatprep.subr.mxu0 0.0
        %3857 = vmatpush1.msra.mxu0 0.0
        %3858 = vmatprep.subr.mxu0 0.0
        %3859 = vmatpush1.msra.mxu0 0.0
        %3860 = vmatprep.subr.mxu0 0.0
        %3861 = vmatpush1.msra.mxu0 0.0
        %3862 = vmatprep.subr.mxu0 0.0
        %3863 = vmatpush1.msra.mxu0 0.0
        %3864 = vmatprep.subr.mxu0 0.0
        %3865 = vmatpush1.msra.mxu0 0.0
        %3866 = vmatprep.subr.mxu0 0.0
        %3867 = vmatpush1.msra.mxu0 0.0
        %3868 = vmatprep.subr.mxu0 0.0
        %3869 = vmatpush1.msra.mxu0 0.0
        %3870 = vmatprep.subr.mxu0 0.0
        %3871 = vmatpush1.msra.mxu0 0.0
        %3872 = vmatprep.subr.mxu0 0.0
        %3873 = vmatpush1.msra.mxu0 0.0
        %3874 = vmatprep.subr.mxu0 0.0
        %3875 = vmatpush1.msra.mxu0 0.0
        %3876 = vmatprep.subr.mxu0 0.0
        %3877 = vmatpush1.msra.mxu0 0.0
        %3878 = vmatprep.subr.mxu0 0.0
        %3879 = vmatpush1.msra.mxu0 0.0
        %3880 = vmatprep.subr.mxu0 0.0
        %3881 = vmatpush1.msra.mxu0 0.0
        %3882 = vmatprep.subr.mxu0 0.0
        %3883 = vmatpush1.msra.mxu0 0.0
        %3884 = vmatprep.subr.mxu0 0.0
        %3885 = vmatpush1.msra.mxu0 0.0
        %3886 = vmatprep.subr.mxu0 0.0
        %3887 = vmatpush1.msra.mxu0 0.0
        %3888 = vmatprep.subr.mxu0 0.0
        %3889 = vmatpush1.msra.mxu0 0.0
        %3890 = vmatprep.subr.mxu0 0.0
        %3891 = vmatpush1.msra.mxu0 0.0
        %3892 = vmatprep.subr.mxu0 0.0
        %3893 = vmatpush1.msra.mxu0 0.0
        %3894 = vmatprep.subr.mxu0 0.0
        %3895 = vmatpush1.msra.mxu0 0.0
        %3896 = vmatprep.subr.mxu0 0.0
        %3897 = vmatpush1.msra.mxu0 0.0
        %3898 = vmatprep.subr.mxu0 0.0
        %3899 = vmatpush1.msra.mxu0 0.0
        %3900 = vmatprep.subr.mxu0 0.0
        %3901 = vmatpush1.msra.mxu0 0.0
        %3902 = vmatprep.subr.mxu0 0.0
        %3903 = vmatpush1.msra.mxu0 0.0
        %3904 = vmatprep.subr.mxu0 0.0
        %3905 = vmatpush1.msra.mxu0 0.0
        %3906 = vmatprep.subr.mxu0 0.0
        %3907 = vmatpush1.msra.mxu0 0.0
        %3908 = vmatprep.subr.mxu0 0.0
        %3909 = vmatpush1.msra.mxu0 0.0
        %3910 = vmatprep.subr.mxu0 0.0
        %3911 = vmatpush1.msra.mxu0 0.0
        %3912 = vmatprep.subr.mxu0 0.0
        %3913 = vmatpush1.msra.mxu0 0.0
        %3914 = vmatprep.mubr.f32.mxu0 0.0
        %3915 = vmatmul.mubr.f32.gmra.mrb[0].mxu0 %v3845
        %v3916 = vpop.f32.mrb[0].mxu0
        %v3917 = vadd.f32 0.0, %v3916
        %v3918 = vpop.f32.mrb[0].mxu0
        %3919 = vmatprep.mubr.f32.mxu0 0.0
        %3920 = vmatmul.mubr.f32.gmra.mrb[0].mxu0 %v3848
        %v3921 = vpop.f32.mrb[0].mxu0
        %v3922 = vadd.f32 0.0, %v3921
        %v3923 = vpop.f32.mrb[0].mxu0
        %3924 = vdwg.mxu0
        %v3925 = vadd.f32 %v3839, %v3917
        %v3926 = vadd.f32 %v3840, %v3922
        %s3927 = scalar_lea.vmem %s3, 160
        %v3928 = vld [vmem:[%s3927] sm:$0xff]
        %v3929 = vld [vmem:[%s3927 + $0x8] sm:$0xff]
        %v3931 = vsel %vm2536, %v3928, 0
        %v3934 = vsel %vm2536, %v3929, 0
        %3936 = vmatprep.subr.mxu0 0.0
        %3937 = vmatpush1.msra.mxu0 %v3751
        %3938 = vmatprep.subr.mxu0 0.0
        %3939 = vmatpush1.msra.mxu0 0.0
        %3940 = vmatprep.subr.mxu0 0.0
        %3941 = vmatpush1.msra.mxu0 0.0
        %3942 = vmatprep.subr.mxu0 0.0
        %3943 = vmatpush1.msra.mxu0 0.0
        %3944 = vmatprep.subr.mxu0 0.0
        %3945 = vmatpush1.msra.mxu0 0.0
        %3946 = vmatprep.subr.mxu0 0.0
        %3947 = vmatpush1.msra.mxu0 0.0
        %3948 = vmatprep.subr.mxu0 0.0
        %3949 = vmatpush1.msra.mxu0 0.0
        %3950 = vmatprep.subr.mxu0 0.0
        %3951 = vmatpush1.msra.mxu0 0.0
        %3952 = vmatprep.subr.mxu0 0.0
        %3953 = vmatpush1.msra.mxu0 0.0
        %3954 = vmatprep.subr.mxu0 0.0
        %3955 = vmatpush1.msra.mxu0 0.0
        %3956 = vmatprep.subr.mxu0 0.0
        %3957 = vmatpush1.msra.mxu0 0.0
        %3958 = vmatprep.subr.mxu0 0.0
        %3959 = vmatpush1.msra.mxu0 0.0
        %3960 = vmatprep.subr.mxu0 0.0
        %3961 = vmatpush1.msra.mxu0 0.0
        %3962 = vmatprep.subr.mxu0 0.0
        %3963 = vmatpush1.msra.mxu0 0.0
        %3964 = vmatprep.subr.mxu0 0.0
        %3965 = vmatpush1.msra.mxu0 0.0
        %3966 = vmatprep.subr.mxu0 0.0
        %3967 = vmatpush1.msra.mxu0 0.0
        %3968 = vmatprep.subr.mxu0 0.0
        %3969 = vmatpush1.msra.mxu0 0.0
        %3970 = vmatprep.subr.mxu0 0.0
        %3971 = vmatpush1.msra.mxu0 0.0
        %3972 = vmatprep.subr.mxu0 0.0
        %3973 = vmatpush1.msra.mxu0 0.0
        %3974 = vmatprep.subr.mxu0 0.0
        %3975 = vmatpush1.msra.mxu0 0.0
        %3976 = vmatprep.subr.mxu0 0.0
        %3977 = vmatpush1.msra.mxu0 0.0
        %3978 = vmatprep.subr.mxu0 0.0
        %3979 = vmatpush1.msra.mxu0 0.0
        %3980 = vmatprep.subr.mxu0 0.0
        %3981 = vmatpush1.msra.mxu0 0.0
        %3982 = vmatprep.subr.mxu0 0.0
        %3983 = vmatpush1.msra.mxu0 0.0
        %3984 = vmatprep.subr.mxu0 0.0
        %3985 = vmatpush1.msra.mxu0 0.0
        %3986 = vmatprep.subr.mxu0 0.0
        %3987 = vmatpush1.msra.mxu0 0.0
        %3988 = vmatprep.subr.mxu0 0.0
        %3989 = vmatpush1.msra.mxu0 0.0
        %3990 = vmatprep.subr.mxu0 0.0
        %3991 = vmatpush1.msra.mxu0 0.0
        %3992 = vmatprep.subr.mxu0 0.0
        %3993 = vmatpush1.msra.mxu0 0.0
        %3994 = vmatprep.subr.mxu0 0.0
        %3995 = vmatpush1.msra.mxu0 0.0
        %3996 = vmatprep.subr.mxu0 0.0
        %3997 = vmatpush1.msra.mxu0 0.0
        %3998 = vmatprep.subr.mxu0 0.0
        %3999 = vmatpush1.msra.mxu0 0.0
        %4000 = vmatprep.mubr.f32.mxu0 0.0
        %4001 = vmatmul.mubr.f32.gmra.mrb[0].mxu0 %v3931
        %v4002 = vpop.f32.mrb[0].mxu0
        %v4003 = vadd.f32 0.0, %v4002
        %v4004 = vpop.f32.mrb[0].mxu0
        %4005 = vmatprep.mubr.f32.mxu0 0.0
        %4006 = vmatmul.mubr.f32.gmra.mrb[0].mxu0 %v3934
        %v4007 = vpop.f32.mrb[0].mxu0
        %v4008 = vadd.f32 0.0, %v4007
        %v4009 = vpop.f32.mrb[0].mxu0
        %4010 = vdwg.mxu0
        %v4011 = vadd.f32 %v3925, %v4003
        %v4012 = vadd.f32 %v3926, %v4008
        %s4013 = scalar_lea.vmem %s3, 176
        %v4014 = vld [vmem:[%s4013] sm:$0xff]
        %v4015 = vld [vmem:[%s4013 + $0x8] sm:$0xff]
        %v4017 = vsel %vm2536, %v4014, 0
        %v4020 = vsel %vm2536, %v4015, 0
        %4022 = vmatprep.subr.mxu0 0.0
        %4023 = vmatpush1.msra.mxu0 %v3753
        %4024 = vmatprep.subr.mxu0 0.0
        %4025 = vmatpush1.msra.mxu0 0.0
        %4026 = vmatprep.subr.mxu0 0.0
        %4027 = vmatpush1.msra.mxu0 0.0
        %4028 = vmatprep.subr.mxu0 0.0
        %4029 = vmatpush1.msra.mxu0 0.0
        %4030 = vmatprep.subr.mxu0 0.0
        %4031 = vmatpush1.msra.mxu0 0.0
        %4032 = vmatprep.subr.mxu0 0.0
        %4033 = vmatpush1.msra.mxu0 0.0
        %4034 = vmatprep.subr.mxu0 0.0
        %4035 = vmatpush1.msra.mxu0 0.0
        %4036 = vmatprep.subr.mxu0 0.0
        %4037 = vmatpush1.msra.mxu0 0.0
        %4038 = vmatprep.subr.mxu0 0.0
        %4039 = vmatpush1.msra.mxu0 0.0
        %4040 = vmatprep.subr.mxu0 0.0
        %4041 = vmatpush1.msra.mxu0 0.0
        %4042 = vmatprep.subr.mxu0 0.0
        %4043 = vmatpush1.msra.mxu0 0.0
        %4044 = vmatprep.subr.mxu0 0.0
        %4045 = vmatpush1.msra.mxu0 0.0
        %4046 = vmatprep.subr.mxu0 0.0
        %4047 = vmatpush1.msra.mxu0 0.0
        %4048 = vmatprep.subr.mxu0 0.0
        %4049 = vmatpush1.msra.mxu0 0.0
        %4050 = vmatprep.subr.mxu0 0.0
        %4051 = vmatpush1.msra.mxu0 0.0
        %4052 = vmatprep.subr.mxu0 0.0
        %4053 = vmatpush1.msra.mxu0 0.0
        %4054 = vmatprep.subr.mxu0 0.0
        %4055 = vmatpush1.msra.mxu0 0.0
        %4056 = vmatprep.subr.mxu0 0.0
        %4057 = vmatpush1.msra.mxu0 0.0
        %4058 = vmatprep.subr.mxu0 0.0
        %4059 = vmatpush1.msra.mxu0 0.0
        %4060 = vmatprep.subr.mxu0 0.0
        %4061 = vmatpush1.msra.mxu0 0.0
        %4062 = vmatprep.subr.mxu0 0.0
        %4063 = vmatpush1.msra.mxu0 0.0
        %4064 = vmatprep.subr.mxu0 0.0
        %4065 = vmatpush1.msra.mxu0 0.0
        %4066 = vmatprep.subr.mxu0 0.0
        %4067 = vmatpush1.msra.mxu0 0.0
        %4068 = vmatprep.subr.mxu0 0.0
        %4069 = vmatpush1.msra.mxu0 0.0
        %4070 = vmatprep.subr.mxu0 0.0
        %4071 = vmatpush1.msra.mxu0 0.0
        %4072 = vmatprep.subr.mxu0 0.0
        %4073 = vmatpush1.msra.mxu0 0.0
        %4074 = vmatprep.subr.mxu0 0.0
        %4075 = vmatpush1.msra.mxu0 0.0
        %4076 = vmatprep.subr.mxu0 0.0
        %4077 = vmatpush1.msra.mxu0 0.0
        %4078 = vmatprep.subr.mxu0 0.0
        %4079 = vmatpush1.msra.mxu0 0.0
        %4080 = vmatprep.subr.mxu0 0.0
        %4081 = vmatpush1.msra.mxu0 0.0
        %4082 = vmatprep.subr.mxu0 0.0
        %4083 = vmatpush1.msra.mxu0 0.0
        %4084 = vmatprep.subr.mxu0 0.0
        %4085 = vmatpush1.msra.mxu0 0.0
        %4086 = vmatprep.mubr.f32.mxu0 0.0
        %4087 = vmatmul.mubr.f32.gmra.mrb[0].mxu0 %v4017
        %v4088 = vpop.f32.mrb[0].mxu0
        %v4089 = vadd.f32 0.0, %v4088
        %v4090 = vpop.f32.mrb[0].mxu0
        %4091 = vmatprep.mubr.f32.mxu0 0.0
        %4092 = vmatmul.mubr.f32.gmra.mrb[0].mxu0 %v4020
        %v4093 = vpop.f32.mrb[0].mxu0
        %v4094 = vadd.f32 0.0, %v4093
        %v4095 = vpop.f32.mrb[0].mxu0
        %4096 = vdwg.mxu0
        %v4097 = vadd.f32 %v4011, %v4089
        %v4098 = vadd.f32 %v4012, %v4094
        %v4099 = vld [vmem:[#allocation2 + $0xf0] sm:$0xff]
        %v4100 = vld [vmem:[#allocation2 + $0xf8] sm:$0xff]
        %v4101 = vld [vmem:[#allocation2 + $0x100] sm:$0xff]
        %v4102 = vld [vmem:[#allocation2 + $0x108] sm:$0xff]
        %v4103 = vld [vmem:[#allocation2 + $0x280] sm:$0xff]
        %v4104 = vld [vmem:[#allocation2 + $0x288] sm:$0xff]
        %v4105 = vld [vmem:[#allocation2 + $0x290] sm:$0xff]
        %v4106 = vld [vmem:[#allocation2 + $0x298] sm:$0xff]
        %v4107 = vld [vmem:[#allocation2 + $0x410] sm:$0xff]
        %v4108 = vld [vmem:[#allocation2 + $0x418] sm:$0xff]
        %v4109 = vld [vmem:[#allocation2 + $0x420] sm:$0xff]
        %v4110 = vld [vmem:[#allocation2 + $0x428] sm:$0xff]
        %v4111 = vld [vmem:[#allocation2 + $0x5a0] sm:$0xff]
        %v4112 = vld [vmem:[#allocation2 + $0x5a8] sm:$0xff]
        %v4113 = vld [vmem:[#allocation2 + $0x5b0] sm:$0xff]
        %v4114 = vld [vmem:[#allocation2 + $0x5b8] sm:$0xff]
        %v4115 = vld [vmem:[#allocation2 + $0x730] sm:$0xff]
        %v4116 = vld [vmem:[#allocation2 + $0x738] sm:$0xff]
        %v4117 = vld [vmem:[#allocation2 + $0x740] sm:$0xff]
        %v4118 = vld [vmem:[#allocation2 + $0x748] sm:$0xff]
        %v4119 = vld [vmem:[#allocation2 + $0x8c0] sm:$0xff]
        %v4120 = vld [vmem:[#allocation2 + $0x8c8] sm:$0xff]
        %v4121 = vld [vmem:[#allocation2 + $0x8d0] sm:$0xff]
        %v4122 = vld [vmem:[#allocation2 + $0x8d8] sm:$0xff]
        %v4123 = vld [vmem:[#allocation2 + $0xa50] sm:$0xff]
        %v4124 = vld [vmem:[#allocation2 + $0xa58] sm:$0xff]
        %v4125 = vld [vmem:[#allocation2 + $0xa60] sm:$0xff]
        %v4126 = vld [vmem:[#allocation2 + $0xa68] sm:$0xff]
        %v4127 = vld [vmem:[#allocation2 + $0xbe0] sm:$0xff]
        %v4128 = vld [vmem:[#allocation2 + $0xbe8] sm:$0xff]
        %v4129 = vld [vmem:[#allocation2 + $0xbf0] sm:$0xff]
        %v4130 = vld [vmem:[#allocation2 + $0xbf8] sm:$0xff]
        %v4131 = vld [vmem:[#allocation2 + $0xd70] sm:$0xff]
        %v4132 = vld [vmem:[#allocation2 + $0xd78] sm:$0xff]
        %v4133 = vld [vmem:[#allocation2 + $0xd80] sm:$0xff]
        %v4134 = vld [vmem:[#allocation2 + $0xd88] sm:$0xff]
        %v4135 = vld [vmem:[#allocation2 + $0xf00] sm:$0xff]
        %v4136 = vld [vmem:[#allocation2 + $0xf08] sm:$0xff]
        %v4137 = vld [vmem:[#allocation2 + $0xf10] sm:$0xff]
        %v4138 = vld [vmem:[#allocation2 + $0xf18] sm:$0xff]
        %v4139 = vld [vmem:[#allocation2 + $0x1090] sm:$0xff]
        %v4140 = vld [vmem:[#allocation2 + $0x1098] sm:$0xff]
        %v4141 = vld [vmem:[#allocation2 + $0x10a0] sm:$0xff]
        %v4142 = vld [vmem:[#allocation2 + $0x10a8] sm:$0xff]
        %v4143 = vld [vmem:[#allocation2 + $0x1220] sm:$0xff]
        %v4144 = vld [vmem:[#allocation2 + $0x1228] sm:$0xff]
        %v4145 = vld [vmem:[#allocation2 + $0x1230] sm:$0xff]
        %v4146 = vld [vmem:[#allocation2 + $0x1238] sm:$0xff]
        %v4147 = vld [vmem:[#allocation2 + $0x13b0] sm:$0xff]
        %v4148 = vld [vmem:[#allocation2 + $0x13b8] sm:$0xff]
        %v4149 = vld [vmem:[#allocation2 + $0x13c0] sm:$0xff]
        %v4150 = vld [vmem:[#allocation2 + $0x13c8] sm:$0xff]
        %v4151 = vld [vmem:[#allocation2 + $0x1540] sm:$0xff]
        %v4152 = vld [vmem:[#allocation2 + $0x1548] sm:$0xff]
        %v4153 = vld [vmem:[#allocation2 + $0x1550] sm:$0xff]
        %v4154 = vld [vmem:[#allocation2 + $0x1558] sm:$0xff]
        %v4155 = vld [vmem:[#allocation2 + $0x16d0] sm:$0xff]
        %v4156 = vld [vmem:[#allocation2 + $0x16d8] sm:$0xff]
        %v4157 = vld [vmem:[#allocation2 + $0x16e0] sm:$0xff]
        %v4158 = vld [vmem:[#allocation2 + $0x16e8] sm:$0xff]
        %v4159 = vld [vmem:[#allocation2 + $0x1860] sm:$0xff]
        %v4160 = vld [vmem:[#allocation2 + $0x1868] sm:$0xff]
        %v4161 = vld [vmem:[#allocation2 + $0x1870] sm:$0xff]
        %v4162 = vld [vmem:[#allocation2 + $0x1878] sm:$0xff]
        %v4163 = vld [vmem:[#allocation2 + $0x19f0] sm:$0xff]
        %v4164 = vld [vmem:[#allocation2 + $0x19f8] sm:$0xff]
        %v4165 = vld [vmem:[#allocation2 + $0x1a00] sm:$0xff]
        %v4166 = vld [vmem:[#allocation2 + $0x1a08] sm:$0xff]
        %v4167 = vld [vmem:[#allocation2 + $0x1b80] sm:$0xff]
        %v4168 = vld [vmem:[#allocation2 + $0x1b88] sm:$0xff]
        %v4169 = vld [vmem:[#allocation2 + $0x1b90] sm:$0xff]
        %v4170 = vld [vmem:[#allocation2 + $0x1b98] sm:$0xff]
        %v4171 = vld [vmem:[#allocation2 + $0x1d10] sm:$0xff]
        %v4172 = vld [vmem:[#allocation2 + $0x1d18] sm:$0xff]
        %v4173 = vld [vmem:[#allocation2 + $0x1d20] sm:$0xff]
        %v4174 = vld [vmem:[#allocation2 + $0x1d28] sm:$0xff]
        %v4175 = vld [vmem:[#allocation2 + $0x1ea0] sm:$0xff]
        %v4176 = vld [vmem:[#allocation2 + $0x1ea8] sm:$0xff]
        %v4177 = vld [vmem:[#allocation2 + $0x1eb0] sm:$0xff]
        %v4178 = vld [vmem:[#allocation2 + $0x1eb8] sm:$0xff]
        %v4179 = vld [vmem:[#allocation2 + $0x2030] sm:$0xff]
        %v4180 = vld [vmem:[#allocation2 + $0x2038] sm:$0xff]
        %v4181 = vld [vmem:[#allocation2 + $0x2040] sm:$0xff]
        %v4182 = vld [vmem:[#allocation2 + $0x2048] sm:$0xff]
        %v4183 = vld [vmem:[#allocation2 + $0x21c0] sm:$0xff]
        %v4184 = vld [vmem:[#allocation2 + $0x21c8] sm:$0xff]
        %v4185 = vld [vmem:[#allocation2 + $0x21d0] sm:$0xff]
        %v4186 = vld [vmem:[#allocation2 + $0x21d8] sm:$0xff]
        %v4187 = vld [vmem:[#allocation2 + $0x2350] sm:$0xff]
        %v4188 = vld [vmem:[#allocation2 + $0x2358] sm:$0xff]
        %v4189 = vld [vmem:[#allocation2 + $0x2360] sm:$0xff]
        %v4190 = vld [vmem:[#allocation2 + $0x2368] sm:$0xff]
        %v4191 = vld [vmem:[#allocation2 + $0x24e0] sm:$0xff]
        %v4192 = vld [vmem:[#allocation2 + $0x24e8] sm:$0xff]
        %v4193 = vld [vmem:[#allocation2 + $0x24f0] sm:$0xff]
        %v4194 = vld [vmem:[#allocation2 + $0x24f8] sm:$0xff]
        %v4195 = vld [vmem:[#allocation2 + $0x2670] sm:$0xff]
        %v4196 = vld [vmem:[#allocation2 + $0x2678] sm:$0xff]
        %v4197 = vld [vmem:[#allocation2 + $0x2680] sm:$0xff]
        %v4198 = vld [vmem:[#allocation2 + $0x2688] sm:$0xff]
        %v4199 = vld [vmem:[#allocation2 + $0x2800] sm:$0xff]
        %v4200 = vld [vmem:[#allocation2 + $0x2808] sm:$0xff]
        %v4201 = vld [vmem:[#allocation2 + $0x2810] sm:$0xff]
        %v4202 = vld [vmem:[#allocation2 + $0x2818] sm:$0xff]
        %v4203 = vld [vmem:[#allocation2 + $0x2990] sm:$0xff]
        %v4204 = vld [vmem:[#allocation2 + $0x2998] sm:$0xff]
        %v4205 = vld [vmem:[#allocation2 + $0x29a0] sm:$0xff]
        %v4206 = vld [vmem:[#allocation2 + $0x29a8] sm:$0xff]
        %v4207 = vld [vmem:[#allocation2 + $0x2b20] sm:$0xff]
        %v4208 = vld [vmem:[#allocation2 + $0x2b28] sm:$0xff]
        %v4209 = vld [vmem:[#allocation2 + $0x2b30] sm:$0xff]
        %v4210 = vld [vmem:[#allocation2 + $0x2b38] sm:$0xff]
        %v4211 = vld [vmem:[#allocation2 + $0x2cb0] sm:$0xff]
        %v4212 = vld [vmem:[#allocation2 + $0x2cb8] sm:$0xff]
        %v4213 = vld [vmem:[#allocation2 + $0x2cc0] sm:$0xff]
        %v4214 = vld [vmem:[#allocation2 + $0x2cc8] sm:$0xff]
        %v4215 = vld [vmem:[#allocation2 + $0x2e40] sm:$0xff]
        %v4216 = vld [vmem:[#allocation2 + $0x2e48] sm:$0xff]
        %v4217 = vld [vmem:[#allocation2 + $0x2e50] sm:$0xff]
        %v4218 = vld [vmem:[#allocation2 + $0x2e58] sm:$0xff]
        %v4219 = vld [vmem:[#allocation2 + $0x2fd0] sm:$0xff]
        %v4220 = vld [vmem:[#allocation2 + $0x2fd8] sm:$0xff]
        %v4221 = vld [vmem:[#allocation2 + $0x2fe0] sm:$0xff]
        %v4222 = vld [vmem:[#allocation2 + $0x2fe8] sm:$0xff]
        %v4223 = vld [vmem:[#allocation2 + $0x3160] sm:$0xff]
        %v4224 = vld [vmem:[#allocation2 + $0x3168] sm:$0xff]
        %v4225 = vld [vmem:[#allocation2 + $0x3170] sm:$0xff]
        %v4226 = vld [vmem:[#allocation2 + $0x3178] sm:$0xff]
        %4227 = vmatprep.subr.mxu0 %v4100
        %4228 = vmatpush1.msra.mxu0 %v4099
        %4229 = vmatprep.subr.mxu0 %v4104
        %4230 = vmatpush1.msra.mxu0 %v4103
        %4231 = vmatprep.subr.mxu0 %v4108
        %4232 = vmatpush1.msra.mxu0 %v4107
        %4233 = vmatprep.subr.mxu0 %v4112
        %4234 = vmatpush1.msra.mxu0 %v4111
        %4235 = vmatprep.subr.mxu0 %v4116
        %4236 = vmatpush1.msra.mxu0 %v4115
        %4237 = vmatprep.subr.mxu0 %v4120
        %4238 = vmatpush1.msra.mxu0 %v4119
        %4239 = vmatprep.subr.mxu0 %v4124
        %4240 = vmatpush1.msra.mxu0 %v4123
        %4241 = vmatprep.subr.mxu0 %v4128
        %4242 = vmatpush1.msra.mxu0 %v4127
        %4243 = vmatprep.subr.mxu0 %v4132
        %4244 = vmatpush1.msra.mxu0 %v4131
        %4245 = vmatprep.subr.mxu0 %v4136
        %4246 = vmatpush1.msra.mxu0 %v4135
        %4247 = vmatprep.subr.mxu0 %v4140
        %4248 = vmatpush1.msra.mxu0 %v4139
        %4249 = vmatprep.subr.mxu0 %v4144
        %4250 = vmatpush1.msra.mxu0 %v4143
        %4251 = vmatprep.subr.mxu0 %v4148
        %4252 = vmatpush1.msra.mxu0 %v4147
        %4253 = vmatprep.subr.mxu0 %v4152
        %4254 = vmatpush1.msra.mxu0 %v4151
        %4255 = vmatprep.subr.mxu0 %v4156
        %4256 = vmatpush1.msra.mxu0 %v4155
        %4257 = vmatprep.subr.mxu0 %v4160
        %4258 = vmatpush1.msra.mxu0 %v4159
        %4259 = vmatprep.subr.mxu0 %v4164
        %4260 = vmatpush1.msra.mxu0 %v4163
        %4261 = vmatprep.subr.mxu0 %v4168
        %4262 = vmatpush1.msra.mxu0 %v4167
        %4263 = vmatprep.subr.mxu0 %v4172
        %4264 = vmatpush1.msra.mxu0 %v4171
        %4265 = vmatprep.subr.mxu0 %v4176
        %4266 = vmatpush1.msra.mxu0 %v4175
        %4267 = vmatprep.subr.mxu0 %v4180
        %4268 = vmatpush1.msra.mxu0 %v4179
        %4269 = vmatprep.subr.mxu0 %v4184
        %4270 = vmatpush1.msra.mxu0 %v4183
        %4271 = vmatprep.subr.mxu0 %v4188
        %4272 = vmatpush1.msra.mxu0 %v4187
        %4273 = vmatprep.subr.mxu0 %v4192
        %4274 = vmatpush1.msra.mxu0 %v4191
        %4275 = vmatprep.subr.mxu0 %v4196
        %4276 = vmatpush1.msra.mxu0 %v4195
        %4277 = vmatprep.subr.mxu0 %v4200
        %4278 = vmatpush1.msra.mxu0 %v4199
        %4279 = vmatprep.subr.mxu0 %v4204
        %4280 = vmatpush1.msra.mxu0 %v4203
        %4281 = vmatprep.subr.mxu0 %v4208
        %4282 = vmatpush1.msra.mxu0 %v4207
        %4283 = vmatprep.subr.mxu0 %v4212
        %4284 = vmatpush1.msra.mxu0 %v4211
        %4285 = vmatprep.subr.mxu0 %v4216
        %4286 = vmatpush1.msra.mxu0 %v4215
        %4287 = vmatprep.subr.mxu0 %v4220
        %4288 = vmatpush1.msra.mxu0 %v4219
        %4289 = vmatprep.subr.mxu0 %v4224
        %4290 = vmatpush1.msra.mxu0 %v4223
        %4291 = vmatprep.mubr.f32.mxu0 %v2260
        %4292 = vmatmul.mubr.f32.gmra.mrb[0].mxu0 %v2259
        %v4293 = vpop.f32.mrb[0].mxu0
        %v4294 = vadd.f32 0.0, %v4293
        %v4295 = vpop.f32.mrb[0].mxu0
        %v4296 = vadd.f32 0.0, %v4295
        %4297 = vdwg.mxu0
        %4298 = vmatprep.subr.mxu0 %v4102
        %4299 = vmatpush1.msra.mxu0 %v4101
        %4300 = vmatprep.subr.mxu0 %v4106
        %4301 = vmatpush1.msra.mxu0 %v4105
        %4302 = vmatprep.subr.mxu0 %v4110
        %4303 = vmatpush1.msra.mxu0 %v4109
        %4304 = vmatprep.subr.mxu0 %v4114
        %4305 = vmatpush1.msra.mxu0 %v4113
        %4306 = vmatprep.subr.mxu0 %v4118
        %4307 = vmatpush1.msra.mxu0 %v4117
        %4308 = vmatprep.subr.mxu0 %v4122
        %4309 = vmatpush1.msra.mxu0 %v4121
        %4310 = vmatprep.subr.mxu0 %v4126
        %4311 = vmatpush1.msra.mxu0 %v4125
        %4312 = vmatprep.subr.mxu0 %v4130
        %4313 = vmatpush1.msra.mxu0 %v4129
        %4314 = vmatprep.subr.mxu0 %v4134
        %4315 = vmatpush1.msra.mxu0 %v4133
        %4316 = vmatprep.subr.mxu0 %v4138
        %4317 = vmatpush1.msra.mxu0 %v4137
        %4318 = vmatprep.subr.mxu0 %v4142
        %4319 = vmatpush1.msra.mxu0 %v4141
        %4320 = vmatprep.subr.mxu0 %v4146
        %4321 = vmatpush1.msra.mxu0 %v4145
        %4322 = vmatprep.subr.mxu0 %v4150
        %4323 = vmatpush1.msra.mxu0 %v4149
        %4324 = vmatprep.subr.mxu0 %v4154
        %4325 = vmatpush1.msra.mxu0 %v4153
        %4326 = vmatprep.subr.mxu0 %v4158
        %4327 = vmatpush1.msra.mxu0 %v4157
        %4328 = vmatprep.subr.mxu0 %v4162
        %4329 = vmatpush1.msra.mxu0 %v4161
        %4330 = vmatprep.subr.mxu0 %v4166
        %4331 = vmatpush1.msra.mxu0 %v4165
        %4332 = vmatprep.subr.mxu0 %v4170
        %4333 = vmatpush1.msra.mxu0 %v4169
        %4334 = vmatprep.subr.mxu0 %v4174
        %4335 = vmatpush1.msra.mxu0 %v4173
        %4336 = vmatprep.subr.mxu0 %v4178
        %4337 = vmatpush1.msra.mxu0 %v4177
        %4338 = vmatprep.subr.mxu0 %v4182
        %4339 = vmatpush1.msra.mxu0 %v4181
        %4340 = vmatprep.subr.mxu0 %v4186
        %4341 = vmatpush1.msra.mxu0 %v4185
        %4342 = vmatprep.subr.mxu0 %v4190
        %4343 = vmatpush1.msra.mxu0 %v4189
        %4344 = vmatprep.subr.mxu0 %v4194
        %4345 = vmatpush1.msra.mxu0 %v4193
        %4346 = vmatprep.subr.mxu0 %v4198
        %4347 = vmatpush1.msra.mxu0 %v4197
        %4348 = vmatprep.subr.mxu0 %v4202
        %4349 = vmatpush1.msra.mxu0 %v4201
        %4350 = vmatprep.subr.mxu0 %v4206
        %4351 = vmatpush1.msra.mxu0 %v4205
        %4352 = vmatprep.subr.mxu0 %v4210
        %4353 = vmatpush1.msra.mxu0 %v4209
        %4354 = vmatprep.subr.mxu0 %v4214
        %4355 = vmatpush1.msra.mxu0 %v4213
        %4356 = vmatprep.subr.mxu0 %v4218
        %4357 = vmatpush1.msra.mxu0 %v4217
        %4358 = vmatprep.subr.mxu0 %v4222
        %4359 = vmatpush1.msra.mxu0 %v4221
        %4360 = vmatprep.subr.mxu0 %v4226
        %4361 = vmatpush1.msra.mxu0 %v4225
        %4362 = vmatprep.mubr.f32.mxu0 %v2260
        %4363 = vmatmul.mubr.f32.gmra.mrb[0].mxu0 %v2259
        %v4364 = vpop.f32.mrb[0].mxu0
        %v4365 = vadd.f32 0.0, %v4364
        %v4366 = vpop.f32.mrb[0].mxu0
        %v4367 = vadd.f32 0.0, %v4366
        %4368 = vdwg.mxu0
        %s4369 = scalar_lea.vmem %s3, 192
        %v4370 = vld [vmem:[%s4369] sm:$0xff]
        %v4371 = vld [vmem:[%s4369 + $0x8] sm:$0xff]
        %v4373 = vsel %vm2536, %v4370, 0
        %v4376 = vsel %vm2536, %v4371, 0
        %4378 = vmatprep.subr.mxu0 0.0
        %4379 = vmatpush1.msra.mxu0 %v4294
        %4380 = vmatprep.subr.mxu0 0.0
        %4381 = vmatpush1.msra.mxu0 0.0
        %4382 = vmatprep.subr.mxu0 0.0
        %4383 = vmatpush1.msra.mxu0 0.0
        %4384 = vmatprep.subr.mxu0 0.0
        %4385 = vmatpush1.msra.mxu0 0.0
        %4386 = vmatprep.subr.mxu0 0.0
        %4387 = vmatpush1.msra.mxu0 0.0
        %4388 = vmatprep.subr.mxu0 0.0
        %4389 = vmatpush1.msra.mxu0 0.0
        %4390 = vmatprep.subr.mxu0 0.0
        %4391 = vmatpush1.msra.mxu0 0.0
        %4392 = vmatprep.subr.mxu0 0.0
        %4393 = vmatpush1.msra.mxu0 0.0
        %4394 = vmatprep.subr.mxu0 0.0
        %4395 = vmatpush1.msra.mxu0 0.0
        %4396 = vmatprep.subr.mxu0 0.0
        %4397 = vmatpush1.msra.mxu0 0.0
        %4398 = vmatprep.subr.mxu0 0.0
        %4399 = vmatpush1.msra.mxu0 0.0
        %4400 = vmatprep.subr.mxu0 0.0
        %4401 = vmatpush1.msra.mxu0 0.0
        %4402 = vmatprep.subr.mxu0 0.0
        %4403 = vmatpush1.msra.mxu0 0.0
        %4404 = vmatprep.subr.mxu0 0.0
        %4405 = vmatpush1.msra.mxu0 0.0
        %4406 = vmatprep.subr.mxu0 0.0
        %4407 = vmatpush1.msra.mxu0 0.0
        %4408 = vmatprep.subr.mxu0 0.0
        %4409 = vmatpush1.msra.mxu0 0.0
        %4410 = vmatprep.subr.mxu0 0.0
        %4411 = vmatpush1.msra.mxu0 0.0
        %4412 = vmatprep.subr.mxu0 0.0
        %4413 = vmatpush1.msra.mxu0 0.0
        %4414 = vmatprep.subr.mxu0 0.0
        %4415 = vmatpush1.msra.mxu0 0.0
        %4416 = vmatprep.subr.mxu0 0.0
        %4417 = vmatpush1.msra.mxu0 0.0
        %4418 = vmatprep.subr.mxu0 0.0
        %4419 = vmatpush1.msra.mxu0 0.0
        %4420 = vmatprep.subr.mxu0 0.0
        %4421 = vmatpush1.msra.mxu0 0.0
        %4422 = vmatprep.subr.mxu0 0.0
        %4423 = vmatpush1.msra.mxu0 0.0
        %4424 = vmatprep.subr.mxu0 0.0
        %4425 = vmatpush1.msra.mxu0 0.0
        %4426 = vmatprep.subr.mxu0 0.0
        %4427 = vmatpush1.msra.mxu0 0.0
        %4428 = vmatprep.subr.mxu0 0.0
        %4429 = vmatpush1.msra.mxu0 0.0
        %4430 = vmatprep.subr.mxu0 0.0
        %4431 = vmatpush1.msra.mxu0 0.0
        %4432 = vmatprep.subr.mxu0 0.0
        %4433 = vmatpush1.msra.mxu0 0.0
        %4434 = vmatprep.subr.mxu0 0.0
        %4435 = vmatpush1.msra.mxu0 0.0
        %4436 = vmatprep.subr.mxu0 0.0
        %4437 = vmatpush1.msra.mxu0 0.0
        %4438 = vmatprep.subr.mxu0 0.0
        %4439 = vmatpush1.msra.mxu0 0.0
        %4440 = vmatprep.subr.mxu0 0.0
        %4441 = vmatpush1.msra.mxu0 0.0
        %4442 = vmatprep.mubr.f32.mxu0 0.0
        %4443 = vmatmul.mubr.f32.gmra.mrb[0].mxu0 %v4373
        %v4444 = vpop.f32.mrb[0].mxu0
        %v4445 = vadd.f32 0.0, %v4444
        %v4446 = vpop.f32.mrb[0].mxu0
        %4447 = vmatprep.mubr.f32.mxu0 0.0
        %4448 = vmatmul.mubr.f32.gmra.mrb[0].mxu0 %v4376
        %v4449 = vpop.f32.mrb[0].mxu0
        %v4450 = vadd.f32 0.0, %v4449
        %v4451 = vpop.f32.mrb[0].mxu0
        %4452 = vdwg.mxu0
        %v4453 = vadd.f32 %v4097, %v4445
        %v4454 = vadd.f32 %v4098, %v4450
        %s4455 = scalar_lea.vmem %s3, 208
        %v4456 = vld [vmem:[%s4455] sm:$0xff]
        %v4457 = vld [vmem:[%s4455 + $0x8] sm:$0xff]
        %v4459 = vsel %vm2536, %v4456, 0
        %v4462 = vsel %vm2536, %v4457, 0
        %4464 = vmatprep.subr.mxu0 0.0
        %4465 = vmatpush1.msra.mxu0 %v4296
        %4466 = vmatprep.subr.mxu0 0.0
        %4467 = vmatpush1.msra.mxu0 0.0
        %4468 = vmatprep.subr.mxu0 0.0
        %4469 = vmatpush1.msra.mxu0 0.0
        %4470 = vmatprep.subr.mxu0 0.0
        %4471 = vmatpush1.msra.mxu0 0.0
        %4472 = vmatprep.subr.mxu0 0.0
        %4473 = vmatpush1.msra.mxu0 0.0
        %4474 = vmatprep.subr.mxu0 0.0
        %4475 = vmatpush1.msra.mxu0 0.0
        %4476 = vmatprep.subr.mxu0 0.0
        %4477 = vmatpush1.msra.mxu0 0.0
        %4478 = vmatprep.subr.mxu0 0.0
        %4479 = vmatpush1.msra.mxu0 0.0
        %4480 = vmatprep.subr.mxu0 0.0
        %4481 = vmatpush1.msra.mxu0 0.0
        %4482 = vmatprep.subr.mxu0 0.0
        %4483 = vmatpush1.msra.mxu0 0.0
        %4484 = vmatprep.subr.mxu0 0.0
        %4485 = vmatpush1.msra.mxu0 0.0
        %4486 = vmatprep.subr.mxu0 0.0
        %4487 = vmatpush1.msra.mxu0 0.0
        %4488 = vmatprep.subr.mxu0 0.0
        %4489 = vmatpush1.msra.mxu0 0.0
        %4490 = vmatprep.subr.mxu0 0.0
        %4491 = vmatpush1.msra.mxu0 0.0
        %4492 = vmatprep.subr.mxu0 0.0
        %4493 = vmatpush1.msra.mxu0 0.0
        %4494 = vmatprep.subr.mxu0 0.0
        %4495 = vmatpush1.msra.mxu0 0.0
        %4496 = vmatprep.subr.mxu0 0.0
        %4497 = vmatpush1.msra.mxu0 0.0
        %4498 = vmatprep.subr.mxu0 0.0
        %4499 = vmatpush1.msra.mxu0 0.0
        %4500 = vmatprep.subr.mxu0 0.0
        %4501 = vmatpush1.msra.mxu0 0.0
        %4502 = vmatprep.subr.mxu0 0.0
        %4503 = vmatpush1.msra.mxu0 0.0
        %4504 = vmatprep.subr.mxu0 0.0
        %4505 = vmatpush1.msra.mxu0 0.0
        %4506 = vmatprep.subr.mxu0 0.0
        %4507 = vmatpush1.msra.mxu0 0.0
        %4508 = vmatprep.subr.mxu0 0.0
        %4509 = vmatpush1.msra.mxu0 0.0
        %4510 = vmatprep.subr.mxu0 0.0
        %4511 = vmatpush1.msra.mxu0 0.0
        %4512 = vmatprep.subr.mxu0 0.0
        %4513 = vmatpush1.msra.mxu0 0.0
        %4514 = vmatprep.subr.mxu0 0.0
        %4515 = vmatpush1.msra.mxu0 0.0
        %4516 = vmatprep.subr.mxu0 0.0
        %4517 = vmatpush1.msra.mxu0 0.0
        %4518 = vmatprep.subr.mxu0 0.0
        %4519 = vmatpush1.msra.mxu0 0.0
        %4520 = vmatprep.subr.mxu0 0.0
        %4521 = vmatpush1.msra.mxu0 0.0
        %4522 = vmatprep.subr.mxu0 0.0
        %4523 = vmatpush1.msra.mxu0 0.0
        %4524 = vmatprep.subr.mxu0 0.0
        %4525 = vmatpush1.msra.mxu0 0.0
        %4526 = vmatprep.subr.mxu0 0.0
        %4527 = vmatpush1.msra.mxu0 0.0
        %4528 = vmatprep.mubr.f32.mxu0 0.0
        %4529 = vmatmul.mubr.f32.gmra.mrb[0].mxu0 %v4459
        %v4530 = vpop.f32.mrb[0].mxu0
        %v4531 = vadd.f32 0.0, %v4530
        %v4532 = vpop.f32.mrb[0].mxu0
        %4533 = vmatprep.mubr.f32.mxu0 0.0
        %4534 = vmatmul.mubr.f32.gmra.mrb[0].mxu0 %v4462
        %v4535 = vpop.f32.mrb[0].mxu0
        %v4536 = vadd.f32 0.0, %v4535
        %v4537 = vpop.f32.mrb[0].mxu0
        %4538 = vdwg.mxu0
        %v4539 = vadd.f32 %v4453, %v4531
        %v4540 = vadd.f32 %v4454, %v4536
        %s4541 = scalar_lea.vmem %s3, 224
        %v4542 = vld [vmem:[%s4541] sm:$0xff]
        %v4543 = vld [vmem:[%s4541 + $0x8] sm:$0xff]
        %v4545 = vsel %vm2536, %v4542, 0
        %v4548 = vsel %vm2536, %v4543, 0
        %4550 = vmatprep.subr.mxu0 0.0
        %4551 = vmatpush1.msra.mxu0 %v4365
        %4552 = vmatprep.subr.mxu0 0.0
        %4553 = vmatpush1.msra.mxu0 0.0
        %4554 = vmatprep.subr.mxu0 0.0
        %4555 = vmatpush1.msra.mxu0 0.0
        %4556 = vmatprep.subr.mxu0 0.0
        %4557 = vmatpush1.msra.mxu0 0.0
        %4558 = vmatprep.subr.mxu0 0.0
        %4559 = vmatpush1.msra.mxu0 0.0
        %4560 = vmatprep.subr.mxu0 0.0
        %4561 = vmatpush1.msra.mxu0 0.0
        %4562 = vmatprep.subr.mxu0 0.0
        %4563 = vmatpush1.msra.mxu0 0.0
        %4564 = vmatprep.subr.mxu0 0.0
        %4565 = vmatpush1.msra.mxu0 0.0
        %4566 = vmatprep.subr.mxu0 0.0
        %4567 = vmatpush1.msra.mxu0 0.0
        %4568 = vmatprep.subr.mxu0 0.0
        %4569 = vmatpush1.msra.mxu0 0.0
        %4570 = vmatprep.subr.mxu0 0.0
        %4571 = vmatpush1.msra.mxu0 0.0
        %4572 = vmatprep.subr.mxu0 0.0
        %4573 = vmatpush1.msra.mxu0 0.0
        %4574 = vmatprep.subr.mxu0 0.0
        %4575 = vmatpush1.msra.mxu0 0.0
        %4576 = vmatprep.subr.mxu0 0.0
        %4577 = vmatpush1.msra.mxu0 0.0
        %4578 = vmatprep.subr.mxu0 0.0
        %4579 = vmatpush1.msra.mxu0 0.0
        %4580 = vmatprep.subr.mxu0 0.0
        %4581 = vmatpush1.msra.mxu0 0.0
        %4582 = vmatprep.subr.mxu0 0.0
        %4583 = vmatpush1.msra.mxu0 0.0
        %4584 = vmatprep.subr.mxu0 0.0
        %4585 = vmatpush1.msra.mxu0 0.0
        %4586 = vmatprep.subr.mxu0 0.0
        %4587 = vmatpush1.msra.mxu0 0.0
        %4588 = vmatprep.subr.mxu0 0.0
        %4589 = vmatpush1.msra.mxu0 0.0
        %4590 = vmatprep.subr.mxu0 0.0
        %4591 = vmatpush1.msra.mxu0 0.0
        %4592 = vmatprep.subr.mxu0 0.0
        %4593 = vmatpush1.msra.mxu0 0.0
        %4594 = vmatprep.subr.mxu0 0.0
        %4595 = vmatpush1.msra.mxu0 0.0
        %4596 = vmatprep.subr.mxu0 0.0
        %4597 = vmatpush1.msra.mxu0 0.0
        %4598 = vmatprep.subr.mxu0 0.0
        %4599 = vmatpush1.msra.mxu0 0.0
        %4600 = vmatprep.subr.mxu0 0.0
        %4601 = vmatpush1.msra.mxu0 0.0
        %4602 = vmatprep.subr.mxu0 0.0
        %4603 = vmatpush1.msra.mxu0 0.0
        %4604 = vmatprep.subr.mxu0 0.0
        %4605 = vmatpush1.msra.mxu0 0.0
        %4606 = vmatprep.subr.mxu0 0.0
        %4607 = vmatpush1.msra.mxu0 0.0
        %4608 = vmatprep.subr.mxu0 0.0
        %4609 = vmatpush1.msra.mxu0 0.0
        %4610 = vmatprep.subr.mxu0 0.0
        %4611 = vmatpush1.msra.mxu0 0.0
        %4612 = vmatprep.subr.mxu0 0.0
        %4613 = vmatpush1.msra.mxu0 0.0
        %4614 = vmatprep.mubr.f32.mxu0 0.0
        %4615 = vmatmul.mubr.f32.gmra.mrb[0].mxu0 %v4545
        %v4616 = vpop.f32.mrb[0].mxu0
        %v4617 = vadd.f32 0.0, %v4616
        %v4618 = vpop.f32.mrb[0].mxu0
        %4619 = vmatprep.mubr.f32.mxu0 0.0
        %4620 = vmatmul.mubr.f32.gmra.mrb[0].mxu0 %v4548
        %v4621 = vpop.f32.mrb[0].mxu0
        %v4622 = vadd.f32 0.0, %v4621
        %v4623 = vpop.f32.mrb[0].mxu0
        %4624 = vdwg.mxu0
        %v4625 = vadd.f32 %v4539, %v4617
        %v4626 = vadd.f32 %v4540, %v4622
        %s4627 = scalar_lea.vmem %s3, 240
        %v4628 = vld [vmem:[%s4627] sm:$0xff]
        %v4629 = vld [vmem:[%s4627 + $0x8] sm:$0xff]
        %v4631 = vsel %vm2536, %v4628, 0
        %v4634 = vsel %vm2536, %v4629, 0
        %4636 = vmatprep.subr.mxu0 0.0
        %4637 = vmatpush1.msra.mxu0 %v4367
        %4638 = vmatprep.subr.mxu0 0.0
        %4639 = vmatpush1.msra.mxu0 0.0
        %4640 = vmatprep.subr.mxu0 0.0
        %4641 = vmatpush1.msra.mxu0 0.0
        %4642 = vmatprep.subr.mxu0 0.0
        %4643 = vmatpush1.msra.mxu0 0.0
        %4644 = vmatprep.subr.mxu0 0.0
        %4645 = vmatpush1.msra.mxu0 0.0
        %4646 = vmatprep.subr.mxu0 0.0
        %4647 = vmatpush1.msra.mxu0 0.0
        %4648 = vmatprep.subr.mxu0 0.0
        %4649 = vmatpush1.msra.mxu0 0.0
        %4650 = vmatprep.subr.mxu0 0.0
        %4651 = vmatpush1.msra.mxu0 0.0
        %4652 = vmatprep.subr.mxu0 0.0
        %4653 = vmatpush1.msra.mxu0 0.0
        %4654 = vmatprep.subr.mxu0 0.0
        %4655 = vmatpush1.msra.mxu0 0.0
        %4656 = vmatprep.subr.mxu0 0.0
        %4657 = vmatpush1.msra.mxu0 0.0
        %4658 = vmatprep.subr.mxu0 0.0
        %4659 = vmatpush1.msra.mxu0 0.0
        %4660 = vmatprep.subr.mxu0 0.0
        %4661 = vmatpush1.msra.mxu0 0.0
        %4662 = vmatprep.subr.mxu0 0.0
        %4663 = vmatpush1.msra.mxu0 0.0
        %4664 = vmatprep.subr.mxu0 0.0
        %4665 = vmatpush1.msra.mxu0 0.0
        %4666 = vmatprep.subr.mxu0 0.0
        %4667 = vmatpush1.msra.mxu0 0.0
        %4668 = vmatprep.subr.mxu0 0.0
        %4669 = vmatpush1.msra.mxu0 0.0
        %4670 = vmatprep.subr.mxu0 0.0
        %4671 = vmatpush1.msra.mxu0 0.0
        %4672 = vmatprep.subr.mxu0 0.0
        %4673 = vmatpush1.msra.mxu0 0.0
        %4674 = vmatprep.subr.mxu0 0.0
        %4675 = vmatpush1.msra.mxu0 0.0
        %4676 = vmatprep.subr.mxu0 0.0
        %4677 = vmatpush1.msra.mxu0 0.0
        %4678 = vmatprep.subr.mxu0 0.0
        %4679 = vmatpush1.msra.mxu0 0.0
        %4680 = vmatprep.subr.mxu0 0.0
        %4681 = vmatpush1.msra.mxu0 0.0
        %4682 = vmatprep.subr.mxu0 0.0
        %4683 = vmatpush1.msra.mxu0 0.0
        %4684 = vmatprep.subr.mxu0 0.0
        %4685 = vmatpush1.msra.mxu0 0.0
        %4686 = vmatprep.subr.mxu0 0.0
        %4687 = vmatpush1.msra.mxu0 0.0
        %4688 = vmatprep.subr.mxu0 0.0
        %4689 = vmatpush1.msra.mxu0 0.0
        %4690 = vmatprep.subr.mxu0 0.0
        %4691 = vmatpush1.msra.mxu0 0.0
        %4692 = vmatprep.subr.mxu0 0.0
        %4693 = vmatpush1.msra.mxu0 0.0
        %4694 = vmatprep.subr.mxu0 0.0
        %4695 = vmatpush1.msra.mxu0 0.0
        %4696 = vmatprep.subr.mxu0 0.0
        %4697 = vmatpush1.msra.mxu0 0.0
        %4698 = vmatprep.subr.mxu0 0.0
        %4699 = vmatpush1.msra.mxu0 0.0
        %4700 = vmatprep.mubr.f32.mxu0 0.0
        %4701 = vmatmul.mubr.f32.gmra.mrb[0].mxu0 %v4631
        %v4702 = vpop.f32.mrb[0].mxu0
        %v4703 = vadd.f32 0.0, %v4702
        %v4704 = vpop.f32.mrb[0].mxu0
        %4705 = vmatprep.mubr.f32.mxu0 0.0
        %4706 = vmatmul.mubr.f32.gmra.mrb[0].mxu0 %v4634
        %v4707 = vpop.f32.mrb[0].mxu0
        %v4708 = vadd.f32 0.0, %v4707
        %v4709 = vpop.f32.mrb[0].mxu0
        %4710 = vdwg.mxu0
        %v4711 = vadd.f32 %v4625, %v4703
        %v4712 = vadd.f32 %v4626, %v4708
        %4713 = vadd.xlane.f32.xlu0 %v4711
        %v4714 = vpop.xlane.xlu0 %4713
        %4715 = vadd.xlane.f32.xlu0 %v4712
        %v4716 = vpop.xlane.xlu0 %4715
        %v4717 = vmul.f32 %v4714, 0.015625
        %v4718 = vmul.f32 %v4716, 0.015625
        %v4719 = vmul.f32 %v4711, %v4711
        %v4720 = vmul.f32 %v4712, %v4712
        %4721 = vadd.xlane.f32.xlu0 %v4719
        %v4722 = vpop.xlane.xlu0 %4721
        %4723 = vadd.xlane.f32.xlu0 %v4720
        %v4724 = vpop.xlane.xlu0 %4723
        %v4725 = vmul.f32 %v4722, 0.015625
        %v4726 = vmul.f32 %v4724, 0.015625
        %v4727 = vmul.f32 %v4717, %v4717
        %v4728 = vmul.f32 %v4718, %v4718
        %v4729 = vsub.f32 %v4725, %v4727
        %v4730 = vsub.f32 %v4726, %v4728
        %v4731 = vmax.f32 %v4729, 0.0
        %v4732 = vmax.f32 %v4730, 0.0
        %v4733 = vsub.f32 %v4711, %v4717
        %v4734 = vsub.f32 %v4712, %v4718
        %v4735 = vadd.f32 %v4731, 1e-05
        %v4736 = vadd.f32 %v4732, 1e-05
        %v4737 = vrsqrt.pop %v4735
        %v4738 = vrsqrt.pop %v4736
        %v4739 = vmul.f32 %v4733, %v4737
        %v4740 = vmul.f32 %v4734, %v4738
        %vm4741 = vcmp.ge.f32.partialorder %v4739, 0.0
        %vm4742 = vcmp.ge.f32.partialorder %v4740, 0.0
        %v4743 = vmul.f32 %v4739, 0.2
        %v4744 = vmul.f32 %v4740, 0.2
        %v4745 = vsel %vm4741, %v4739, %v4743
        %v4746 = vsel %vm4742, %v4740, %v4744
        %v4747 = vld [vmem:[#allocation2 + $0x110] sm:$0xff]
        %v4748 = vld [vmem:[#allocation2 + $0x118] sm:$0xff]
        %v4749 = vld [vmem:[#allocation2 + $0x120] sm:$0xff]
        %v4750 = vld [vmem:[#allocation2 + $0x128] sm:$0xff]
        %v4751 = vld [vmem:[#allocation2 + $0x2a0] sm:$0xff]
        %v4752 = vld [vmem:[#allocation2 + $0x2a8] sm:$0xff]
        %v4753 = vld [vmem:[#allocation2 + $0x2b0] sm:$0xff]
        %v4754 = vld [vmem:[#allocation2 + $0x2b8] sm:$0xff]
        %v4755 = vld [vmem:[#allocation2 + $0x430] sm:$0xff]
        %v4756 = vld [vmem:[#allocation2 + $0x438] sm:$0xff]
        %v4757 = vld [vmem:[#allocation2 + $0x440] sm:$0xff]
        %v4758 = vld [vmem:[#allocation2 + $0x448] sm:$0xff]
        %v4759 = vld [vmem:[#allocation2 + $0x5c0] sm:$0xff]
        %v4760 = vld [vmem:[#allocation2 + $0x5c8] sm:$0xff]
        %v4761 = vld [vmem:[#allocation2 + $0x5d0] sm:$0xff]
        %v4762 = vld [vmem:[#allocation2 + $0x5d8] sm:$0xff]
        %v4763 = vld [vmem:[#allocation2 + $0x750] sm:$0xff]
        %v4764 = vld [vmem:[#allocation2 + $0x758] sm:$0xff]
        %v4765 = vld [vmem:[#allocation2 + $0x760] sm:$0xff]
        %v4766 = vld [vmem:[#allocation2 + $0x768] sm:$0xff]
        %v4767 = vld [vmem:[#allocation2 + $0x8e0] sm:$0xff]
        %v4768 = vld [vmem:[#allocation2 + $0x8e8] sm:$0xff]
        %v4769 = vld [vmem:[#allocation2 + $0x8f0] sm:$0xff]
        %v4770 = vld [vmem:[#allocation2 + $0x8f8] sm:$0xff]
        %v4771 = vld [vmem:[#allocation2 + $0xa70] sm:$0xff]
        %v4772 = vld [vmem:[#allocation2 + $0xa78] sm:$0xff]
        %v4773 = vld [vmem:[#allocation2 + $0xa80] sm:$0xff]
        %v4774 = vld [vmem:[#allocation2 + $0xa88] sm:$0xff]
        %v4775 = vld [vmem:[#allocation2 + $0xc00] sm:$0xff]
        %v4776 = vld [vmem:[#allocation2 + $0xc08] sm:$0xff]
        %v4777 = vld [vmem:[#allocation2 + $0xc10] sm:$0xff]
        %v4778 = vld [vmem:[#allocation2 + $0xc18] sm:$0xff]
        %v4779 = vld [vmem:[#allocation2 + $0xd90] sm:$0xff]
        %v4780 = vld [vmem:[#allocation2 + $0xd98] sm:$0xff]
        %v4781 = vld [vmem:[#allocation2 + $0xda0] sm:$0xff]
        %v4782 = vld [vmem:[#allocation2 + $0xda8] sm:$0xff]
        %v4783 = vld [vmem:[#allocation2 + $0xf20] sm:$0xff]
        %v4784 = vld [vmem:[#allocation2 + $0xf28] sm:$0xff]
        %v4785 = vld [vmem:[#allocation2 + $0xf30] sm:$0xff]
        %v4786 = vld [vmem:[#allocation2 + $0xf38] sm:$0xff]
        %v4787 = vld [vmem:[#allocation2 + $0x10b0] sm:$0xff]
        %v4788 = vld [vmem:[#allocation2 + $0x10b8] sm:$0xff]
        %v4789 = vld [vmem:[#allocation2 + $0x10c0] sm:$0xff]
        %v4790 = vld [vmem:[#allocation2 + $0x10c8] sm:$0xff]
        %v4791 = vld [vmem:[#allocation2 + $0x1240] sm:$0xff]
        %v4792 = vld [vmem:[#allocation2 + $0x1248] sm:$0xff]
        %v4793 = vld [vmem:[#allocation2 + $0x1250] sm:$0xff]
        %v4794 = vld [vmem:[#allocation2 + $0x1258] sm:$0xff]
        %v4795 = vld [vmem:[#allocation2 + $0x13d0] sm:$0xff]
        %v4796 = vld [vmem:[#allocation2 + $0x13d8] sm:$0xff]
        %v4797 = vld [vmem:[#allocation2 + $0x13e0] sm:$0xff]
        %v4798 = vld [vmem:[#allocation2 + $0x13e8] sm:$0xff]
        %v4799 = vld [vmem:[#allocation2 + $0x1560] sm:$0xff]
        %v4800 = vld [vmem:[#allocation2 + $0x1568] sm:$0xff]
        %v4801 = vld [vmem:[#allocation2 + $0x1570] sm:$0xff]
        %v4802 = vld [vmem:[#allocation2 + $0x1578] sm:$0xff]
        %v4803 = vld [vmem:[#allocation2 + $0x16f0] sm:$0xff]
        %v4804 = vld [vmem:[#allocation2 + $0x16f8] sm:$0xff]
        %v4805 = vld [vmem:[#allocation2 + $0x1700] sm:$0xff]
        %v4806 = vld [vmem:[#allocation2 + $0x1708] sm:$0xff]
        %v4807 = vld [vmem:[#allocation2 + $0x1880] sm:$0xff]
        %v4808 = vld [vmem:[#allocation2 + $0x1888] sm:$0xff]
        %v4809 = vld [vmem:[#allocation2 + $0x1890] sm:$0xff]
        %v4810 = vld [vmem:[#allocation2 + $0x1898] sm:$0xff]
        %4811 = vmatprep.subr.mxu0 %v4748
        %4812 = vmatpush1.msra.mxu0 %v4747
        %4813 = vmatprep.subr.mxu0 %v4752
        %4814 = vmatpush1.msra.mxu0 %v4751
        %4815 = vmatprep.subr.mxu0 %v4756
        %4816 = vmatpush1.msra.mxu0 %v4755
        %4817 = vmatprep.subr.mxu0 %v4760
        %4818 = vmatpush1.msra.mxu0 %v4759
        %4819 = vmatprep.subr.mxu0 %v4764
        %4820 = vmatpush1.msra.mxu0 %v4763
        %4821 = vmatprep.subr.mxu0 %v4768
        %4822 = vmatpush1.msra.mxu0 %v4767
        %4823 = vmatprep.subr.mxu0 %v4772
        %4824 = vmatpush1.msra.mxu0 %v4771
        %4825 = vmatprep.subr.mxu0 %v4776
        %4826 = vmatpush1.msra.mxu0 %v4775
        %4827 = vmatprep.subr.mxu0 %v4780
        %4828 = vmatpush1.msra.mxu0 %v4779
        %4829 = vmatprep.subr.mxu0 %v4784
        %4830 = vmatpush1.msra.mxu0 %v4783
        %4831 = vmatprep.subr.mxu0 %v4788
        %4832 = vmatpush1.msra.mxu0 %v4787
        %4833 = vmatprep.subr.mxu0 %v4792
        %4834 = vmatpush1.msra.mxu0 %v4791
        %4835 = vmatprep.subr.mxu0 %v4796
        %4836 = vmatpush1.msra.mxu0 %v4795
        %4837 = vmatprep.subr.mxu0 %v4800
        %4838 = vmatpush1.msra.mxu0 %v4799
        %4839 = vmatprep.subr.mxu0 %v4804
        %4840 = vmatpush1.msra.mxu0 %v4803
        %4841 = vmatprep.subr.mxu0 %v4808
        %4842 = vmatpush1.msra.mxu0 %v4807
        %4843 = vmatprep.subr.mxu0 0.0
        %4844 = vmatpush1.msra.mxu0 0.0
        %4845 = vmatprep.subr.mxu0 0.0
        %4846 = vmatpush1.msra.mxu0 0.0
        %4847 = vmatprep.subr.mxu0 0.0
        %4848 = vmatpush1.msra.mxu0 0.0
        %4849 = vmatprep.subr.mxu0 0.0
        %4850 = vmatpush1.msra.mxu0 0.0
        %4851 = vmatprep.subr.mxu0 0.0
        %4852 = vmatpush1.msra.mxu0 0.0
        %4853 = vmatprep.subr.mxu0 0.0
        %4854 = vmatpush1.msra.mxu0 0.0
        %4855 = vmatprep.subr.mxu0 0.0
        %4856 = vmatpush1.msra.mxu0 0.0
        %4857 = vmatprep.subr.mxu0 0.0
        %4858 = vmatpush1.msra.mxu0 0.0
        %4859 = vmatprep.subr.mxu0 0.0
        %4860 = vmatpush1.msra.mxu0 0.0
        %4861 = vmatprep.subr.mxu0 0.0
        %4862 = vmatpush1.msra.mxu0 0.0
        %4863 = vmatprep.subr.mxu0 0.0
        %4864 = vmatpush1.msra.mxu0 0.0
        %4865 = vmatprep.subr.mxu0 0.0
        %4866 = vmatpush1.msra.mxu0 0.0
        %4867 = vmatprep.subr.mxu0 0.0
        %4868 = vmatpush1.msra.mxu0 0.0
        %4869 = vmatprep.subr.mxu0 0.0
        %4870 = vmatpush1.msra.mxu0 0.0
        %4871 = vmatprep.subr.mxu0 0.0
        %4872 = vmatpush1.msra.mxu0 0.0
        %4873 = vmatprep.subr.mxu0 0.0
        %4874 = vmatpush1.msra.mxu0 0.0
        %4875 = vmatprep.mubr.f32.mxu0 0.0
        %4876 = vmatmul.mubr.f32.gmra.mrb[0].mxu0 %v4745
        %v4877 = vpop.f32.mrb[0].mxu0
        %v4878 = vadd.f32 0.0, %v4877
        %v4879 = vpop.f32.mrb[0].mxu0
        %v4880 = vadd.f32 0.0, %v4879
        %4881 = vmatprep.mubr.f32.mxu0 0.0
        %4882 = vmatmul.mubr.f32.gmra.mrb[0].mxu0 %v4746
        %v4883 = vpop.f32.mrb[0].mxu0
        %v4884 = vadd.f32 0.0, %v4883
        %v4885 = vpop.f32.mrb[0].mxu0
        %v4886 = vadd.f32 0.0, %v4885
        %4887 = vdwg.mxu0
        %4888 = vmatprep.subr.mxu0 %v4750
        %4889 = vmatpush1.msra.mxu0 %v4749
        %4890 = vmatprep.subr.mxu0 %v4754
        %4891 = vmatpush1.msra.mxu0 %v4753
        %4892 = vmatprep.subr.mxu0 %v4758
        %4893 = vmatpush1.msra.mxu0 %v4757
        %4894 = vmatprep.subr.mxu0 %v4762
        %4895 = vmatpush1.msra.mxu0 %v4761
        %4896 = vmatprep.subr.mxu0 %v4766
        %4897 = vmatpush1.msra.mxu0 %v4765
        %4898 = vmatprep.subr.mxu0 %v4770
        %4899 = vmatpush1.msra.mxu0 %v4769
        %4900 = vmatprep.subr.mxu0 %v4774
        %4901 = vmatpush1.msra.mxu0 %v4773
        %4902 = vmatprep.subr.mxu0 %v4778
        %4903 = vmatpush1.msra.mxu0 %v4777
        %4904 = vmatprep.subr.mxu0 %v4782
        %4905 = vmatpush1.msra.mxu0 %v4781
        %4906 = vmatprep.subr.mxu0 %v4786
        %4907 = vmatpush1.msra.mxu0 %v4785
        %4908 = vmatprep.subr.mxu0 %v4790
        %4909 = vmatpush1.msra.mxu0 %v4789
        %4910 = vmatprep.subr.mxu0 %v4794
        %4911 = vmatpush1.msra.mxu0 %v4793
        %4912 = vmatprep.subr.mxu0 %v4798
        %4913 = vmatpush1.msra.mxu0 %v4797
        %4914 = vmatprep.subr.mxu0 %v4802
        %4915 = vmatpush1.msra.mxu0 %v4801
        %4916 = vmatprep.subr.mxu0 %v4806
        %4917 = vmatpush1.msra.mxu0 %v4805
        %4918 = vmatprep.subr.mxu0 %v4810
        %4919 = vmatpush1.msra.mxu0 %v4809
        %4920 = vmatprep.subr.mxu0 0.0
        %4921 = vmatpush1.msra.mxu0 0.0
        %4922 = vmatprep.subr.mxu0 0.0
        %4923 = vmatpush1.msra.mxu0 0.0
        %4924 = vmatprep.subr.mxu0 0.0
        %4925 = vmatpush1.msra.mxu0 0.0
        %4926 = vmatprep.subr.mxu0 0.0
        %4927 = vmatpush1.msra.mxu0 0.0
        %4928 = vmatprep.subr.mxu0 0.0
        %4929 = vmatpush1.msra.mxu0 0.0
        %4930 = vmatprep.subr.mxu0 0.0
        %4931 = vmatpush1.msra.mxu0 0.0
        %4932 = vmatprep.subr.mxu0 0.0
        %4933 = vmatpush1.msra.mxu0 0.0
        %4934 = vmatprep.subr.mxu0 0.0
        %4935 = vmatpush1.msra.mxu0 0.0
        %4936 = vmatprep.subr.mxu0 0.0
        %4937 = vmatpush1.msra.mxu0 0.0
        %4938 = vmatprep.subr.mxu0 0.0
        %4939 = vmatpush1.msra.mxu0 0.0
        %4940 = vmatprep.subr.mxu0 0.0
        %4941 = vmatpush1.msra.mxu0 0.0
        %4942 = vmatprep.subr.mxu0 0.0
        %4943 = vmatpush1.msra.mxu0 0.0
        %4944 = vmatprep.subr.mxu0 0.0
        %4945 = vmatpush1.msra.mxu0 0.0
        %4946 = vmatprep.subr.mxu0 0.0
        %4947 = vmatpush1.msra.mxu0 0.0
        %4948 = vmatprep.subr.mxu0 0.0
        %4949 = vmatpush1.msra.mxu0 0.0
        %4950 = vmatprep.subr.mxu0 0.0
        %4951 = vmatpush1.msra.mxu0 0.0
        %4952 = vmatprep.mubr.f32.mxu0 0.0
        %4953 = vmatmul.mubr.f32.gmra.mrb[0].mxu0 %v4745
        %v4954 = vpop.f32.mrb[0].mxu0
        %v4955 = vadd.f32 0.0, %v4954
        %v4956 = vpop.f32.mrb[0].mxu0
        %v4957 = vadd.f32 0.0, %v4956
        %4958 = vmatprep.mubr.f32.mxu0 0.0
        %4959 = vmatmul.mubr.f32.gmra.mrb[0].mxu0 %v4746
        %v4960 = vpop.f32.mrb[0].mxu0
        %v4961 = vadd.f32 0.0, %v4960
        %v4962 = vpop.f32.mrb[0].mxu0
        %v4963 = vadd.f32 0.0, %v4962
        %4964 = vdwg.mxu0
        %v4965 = vld [vmem:[%s4] sm:$0xff]
        %v4966 = vld [vmem:[%s4 + $0x8] sm:$0xff]
        %v4967 = vld [vmem:[%s4 + $0x10] sm:$0xff]
        %v4968 = vld [vmem:[%s4 + $0x18] sm:$0xff]
        %s4969 = scalar_lea.vmem %s4, 32
        %v4970 = vld [vmem:[%s4969] sm:$0xff]
        %v4971 = vld [vmem:[%s4969 + $0x8] sm:$0xff]
        %v4972 = vld [vmem:[%s4969 + $0x10] sm:$0xff]
        %v4973 = vld [vmem:[%s4969 + $0x18] sm:$0xff]
        %vm4974 = vcmask 130048
        %v4976 = vsel %vm4974, %v4970, 0
        %v4979 = vsel %vm4974, %v4971, 0
        %v4982 = vsel %vm4974, %v4972, 0
        %v4985 = vsel %vm4974, %v4973, 0
        %4987 = vmatprep.subr.mxu0 0.0
        %4988 = vmatpush1.msra.mxu0 %v4880
        %4989 = vmatprep.subr.mxu0 0.0
        %4990 = vmatpush1.msra.mxu0 %v4886
        %4991 = vmatprep.subr.mxu0 0.0
        %4992 = vmatpush1.msra.mxu0 0.0
        %4993 = vmatprep.subr.mxu0 0.0
        %4994 = vmatpush1.msra.mxu0 0.0
        %4995 = vmatprep.subr.mxu0 0.0
        %4996 = vmatpush1.msra.mxu0 0.0
        %4997 = vmatprep.subr.mxu0 0.0
        %4998 = vmatpush1.msra.mxu0 0.0
        %4999 = vmatprep.subr.mxu0 0.0
        %5000 = vmatpush1.msra.mxu0 0.0
        %5001 = vmatprep.subr.mxu0 0.0
        %5002 = vmatpush1.msra.mxu0 0.0
        %5003 = vmatprep.subr.mxu0 0.0
        %5004 = vmatpush1.msra.mxu0 0.0
        %5005 = vmatprep.subr.mxu0 0.0
        %5006 = vmatpush1.msra.mxu0 0.0
        %5007 = vmatprep.subr.mxu0 0.0
        %5008 = vmatpush1.msra.mxu0 0.0
        %5009 = vmatprep.subr.mxu0 0.0
        %5010 = vmatpush1.msra.mxu0 0.0
        %5011 = vmatprep.subr.mxu0 0.0
        %5012 = vmatpush1.msra.mxu0 0.0
        %5013 = vmatprep.subr.mxu0 0.0
        %5014 = vmatpush1.msra.mxu0 0.0
        %5015 = vmatprep.subr.mxu0 0.0
        %5016 = vmatpush1.msra.mxu0 0.0
        %5017 = vmatprep.subr.mxu0 0.0
        %5018 = vmatpush1.msra.mxu0 0.0
        %5019 = vmatprep.subr.mxu0 0.0
        %5020 = vmatpush1.msra.mxu0 0.0
        %5021 = vmatprep.subr.mxu0 0.0
        %5022 = vmatpush1.msra.mxu0 0.0
        %5023 = vmatprep.subr.mxu0 0.0
        %5024 = vmatpush1.msra.mxu0 0.0
        %5025 = vmatprep.subr.mxu0 0.0
        %5026 = vmatpush1.msra.mxu0 0.0
        %5027 = vmatprep.subr.mxu0 0.0
        %5028 = vmatpush1.msra.mxu0 0.0
        %5029 = vmatprep.subr.mxu0 0.0
        %5030 = vmatpush1.msra.mxu0 0.0
        %5031 = vmatprep.subr.mxu0 0.0
        %5032 = vmatpush1.msra.mxu0 0.0
        %5033 = vmatprep.subr.mxu0 0.0
        %5034 = vmatpush1.msra.mxu0 0.0
        %5035 = vmatprep.subr.mxu0 0.0
        %5036 = vmatpush1.msra.mxu0 0.0
        %5037 = vmatprep.subr.mxu0 0.0
        %5038 = vmatpush1.msra.mxu0 0.0
        %5039 = vmatprep.subr.mxu0 0.0
        %5040 = vmatpush1.msra.mxu0 0.0
        %5041 = vmatprep.subr.mxu0 0.0
        %5042 = vmatpush1.msra.mxu0 0.0
        %5043 = vmatprep.subr.mxu0 0.0
        %5044 = vmatpush1.msra.mxu0 0.0
        %5045 = vmatprep.subr.mxu0 0.0
        %5046 = vmatpush1.msra.mxu0 0.0
        %5047 = vmatprep.subr.mxu0 0.0
        %5048 = vmatpush1.msra.mxu0 0.0
        %5049 = vmatprep.subr.mxu0 0.0
        %5050 = vmatpush1.msra.mxu0 0.0
        %5051 = vmatprep.mubr.f32.mxu0 0.0
        %5052 = vmatmul.mubr.f32.gmra.mrb[0].mxu0 %v4976
        %v5053 = vpop.f32.mrb[0].mxu0
        %v5054 = vadd.f32 0.0, %v5053
        %v5055 = vpop.f32.mrb[0].mxu0
        %5056 = vmatprep.mubr.f32.mxu0 0.0
        %5057 = vmatmul.mubr.f32.gmra.mrb[0].mxu0 %v4979
        %v5058 = vpop.f32.mrb[0].mxu0
        %v5059 = vadd.f32 0.0, %v5058
        %v5060 = vpop.f32.mrb[0].mxu0
        %5061 = vmatprep.mubr.f32.mxu0 0.0
        %5062 = vmatmul.mubr.f32.gmra.mrb[0].mxu0 %v4982
        %v5063 = vpop.f32.mrb[0].mxu0
        %v5064 = vadd.f32 0.0, %v5063
        %v5065 = vpop.f32.mrb[0].mxu0
        %5066 = vmatprep.mubr.f32.mxu0 0.0
        %5067 = vmatmul.mubr.f32.gmra.mrb[0].mxu0 %v4985
        %v5068 = vpop.f32.mrb[0].mxu0
        %v5069 = vadd.f32 0.0, %v5068
        %v5070 = vpop.f32.mrb[0].mxu0
        %5071 = vdwg.mxu0
        %v5073 = vsel %vm4974, %v4965, 0
        %v5076 = vsel %vm4974, %v4966, 0
        %v5079 = vsel %vm4974, %v4967, 0
        %v5082 = vsel %vm4974, %v4968, 0
        %5084 = vmatprep.subr.mxu0 0.0
        %5085 = vmatpush1.msra.mxu0 %v4878
        %5086 = vmatprep.subr.mxu0 0.0
        %5087 = vmatpush1.msra.mxu0 %v4884
        %5088 = vmatprep.subr.mxu0 0.0
        %5089 = vmatpush1.msra.mxu0 0.0
        %5090 = vmatprep.subr.mxu0 0.0
        %5091 = vmatpush1.msra.mxu0 0.0
        %5092 = vmatprep.subr.mxu0 0.0
        %5093 = vmatpush1.msra.mxu0 0.0
        %5094 = vmatprep.subr.mxu0 0.0
        %5095 = vmatpush1.msra.mxu0 0.0
        %5096 = vmatprep.subr.mxu0 0.0
        %5097 = vmatpush1.msra.mxu0 0.0
        %5098 = vmatprep.subr.mxu0 0.0
        %5099 = vmatpush1.msra.mxu0 0.0
        %5100 = vmatprep.subr.mxu0 0.0
        %5101 = vmatpush1.msra.mxu0 0.0
        %5102 = vmatprep.subr.mxu0 0.0
        %5103 = vmatpush1.msra.mxu0 0.0
        %5104 = vmatprep.subr.mxu0 0.0
        %5105 = vmatpush1.msra.mxu0 0.0
        %5106 = vmatprep.subr.mxu0 0.0
        %5107 = vmatpush1.msra.mxu0 0.0
        %5108 = vmatprep.subr.mxu0 0.0
        %5109 = vmatpush1.msra.mxu0 0.0
        %5110 = vmatprep.subr.mxu0 0.0
        %5111 = vmatpush1.msra.mxu0 0.0
        %5112 = vmatprep.subr.mxu0 0.0
        %5113 = vmatpush1.msra.mxu0 0.0
        %5114 = vmatprep.subr.mxu0 0.0
        %5115 = vmatpush1.msra.mxu0 0.0
        %5116 = vmatprep.subr.mxu0 0.0
        %5117 = vmatpush1.msra.mxu0 0.0
        %5118 = vmatprep.subr.mxu0 0.0
        %5119 = vmatpush1.msra.mxu0 0.0
        %5120 = vmatprep.subr.mxu0 0.0
        %5121 = vmatpush1.msra.mxu0 0.0
        %5122 = vmatprep.subr.mxu0 0.0
        %5123 = vmatpush1.msra.mxu0 0.0
        %5124 = vmatprep.subr.mxu0 0.0
        %5125 = vmatpush1.msra.mxu0 0.0
        %5126 = vmatprep.subr.mxu0 0.0
        %5127 = vmatpush1.msra.mxu0 0.0
        %5128 = vmatprep.subr.mxu0 0.0
        %5129 = vmatpush1.msra.mxu0 0.0
        %5130 = vmatprep.subr.mxu0 0.0
        %5131 = vmatpush1.msra.mxu0 0.0
        %5132 = vmatprep.subr.mxu0 0.0
        %5133 = vmatpush1.msra.mxu0 0.0
        %5134 = vmatprep.subr.mxu0 0.0
        %5135 = vmatpush1.msra.mxu0 0.0
        %5136 = vmatprep.subr.mxu0 0.0
        %5137 = vmatpush1.msra.mxu0 0.0
        %5138 = vmatprep.subr.mxu0 0.0
        %5139 = vmatpush1.msra.mxu0 0.0
        %5140 = vmatprep.subr.mxu0 0.0
        %5141 = vmatpush1.msra.mxu0 0.0
        %5142 = vmatprep.subr.mxu0 0.0
        %5143 = vmatpush1.msra.mxu0 0.0
        %5144 = vmatprep.subr.mxu0 0.0
        %5145 = vmatpush1.msra.mxu0 0.0
        %5146 = vmatprep.subr.mxu0 0.0
        %5147 = vmatpush1.msra.mxu0 0.0
        %5148 = vmatprep.mubr.f32.mxu0 0.0
        %5149 = vmatmul.mubr.f32.gmra.mrb[0].mxu0 %v5073
        %v5150 = vpop.f32.mrb[0].mxu0
        %v5151 = vadd.f32 %v5054, %v5150
        %v5152 = vpop.f32.mrb[0].mxu0
        %5153 = vmatprep.mubr.f32.mxu0 0.0
        %5154 = vmatmul.mubr.f32.gmra.mrb[0].mxu0 %v5076
        %v5155 = vpop.f32.mrb[0].mxu0
        %v5156 = vadd.f32 %v5059, %v5155
        %v5157 = vpop.f32.mrb[0].mxu0
        %5158 = vmatprep.mubr.f32.mxu0 0.0
        %5159 = vmatmul.mubr.f32.gmra.mrb[0].mxu0 %v5079
        %v5160 = vpop.f32.mrb[0].mxu0
        %v5161 = vadd.f32 %v5064, %v5160
        %v5162 = vpop.f32.mrb[0].mxu0
        %5163 = vmatprep.mubr.f32.mxu0 0.0
        %5164 = vmatmul.mubr.f32.gmra.mrb[0].mxu0 %v5082
        %v5165 = vpop.f32.mrb[0].mxu0
        %v5166 = vadd.f32 %v5069, %v5165
        %v5167 = vpop.f32.mrb[0].mxu0
        %5168 = vdwg.mxu0
        %s5169 = scalar_lea.vmem %s4, 64
        %v5170 = vld [vmem:[%s5169] sm:$0xff]
        %v5171 = vld [vmem:[%s5169 + $0x8] sm:$0xff]
        %v5172 = vld [vmem:[%s5169 + $0x10] sm:$0xff]
        %v5173 = vld [vmem:[%s5169 + $0x18] sm:$0xff]
        %v5175 = vsel %vm4974, %v5170, 0
        %v5178 = vsel %vm4974, %v5171, 0
        %v5181 = vsel %vm4974, %v5172, 0
        %v5184 = vsel %vm4974, %v5173, 0
        %5186 = vmatprep.subr.mxu0 0.0
        %5187 = vmatpush1.msra.mxu0 %v4955
        %5188 = vmatprep.subr.mxu0 0.0
        %5189 = vmatpush1.msra.mxu0 %v4961
        %5190 = vmatprep.subr.mxu0 0.0
        %5191 = vmatpush1.msra.mxu0 0.0
        %5192 = vmatprep.subr.mxu0 0.0
        %5193 = vmatpush1.msra.mxu0 0.0
        %5194 = vmatprep.subr.mxu0 0.0
        %5195 = vmatpush1.msra.mxu0 0.0
        %5196 = vmatprep.subr.mxu0 0.0
        %5197 = vmatpush1.msra.mxu0 0.0
        %5198 = vmatprep.subr.mxu0 0.0
        %5199 = vmatpush1.msra.mxu0 0.0
        %5200 = vmatprep.subr.mxu0 0.0
        %5201 = vmatpush1.msra.mxu0 0.0
        %5202 = vmatprep.subr.mxu0 0.0
        %5203 = vmatpush1.msra.mxu0 0.0
        %5204 = vmatprep.subr.mxu0 0.0
        %5205 = vmatpush1.msra.mxu0 0.0
        %5206 = vmatprep.subr.mxu0 0.0
        %5207 = vmatpush1.msra.mxu0 0.0
        %5208 = vmatprep.subr.mxu0 0.0
        %5209 = vmatpush1.msra.mxu0 0.0
        %5210 = vmatprep.subr.mxu0 0.0
        %5211 = vmatpush1.msra.mxu0 0.0
        %5212 = vmatprep.subr.mxu0 0.0
        %5213 = vmatpush1.msra.mxu0 0.0
        %5214 = vmatprep.subr.mxu0 0.0
        %5215 = vmatpush1.msra.mxu0 0.0
        %5216 = vmatprep.subr.mxu0 0.0
        %5217 = vmatpush1.msra.mxu0 0.0
        %5218 = vmatprep.subr.mxu0 0.0
        %5219 = vmatpush1.msra.mxu0 0.0
        %5220 = vmatprep.subr.mxu0 0.0
        %5221 = vmatpush1.msra.mxu0 0.0
        %5222 = vmatprep.subr.mxu0 0.0
        %5223 = vmatpush1.msra.mxu0 0.0
        %5224 = vmatprep.subr.mxu0 0.0
        %5225 = vmatpush1.msra.mxu0 0.0
        %5226 = vmatprep.subr.mxu0 0.0
        %5227 = vmatpush1.msra.mxu0 0.0
        %5228 = vmatprep.subr.mxu0 0.0
        %5229 = vmatpush1.msra.mxu0 0.0
        %5230 = vmatprep.subr.mxu0 0.0
        %5231 = vmatpush1.msra.mxu0 0.0
        %5232 = vmatprep.subr.mxu0 0.0
        %5233 = vmatpush1.msra.mxu0 0.0
        %5234 = vmatprep.subr.mxu0 0.0
        %5235 = vmatpush1.msra.mxu0 0.0
        %5236 = vmatprep.subr.mxu0 0.0
        %5237 = vmatpush1.msra.mxu0 0.0
        %5238 = vmatprep.subr.mxu0 0.0
        %5239 = vmatpush1.msra.mxu0 0.0
        %5240 = vmatprep.subr.mxu0 0.0
        %5241 = vmatpush1.msra.mxu0 0.0
        %5242 = vmatprep.subr.mxu0 0.0
        %5243 = vmatpush1.msra.mxu0 0.0
        %5244 = vmatprep.subr.mxu0 0.0
        %5245 = vmatpush1.msra.mxu0 0.0
        %5246 = vmatprep.subr.mxu0 0.0
        %5247 = vmatpush1.msra.mxu0 0.0
        %5248 = vmatprep.subr.mxu0 0.0
        %5249 = vmatpush1.msra.mxu0 0.0
        %5250 = vmatprep.mubr.f32.mxu0 0.0
        %5251 = vmatmul.mubr.f32.gmra.mrb[0].mxu0 %v5175
        %v5252 = vpop.f32.mrb[0].mxu0
        %v5253 = vadd.f32 0.0, %v5252
        %v5254 = vpop.f32.mrb[0].mxu0
        %5255 = vmatprep.mubr.f32.mxu0 0.0
        %5256 = vmatmul.mubr.f32.gmra.mrb[0].mxu0 %v5178
        %v5257 = vpop.f32.mrb[0].mxu0
        %v5258 = vadd.f32 0.0, %v5257
        %v5259 = vpop.f32.mrb[0].mxu0
        %5260 = vmatprep.mubr.f32.mxu0 0.0
        %5261 = vmatmul.mubr.f32.gmra.mrb[0].mxu0 %v5181
        %v5262 = vpop.f32.mrb[0].mxu0
        %v5263 = vadd.f32 0.0, %v5262
        %v5264 = vpop.f32.mrb[0].mxu0
        %5265 = vmatprep.mubr.f32.mxu0 0.0
        %5266 = vmatmul.mubr.f32.gmra.mrb[0].mxu0 %v5184
        %v5267 = vpop.f32.mrb[0].mxu0
        %v5268 = vadd.f32 0.0, %v5267
        %v5269 = vpop.f32.mrb[0].mxu0
        %5270 = vdwg.mxu0
        %v5271 = vadd.f32 %v5151, %v5253
        %v5272 = vadd.f32 %v5156, %v5258
        %v5273 = vadd.f32 %v5161, %v5263
        %v5274 = vadd.f32 %v5166, %v5268
        %s5275 = scalar_lea.vmem %s4, 96
        %v5276 = vld [vmem:[%s5275] sm:$0xff]
        %v5277 = vld [vmem:[%s5275 + $0x8] sm:$0xff]
        %v5278 = vld [vmem:[%s5275 + $0x10] sm:$0xff]
        %v5279 = vld [vmem:[%s5275 + $0x18] sm:$0xff]
        %v5281 = vsel %vm4974, %v5276, 0
        %v5284 = vsel %vm4974, %v5277, 0
        %v5287 = vsel %vm4974, %v5278, 0
        %v5290 = vsel %vm4974, %v5279, 0
        %5292 = vmatprep.subr.mxu0 0.0
        %5293 = vmatpush1.msra.mxu0 %v4957
        %5294 = vmatprep.subr.mxu0 0.0
        %5295 = vmatpush1.msra.mxu0 %v4963
        %5296 = vmatprep.subr.mxu0 0.0
        %5297 = vmatpush1.msra.mxu0 0.0
        %5298 = vmatprep.subr.mxu0 0.0
        %5299 = vmatpush1.msra.mxu0 0.0
        %5300 = vmatprep.subr.mxu0 0.0
        %5301 = vmatpush1.msra.mxu0 0.0
        %5302 = vmatprep.subr.mxu0 0.0
        %5303 = vmatpush1.msra.mxu0 0.0
        %5304 = vmatprep.subr.mxu0 0.0
        %5305 = vmatpush1.msra.mxu0 0.0
        %5306 = vmatprep.subr.mxu0 0.0
        %5307 = vmatpush1.msra.mxu0 0.0
        %5308 = vmatprep.subr.mxu0 0.0
        %5309 = vmatpush1.msra.mxu0 0.0
        %5310 = vmatprep.subr.mxu0 0.0
        %5311 = vmatpush1.msra.mxu0 0.0
        %5312 = vmatprep.subr.mxu0 0.0
        %5313 = vmatpush1.msra.mxu0 0.0
        %5314 = vmatprep.subr.mxu0 0.0
        %5315 = vmatpush1.msra.mxu0 0.0
        %5316 = vmatprep.subr.mxu0 0.0
        %5317 = vmatpush1.msra.mxu0 0.0
        %5318 = vmatprep.subr.mxu0 0.0
        %5319 = vmatpush1.msra.mxu0 0.0
        %5320 = vmatprep.subr.mxu0 0.0
        %5321 = vmatpush1.msra.mxu0 0.0
        %5322 = vmatprep.subr.mxu0 0.0
        %5323 = vmatpush1.msra.mxu0 0.0
        %5324 = vmatprep.subr.mxu0 0.0
        %5325 = vmatpush1.msra.mxu0 0.0
        %5326 = vmatprep.subr.mxu0 0.0
        %5327 = vmatpush1.msra.mxu0 0.0
        %5328 = vmatprep.subr.mxu0 0.0
        %5329 = vmatpush1.msra.mxu0 0.0
        %5330 = vmatprep.subr.mxu0 0.0
        %5331 = vmatpush1.msra.mxu0 0.0
        %5332 = vmatprep.subr.mxu0 0.0
        %5333 = vmatpush1.msra.mxu0 0.0
        %5334 = vmatprep.subr.mxu0 0.0
        %5335 = vmatpush1.msra.mxu0 0.0
        %5336 = vmatprep.subr.mxu0 0.0
        %5337 = vmatpush1.msra.mxu0 0.0
        %5338 = vmatprep.subr.mxu0 0.0
        %5339 = vmatpush1.msra.mxu0 0.0
        %5340 = vmatprep.subr.mxu0 0.0
        %5341 = vmatpush1.msra.mxu0 0.0
        %5342 = vmatprep.subr.mxu0 0.0
        %5343 = vmatpush1.msra.mxu0 0.0
        %5344 = vmatprep.subr.mxu0 0.0
        %5345 = vmatpush1.msra.mxu0 0.0
        %5346 = vmatprep.subr.mxu0 0.0
        %5347 = vmatpush1.msra.mxu0 0.0
        %5348 = vmatprep.subr.mxu0 0.0
        %5349 = vmatpush1.msra.mxu0 0.0
        %5350 = vmatprep.subr.mxu0 0.0
        %5351 = vmatpush1.msra.mxu0 0.0
        %5352 = vmatprep.subr.mxu0 0.0
        %5353 = vmatpush1.msra.mxu0 0.0
        %5354 = vmatprep.subr.mxu0 0.0
        %5355 = vmatpush1.msra.mxu0 0.0
        %5356 = vmatprep.mubr.f32.mxu0 0.0
        %5357 = vmatmul.mubr.f32.gmra.mrb[0].mxu0 %v5281
        %v5358 = vpop.f32.mrb[0].mxu0
        %v5359 = vadd.f32 0.0, %v5358
        %v5360 = vpop.f32.mrb[0].mxu0
        %5361 = vmatprep.mubr.f32.mxu0 0.0
        %5362 = vmatmul.mubr.f32.gmra.mrb[0].mxu0 %v5284
        %v5363 = vpop.f32.mrb[0].mxu0
        %v5364 = vadd.f32 0.0, %v5363
        %v5365 = vpop.f32.mrb[0].mxu0
        %5366 = vmatprep.mubr.f32.mxu0 0.0
        %5367 = vmatmul.mubr.f32.gmra.mrb[0].mxu0 %v5287
        %v5368 = vpop.f32.mrb[0].mxu0
        %v5369 = vadd.f32 0.0, %v5368
        %v5370 = vpop.f32.mrb[0].mxu0
        %5371 = vmatprep.mubr.f32.mxu0 0.0
        %5372 = vmatmul.mubr.f32.gmra.mrb[0].mxu0 %v5290
        %v5373 = vpop.f32.mrb[0].mxu0
        %v5374 = vadd.f32 0.0, %v5373
        %v5375 = vpop.f32.mrb[0].mxu0
        %5376 = vdwg.mxu0
        %v5377 = vadd.f32 %v5271, %v5359
        %v5378 = vadd.f32 %v5272, %v5364
        %v5379 = vadd.f32 %v5273, %v5369
        %v5380 = vadd.f32 %v5274, %v5374
        %v5381 = vld [vmem:[#allocation2 + $0x130] sm:$0xff]
        %v5382 = vld [vmem:[#allocation2 + $0x138] sm:$0xff]
        %v5383 = vld [vmem:[#allocation2 + $0x140] sm:$0xff]
        %v5384 = vld [vmem:[#allocation2 + $0x148] sm:$0xff]
        %v5385 = vld [vmem:[#allocation2 + $0x2c0] sm:$0xff]
        %v5386 = vld [vmem:[#allocation2 + $0x2c8] sm:$0xff]
        %v5387 = vld [vmem:[#allocation2 + $0x2d0] sm:$0xff]
        %v5388 = vld [vmem:[#allocation2 + $0x2d8] sm:$0xff]
        %v5389 = vld [vmem:[#allocation2 + $0x450] sm:$0xff]
        %v5390 = vld [vmem:[#allocation2 + $0x458] sm:$0xff]
        %v5391 = vld [vmem:[#allocation2 + $0x460] sm:$0xff]
        %v5392 = vld [vmem:[#allocation2 + $0x468] sm:$0xff]
        %v5393 = vld [vmem:[#allocation2 + $0x5e0] sm:$0xff]
        %v5394 = vld [vmem:[#allocation2 + $0x5e8] sm:$0xff]
        %v5395 = vld [vmem:[#allocation2 + $0x5f0] sm:$0xff]
        %v5396 = vld [vmem:[#allocation2 + $0x5f8] sm:$0xff]
        %v5397 = vld [vmem:[#allocation2 + $0x770] sm:$0xff]
        %v5398 = vld [vmem:[#allocation2 + $0x778] sm:$0xff]
        %v5399 = vld [vmem:[#allocation2 + $0x780] sm:$0xff]
        %v5400 = vld [vmem:[#allocation2 + $0x788] sm:$0xff]
        %v5401 = vld [vmem:[#allocation2 + $0x900] sm:$0xff]
        %v5402 = vld [vmem:[#allocation2 + $0x908] sm:$0xff]
        %v5403 = vld [vmem:[#allocation2 + $0x910] sm:$0xff]
        %v5404 = vld [vmem:[#allocation2 + $0x918] sm:$0xff]
        %v5405 = vld [vmem:[#allocation2 + $0xa90] sm:$0xff]
        %v5406 = vld [vmem:[#allocation2 + $0xa98] sm:$0xff]
        %v5407 = vld [vmem:[#allocation2 + $0xaa0] sm:$0xff]
        %v5408 = vld [vmem:[#allocation2 + $0xaa8] sm:$0xff]
        %v5409 = vld [vmem:[#allocation2 + $0xc20] sm:$0xff]
        %v5410 = vld [vmem:[#allocation2 + $0xc28] sm:$0xff]
        %v5411 = vld [vmem:[#allocation2 + $0xc30] sm:$0xff]
        %v5412 = vld [vmem:[#allocation2 + $0xc38] sm:$0xff]
        %v5413 = vld [vmem:[#allocation2 + $0xdb0] sm:$0xff]
        %v5414 = vld [vmem:[#allocation2 + $0xdb8] sm:$0xff]
        %v5415 = vld [vmem:[#allocation2 + $0xdc0] sm:$0xff]
        %v5416 = vld [vmem:[#allocation2 + $0xdc8] sm:$0xff]
        %v5417 = vld [vmem:[#allocation2 + $0xf40] sm:$0xff]
        %v5418 = vld [vmem:[#allocation2 + $0xf48] sm:$0xff]
        %v5419 = vld [vmem:[#allocation2 + $0xf50] sm:$0xff]
        %v5420 = vld [vmem:[#allocation2 + $0xf58] sm:$0xff]
        %v5421 = vld [vmem:[#allocation2 + $0x10d0] sm:$0xff]
        %v5422 = vld [vmem:[#allocation2 + $0x10d8] sm:$0xff]
        %v5423 = vld [vmem:[#allocation2 + $0x10e0] sm:$0xff]
        %v5424 = vld [vmem:[#allocation2 + $0x10e8] sm:$0xff]
        %v5425 = vld [vmem:[#allocation2 + $0x1260] sm:$0xff]
        %v5426 = vld [vmem:[#allocation2 + $0x1268] sm:$0xff]
        %v5427 = vld [vmem:[#allocation2 + $0x1270] sm:$0xff]
        %v5428 = vld [vmem:[#allocation2 + $0x1278] sm:$0xff]
        %v5429 = vld [vmem:[#allocation2 + $0x13f0] sm:$0xff]
        %v5430 = vld [vmem:[#allocation2 + $0x13f8] sm:$0xff]
        %v5431 = vld [vmem:[#allocation2 + $0x1400] sm:$0xff]
        %v5432 = vld [vmem:[#allocation2 + $0x1408] sm:$0xff]
        %v5433 = vld [vmem:[#allocation2 + $0x1580] sm:$0xff]
        %v5434 = vld [vmem:[#allocation2 + $0x1588] sm:$0xff]
        %v5435 = vld [vmem:[#allocation2 + $0x1590] sm:$0xff]
        %v5436 = vld [vmem:[#allocation2 + $0x1598] sm:$0xff]
        %v5437 = vld [vmem:[#allocation2 + $0x1710] sm:$0xff]
        %v5438 = vld [vmem:[#allocation2 + $0x1718] sm:$0xff]
        %v5439 = vld [vmem:[#allocation2 + $0x1720] sm:$0xff]
        %v5440 = vld [vmem:[#allocation2 + $0x1728] sm:$0xff]
        %v5441 = vld [vmem:[#allocation2 + $0x18a0] sm:$0xff]
        %v5442 = vld [vmem:[#allocation2 + $0x18a8] sm:$0xff]
        %v5443 = vld [vmem:[#allocation2 + $0x18b0] sm:$0xff]
        %v5444 = vld [vmem:[#allocation2 + $0x18b8] sm:$0xff]
        %5445 = vmatprep.subr.mxu0 %v5382
        %5446 = vmatpush1.msra.mxu0 %v5381
        %5447 = vmatprep.subr.mxu0 %v5386
        %5448 = vmatpush1.msra.mxu0 %v5385
        %5449 = vmatprep.subr.mxu0 %v5390
        %5450 = vmatpush1.msra.mxu0 %v5389
        %5451 = vmatprep.subr.mxu0 %v5394
        %5452 = vmatpush1.msra.mxu0 %v5393
        %5453 = vmatprep.subr.mxu0 %v5398
        %5454 = vmatpush1.msra.mxu0 %v5397
        %5455 = vmatprep.subr.mxu0 %v5402
        %5456 = vmatpush1.msra.mxu0 %v5401
        %5457 = vmatprep.subr.mxu0 %v5406
        %5458 = vmatpush1.msra.mxu0 %v5405
        %5459 = vmatprep.subr.mxu0 %v5410
        %5460 = vmatpush1.msra.mxu0 %v5409
        %5461 = vmatprep.subr.mxu0 %v5414
        %5462 = vmatpush1.msra.mxu0 %v5413
        %5463 = vmatprep.subr.mxu0 %v5418
        %5464 = vmatpush1.msra.mxu0 %v5417
        %5465 = vmatprep.subr.mxu0 %v5422
        %5466 = vmatpush1.msra.mxu0 %v5421
        %5467 = vmatprep.subr.mxu0 %v5426
        %5468 = vmatpush1.msra.mxu0 %v5425
        %5469 = vmatprep.subr.mxu0 %v5430
        %5470 = vmatpush1.msra.mxu0 %v5429
        %5471 = vmatprep.subr.mxu0 %v5434
        %5472 = vmatpush1.msra.mxu0 %v5433
        %5473 = vmatprep.subr.mxu0 %v5438
        %5474 = vmatpush1.msra.mxu0 %v5437
        %5475 = vmatprep.subr.mxu0 %v5442
        %5476 = vmatpush1.msra.mxu0 %v5441
        %5477 = vmatprep.subr.mxu0 0.0
        %5478 = vmatpush1.msra.mxu0 0.0
        %5479 = vmatprep.subr.mxu0 0.0
        %5480 = vmatpush1.msra.mxu0 0.0
        %5481 = vmatprep.subr.mxu0 0.0
        %5482 = vmatpush1.msra.mxu0 0.0
        %5483 = vmatprep.subr.mxu0 0.0
        %5484 = vmatpush1.msra.mxu0 0.0
        %5485 = vmatprep.subr.mxu0 0.0
        %5486 = vmatpush1.msra.mxu0 0.0
        %5487 = vmatprep.subr.mxu0 0.0
        %5488 = vmatpush1.msra.mxu0 0.0
        %5489 = vmatprep.subr.mxu0 0.0
        %5490 = vmatpush1.msra.mxu0 0.0
        %5491 = vmatprep.subr.mxu0 0.0
        %5492 = vmatpush1.msra.mxu0 0.0
        %5493 = vmatprep.subr.mxu0 0.0
        %5494 = vmatpush1.msra.mxu0 0.0
        %5495 = vmatprep.subr.mxu0 0.0
        %5496 = vmatpush1.msra.mxu0 0.0
        %5497 = vmatprep.subr.mxu0 0.0
        %5498 = vmatpush1.msra.mxu0 0.0
        %5499 = vmatprep.subr.mxu0 0.0
        %5500 = vmatpush1.msra.mxu0 0.0
        %5501 = vmatprep.subr.mxu0 0.0
        %5502 = vmatpush1.msra.mxu0 0.0
        %5503 = vmatprep.subr.mxu0 0.0
        %5504 = vmatpush1.msra.mxu0 0.0
        %5505 = vmatprep.subr.mxu0 0.0
        %5506 = vmatpush1.msra.mxu0 0.0
        %5507 = vmatprep.subr.mxu0 0.0
        %5508 = vmatpush1.msra.mxu0 0.0
        %5509 = vmatprep.mubr.f32.mxu0 0.0
        %5510 = vmatmul.mubr.f32.gmra.mrb[0].mxu0 %v4745
        %v5511 = vpop.f32.mrb[0].mxu0
        %v5512 = vadd.f32 0.0, %v5511
        %v5513 = vpop.f32.mrb[0].mxu0
        %v5514 = vadd.f32 0.0, %v5513
        %5515 = vmatprep.mubr.f32.mxu0 0.0
        %5516 = vmatmul.mubr.f32.gmra.mrb[0].mxu0 %v4746
        %v5517 = vpop.f32.mrb[0].mxu0
        %v5518 = vadd.f32 0.0, %v5517
        %v5519 = vpop.f32.mrb[0].mxu0
        %v5520 = vadd.f32 0.0, %v5519
        %5521 = vdwg.mxu0
        %5522 = vmatprep.subr.mxu0 %v5384
        %5523 = vmatpush1.msra.mxu0 %v5383
        %5524 = vmatprep.subr.mxu0 %v5388
        %5525 = vmatpush1.msra.mxu0 %v5387
        %5526 = vmatprep.subr.mxu0 %v5392
        %5527 = vmatpush1.msra.mxu0 %v5391
        %5528 = vmatprep.subr.mxu0 %v5396
        %5529 = vmatpush1.msra.mxu0 %v5395
        %5530 = vmatprep.subr.mxu0 %v5400
        %5531 = vmatpush1.msra.mxu0 %v5399
        %5532 = vmatprep.subr.mxu0 %v5404
        %5533 = vmatpush1.msra.mxu0 %v5403
        %5534 = vmatprep.subr.mxu0 %v5408
        %5535 = vmatpush1.msra.mxu0 %v5407
        %5536 = vmatprep.subr.mxu0 %v5412
        %5537 = vmatpush1.msra.mxu0 %v5411
        %5538 = vmatprep.subr.mxu0 %v5416
        %5539 = vmatpush1.msra.mxu0 %v5415
        %5540 = vmatprep.subr.mxu0 %v5420
        %5541 = vmatpush1.msra.mxu0 %v5419
        %5542 = vmatprep.subr.mxu0 %v5424
        %5543 = vmatpush1.msra.mxu0 %v5423
        %5544 = vmatprep.subr.mxu0 %v5428
        %5545 = vmatpush1.msra.mxu0 %v5427
        %5546 = vmatprep.subr.mxu0 %v5432
        %5547 = vmatpush1.msra.mxu0 %v5431
        %5548 = vmatprep.subr.mxu0 %v5436
        %5549 = vmatpush1.msra.mxu0 %v5435
        %5550 = vmatprep.subr.mxu0 %v5440
        %5551 = vmatpush1.msra.mxu0 %v5439
        %5552 = vmatprep.subr.mxu0 %v5444
        %5553 = vmatpush1.msra.mxu0 %v5443
        %5554 = vmatprep.subr.mxu0 0.0
        %5555 = vmatpush1.msra.mxu0 0.0
        %5556 = vmatprep.subr.mxu0 0.0
        %5557 = vmatpush1.msra.mxu0 0.0
        %5558 = vmatprep.subr.mxu0 0.0
        %5559 = vmatpush1.msra.mxu0 0.0
        %5560 = vmatprep.subr.mxu0 0.0
        %5561 = vmatpush1.msra.mxu0 0.0
        %5562 = vmatprep.subr.mxu0 0.0
        %5563 = vmatpush1.msra.mxu0 0.0
        %5564 = vmatprep.subr.mxu0 0.0
        %5565 = vmatpush1.msra.mxu0 0.0
        %5566 = vmatprep.subr.mxu0 0.0
        %5567 = vmatpush1.msra.mxu0 0.0
        %5568 = vmatprep.subr.mxu0 0.0
        %5569 = vmatpush1.msra.mxu0 0.0
        %5570 = vmatprep.subr.mxu0 0.0
        %5571 = vmatpush1.msra.mxu0 0.0
        %5572 = vmatprep.subr.mxu0 0.0
        %5573 = vmatpush1.msra.mxu0 0.0
        %5574 = vmatprep.subr.mxu0 0.0
        %5575 = vmatpush1.msra.mxu0 0.0
        %5576 = vmatprep.subr.mxu0 0.0
        %5577 = vmatpush1.msra.mxu0 0.0
        %5578 = vmatprep.subr.mxu0 0.0
        %5579 = vmatpush1.msra.mxu0 0.0
        %5580 = vmatprep.subr.mxu0 0.0
        %5581 = vmatpush1.msra.mxu0 0.0
        %5582 = vmatprep.subr.mxu0 0.0
        %5583 = vmatpush1.msra.mxu0 0.0
        %5584 = vmatprep.subr.mxu0 0.0
        %5585 = vmatpush1.msra.mxu0 0.0
        %5586 = vmatprep.mubr.f32.mxu0 0.0
        %5587 = vmatmul.mubr.f32.gmra.mrb[0].mxu0 %v4745
        %v5588 = vpop.f32.mrb[0].mxu0
        %v5589 = vadd.f32 0.0, %v5588
        %v5590 = vpop.f32.mrb[0].mxu0
        %v5591 = vadd.f32 0.0, %v5590
        %5592 = vmatprep.mubr.f32.mxu0 0.0
        %5593 = vmatmul.mubr.f32.gmra.mrb[0].mxu0 %v4746
        %v5594 = vpop.f32.mrb[0].mxu0
        %v5595 = vadd.f32 0.0, %v5594
        %v5596 = vpop.f32.mrb[0].mxu0
        %v5597 = vadd.f32 0.0, %v5596
        %5598 = vdwg.mxu0
        %s5599 = scalar_lea.vmem %s4, 128
        %v5600 = vld [vmem:[%s5599] sm:$0xff]
        %v5601 = vld [vmem:[%s5599 + $0x8] sm:$0xff]
        %v5602 = vld [vmem:[%s5599 + $0x10] sm:$0xff]
        %v5603 = vld [vmem:[%s5599 + $0x18] sm:$0xff]
        %v5605 = vsel %vm4974, %v5600, 0
        %v5608 = vsel %vm4974, %v5601, 0
        %v5611 = vsel %vm4974, %v5602, 0
        %v5614 = vsel %vm4974, %v5603, 0
        %5616 = vmatprep.subr.mxu0 0.0
        %5617 = vmatpush1.msra.mxu0 %v5512
        %5618 = vmatprep.subr.mxu0 0.0
        %5619 = vmatpush1.msra.mxu0 %v5518
        %5620 = vmatprep.subr.mxu0 0.0
        %5621 = vmatpush1.msra.mxu0 0.0
        %5622 = vmatprep.subr.mxu0 0.0
        %5623 = vmatpush1.msra.mxu0 0.0
        %5624 = vmatprep.subr.mxu0 0.0
        %5625 = vmatpush1.msra.mxu0 0.0
        %5626 = vmatprep.subr.mxu0 0.0
        %5627 = vmatpush1.msra.mxu0 0.0
        %5628 = vmatprep.subr.mxu0 0.0
        %5629 = vmatpush1.msra.mxu0 0.0
        %5630 = vmatprep.subr.mxu0 0.0
        %5631 = vmatpush1.msra.mxu0 0.0
        %5632 = vmatprep.subr.mxu0 0.0
        %5633 = vmatpush1.msra.mxu0 0.0
        %5634 = vmatprep.subr.mxu0 0.0
        %5635 = vmatpush1.msra.mxu0 0.0
        %5636 = vmatprep.subr.mxu0 0.0
        %5637 = vmatpush1.msra.mxu0 0.0
        %5638 = vmatprep.subr.mxu0 0.0
        %5639 = vmatpush1.msra.mxu0 0.0
        %5640 = vmatprep.subr.mxu0 0.0
        %5641 = vmatpush1.msra.mxu0 0.0
        %5642 = vmatprep.subr.mxu0 0.0
        %5643 = vmatpush1.msra.mxu0 0.0
        %5644 = vmatprep.subr.mxu0 0.0
        %5645 = vmatpush1.msra.mxu0 0.0
        %5646 = vmatprep.subr.mxu0 0.0
        %5647 = vmatpush1.msra.mxu0 0.0
        %5648 = vmatprep.subr.mxu0 0.0
        %5649 = vmatpush1.msra.mxu0 0.0
        %5650 = vmatprep.subr.mxu0 0.0
        %5651 = vmatpush1.msra.mxu0 0.0
        %5652 = vmatprep.subr.mxu0 0.0
        %5653 = vmatpush1.msra.mxu0 0.0
        %5654 = vmatprep.subr.mxu0 0.0
        %5655 = vmatpush1.msra.mxu0 0.0
        %5656 = vmatprep.subr.mxu0 0.0
        %5657 = vmatpush1.msra.mxu0 0.0
        %5658 = vmatprep.subr.mxu0 0.0
        %5659 = vmatpush1.msra.mxu0 0.0
        %5660 = vmatprep.subr.mxu0 0.0
        %5661 = vmatpush1.msra.mxu0 0.0
        %5662 = vmatprep.subr.mxu0 0.0
        %5663 = vmatpush1.msra.mxu0 0.0
        %5664 = vmatprep.subr.mxu0 0.0
        %5665 = vmatpush1.msra.mxu0 0.0
        %5666 = vmatprep.subr.mxu0 0.0
        %5667 = vmatpush1.msra.mxu0 0.0
        %5668 = vmatprep.subr.mxu0 0.0
        %5669 = vmatpush1.msra.mxu0 0.0
        %5670 = vmatprep.subr.mxu0 0.0
        %5671 = vmatpush1.msra.mxu0 0.0
        %5672 = vmatprep.subr.mxu0 0.0
        %5673 = vmatpush1.msra.mxu0 0.0
        %5674 = vmatprep.subr.mxu0 0.0
        %5675 = vmatpush1.msra.mxu0 0.0
        %5676 = vmatprep.subr.mxu0 0.0
        %5677 = vmatpush1.msra.mxu0 0.0
        %5678 = vmatprep.subr.mxu0 0.0
        %5679 = vmatpush1.msra.mxu0 0.0
        %5680 = vmatprep.mubr.f32.mxu0 0.0
        %5681 = vmatmul.mubr.f32.gmra.mrb[0].mxu0 %v5605
        %v5682 = vpop.f32.mrb[0].mxu0
        %v5683 = vadd.f32 0.0, %v5682
        %v5684 = vpop.f32.mrb[0].mxu0
        %5685 = vmatprep.mubr.f32.mxu0 0.0
        %5686 = vmatmul.mubr.f32.gmra.mrb[0].mxu0 %v5608
        %v5687 = vpop.f32.mrb[0].mxu0
        %v5688 = vadd.f32 0.0, %v5687
        %v5689 = vpop.f32.mrb[0].mxu0
        %5690 = vmatprep.mubr.f32.mxu0 0.0
        %5691 = vmatmul.mubr.f32.gmra.mrb[0].mxu0 %v5611
        %v5692 = vpop.f32.mrb[0].mxu0
        %v5693 = vadd.f32 0.0, %v5692
        %v5694 = vpop.f32.mrb[0].mxu0
        %5695 = vmatprep.mubr.f32.mxu0 0.0
        %5696 = vmatmul.mubr.f32.gmra.mrb[0].mxu0 %v5614
        %v5697 = vpop.f32.mrb[0].mxu0
        %v5698 = vadd.f32 0.0, %v5697
        %v5699 = vpop.f32.mrb[0].mxu0
        %5700 = vdwg.mxu0
        %v5701 = vadd.f32 %v5377, %v5683
        %v5702 = vadd.f32 %v5378, %v5688
        %v5703 = vadd.f32 %v5379, %v5693
        %v5704 = vadd.f32 %v5380, %v5698
        %s5705 = scalar_lea.vmem %s4, 160
        %v5706 = vld [vmem:[%s5705] sm:$0xff]
        %v5707 = vld [vmem:[%s5705 + $0x8] sm:$0xff]
        %v5708 = vld [vmem:[%s5705 + $0x10] sm:$0xff]
        %v5709 = vld [vmem:[%s5705 + $0x18] sm:$0xff]
        %v5711 = vsel %vm4974, %v5706, 0
        %v5714 = vsel %vm4974, %v5707, 0
        %v5717 = vsel %vm4974, %v5708, 0
        %v5720 = vsel %vm4974, %v5709, 0
        %5722 = vmatprep.subr.mxu0 0.0
        %5723 = vmatpush1.msra.mxu0 %v5514
        %5724 = vmatprep.subr.mxu0 0.0
        %5725 = vmatpush1.msra.mxu0 %v5520
        %5726 = vmatprep.subr.mxu0 0.0
        %5727 = vmatpush1.msra.mxu0 0.0
        %5728 = vmatprep.subr.mxu0 0.0
        %5729 = vmatpush1.msra.mxu0 0.0
        %5730 = vmatprep.subr.mxu0 0.0
        %5731 = vmatpush1.msra.mxu0 0.0
        %5732 = vmatprep.subr.mxu0 0.0
        %5733 = vmatpush1.msra.mxu0 0.0
        %5734 = vmatprep.subr.mxu0 0.0
        %5735 = vmatpush1.msra.mxu0 0.0
        %5736 = vmatprep.subr.mxu0 0.0
        %5737 = vmatpush1.msra.mxu0 0.0
        %5738 = vmatprep.subr.mxu0 0.0
        %5739 = vmatpush1.msra.mxu0 0.0
        %5740 = vmatprep.subr.mxu0 0.0
        %5741 = vmatpush1.msra.mxu0 0.0
        %5742 = vmatprep.subr.mxu0 0.0
        %5743 = vmatpush1.msra.mxu0 0.0
        %5744 = vmatprep.subr.mxu0 0.0
        %5745 = vmatpush1.msra.mxu0 0.0
        %5746 = vmatprep.subr.mxu0 0.0
        %5747 = vmatpush1.msra.mxu0 0.0
        %5748 = vmatprep.subr.mxu0 0.0
        %5749 = vmatpush1.msra.mxu0 0.0
        %5750 = vmatprep.subr.mxu0 0.0
        %5751 = vmatpush1.msra.mxu0 0.0
        %5752 = vmatprep.subr.mxu0 0.0
        %5753 = vmatpush1.msra.mxu0 0.0
        %5754 = vmatprep.subr.mxu0 0.0
        %5755 = vmatpush1.msra.mxu0 0.0
        %5756 = vmatprep.subr.mxu0 0.0
        %5757 = vmatpush1.msra.mxu0 0.0
        %5758 = vmatprep.subr.mxu0 0.0
        %5759 = vmatpush1.msra.mxu0 0.0
        %5760 = vmatprep.subr.mxu0 0.0
        %5761 = vmatpush1.msra.mxu0 0.0
        %5762 = vmatprep.subr.mxu0 0.0
        %5763 = vmatpush1.msra.mxu0 0.0
        %5764 = vmatprep.subr.mxu0 0.0
        %5765 = vmatpush1.msra.mxu0 0.0
        %5766 = vmatprep.subr.mxu0 0.0
        %5767 = vmatpush1.msra.mxu0 0.0
        %5768 = vmatprep.subr.mxu0 0.0
        %5769 = vmatpush1.msra.mxu0 0.0
        %5770 = vmatprep.subr.mxu0 0.0
        %5771 = vmatpush1.msra.mxu0 0.0
        %5772 = vmatprep.subr.mxu0 0.0
        %5773 = vmatpush1.msra.mxu0 0.0
        %5774 = vmatprep.subr.mxu0 0.0
        %5775 = vmatpush1.msra.mxu0 0.0
        %5776 = vmatprep.subr.mxu0 0.0
        %5777 = vmatpush1.msra.mxu0 0.0
        %5778 = vmatprep.subr.mxu0 0.0
        %5779 = vmatpush1.msra.mxu0 0.0
        %5780 = vmatprep.subr.mxu0 0.0
        %5781 = vmatpush1.msra.mxu0 0.0
        %5782 = vmatprep.subr.mxu0 0.0
        %5783 = vmatpush1.msra.mxu0 0.0
        %5784 = vmatprep.subr.mxu0 0.0
        %5785 = vmatpush1.msra.mxu0 0.0
        %5786 = vmatprep.mubr.f32.mxu0 0.0
        %5787 = vmatmul.mubr.f32.gmra.mrb[0].mxu0 %v5711
        %v5788 = vpop.f32.mrb[0].mxu0
        %v5789 = vadd.f32 0.0, %v5788
        %v5790 = vpop.f32.mrb[0].mxu0
        %5791 = vmatprep.mubr.f32.mxu0 0.0
        %5792 = vmatmul.mubr.f32.gmra.mrb[0].mxu0 %v5714
        %v5793 = vpop.f32.mrb[0].mxu0
        %v5794 = vadd.f32 0.0, %v5793
        %v5795 = vpop.f32.mrb[0].mxu0
        %5796 = vmatprep.mubr.f32.mxu0 0.0
        %5797 = vmatmul.mubr.f32.gmra.mrb[0].mxu0 %v5717
        %v5798 = vpop.f32.mrb[0].mxu0
        %v5799 = vadd.f32 0.0, %v5798
        %v5800 = vpop.f32.mrb[0].mxu0
        %5801 = vmatprep.mubr.f32.mxu0 0.0
        %5802 = vmatmul.mubr.f32.gmra.mrb[0].mxu0 %v5720
        %v5803 = vpop.f32.mrb[0].mxu0
        %v5804 = vadd.f32 0.0, %v5803
        %v5805 = vpop.f32.mrb[0].mxu0
        %5806 = vdwg.mxu0
        %v5807 = vadd.f32 %v5701, %v5789
        %v5808 = vadd.f32 %v5702, %v5794
        %v5809 = vadd.f32 %v5703, %v5799
        %v5810 = vadd.f32 %v5704, %v5804
        %s5811 = scalar_lea.vmem %s4, 192
        %v5812 = vld [vmem:[%s5811] sm:$0xff]
        %v5813 = vld [vmem:[%s5811 + $0x8] sm:$0xff]
        %v5814 = vld [vmem:[%s5811 + $0x10] sm:$0xff]
        %v5815 = vld [vmem:[%s5811 + $0x18] sm:$0xff]
        %v5817 = vsel %vm4974, %v5812, 0
        %v5820 = vsel %vm4974, %v5813, 0
        %v5823 = vsel %vm4974, %v5814, 0
        %v5826 = vsel %vm4974, %v5815, 0
        %5828 = vmatprep.subr.mxu0 0.0
        %5829 = vmatpush1.msra.mxu0 %v5589
        %5830 = vmatprep.subr.mxu0 0.0
        %5831 = vmatpush1.msra.mxu0 %v5595
        %5832 = vmatprep.subr.mxu0 0.0
        %5833 = vmatpush1.msra.mxu0 0.0
        %5834 = vmatprep.subr.mxu0 0.0
        %5835 = vmatpush1.msra.mxu0 0.0
        %5836 = vmatprep.subr.mxu0 0.0
        %5837 = vmatpush1.msra.mxu0 0.0
        %5838 = vmatprep.subr.mxu0 0.0
        %5839 = vmatpush1.msra.mxu0 0.0
        %5840 = vmatprep.subr.mxu0 0.0
        %5841 = vmatpush1.msra.mxu0 0.0
        %5842 = vmatprep.subr.mxu0 0.0
        %5843 = vmatpush1.msra.mxu0 0.0
        %5844 = vmatprep.subr.mxu0 0.0
        %5845 = vmatpush1.msra.mxu0 0.0
        %5846 = vmatprep.subr.mxu0 0.0
        %5847 = vmatpush1.msra.mxu0 0.0
        %5848 = vmatprep.subr.mxu0 0.0
        %5849 = vmatpush1.msra.mxu0 0.0
        %5850 = vmatprep.subr.mxu0 0.0
        %5851 = vmatpush1.msra.mxu0 0.0
        %5852 = vmatprep.subr.mxu0 0.0
        %5853 = vmatpush1.msra.mxu0 0.0
        %5854 = vmatprep.subr.mxu0 0.0
        %5855 = vmatpush1.msra.mxu0 0.0
        %5856 = vmatprep.subr.mxu0 0.0
        %5857 = vmatpush1.msra.mxu0 0.0
        %5858 = vmatprep.subr.mxu0 0.0
        %5859 = vmatpush1.msra.mxu0 0.0
        %5860 = vmatprep.subr.mxu0 0.0
        %5861 = vmatpush1.msra.mxu0 0.0
        %5862 = vmatprep.subr.mxu0 0.0
        %5863 = vmatpush1.msra.mxu0 0.0
        %5864 = vmatprep.subr.mxu0 0.0
        %5865 = vmatpush1.msra.mxu0 0.0
        %5866 = vmatprep.subr.mxu0 0.0
        %5867 = vmatpush1.msra.mxu0 0.0
        %5868 = vmatprep.subr.mxu0 0.0
        %5869 = vmatpush1.msra.mxu0 0.0
        %5870 = vmatprep.subr.mxu0 0.0
        %5871 = vmatpush1.msra.mxu0 0.0
        %5872 = vmatprep.subr.mxu0 0.0
        %5873 = vmatpush1.msra.mxu0 0.0
        %5874 = vmatprep.subr.mxu0 0.0
        %5875 = vmatpush1.msra.mxu0 0.0
        %5876 = vmatprep.subr.mxu0 0.0
        %5877 = vmatpush1.msra.mxu0 0.0
        %5878 = vmatprep.subr.mxu0 0.0
        %5879 = vmatpush1.msra.mxu0 0.0
        %5880 = vmatprep.subr.mxu0 0.0
        %5881 = vmatpush1.msra.mxu0 0.0
        %5882 = vmatprep.subr.mxu0 0.0
        %5883 = vmatpush1.msra.mxu0 0.0
        %5884 = vmatprep.subr.mxu0 0.0
        %5885 = vmatpush1.msra.mxu0 0.0
        %5886 = vmatprep.subr.mxu0 0.0
        %5887 = vmatpush1.msra.mxu0 0.0
        %5888 = vmatprep.subr.mxu0 0.0
        %5889 = vmatpush1.msra.mxu0 0.0
        %5890 = vmatprep.subr.mxu0 0.0
        %5891 = vmatpush1.msra.mxu0 0.0
        %5892 = vmatprep.mubr.f32.mxu0 0.0
        %5893 = vmatmul.mubr.f32.gmra.mrb[0].mxu0 %v5817
        %v5894 = vpop.f32.mrb[0].mxu0
        %v5895 = vadd.f32 0.0, %v5894
        %v5896 = vpop.f32.mrb[0].mxu0
        %5897 = vmatprep.mubr.f32.mxu0 0.0
        %5898 = vmatmul.mubr.f32.gmra.mrb[0].mxu0 %v5820
        %v5899 = vpop.f32.mrb[0].mxu0
        %v5900 = vadd.f32 0.0, %v5899
        %v5901 = vpop.f32.mrb[0].mxu0
        %5902 = vmatprep.mubr.f32.mxu0 0.0
        %5903 = vmatmul.mubr.f32.gmra.mrb[0].mxu0 %v5823
        %v5904 = vpop.f32.mrb[0].mxu0
        %v5905 = vadd.f32 0.0, %v5904
        %v5906 = vpop.f32.mrb[0].mxu0
        %5907 = vmatprep.mubr.f32.mxu0 0.0
        %5908 = vmatmul.mubr.f32.gmra.mrb[0].mxu0 %v5826
        %v5909 = vpop.f32.mrb[0].mxu0
        %v5910 = vadd.f32 0.0, %v5909
        %v5911 = vpop.f32.mrb[0].mxu0
        %5912 = vdwg.mxu0
        %v5913 = vadd.f32 %v5807, %v5895
        %v5914 = vadd.f32 %v5808, %v5900
        %v5915 = vadd.f32 %v5809, %v5905
        %v5916 = vadd.f32 %v5810, %v5910
        %s5917 = scalar_lea.vmem %s4, 224
        %v5918 = vld [vmem:[%s5917] sm:$0xff]
        %v5919 = vld [vmem:[%s5917 + $0x8] sm:$0xff]
        %v5920 = vld [vmem:[%s5917 + $0x10] sm:$0xff]
        %v5921 = vld [vmem:[%s5917 + $0x18] sm:$0xff]
        %v5923 = vsel %vm4974, %v5918, 0
        %v5926 = vsel %vm4974, %v5919, 0
        %v5929 = vsel %vm4974, %v5920, 0
        %v5932 = vsel %vm4974, %v5921, 0
        %5934 = vmatprep.subr.mxu0 0.0
        %5935 = vmatpush1.msra.mxu0 %v5591
        %5936 = vmatprep.subr.mxu0 0.0
        %5937 = vmatpush1.msra.mxu0 %v5597
        %5938 = vmatprep.subr.mxu0 0.0
        %5939 = vmatpush1.msra.mxu0 0.0
        %5940 = vmatprep.subr.mxu0 0.0
        %5941 = vmatpush1.msra.mxu0 0.0
        %5942 = vmatprep.subr.mxu0 0.0
        %5943 = vmatpush1.msra.mxu0 0.0
        %5944 = vmatprep.subr.mxu0 0.0
        %5945 = vmatpush1.msra.mxu0 0.0
        %5946 = vmatprep.subr.mxu0 0.0
        %5947 = vmatpush1.msra.mxu0 0.0
        %5948 = vmatprep.subr.mxu0 0.0
        %5949 = vmatpush1.msra.mxu0 0.0
        %5950 = vmatprep.subr.mxu0 0.0
        %5951 = vmatpush1.msra.mxu0 0.0
        %5952 = vmatprep.subr.mxu0 0.0
        %5953 = vmatpush1.msra.mxu0 0.0
        %5954 = vmatprep.subr.mxu0 0.0
        %5955 = vmatpush1.msra.mxu0 0.0
        %5956 = vmatprep.subr.mxu0 0.0
        %5957 = vmatpush1.msra.mxu0 0.0
        %5958 = vmatprep.subr.mxu0 0.0
        %5959 = vmatpush1.msra.mxu0 0.0
        %5960 = vmatprep.subr.mxu0 0.0
        %5961 = vmatpush1.msra.mxu0 0.0
        %5962 = vmatprep.subr.mxu0 0.0
        %5963 = vmatpush1.msra.mxu0 0.0
        %5964 = vmatprep.subr.mxu0 0.0
        %5965 = vmatpush1.msra.mxu0 0.0
        %5966 = vmatprep.subr.mxu0 0.0
        %5967 = vmatpush1.msra.mxu0 0.0
        %5968 = vmatprep.subr.mxu0 0.0
        %5969 = vmatpush1.msra.mxu0 0.0
        %5970 = vmatprep.subr.mxu0 0.0
        %5971 = vmatpush1.msra.mxu0 0.0
        %5972 = vmatprep.subr.mxu0 0.0
        %5973 = vmatpush1.msra.mxu0 0.0
        %5974 = vmatprep.subr.mxu0 0.0
        %5975 = vmatpush1.msra.mxu0 0.0
        %5976 = vmatprep.subr.mxu0 0.0
        %5977 = vmatpush1.msra.mxu0 0.0
        %5978 = vmatprep.subr.mxu0 0.0
        %5979 = vmatpush1.msra.mxu0 0.0
        %5980 = vmatprep.subr.mxu0 0.0
        %5981 = vmatpush1.msra.mxu0 0.0
        %5982 = vmatprep.subr.mxu0 0.0
        %5983 = vmatpush1.msra.mxu0 0.0
        %5984 = vmatprep.subr.mxu0 0.0
        %5985 = vmatpush1.msra.mxu0 0.0
        %5986 = vmatprep.subr.mxu0 0.0
        %5987 = vmatpush1.msra.mxu0 0.0
        %5988 = vmatprep.subr.mxu0 0.0
        %5989 = vmatpush1.msra.mxu0 0.0
        %5990 = vmatprep.subr.mxu0 0.0
        %5991 = vmatpush1.msra.mxu0 0.0
        %5992 = vmatprep.subr.mxu0 0.0
        %5993 = vmatpush1.msra.mxu0 0.0
        %5994 = vmatprep.subr.mxu0 0.0
        %5995 = vmatpush1.msra.mxu0 0.0
        %5996 = vmatprep.subr.mxu0 0.0
        %5997 = vmatpush1.msra.mxu0 0.0
        %5998 = vmatprep.mubr.f32.mxu0 0.0
        %5999 = vmatmul.mubr.f32.gmra.mrb[0].mxu0 %v5923
        %v6000 = vpop.f32.mrb[0].mxu0
        %v6001 = vadd.f32 0.0, %v6000
        %v6002 = vpop.f32.mrb[0].mxu0
        %6003 = vmatprep.mubr.f32.mxu0 0.0
        %6004 = vmatmul.mubr.f32.gmra.mrb[0].mxu0 %v5926
        %v6005 = vpop.f32.mrb[0].mxu0
        %v6006 = vadd.f32 0.0, %v6005
        %v6007 = vpop.f32.mrb[0].mxu0
        %6008 = vmatprep.mubr.f32.mxu0 0.0
        %6009 = vmatmul.mubr.f32.gmra.mrb[0].mxu0 %v5929
        %v6010 = vpop.f32.mrb[0].mxu0
        %v6011 = vadd.f32 0.0, %v6010
        %v6012 = vpop.f32.mrb[0].mxu0
        %6013 = vmatprep.mubr.f32.mxu0 0.0
        %6014 = vmatmul.mubr.f32.gmra.mrb[0].mxu0 %v5932
        %v6015 = vpop.f32.mrb[0].mxu0
        %v6016 = vadd.f32 0.0, %v6015
        %v6017 = vpop.f32.mrb[0].mxu0
        %6018 = vdwg.mxu0
        %v6019 = vadd.f32 %v5913, %v6001
        %v6020 = vadd.f32 %v5914, %v6006
        %v6021 = vadd.f32 %v5915, %v6011
        %v6022 = vadd.f32 %v5916, %v6016
        %v6023 = vld [vmem:[#allocation2 + $0x150] sm:$0xff]
        %v6024 = vld [vmem:[#allocation2 + $0x158] sm:$0xff]
        %v6025 = vld [vmem:[#allocation2 + $0x160] sm:$0xff]
        %v6026 = vld [vmem:[#allocation2 + $0x168] sm:$0xff]
        %v6027 = vld [vmem:[#allocation2 + $0x2e0] sm:$0xff]
        %v6028 = vld [vmem:[#allocation2 + $0x2e8] sm:$0xff]
        %v6029 = vld [vmem:[#allocation2 + $0x2f0] sm:$0xff]
        %v6030 = vld [vmem:[#allocation2 + $0x2f8] sm:$0xff]
        %v6031 = vld [vmem:[#allocation2 + $0x470] sm:$0xff]
        %v6032 = vld [vmem:[#allocation2 + $0x478] sm:$0xff]
        %v6033 = vld [vmem:[#allocation2 + $0x480] sm:$0xff]
        %v6034 = vld [vmem:[#allocation2 + $0x488] sm:$0xff]
        %v6035 = vld [vmem:[#allocation2 + $0x600] sm:$0xff]
        %v6036 = vld [vmem:[#allocation2 + $0x608] sm:$0xff]
        %v6037 = vld [vmem:[#allocation2 + $0x610] sm:$0xff]
        %v6038 = vld [vmem:[#allocation2 + $0x618] sm:$0xff]
        %v6039 = vld [vmem:[#allocation2 + $0x790] sm:$0xff]
        %v6040 = vld [vmem:[#allocation2 + $0x798] sm:$0xff]
        %v6041 = vld [vmem:[#allocation2 + $0x7a0] sm:$0xff]
        %v6042 = vld [vmem:[#allocation2 + $0x7a8] sm:$0xff]
        %v6043 = vld [vmem:[#allocation2 + $0x920] sm:$0xff]
        %v6044 = vld [vmem:[#allocation2 + $0x928] sm:$0xff]
        %v6045 = vld [vmem:[#allocation2 + $0x930] sm:$0xff]
        %v6046 = vld [vmem:[#allocation2 + $0x938] sm:$0xff]
        %v6047 = vld [vmem:[#allocation2 + $0xab0] sm:$0xff]
        %v6048 = vld [vmem:[#allocation2 + $0xab8] sm:$0xff]
        %v6049 = vld [vmem:[#allocation2 + $0xac0] sm:$0xff]
        %v6050 = vld [vmem:[#allocation2 + $0xac8] sm:$0xff]
        %v6051 = vld [vmem:[#allocation2 + $0xc40] sm:$0xff]
        %v6052 = vld [vmem:[#allocation2 + $0xc48] sm:$0xff]
        %v6053 = vld [vmem:[#allocation2 + $0xc50] sm:$0xff]
        %v6054 = vld [vmem:[#allocation2 + $0xc58] sm:$0xff]
        %v6055 = vld [vmem:[#allocation2 + $0xdd0] sm:$0xff]
        %v6056 = vld [vmem:[#allocation2 + $0xdd8] sm:$0xff]
        %v6057 = vld [vmem:[#allocation2 + $0xde0] sm:$0xff]
        %v6058 = vld [vmem:[#allocation2 + $0xde8] sm:$0xff]
        %v6059 = vld [vmem:[#allocation2 + $0xf60] sm:$0xff]
        %v6060 = vld [vmem:[#allocation2 + $0xf68] sm:$0xff]
        %v6061 = vld [vmem:[#allocation2 + $0xf70] sm:$0xff]
        %v6062 = vld [vmem:[#allocation2 + $0xf78] sm:$0xff]
        %v6063 = vld [vmem:[#allocation2 + $0x10f0] sm:$0xff]
        %v6064 = vld [vmem:[#allocation2 + $0x10f8] sm:$0xff]
        %v6065 = vld [vmem:[#allocation2 + $0x1100] sm:$0xff]
        %v6066 = vld [vmem:[#allocation2 + $0x1108] sm:$0xff]
        %v6067 = vld [vmem:[#allocation2 + $0x1280] sm:$0xff]
        %v6068 = vld [vmem:[#allocation2 + $0x1288] sm:$0xff]
        %v6069 = vld [vmem:[#allocation2 + $0x1290] sm:$0xff]
        %v6070 = vld [vmem:[#allocation2 + $0x1298] sm:$0xff]
        %v6071 = vld [vmem:[#allocation2 + $0x1410] sm:$0xff]
        %v6072 = vld [vmem:[#allocation2 + $0x1418] sm:$0xff]
        %v6073 = vld [vmem:[#allocation2 + $0x1420] sm:$0xff]
        %v6074 = vld [vmem:[#allocation2 + $0x1428] sm:$0xff]
        %v6075 = vld [vmem:[#allocation2 + $0x15a0] sm:$0xff]
        %v6076 = vld [vmem:[#allocation2 + $0x15a8] sm:$0xff]
        %v6077 = vld [vmem:[#allocation2 + $0x15b0] sm:$0xff]
        %v6078 = vld [vmem:[#allocation2 + $0x15b8] sm:$0xff]
        %v6079 = vld [vmem:[#allocation2 + $0x1730] sm:$0xff]
        %v6080 = vld [vmem:[#allocation2 + $0x1738] sm:$0xff]
        %v6081 = vld [vmem:[#allocation2 + $0x1740] sm:$0xff]
        %v6082 = vld [vmem:[#allocation2 + $0x1748] sm:$0xff]
        %v6083 = vld [vmem:[#allocation2 + $0x18c0] sm:$0xff]
        %v6084 = vld [vmem:[#allocation2 + $0x18c8] sm:$0xff]
        %v6085 = vld [vmem:[#allocation2 + $0x18d0] sm:$0xff]
        %v6086 = vld [vmem:[#allocation2 + $0x18d8] sm:$0xff]
        %6087 = vmatprep.subr.mxu0 %v6024
        %6088 = vmatpush1.msra.mxu0 %v6023
        %6089 = vmatprep.subr.mxu0 %v6028
        %6090 = vmatpush1.msra.mxu0 %v6027
        %6091 = vmatprep.subr.mxu0 %v6032
        %6092 = vmatpush1.msra.mxu0 %v6031
        %6093 = vmatprep.subr.mxu0 %v6036
        %6094 = vmatpush1.msra.mxu0 %v6035
        %6095 = vmatprep.subr.mxu0 %v6040
        %6096 = vmatpush1.msra.mxu0 %v6039
        %6097 = vmatprep.subr.mxu0 %v6044
        %6098 = vmatpush1.msra.mxu0 %v6043
        %6099 = vmatprep.subr.mxu0 %v6048
        %6100 = vmatpush1.msra.mxu0 %v6047
        %6101 = vmatprep.subr.mxu0 %v6052
        %6102 = vmatpush1.msra.mxu0 %v6051
        %6103 = vmatprep.subr.mxu0 %v6056
        %6104 = vmatpush1.msra.mxu0 %v6055
        %6105 = vmatprep.subr.mxu0 %v6060
        %6106 = vmatpush1.msra.mxu0 %v6059
        %6107 = vmatprep.subr.mxu0 %v6064
        %6108 = vmatpush1.msra.mxu0 %v6063
        %6109 = vmatprep.subr.mxu0 %v6068
        %6110 = vmatpush1.msra.mxu0 %v6067
        %6111 = vmatprep.subr.mxu0 %v6072
        %6112 = vmatpush1.msra.mxu0 %v6071
        %6113 = vmatprep.subr.mxu0 %v6076
        %6114 = vmatpush1.msra.mxu0 %v6075
        %6115 = vmatprep.subr.mxu0 %v6080
        %6116 = vmatpush1.msra.mxu0 %v6079
        %6117 = vmatprep.subr.mxu0 %v6084
        %6118 = vmatpush1.msra.mxu0 %v6083
        %6119 = vmatprep.subr.mxu0 0.0
        %6120 = vmatpush1.msra.mxu0 0.0
        %6121 = vmatprep.subr.mxu0 0.0
        %6122 = vmatpush1.msra.mxu0 0.0
        %6123 = vmatprep.subr.mxu0 0.0
        %6124 = vmatpush1.msra.mxu0 0.0
        %6125 = vmatprep.subr.mxu0 0.0
        %6126 = vmatpush1.msra.mxu0 0.0
        %6127 = vmatprep.subr.mxu0 0.0
        %6128 = vmatpush1.msra.mxu0 0.0
        %6129 = vmatprep.subr.mxu0 0.0
        %6130 = vmatpush1.msra.mxu0 0.0
        %6131 = vmatprep.subr.mxu0 0.0
        %6132 = vmatpush1.msra.mxu0 0.0
        %6133 = vmatprep.subr.mxu0 0.0
        %6134 = vmatpush1.msra.mxu0 0.0
        %6135 = vmatprep.subr.mxu0 0.0
        %6136 = vmatpush1.msra.mxu0 0.0
        %6137 = vmatprep.subr.mxu0 0.0
        %6138 = vmatpush1.msra.mxu0 0.0
        %6139 = vmatprep.subr.mxu0 0.0
        %6140 = vmatpush1.msra.mxu0 0.0
        %6141 = vmatprep.subr.mxu0 0.0
        %6142 = vmatpush1.msra.mxu0 0.0
        %6143 = vmatprep.subr.mxu0 0.0
        %6144 = vmatpush1.msra.mxu0 0.0
        %6145 = vmatprep.subr.mxu0 0.0
        %6146 = vmatpush1.msra.mxu0 0.0
        %6147 = vmatprep.subr.mxu0 0.0
        %6148 = vmatpush1.msra.mxu0 0.0
        %6149 = vmatprep.subr.mxu0 0.0
        %6150 = vmatpush1.msra.mxu0 0.0
        %6151 = vmatprep.mubr.f32.mxu0 0.0
        %6152 = vmatmul.mubr.f32.gmra.mrb[0].mxu0 %v4745
        %v6153 = vpop.f32.mrb[0].mxu0
        %v6154 = vadd.f32 0.0, %v6153
        %v6155 = vpop.f32.mrb[0].mxu0
        %v6156 = vadd.f32 0.0, %v6155
        %6157 = vmatprep.mubr.f32.mxu0 0.0
        %6158 = vmatmul.mubr.f32.gmra.mrb[0].mxu0 %v4746
        %v6159 = vpop.f32.mrb[0].mxu0
        %v6160 = vadd.f32 0.0, %v6159
        %v6161 = vpop.f32.mrb[0].mxu0
        %v6162 = vadd.f32 0.0, %v6161
        %6163 = vdwg.mxu0
        %6164 = vmatprep.subr.mxu0 %v6026
        %6165 = vmatpush1.msra.mxu0 %v6025
        %6166 = vmatprep.subr.mxu0 %v6030
        %6167 = vmatpush1.msra.mxu0 %v6029
        %6168 = vmatprep.subr.mxu0 %v6034
        %6169 = vmatpush1.msra.mxu0 %v6033
        %6170 = vmatprep.subr.mxu0 %v6038
        %6171 = vmatpush1.msra.mxu0 %v6037
        %6172 = vmatprep.subr.mxu0 %v6042
        %6173 = vmatpush1.msra.mxu0 %v6041
        %6174 = vmatprep.subr.mxu0 %v6046
        %6175 = vmatpush1.msra.mxu0 %v6045
        %6176 = vmatprep.subr.mxu0 %v6050
        %6177 = vmatpush1.msra.mxu0 %v6049
        %6178 = vmatprep.subr.mxu0 %v6054
        %6179 = vmatpush1.msra.mxu0 %v6053
        %6180 = vmatprep.subr.mxu0 %v6058
        %6181 = vmatpush1.msra.mxu0 %v6057
        %6182 = vmatprep.subr.mxu0 %v6062
        %6183 = vmatpush1.msra.mxu0 %v6061
        %6184 = vmatprep.subr.mxu0 %v6066
        %6185 = vmatpush1.msra.mxu0 %v6065
        %6186 = vmatprep.subr.mxu0 %v6070
        %6187 = vmatpush1.msra.mxu0 %v6069
        %6188 = vmatprep.subr.mxu0 %v6074
        %6189 = vmatpush1.msra.mxu0 %v6073
        %6190 = vmatprep.subr.mxu0 %v6078
        %6191 = vmatpush1.msra.mxu0 %v6077
        %6192 = vmatprep.subr.mxu0 %v6082
        %6193 = vmatpush1.msra.mxu0 %v6081
        %6194 = vmatprep.subr.mxu0 %v6086
        %6195 = vmatpush1.msra.mxu0 %v6085
        %6196 = vmatprep.subr.mxu0 0.0
        %6197 = vmatpush1.msra.mxu0 0.0
        %6198 = vmatprep.subr.mxu0 0.0
        %6199 = vmatpush1.msra.mxu0 0.0
        %6200 = vmatprep.subr.mxu0 0.0
        %6201 = vmatpush1.msra.mxu0 0.0
        %6202 = vmatprep.subr.mxu0 0.0
        %6203 = vmatpush1.msra.mxu0 0.0
        %6204 = vmatprep.subr.mxu0 0.0
        %6205 = vmatpush1.msra.mxu0 0.0
        %6206 = vmatprep.subr.mxu0 0.0
        %6207 = vmatpush1.msra.mxu0 0.0
        %6208 = vmatprep.subr.mxu0 0.0
        %6209 = vmatpush1.msra.mxu0 0.0
        %6210 = vmatprep.subr.mxu0 0.0
        %6211 = vmatpush1.msra.mxu0 0.0
        %6212 = vmatprep.subr.mxu0 0.0
        %6213 = vmatpush1.msra.mxu0 0.0
        %6214 = vmatprep.subr.mxu0 0.0
        %6215 = vmatpush1.msra.mxu0 0.0
        %6216 = vmatprep.subr.mxu0 0.0
        %6217 = vmatpush1.msra.mxu0 0.0
        %6218 = vmatprep.subr.mxu0 0.0
        %6219 = vmatpush1.msra.mxu0 0.0
        %6220 = vmatprep.subr.mxu0 0.0
        %6221 = vmatpush1.msra.mxu0 0.0
        %6222 = vmatprep.subr.mxu0 0.0
        %6223 = vmatpush1.msra.mxu0 0.0
        %6224 = vmatprep.subr.mxu0 0.0
        %6225 = vmatpush1.msra.mxu0 0.0
        %6226 = vmatprep.subr.mxu0 0.0
        %6227 = vmatpush1.msra.mxu0 0.0
        %6228 = vmatprep.mubr.f32.mxu0 0.0
        %6229 = vmatmul.mubr.f32.gmra.mrb[0].mxu0 %v4745
        %v6230 = vpop.f32.mrb[0].mxu0
        %v6231 = vadd.f32 0.0, %v6230
        %v6232 = vpop.f32.mrb[0].mxu0
        %v6233 = vadd.f32 0.0, %v6232
        %6234 = vmatprep.mubr.f32.mxu0 0.0
        %6235 = vmatmul.mubr.f32.gmra.mrb[0].mxu0 %v4746
        %v6236 = vpop.f32.mrb[0].mxu0
        %v6237 = vadd.f32 0.0, %v6236
        %v6238 = vpop.f32.mrb[0].mxu0
        %v6239 = vadd.f32 0.0, %v6238
        %6240 = vdwg.mxu0
        %s6241 = scalar_lea.vmem %s4, 256
        %v6242 = vld [vmem:[%s6241] sm:$0xff]
        %v6243 = vld [vmem:[%s6241 + $0x8] sm:$0xff]
        %v6244 = vld [vmem:[%s6241 + $0x10] sm:$0xff]
        %v6245 = vld [vmem:[%s6241 + $0x18] sm:$0xff]
        %v6247 = vsel %vm4974, %v6242, 0
        %v6250 = vsel %vm4974, %v6243, 0
        %v6253 = vsel %vm4974, %v6244, 0
        %v6256 = vsel %vm4974, %v6245, 0
        %6258 = vmatprep.subr.mxu0 0.0
        %6259 = vmatpush1.msra.mxu0 %v6154
        %6260 = vmatprep.subr.mxu0 0.0
        %6261 = vmatpush1.msra.mxu0 %v6160
        %6262 = vmatprep.subr.mxu0 0.0
        %6263 = vmatpush1.msra.mxu0 0.0
        %6264 = vmatprep.subr.mxu0 0.0
        %6265 = vmatpush1.msra.mxu0 0.0
        %6266 = vmatprep.subr.mxu0 0.0
        %6267 = vmatpush1.msra.mxu0 0.0
        %6268 = vmatprep.subr.mxu0 0.0
        %6269 = vmatpush1.msra.mxu0 0.0
        %6270 = vmatprep.subr.mxu0 0.0
        %6271 = vmatpush1.msra.mxu0 0.0
        %6272 = vmatprep.subr.mxu0 0.0
        %6273 = vmatpush1.msra.mxu0 0.0
        %6274 = vmatprep.subr.mxu0 0.0
        %6275 = vmatpush1.msra.mxu0 0.0
        %6276 = vmatprep.subr.mxu0 0.0
        %6277 = vmatpush1.msra.mxu0 0.0
        %6278 = vmatprep.subr.mxu0 0.0
        %6279 = vmatpush1.msra.mxu0 0.0
        %6280 = vmatprep.subr.mxu0 0.0
        %6281 = vmatpush1.msra.mxu0 0.0
        %6282 = vmatprep.subr.mxu0 0.0
        %6283 = vmatpush1.msra.mxu0 0.0
        %6284 = vmatprep.subr.mxu0 0.0
        %6285 = vmatpush1.msra.mxu0 0.0
        %6286 = vmatprep.subr.mxu0 0.0
        %6287 = vmatpush1.msra.mxu0 0.0
        %6288 = vmatprep.subr.mxu0 0.0
        %6289 = vmatpush1.msra.mxu0 0.0
        %6290 = vmatprep.subr.mxu0 0.0
        %6291 = vmatpush1.msra.mxu0 0.0
        %6292 = vmatprep.subr.mxu0 0.0
        %6293 = vmatpush1.msra.mxu0 0.0
        %6294 = vmatprep.subr.mxu0 0.0
        %6295 = vmatpush1.msra.mxu0 0.0
        %6296 = vmatprep.subr.mxu0 0.0
        %6297 = vmatpush1.msra.mxu0 0.0
        %6298 = vmatprep.subr.mxu0 0.0
        %6299 = vmatpush1.msra.mxu0 0.0
        %6300 = vmatprep.subr.mxu0 0.0
        %6301 = vmatpush1.msra.mxu0 0.0
        %6302 = vmatprep.subr.mxu0 0.0
        %6303 = vmatpush1.msra.mxu0 0.0
        %6304 = vmatprep.subr.mxu0 0.0
        %6305 = vmatpush1.msra.mxu0 0.0
        %6306 = vmatprep.subr.mxu0 0.0
        %6307 = vmatpush1.msra.mxu0 0.0
        %6308 = vmatprep.subr.mxu0 0.0
        %6309 = vmatpush1.msra.mxu0 0.0
        %6310 = vmatprep.subr.mxu0 0.0
        %6311 = vmatpush1.msra.mxu0 0.0
        %6312 = vmatprep.subr.mxu0 0.0
        %6313 = vmatpush1.msra.mxu0 0.0
        %6314 = vmatprep.subr.mxu0 0.0
        %6315 = vmatpush1.msra.mxu0 0.0
        %6316 = vmatprep.subr.mxu0 0.0
        %6317 = vmatpush1.msra.mxu0 0.0
        %6318 = vmatprep.subr.mxu0 0.0
        %6319 = vmatpush1.msra.mxu0 0.0
        %6320 = vmatprep.subr.mxu0 0.0
        %6321 = vmatpush1.msra.mxu0 0.0
        %6322 = vmatprep.mubr.f32.mxu0 0.0
        %6323 = vmatmul.mubr.f32.gmra.mrb[0].mxu0 %v6247
        %v6324 = vpop.f32.mrb[0].mxu0
        %v6325 = vadd.f32 0.0, %v6324
        %v6326 = vpop.f32.mrb[0].mxu0
        %6327 = vmatprep.mubr.f32.mxu0 0.0
        %6328 = vmatmul.mubr.f32.gmra.mrb[0].mxu0 %v6250
        %v6329 = vpop.f32.mrb[0].mxu0
        %v6330 = vadd.f32 0.0, %v6329
        %v6331 = vpop.f32.mrb[0].mxu0
        %6332 = vmatprep.mubr.f32.mxu0 0.0
        %6333 = vmatmul.mubr.f32.gmra.mrb[0].mxu0 %v6253
        %v6334 = vpop.f32.mrb[0].mxu0
        %v6335 = vadd.f32 0.0, %v6334
        %v6336 = vpop.f32.mrb[0].mxu0
        %6337 = vmatprep.mubr.f32.mxu0 0.0
        %6338 = vmatmul.mubr.f32.gmra.mrb[0].mxu0 %v6256
        %v6339 = vpop.f32.mrb[0].mxu0
        %v6340 = vadd.f32 0.0, %v6339
        %v6341 = vpop.f32.mrb[0].mxu0
        %6342 = vdwg.mxu0
        %v6343 = vadd.f32 %v6019, %v6325
        %v6344 = vadd.f32 %v6020, %v6330
        %v6345 = vadd.f32 %v6021, %v6335
        %v6346 = vadd.f32 %v6022, %v6340
        %s6347 = scalar_lea.vmem %s4, 288
        %v6348 = vld [vmem:[%s6347] sm:$0xff]
        %v6349 = vld [vmem:[%s6347 + $0x8] sm:$0xff]
        %v6350 = vld [vmem:[%s6347 + $0x10] sm:$0xff]
        %v6351 = vld [vmem:[%s6347 + $0x18] sm:$0xff]
        %v6353 = vsel %vm4974, %v6348, 0
        %v6356 = vsel %vm4974, %v6349, 0
        %v6359 = vsel %vm4974, %v6350, 0
        %v6362 = vsel %vm4974, %v6351, 0
        %6364 = vmatprep.subr.mxu0 0.0
        %6365 = vmatpush1.msra.mxu0 %v6156
        %6366 = vmatprep.subr.mxu0 0.0
        %6367 = vmatpush1.msra.mxu0 %v6162
        %6368 = vmatprep.subr.mxu0 0.0
        %6369 = vmatpush1.msra.mxu0 0.0
        %6370 = vmatprep.subr.mxu0 0.0
        %6371 = vmatpush1.msra.mxu0 0.0
        %6372 = vmatprep.subr.mxu0 0.0
        %6373 = vmatpush1.msra.mxu0 0.0
        %6374 = vmatprep.subr.mxu0 0.0
        %6375 = vmatpush1.msra.mxu0 0.0
        %6376 = vmatprep.subr.mxu0 0.0
        %6377 = vmatpush1.msra.mxu0 0.0
        %6378 = vmatprep.subr.mxu0 0.0
        %6379 = vmatpush1.msra.mxu0 0.0
        %6380 = vmatprep.subr.mxu0 0.0
        %6381 = vmatpush1.msra.mxu0 0.0
        %6382 = vmatprep.subr.mxu0 0.0
        %6383 = vmatpush1.msra.mxu0 0.0
        %6384 = vmatprep.subr.mxu0 0.0
        %6385 = vmatpush1.msra.mxu0 0.0
        %6386 = vmatprep.subr.mxu0 0.0
        %6387 = vmatpush1.msra.mxu0 0.0
        %6388 = vmatprep.subr.mxu0 0.0
        %6389 = vmatpush1.msra.mxu0 0.0
        %6390 = vmatprep.subr.mxu0 0.0
        %6391 = vmatpush1.msra.mxu0 0.0
        %6392 = vmatprep.subr.mxu0 0.0
        %6393 = vmatpush1.msra.mxu0 0.0
        %6394 = vmatprep.subr.mxu0 0.0
        %6395 = vmatpush1.msra.mxu0 0.0
        %6396 = vmatprep.subr.mxu0 0.0
        %6397 = vmatpush1.msra.mxu0 0.0
        %6398 = vmatprep.subr.mxu0 0.0
        %6399 = vmatpush1.msra.mxu0 0.0
        %6400 = vmatprep.subr.mxu0 0.0
        %6401 = vmatpush1.msra.mxu0 0.0
        %6402 = vmatprep.subr.mxu0 0.0
        %6403 = vmatpush1.msra.mxu0 0.0
        %6404 = vmatprep.subr.mxu0 0.0
        %6405 = vmatpush1.msra.mxu0 0.0
        %6406 = vmatprep.subr.mxu0 0.0
        %6407 = vmatpush1.msra.mxu0 0.0
        %6408 = vmatprep.subr.mxu0 0.0
        %6409 = vmatpush1.msra.mxu0 0.0
        %6410 = vmatprep.subr.mxu0 0.0
        %6411 = vmatpush1.msra.mxu0 0.0
        %6412 = vmatprep.subr.mxu0 0.0
        %6413 = vmatpush1.msra.mxu0 0.0
        %6414 = vmatprep.subr.mxu0 0.0
        %6415 = vmatpush1.msra.mxu0 0.0
        %6416 = vmatprep.subr.mxu0 0.0
        %6417 = vmatpush1.msra.mxu0 0.0
        %6418 = vmatprep.subr.mxu0 0.0
        %6419 = vmatpush1.msra.mxu0 0.0
        %6420 = vmatprep.subr.mxu0 0.0
        %6421 = vmatpush1.msra.mxu0 0.0
        %6422 = vmatprep.subr.mxu0 0.0
        %6423 = vmatpush1.msra.mxu0 0.0
        %6424 = vmatprep.subr.mxu0 0.0
        %6425 = vmatpush1.msra.mxu0 0.0
        %6426 = vmatprep.subr.mxu0 0.0
        %6427 = vmatpush1.msra.mxu0 0.0
        %6428 = vmatprep.mubr.f32.mxu0 0.0
        %6429 = vmatmul.mubr.f32.gmra.mrb[0].mxu0 %v6353
        %v6430 = vpop.f32.mrb[0].mxu0
        %v6431 = vadd.f32 0.0, %v6430
        %v6432 = vpop.f32.mrb[0].mxu0
        %6433 = vmatprep.mubr.f32.mxu0 0.0
        %6434 = vmatmul.mubr.f32.gmra.mrb[0].mxu0 %v6356
        %v6435 = vpop.f32.mrb[0].mxu0
        %v6436 = vadd.f32 0.0, %v6435
        %v6437 = vpop.f32.mrb[0].mxu0
        %6438 = vmatprep.mubr.f32.mxu0 0.0
        %6439 = vmatmul.mubr.f32.gmra.mrb[0].mxu0 %v6359
        %v6440 = vpop.f32.mrb[0].mxu0
        %v6441 = vadd.f32 0.0, %v6440
        %v6442 = vpop.f32.mrb[0].mxu0
        %6443 = vmatprep.mubr.f32.mxu0 0.0
        %6444 = vmatmul.mubr.f32.gmra.mrb[0].mxu0 %v6362
        %v6445 = vpop.f32.mrb[0].mxu0
        %v6446 = vadd.f32 0.0, %v6445
        %v6447 = vpop.f32.mrb[0].mxu0
        %6448 = vdwg.mxu0
        %v6449 = vadd.f32 %v6343, %v6431
        %v6450 = vadd.f32 %v6344, %v6436
        %v6451 = vadd.f32 %v6345, %v6441
        %v6452 = vadd.f32 %v6346, %v6446
        %s6453 = scalar_lea.vmem %s4, 320
        %v6454 = vld [vmem:[%s6453] sm:$0xff]
        %v6455 = vld [vmem:[%s6453 + $0x8] sm:$0xff]
        %v6456 = vld [vmem:[%s6453 + $0x10] sm:$0xff]
        %v6457 = vld [vmem:[%s6453 + $0x18] sm:$0xff]
        %v6459 = vsel %vm4974, %v6454, 0
        %v6462 = vsel %vm4974, %v6455, 0
        %v6465 = vsel %vm4974, %v6456, 0
        %v6468 = vsel %vm4974, %v6457, 0
        %6470 = vmatprep.subr.mxu0 0.0
        %6471 = vmatpush1.msra.mxu0 %v6231
        %6472 = vmatprep.subr.mxu0 0.0
        %6473 = vmatpush1.msra.mxu0 %v6237
        %6474 = vmatprep.subr.mxu0 0.0
        %6475 = vmatpush1.msra.mxu0 0.0
        %6476 = vmatprep.subr.mxu0 0.0
        %6477 = vmatpush1.msra.mxu0 0.0
        %6478 = vmatprep.subr.mxu0 0.0
        %6479 = vmatpush1.msra.mxu0 0.0
        %6480 = vmatprep.subr.mxu0 0.0
        %6481 = vmatpush1.msra.mxu0 0.0
        %6482 = vmatprep.subr.mxu0 0.0
        %6483 = vmatpush1.msra.mxu0 0.0
        %6484 = vmatprep.subr.mxu0 0.0
        %6485 = vmatpush1.msra.mxu0 0.0
        %6486 = vmatprep.subr.mxu0 0.0
        %6487 = vmatpush1.msra.mxu0 0.0
        %6488 = vmatprep.subr.mxu0 0.0
        %6489 = vmatpush1.msra.mxu0 0.0
        %6490 = vmatprep.subr.mxu0 0.0
        %6491 = vmatpush1.msra.mxu0 0.0
        %6492 = vmatprep.subr.mxu0 0.0
        %6493 = vmatpush1.msra.mxu0 0.0
        %6494 = vmatprep.subr.mxu0 0.0
        %6495 = vmatpush1.msra.mxu0 0.0
        %6496 = vmatprep.subr.mxu0 0.0
        %6497 = vmatpush1.msra.mxu0 0.0
        %6498 = vmatprep.subr.mxu0 0.0
        %6499 = vmatpush1.msra.mxu0 0.0
        %6500 = vmatprep.subr.mxu0 0.0
        %6501 = vmatpush1.msra.mxu0 0.0
        %6502 = vmatprep.subr.mxu0 0.0
        %6503 = vmatpush1.msra.mxu0 0.0
        %6504 = vmatprep.subr.mxu0 0.0
        %6505 = vmatpush1.msra.mxu0 0.0
        %6506 = vmatprep.subr.mxu0 0.0
        %6507 = vmatpush1.msra.mxu0 0.0
        %6508 = vmatprep.subr.mxu0 0.0
        %6509 = vmatpush1.msra.mxu0 0.0
        %6510 = vmatprep.subr.mxu0 0.0
        %6511 = vmatpush1.msra.mxu0 0.0
        %6512 = vmatprep.subr.mxu0 0.0
        %6513 = vmatpush1.msra.mxu0 0.0
        %6514 = vmatprep.subr.mxu0 0.0
        %6515 = vmatpush1.msra.mxu0 0.0
        %6516 = vmatprep.subr.mxu0 0.0
        %6517 = vmatpush1.msra.mxu0 0.0
        %6518 = vmatprep.subr.mxu0 0.0
        %6519 = vmatpush1.msra.mxu0 0.0
        %6520 = vmatprep.subr.mxu0 0.0
        %6521 = vmatpush1.msra.mxu0 0.0
        %6522 = vmatprep.subr.mxu0 0.0
        %6523 = vmatpush1.msra.mxu0 0.0
        %6524 = vmatprep.subr.mxu0 0.0
        %6525 = vmatpush1.msra.mxu0 0.0
        %6526 = vmatprep.subr.mxu0 0.0
        %6527 = vmatpush1.msra.mxu0 0.0
        %6528 = vmatprep.subr.mxu0 0.0
        %6529 = vmatpush1.msra.mxu0 0.0
        %6530 = vmatprep.subr.mxu0 0.0
        %6531 = vmatpush1.msra.mxu0 0.0
        %6532 = vmatprep.subr.mxu0 0.0
        %6533 = vmatpush1.msra.mxu0 0.0
        %6534 = vmatprep.mubr.f32.mxu0 0.0
        %6535 = vmatmul.mubr.f32.gmra.mrb[0].mxu0 %v6459
        %v6536 = vpop.f32.mrb[0].mxu0
        %v6537 = vadd.f32 0.0, %v6536
        %v6538 = vpop.f32.mrb[0].mxu0
        %6539 = vmatprep.mubr.f32.mxu0 0.0
        %6540 = vmatmul.mubr.f32.gmra.mrb[0].mxu0 %v6462
        %v6541 = vpop.f32.mrb[0].mxu0
        %v6542 = vadd.f32 0.0, %v6541
        %v6543 = vpop.f32.mrb[0].mxu0
        %6544 = vmatprep.mubr.f32.mxu0 0.0
        %6545 = vmatmul.mubr.f32.gmra.mrb[0].mxu0 %v6465
        %v6546 = vpop.f32.mrb[0].mxu0
        %v6547 = vadd.f32 0.0, %v6546
        %v6548 = vpop.f32.mrb[0].mxu0
        %6549 = vmatprep.mubr.f32.mxu0 0.0
        %6550 = vmatmul.mubr.f32.gmra.mrb[0].mxu0 %v6468
        %v6551 = vpop.f32.mrb[0].mxu0
        %v6552 = vadd.f32 0.0, %v6551
        %v6553 = vpop.f32.mrb[0].mxu0
        %6554 = vdwg.mxu0
        %v6555 = vadd.f32 %v6449, %v6537
        %v6556 = vadd.f32 %v6450, %v6542
        %v6557 = vadd.f32 %v6451, %v6547
        %v6558 = vadd.f32 %v6452, %v6552
        %s6559 = scalar_lea.vmem %s4, 352
        %v6560 = vld [vmem:[%s6559] sm:$0xff]
        %v6561 = vld [vmem:[%s6559 + $0x8] sm:$0xff]
        %v6562 = vld [vmem:[%s6559 + $0x10] sm:$0xff]
        %v6563 = vld [vmem:[%s6559 + $0x18] sm:$0xff]
        %v6565 = vsel %vm4974, %v6560, 0
        %v6568 = vsel %vm4974, %v6561, 0
        %v6571 = vsel %vm4974, %v6562, 0
        %v6574 = vsel %vm4974, %v6563, 0
        %6576 = vmatprep.subr.mxu0 0.0
        %6577 = vmatpush1.msra.mxu0 %v6233
        %6578 = vmatprep.subr.mxu0 0.0
        %6579 = vmatpush1.msra.mxu0 %v6239
        %6580 = vmatprep.subr.mxu0 0.0
        %6581 = vmatpush1.msra.mxu0 0.0
        %6582 = vmatprep.subr.mxu0 0.0
        %6583 = vmatpush1.msra.mxu0 0.0
        %6584 = vmatprep.subr.mxu0 0.0
        %6585 = vmatpush1.msra.mxu0 0.0
        %6586 = vmatprep.subr.mxu0 0.0
        %6587 = vmatpush1.msra.mxu0 0.0
        %6588 = vmatprep.subr.mxu0 0.0
        %6589 = vmatpush1.msra.mxu0 0.0
        %6590 = vmatprep.subr.mxu0 0.0
        %6591 = vmatpush1.msra.mxu0 0.0
        %6592 = vmatprep.subr.mxu0 0.0
        %6593 = vmatpush1.msra.mxu0 0.0
        %6594 = vmatprep.subr.mxu0 0.0
        %6595 = vmatpush1.msra.mxu0 0.0
        %6596 = vmatprep.subr.mxu0 0.0
        %6597 = vmatpush1.msra.mxu0 0.0
        %6598 = vmatprep.subr.mxu0 0.0
        %6599 = vmatpush1.msra.mxu0 0.0
        %6600 = vmatprep.subr.mxu0 0.0
        %6601 = vmatpush1.msra.mxu0 0.0
        %6602 = vmatprep.subr.mxu0 0.0
        %6603 = vmatpush1.msra.mxu0 0.0
        %6604 = vmatprep.subr.mxu0 0.0
        %6605 = vmatpush1.msra.mxu0 0.0
        %6606 = vmatprep.subr.mxu0 0.0
        %6607 = vmatpush1.msra.mxu0 0.0
        %6608 = vmatprep.subr.mxu0 0.0
        %6609 = vmatpush1.msra.mxu0 0.0
        %6610 = vmatprep.subr.mxu0 0.0
        %6611 = vmatpush1.msra.mxu0 0.0
        %6612 = vmatprep.subr.mxu0 0.0
        %6613 = vmatpush1.msra.mxu0 0.0
        %6614 = vmatprep.subr.mxu0 0.0
        %6615 = vmatpush1.msra.mxu0 0.0
        %6616 = vmatprep.subr.mxu0 0.0
        %6617 = vmatpush1.msra.mxu0 0.0
        %6618 = vmatprep.subr.mxu0 0.0
        %6619 = vmatpush1.msra.mxu0 0.0
        %6620 = vmatprep.subr.mxu0 0.0
        %6621 = vmatpush1.msra.mxu0 0.0
        %6622 = vmatprep.subr.mxu0 0.0
        %6623 = vmatpush1.msra.mxu0 0.0
        %6624 = vmatprep.subr.mxu0 0.0
        %6625 = vmatpush1.msra.mxu0 0.0
        %6626 = vmatprep.subr.mxu0 0.0
        %6627 = vmatpush1.msra.mxu0 0.0
        %6628 = vmatprep.subr.mxu0 0.0
        %6629 = vmatpush1.msra.mxu0 0.0
        %6630 = vmatprep.subr.mxu0 0.0
        %6631 = vmatpush1.msra.mxu0 0.0
        %6632 = vmatprep.subr.mxu0 0.0
        %6633 = vmatpush1.msra.mxu0 0.0
        %6634 = vmatprep.subr.mxu0 0.0
        %6635 = vmatpush1.msra.mxu0 0.0
        %6636 = vmatprep.subr.mxu0 0.0
        %6637 = vmatpush1.msra.mxu0 0.0
        %6638 = vmatprep.subr.mxu0 0.0
        %6639 = vmatpush1.msra.mxu0 0.0
        %6640 = vmatprep.mubr.f32.mxu0 0.0
        %6641 = vmatmul.mubr.f32.gmra.mrb[0].mxu0 %v6565
        %v6642 = vpop.f32.mrb[0].mxu0
        %v6643 = vadd.f32 0.0, %v6642
        %v6644 = vpop.f32.mrb[0].mxu0
        %6645 = vmatprep.mubr.f32.mxu0 0.0
        %6646 = vmatmul.mubr.f32.gmra.mrb[0].mxu0 %v6568
        %v6647 = vpop.f32.mrb[0].mxu0
        %v6648 = vadd.f32 0.0, %v6647
        %v6649 = vpop.f32.mrb[0].mxu0
        %6650 = vmatprep.mubr.f32.mxu0 0.0
        %6651 = vmatmul.mubr.f32.gmra.mrb[0].mxu0 %v6571
        %v6652 = vpop.f32.mrb[0].mxu0
        %v6653 = vadd.f32 0.0, %v6652
        %v6654 = vpop.f32.mrb[0].mxu0
        %6655 = vmatprep.mubr.f32.mxu0 0.0
        %6656 = vmatmul.mubr.f32.gmra.mrb[0].mxu0 %v6574
        %v6657 = vpop.f32.mrb[0].mxu0
        %v6658 = vadd.f32 0.0, %v6657
        %v6659 = vpop.f32.mrb[0].mxu0
        %6660 = vdwg.mxu0
        %v6661 = vadd.f32 %v6555, %v6643
        %v6662 = vadd.f32 %v6556, %v6648
        %v6663 = vadd.f32 %v6557, %v6653
        %v6664 = vadd.f32 %v6558, %v6658
        %v6665 = vld [vmem:[#allocation2 + $0x170] sm:$0xff]
        %v6666 = vld [vmem:[#allocation2 + $0x178] sm:$0xff]
        %v6667 = vld [vmem:[#allocation2 + $0x180] sm:$0xff]
        %v6668 = vld [vmem:[#allocation2 + $0x188] sm:$0xff]
        %v6669 = vld [vmem:[#allocation2 + $0x300] sm:$0xff]
        %v6670 = vld [vmem:[#allocation2 + $0x308] sm:$0xff]
        %v6671 = vld [vmem:[#allocation2 + $0x310] sm:$0xff]
        %v6672 = vld [vmem:[#allocation2 + $0x318] sm:$0xff]
        %v6673 = vld [vmem:[#allocation2 + $0x490] sm:$0xff]
        %v6674 = vld [vmem:[#allocation2 + $0x498] sm:$0xff]
        %v6675 = vld [vmem:[#allocation2 + $0x4a0] sm:$0xff]
        %v6676 = vld [vmem:[#allocation2 + $0x4a8] sm:$0xff]
        %v6677 = vld [vmem:[#allocation2 + $0x620] sm:$0xff]
        %v6678 = vld [vmem:[#allocation2 + $0x628] sm:$0xff]
        %v6679 = vld [vmem:[#allocation2 + $0x630] sm:$0xff]
        %v6680 = vld [vmem:[#allocation2 + $0x638] sm:$0xff]
        %v6681 = vld [vmem:[#allocation2 + $0x7b0] sm:$0xff]
        %v6682 = vld [vmem:[#allocation2 + $0x7b8] sm:$0xff]
        %v6683 = vld [vmem:[#allocation2 + $0x7c0] sm:$0xff]
        %v6684 = vld [vmem:[#allocation2 + $0x7c8] sm:$0xff]
        %v6685 = vld [vmem:[#allocation2 + $0x940] sm:$0xff]
        %v6686 = vld [vmem:[#allocation2 + $0x948] sm:$0xff]
        %v6687 = vld [vmem:[#allocation2 + $0x950] sm:$0xff]
        %v6688 = vld [vmem:[#allocation2 + $0x958] sm:$0xff]
        %v6689 = vld [vmem:[#allocation2 + $0xad0] sm:$0xff]
        %v6690 = vld [vmem:[#allocation2 + $0xad8] sm:$0xff]
        %v6691 = vld [vmem:[#allocation2 + $0xae0] sm:$0xff]
        %v6692 = vld [vmem:[#allocation2 + $0xae8] sm:$0xff]
        %v6693 = vld [vmem:[#allocation2 + $0xc60] sm:$0xff]
        %v6694 = vld [vmem:[#allocation2 + $0xc68] sm:$0xff]
        %v6695 = vld [vmem:[#allocation2 + $0xc70] sm:$0xff]
        %v6696 = vld [vmem:[#allocation2 + $0xc78] sm:$0xff]
        %v6697 = vld [vmem:[#allocation2 + $0xdf0] sm:$0xff]
        %v6698 = vld [vmem:[#allocation2 + $0xdf8] sm:$0xff]
        %v6699 = vld [vmem:[#allocation2 + $0xe00] sm:$0xff]
        %v6700 = vld [vmem:[#allocation2 + $0xe08] sm:$0xff]
        %v6701 = vld [vmem:[#allocation2 + $0xf80] sm:$0xff]
        %v6702 = vld [vmem:[#allocation2 + $0xf88] sm:$0xff]
        %v6703 = vld [vmem:[#allocation2 + $0xf90] sm:$0xff]
        %v6704 = vld [vmem:[#allocation2 + $0xf98] sm:$0xff]
        %v6705 = vld [vmem:[#allocation2 + $0x1110] sm:$0xff]
        %v6706 = vld [vmem:[#allocation2 + $0x1118] sm:$0xff]
        %v6707 = vld [vmem:[#allocation2 + $0x1120] sm:$0xff]
        %v6708 = vld [vmem:[#allocation2 + $0x1128] sm:$0xff]
        %v6709 = vld [vmem:[#allocation2 + $0x12a0] sm:$0xff]
        %v6710 = vld [vmem:[#allocation2 + $0x12a8] sm:$0xff]
        %v6711 = vld [vmem:[#allocation2 + $0x12b0] sm:$0xff]
        %v6712 = vld [vmem:[#allocation2 + $0x12b8] sm:$0xff]
        %v6713 = vld [vmem:[#allocation2 + $0x1430] sm:$0xff]
        %v6714 = vld [vmem:[#allocation2 + $0x1438] sm:$0xff]
        %v6715 = vld [vmem:[#allocation2 + $0x1440] sm:$0xff]
        %v6716 = vld [vmem:[#allocation2 + $0x1448] sm:$0xff]
        %v6717 = vld [vmem:[#allocation2 + $0x15c0] sm:$0xff]
        %v6718 = vld [vmem:[#allocation2 + $0x15c8] sm:$0xff]
        %v6719 = vld [vmem:[#allocation2 + $0x15d0] sm:$0xff]
        %v6720 = vld [vmem:[#allocation2 + $0x15d8] sm:$0xff]
        %v6721 = vld [vmem:[#allocation2 + $0x1750] sm:$0xff]
        %v6722 = vld [vmem:[#allocation2 + $0x1758] sm:$0xff]
        %v6723 = vld [vmem:[#allocation2 + $0x1760] sm:$0xff]
        %v6724 = vld [vmem:[#allocation2 + $0x1768] sm:$0xff]
        %v6725 = vld [vmem:[#allocation2 + $0x18e0] sm:$0xff]
        %v6726 = vld [vmem:[#allocation2 + $0x18e8] sm:$0xff]
        %v6727 = vld [vmem:[#allocation2 + $0x18f0] sm:$0xff]
        %v6728 = vld [vmem:[#allocation2 + $0x18f8] sm:$0xff]
        %6729 = vmatprep.subr.mxu0 %v6666
        %6730 = vmatpush1.msra.mxu0 %v6665
        %6731 = vmatprep.subr.mxu0 %v6670
        %6732 = vmatpush1.msra.mxu0 %v6669
        %6733 = vmatprep.subr.mxu0 %v6674
        %6734 = vmatpush1.msra.mxu0 %v6673
        %6735 = vmatprep.subr.mxu0 %v6678
        %6736 = vmatpush1.msra.mxu0 %v6677
        %6737 = vmatprep.subr.mxu0 %v6682
        %6738 = vmatpush1.msra.mxu0 %v6681
        %6739 = vmatprep.subr.mxu0 %v6686
        %6740 = vmatpush1.msra.mxu0 %v6685
        %6741 = vmatprep.subr.mxu0 %v6690
        %6742 = vmatpush1.msra.mxu0 %v6689
        %6743 = vmatprep.subr.mxu0 %v6694
        %6744 = vmatpush1.msra.mxu0 %v6693
        %6745 = vmatprep.subr.mxu0 %v6698
        %6746 = vmatpush1.msra.mxu0 %v6697
        %6747 = vmatprep.subr.mxu0 %v6702
        %6748 = vmatpush1.msra.mxu0 %v6701
        %6749 = vmatprep.subr.mxu0 %v6706
        %6750 = vmatpush1.msra.mxu0 %v6705
        %6751 = vmatprep.subr.mxu0 %v6710
        %6752 = vmatpush1.msra.mxu0 %v6709
        %6753 = vmatprep.subr.mxu0 %v6714
        %6754 = vmatpush1.msra.mxu0 %v6713
        %6755 = vmatprep.subr.mxu0 %v6718
        %6756 = vmatpush1.msra.mxu0 %v6717
        %6757 = vmatprep.subr.mxu0 %v6722
        %6758 = vmatpush1.msra.mxu0 %v6721
        %6759 = vmatprep.subr.mxu0 %v6726
        %6760 = vmatpush1.msra.mxu0 %v6725
        %6761 = vmatprep.subr.mxu0 0.0
        %6762 = vmatpush1.msra.mxu0 0.0
        %6763 = vmatprep.subr.mxu0 0.0
        %6764 = vmatpush1.msra.mxu0 0.0
        %6765 = vmatprep.subr.mxu0 0.0
        %6766 = vmatpush1.msra.mxu0 0.0
        %6767 = vmatprep.subr.mxu0 0.0
        %6768 = vmatpush1.msra.mxu0 0.0
        %6769 = vmatprep.subr.mxu0 0.0
        %6770 = vmatpush1.msra.mxu0 0.0
        %6771 = vmatprep.subr.mxu0 0.0
        %6772 = vmatpush1.msra.mxu0 0.0
        %6773 = vmatprep.subr.mxu0 0.0
        %6774 = vmatpush1.msra.mxu0 0.0
        %6775 = vmatprep.subr.mxu0 0.0
        %6776 = vmatpush1.msra.mxu0 0.0
        %6777 = vmatprep.subr.mxu0 0.0
        %6778 = vmatpush1.msra.mxu0 0.0
        %6779 = vmatprep.subr.mxu0 0.0
        %6780 = vmatpush1.msra.mxu0 0.0
        %6781 = vmatprep.subr.mxu0 0.0
        %6782 = vmatpush1.msra.mxu0 0.0
        %6783 = vmatprep.subr.mxu0 0.0
        %6784 = vmatpush1.msra.mxu0 0.0
        %6785 = vmatprep.subr.mxu0 0.0
        %6786 = vmatpush1.msra.mxu0 0.0
        %6787 = vmatprep.subr.mxu0 0.0
        %6788 = vmatpush1.msra.mxu0 0.0
        %6789 = vmatprep.subr.mxu0 0.0
        %6790 = vmatpush1.msra.mxu0 0.0
        %6791 = vmatprep.subr.mxu0 0.0
        %6792 = vmatpush1.msra.mxu0 0.0
        %6793 = vmatprep.mubr.f32.mxu0 0.0
        %6794 = vmatmul.mubr.f32.gmra.mrb[0].mxu0 %v4745
        %v6795 = vpop.f32.mrb[0].mxu0
        %v6796 = vadd.f32 0.0, %v6795
        %v6797 = vpop.f32.mrb[0].mxu0
        %v6798 = vadd.f32 0.0, %v6797
        %6799 = vmatprep.mubr.f32.mxu0 0.0
        %6800 = vmatmul.mubr.f32.gmra.mrb[0].mxu0 %v4746
        %v6801 = vpop.f32.mrb[0].mxu0
        %v6802 = vadd.f32 0.0, %v6801
        %v6803 = vpop.f32.mrb[0].mxu0
        %v6804 = vadd.f32 0.0, %v6803
        %6805 = vdwg.mxu0
        %6806 = vmatprep.subr.mxu0 %v6668
        %6807 = vmatpush1.msra.mxu0 %v6667
        %6808 = vmatprep.subr.mxu0 %v6672
        %6809 = vmatpush1.msra.mxu0 %v6671
        %6810 = vmatprep.subr.mxu0 %v6676
        %6811 = vmatpush1.msra.mxu0 %v6675
        %6812 = vmatprep.subr.mxu0 %v6680
        %6813 = vmatpush1.msra.mxu0 %v6679
        %6814 = vmatprep.subr.mxu0 %v6684
        %6815 = vmatpush1.msra.mxu0 %v6683
        %6816 = vmatprep.subr.mxu0 %v6688
        %6817 = vmatpush1.msra.mxu0 %v6687
        %6818 = vmatprep.subr.mxu0 %v6692
        %6819 = vmatpush1.msra.mxu0 %v6691
        %6820 = vmatprep.subr.mxu0 %v6696
        %6821 = vmatpush1.msra.mxu0 %v6695
        %6822 = vmatprep.subr.mxu0 %v6700
        %6823 = vmatpush1.msra.mxu0 %v6699
        %6824 = vmatprep.subr.mxu0 %v6704
        %6825 = vmatpush1.msra.mxu0 %v6703
        %6826 = vmatprep.subr.mxu0 %v6708
        %6827 = vmatpush1.msra.mxu0 %v6707
        %6828 = vmatprep.subr.mxu0 %v6712
        %6829 = vmatpush1.msra.mxu0 %v6711
        %6830 = vmatprep.subr.mxu0 %v6716
        %6831 = vmatpush1.msra.mxu0 %v6715
        %6832 = vmatprep.subr.mxu0 %v6720
        %6833 = vmatpush1.msra.mxu0 %v6719
        %6834 = vmatprep.subr.mxu0 %v6724
        %6835 = vmatpush1.msra.mxu0 %v6723
        %6836 = vmatprep.subr.mxu0 %v6728
        %6837 = vmatpush1.msra.mxu0 %v6727
        %6838 = vmatprep.subr.mxu0 0.0
        %6839 = vmatpush1.msra.mxu0 0.0
        %6840 = vmatprep.subr.mxu0 0.0
        %6841 = vmatpush1.msra.mxu0 0.0
        %6842 = vmatprep.subr.mxu0 0.0
        %6843 = vmatpush1.msra.mxu0 0.0
        %6844 = vmatprep.subr.mxu0 0.0
        %6845 = vmatpush1.msra.mxu0 0.0
        %6846 = vmatprep.subr.mxu0 0.0
        %6847 = vmatpush1.msra.mxu0 0.0
        %6848 = vmatprep.subr.mxu0 0.0
        %6849 = vmatpush1.msra.mxu0 0.0
        %6850 = vmatprep.subr.mxu0 0.0
        %6851 = vmatpush1.msra.mxu0 0.0
        %6852 = vmatprep.subr.mxu0 0.0
        %6853 = vmatpush1.msra.mxu0 0.0
        %6854 = vmatprep.subr.mxu0 0.0
        %6855 = vmatpush1.msra.mxu0 0.0
        %6856 = vmatprep.subr.mxu0 0.0
        %6857 = vmatpush1.msra.mxu0 0.0
        %6858 = vmatprep.subr.mxu0 0.0
        %6859 = vmatpush1.msra.mxu0 0.0
        %6860 = vmatprep.subr.mxu0 0.0
        %6861 = vmatpush1.msra.mxu0 0.0
        %6862 = vmatprep.subr.mxu0 0.0
        %6863 = vmatpush1.msra.mxu0 0.0
        %6864 = vmatprep.subr.mxu0 0.0
        %6865 = vmatpush1.msra.mxu0 0.0
        %6866 = vmatprep.subr.mxu0 0.0
        %6867 = vmatpush1.msra.mxu0 0.0
        %6868 = vmatprep.subr.mxu0 0.0
        %6869 = vmatpush1.msra.mxu0 0.0
        %6870 = vmatprep.mubr.f32.mxu0 0.0
        %6871 = vmatmul.mubr.f32.gmra.mrb[0].mxu0 %v4745
        %v6872 = vpop.f32.mrb[0].mxu0
        %v6873 = vadd.f32 0.0, %v6872
        %v6874 = vpop.f32.mrb[0].mxu0
        %v6875 = vadd.f32 0.0, %v6874
        %6876 = vmatprep.mubr.f32.mxu0 0.0
        %6877 = vmatmul.mubr.f32.gmra.mrb[0].mxu0 %v4746
        %v6878 = vpop.f32.mrb[0].mxu0
        %v6879 = vadd.f32 0.0, %v6878
        %v6880 = vpop.f32.mrb[0].mxu0
        %v6881 = vadd.f32 0.0, %v6880
        %6882 = vdwg.mxu0
        %s6883 = scalar_lea.vmem %s4, 384
        %v6884 = vld [vmem:[%s6883] sm:$0xff]
        %v6885 = vld [vmem:[%s6883 + $0x8] sm:$0xff]
        %v6886 = vld [vmem:[%s6883 + $0x10] sm:$0xff]
        %v6887 = vld [vmem:[%s6883 + $0x18] sm:$0xff]
        %v6889 = vsel %vm4974, %v6884, 0
        %v6892 = vsel %vm4974, %v6885, 0
        %v6895 = vsel %vm4974, %v6886, 0
        %v6898 = vsel %vm4974, %v6887, 0
        %6900 = vmatprep.subr.mxu0 0.0
        %6901 = vmatpush1.msra.mxu0 %v6796
        %6902 = vmatprep.subr.mxu0 0.0
        %6903 = vmatpush1.msra.mxu0 %v6802
        %6904 = vmatprep.subr.mxu0 0.0
        %6905 = vmatpush1.msra.mxu0 0.0
        %6906 = vmatprep.subr.mxu0 0.0
        %6907 = vmatpush1.msra.mxu0 0.0
        %6908 = vmatprep.subr.mxu0 0.0
        %6909 = vmatpush1.msra.mxu0 0.0
        %6910 = vmatprep.subr.mxu0 0.0
        %6911 = vmatpush1.msra.mxu0 0.0
        %6912 = vmatprep.subr.mxu0 0.0
        %6913 = vmatpush1.msra.mxu0 0.0
        %6914 = vmatprep.subr.mxu0 0.0
        %6915 = vmatpush1.msra.mxu0 0.0
        %6916 = vmatprep.subr.mxu0 0.0
        %6917 = vmatpush1.msra.mxu0 0.0
        %6918 = vmatprep.subr.mxu0 0.0
        %6919 = vmatpush1.msra.mxu0 0.0
        %6920 = vmatprep.subr.mxu0 0.0
        %6921 = vmatpush1.msra.mxu0 0.0
        %6922 = vmatprep.subr.mxu0 0.0
        %6923 = vmatpush1.msra.mxu0 0.0
        %6924 = vmatprep.subr.mxu0 0.0
        %6925 = vmatpush1.msra.mxu0 0.0
        %6926 = vmatprep.subr.mxu0 0.0
        %6927 = vmatpush1.msra.mxu0 0.0
        %6928 = vmatprep.subr.mxu0 0.0
        %6929 = vmatpush1.msra.mxu0 0.0
        %6930 = vmatprep.subr.mxu0 0.0
        %6931 = vmatpush1.msra.mxu0 0.0
        %6932 = vmatprep.subr.mxu0 0.0
        %6933 = vmatpush1.msra.mxu0 0.0
        %6934 = vmatprep.subr.mxu0 0.0
        %6935 = vmatpush1.msra.mxu0 0.0
        %6936 = vmatprep.subr.mxu0 0.0
        %6937 = vmatpush1.msra.mxu0 0.0
        %6938 = vmatprep.subr.mxu0 0.0
        %6939 = vmatpush1.msra.mxu0 0.0
        %6940 = vmatprep.subr.mxu0 0.0
        %6941 = vmatpush1.msra.mxu0 0.0
        %6942 = vmatprep.subr.mxu0 0.0
        %6943 = vmatpush1.msra.mxu0 0.0
        %6944 = vmatprep.subr.mxu0 0.0
        %6945 = vmatpush1.msra.mxu0 0.0
        %6946 = vmatprep.subr.mxu0 0.0
        %6947 = vmatpush1.msra.mxu0 0.0
        %6948 = vmatprep.subr.mxu0 0.0
        %6949 = vmatpush1.msra.mxu0 0.0
        %6950 = vmatprep.subr.mxu0 0.0
        %6951 = vmatpush1.msra.mxu0 0.0
        %6952 = vmatprep.subr.mxu0 0.0
        %6953 = vmatpush1.msra.mxu0 0.0
        %6954 = vmatprep.subr.mxu0 0.0
        %6955 = vmatpush1.msra.mxu0 0.0
        %6956 = vmatprep.subr.mxu0 0.0
        %6957 = vmatpush1.msra.mxu0 0.0
        %6958 = vmatprep.subr.mxu0 0.0
        %6959 = vmatpush1.msra.mxu0 0.0
        %6960 = vmatprep.subr.mxu0 0.0
        %6961 = vmatpush1.msra.mxu0 0.0
        %6962 = vmatprep.subr.mxu0 0.0
        %6963 = vmatpush1.msra.mxu0 0.0
        %6964 = vmatprep.mubr.f32.mxu0 0.0
        %6965 = vmatmul.mubr.f32.gmra.mrb[0].mxu0 %v6889
        %v6966 = vpop.f32.mrb[0].mxu0
        %v6967 = vadd.f32 0.0, %v6966
        %v6968 = vpop.f32.mrb[0].mxu0
        %6969 = vmatprep.mubr.f32.mxu0 0.0
        %6970 = vmatmul.mubr.f32.gmra.mrb[0].mxu0 %v6892
        %v6971 = vpop.f32.mrb[0].mxu0
        %v6972 = vadd.f32 0.0, %v6971
        %v6973 = vpop.f32.mrb[0].mxu0
        %6974 = vmatprep.mubr.f32.mxu0 0.0
        %6975 = vmatmul.mubr.f32.gmra.mrb[0].mxu0 %v6895
        %v6976 = vpop.f32.mrb[0].mxu0
        %v6977 = vadd.f32 0.0, %v6976
        %v6978 = vpop.f32.mrb[0].mxu0
        %6979 = vmatprep.mubr.f32.mxu0 0.0
        %6980 = vmatmul.mubr.f32.gmra.mrb[0].mxu0 %v6898
        %v6981 = vpop.f32.mrb[0].mxu0
        %v6982 = vadd.f32 0.0, %v6981
        %v6983 = vpop.f32.mrb[0].mxu0
        %6984 = vdwg.mxu0
        %v6985 = vadd.f32 %v6661, %v6967
        %v6986 = vadd.f32 %v6662, %v6972
        %v6987 = vadd.f32 %v6663, %v6977
        %v6988 = vadd.f32 %v6664, %v6982
        %s6989 = scalar_lea.vmem %s4, 416
        %v6990 = vld [vmem:[%s6989] sm:$0xff]
        %v6991 = vld [vmem:[%s6989 + $0x8] sm:$0xff]
        %v6992 = vld [vmem:[%s6989 + $0x10] sm:$0xff]
        %v6993 = vld [vmem:[%s6989 + $0x18] sm:$0xff]
        %v6995 = vsel %vm4974, %v6990, 0
        %v6998 = vsel %vm4974, %v6991, 0
        %v7001 = vsel %vm4974, %v6992, 0
        %v7004 = vsel %vm4974, %v6993, 0
        %7006 = vmatprep.subr.mxu0 0.0
        %7007 = vmatpush1.msra.mxu0 %v6798
        %7008 = vmatprep.subr.mxu0 0.0
        %7009 = vmatpush1.msra.mxu0 %v6804
        %7010 = vmatprep.subr.mxu0 0.0
        %7011 = vmatpush1.msra.mxu0 0.0
        %7012 = vmatprep.subr.mxu0 0.0
        %7013 = vmatpush1.msra.mxu0 0.0
        %7014 = vmatprep.subr.mxu0 0.0
        %7015 = vmatpush1.msra.mxu0 0.0
        %7016 = vmatprep.subr.mxu0 0.0
        %7017 = vmatpush1.msra.mxu0 0.0
        %7018 = vmatprep.subr.mxu0 0.0
        %7019 = vmatpush1.msra.mxu0 0.0
        %7020 = vmatprep.subr.mxu0 0.0
        %7021 = vmatpush1.msra.mxu0 0.0
        %7022 = vmatprep.subr.mxu0 0.0
        %7023 = vmatpush1.msra.mxu0 0.0
        %7024 = vmatprep.subr.mxu0 0.0
        %7025 = vmatpush1.msra.mxu0 0.0
        %7026 = vmatprep.subr.mxu0 0.0
        %7027 = vmatpush1.msra.mxu0 0.0
        %7028 = vmatprep.subr.mxu0 0.0
        %7029 = vmatpush1.msra.mxu0 0.0
        %7030 = vmatprep.subr.mxu0 0.0
        %7031 = vmatpush1.msra.mxu0 0.0
        %7032 = vmatprep.subr.mxu0 0.0
        %7033 = vmatpush1.msra.mxu0 0.0
        %7034 = vmatprep.subr.mxu0 0.0
        %7035 = vmatpush1.msra.mxu0 0.0
        %7036 = vmatprep.subr.mxu0 0.0
        %7037 = vmatpush1.msra.mxu0 0.0
        %7038 = vmatprep.subr.mxu0 0.0
        %7039 = vmatpush1.msra.mxu0 0.0
        %7040 = vmatprep.subr.mxu0 0.0
        %7041 = vmatpush1.msra.mxu0 0.0
        %7042 = vmatprep.subr.mxu0 0.0
        %7043 = vmatpush1.msra.mxu0 0.0
        %7044 = vmatprep.subr.mxu0 0.0
        %7045 = vmatpush1.msra.mxu0 0.0
        %7046 = vmatprep.subr.mxu0 0.0
        %7047 = vmatpush1.msra.mxu0 0.0
        %7048 = vmatprep.subr.mxu0 0.0
        %7049 = vmatpush1.msra.mxu0 0.0
        %7050 = vmatprep.subr.mxu0 0.0
        %7051 = vmatpush1.msra.mxu0 0.0
        %7052 = vmatprep.subr.mxu0 0.0
        %7053 = vmatpush1.msra.mxu0 0.0
        %7054 = vmatprep.subr.mxu0 0.0
        %7055 = vmatpush1.msra.mxu0 0.0
        %7056 = vmatprep.subr.mxu0 0.0
        %7057 = vmatpush1.msra.mxu0 0.0
        %7058 = vmatprep.subr.mxu0 0.0
        %7059 = vmatpush1.msra.mxu0 0.0
        %7060 = vmatprep.subr.mxu0 0.0
        %7061 = vmatpush1.msra.mxu0 0.0
        %7062 = vmatprep.subr.mxu0 0.0
        %7063 = vmatpush1.msra.mxu0 0.0
        %7064 = vmatprep.subr.mxu0 0.0
        %7065 = vmatpush1.msra.mxu0 0.0
        %7066 = vmatprep.subr.mxu0 0.0
        %7067 = vmatpush1.msra.mxu0 0.0
        %7068 = vmatprep.subr.mxu0 0.0
        %7069 = vmatpush1.msra.mxu0 0.0
        %7070 = vmatprep.mubr.f32.mxu0 0.0
        %7071 = vmatmul.mubr.f32.gmra.mrb[0].mxu0 %v6995
        %v7072 = vpop.f32.mrb[0].mxu0
        %v7073 = vadd.f32 0.0, %v7072
        %v7074 = vpop.f32.mrb[0].mxu0
        %7075 = vmatprep.mubr.f32.mxu0 0.0
        %7076 = vmatmul.mubr.f32.gmra.mrb[0].mxu0 %v6998
        %v7077 = vpop.f32.mrb[0].mxu0
        %v7078 = vadd.f32 0.0, %v7077
        %v7079 = vpop.f32.mrb[0].mxu0
        %7080 = vmatprep.mubr.f32.mxu0 0.0
        %7081 = vmatmul.mubr.f32.gmra.mrb[0].mxu0 %v7001
        %v7082 = vpop.f32.mrb[0].mxu0
        %v7083 = vadd.f32 0.0, %v7082
        %v7084 = vpop.f32.mrb[0].mxu0
        %7085 = vmatprep.mubr.f32.mxu0 0.0
        %7086 = vmatmul.mubr.f32.gmra.mrb[0].mxu0 %v7004
        %v7087 = vpop.f32.mrb[0].mxu0
        %v7088 = vadd.f32 0.0, %v7087
        %v7089 = vpop.f32.mrb[0].mxu0
        %7090 = vdwg.mxu0
        %v7091 = vadd.f32 %v6985, %v7073
        %v7092 = vadd.f32 %v6986, %v7078
        %v7093 = vadd.f32 %v6987, %v7083
        %v7094 = vadd.f32 %v6988, %v7088
        %s7095 = scalar_lea.vmem %s4, 448
        %v7096 = vld [vmem:[%s7095] sm:$0xff]
        %v7097 = vld [vmem:[%s7095 + $0x8] sm:$0xff]
        %v7098 = vld [vmem:[%s7095 + $0x10] sm:$0xff]
        %v7099 = vld [vmem:[%s7095 + $0x18] sm:$0xff]
        %v7101 = vsel %vm4974, %v7096, 0
        %v7104 = vsel %vm4974, %v7097, 0
        %v7107 = vsel %vm4974, %v7098, 0
        %v7110 = vsel %vm4974, %v7099, 0
        %7112 = vmatprep.subr.mxu0 0.0
        %7113 = vmatpush1.msra.mxu0 %v6873
        %7114 = vmatprep.subr.mxu0 0.0
        %7115 = vmatpush1.msra.mxu0 %v6879
        %7116 = vmatprep.subr.mxu0 0.0
        %7117 = vmatpush1.msra.mxu0 0.0
        %7118 = vmatprep.subr.mxu0 0.0
        %7119 = vmatpush1.msra.mxu0 0.0
        %7120 = vmatprep.subr.mxu0 0.0
        %7121 = vmatpush1.msra.mxu0 0.0
        %7122 = vmatprep.subr.mxu0 0.0
        %7123 = vmatpush1.msra.mxu0 0.0
        %7124 = vmatprep.subr.mxu0 0.0
        %7125 = vmatpush1.msra.mxu0 0.0
        %7126 = vmatprep.subr.mxu0 0.0
        %7127 = vmatpush1.msra.mxu0 0.0
        %7128 = vmatprep.subr.mxu0 0.0
        %7129 = vmatpush1.msra.mxu0 0.0
        %7130 = vmatprep.subr.mxu0 0.0
        %7131 = vmatpush1.msra.mxu0 0.0
        %7132 = vmatprep.subr.mxu0 0.0
        %7133 = vmatpush1.msra.mxu0 0.0
        %7134 = vmatprep.subr.mxu0 0.0
        %7135 = vmatpush1.msra.mxu0 0.0
        %7136 = vmatprep.subr.mxu0 0.0
        %7137 = vmatpush1.msra.mxu0 0.0
        %7138 = vmatprep.subr.mxu0 0.0
        %7139 = vmatpush1.msra.mxu0 0.0
        %7140 = vmatprep.subr.mxu0 0.0
        %7141 = vmatpush1.msra.mxu0 0.0
        %7142 = vmatprep.subr.mxu0 0.0
        %7143 = vmatpush1.msra.mxu0 0.0
        %7144 = vmatprep.subr.mxu0 0.0
        %7145 = vmatpush1.msra.mxu0 0.0
        %7146 = vmatprep.subr.mxu0 0.0
        %7147 = vmatpush1.msra.mxu0 0.0
        %7148 = vmatprep.subr.mxu0 0.0
        %7149 = vmatpush1.msra.mxu0 0.0
        %7150 = vmatprep.subr.mxu0 0.0
        %7151 = vmatpush1.msra.mxu0 0.0
        %7152 = vmatprep.subr.mxu0 0.0
        %7153 = vmatpush1.msra.mxu0 0.0
        %7154 = vmatprep.subr.mxu0 0.0
        %7155 = vmatpush1.msra.mxu0 0.0
        %7156 = vmatprep.subr.mxu0 0.0
        %7157 = vmatpush1.msra.mxu0 0.0
        %7158 = vmatprep.subr.mxu0 0.0
        %7159 = vmatpush1.msra.mxu0 0.0
        %7160 = vmatprep.subr.mxu0 0.0
        %7161 = vmatpush1.msra.mxu0 0.0
        %7162 = vmatprep.subr.mxu0 0.0
        %7163 = vmatpush1.msra.mxu0 0.0
        %7164 = vmatprep.subr.mxu0 0.0
        %7165 = vmatpush1.msra.mxu0 0.0
        %7166 = vmatprep.subr.mxu0 0.0
        %7167 = vmatpush1.msra.mxu0 0.0
        %7168 = vmatprep.subr.mxu0 0.0
        %7169 = vmatpush1.msra.mxu0 0.0
        %7170 = vmatprep.subr.mxu0 0.0
        %7171 = vmatpush1.msra.mxu0 0.0
        %7172 = vmatprep.subr.mxu0 0.0
        %7173 = vmatpush1.msra.mxu0 0.0
        %7174 = vmatprep.subr.mxu0 0.0
        %7175 = vmatpush1.msra.mxu0 0.0
        %7176 = vmatprep.mubr.f32.mxu0 0.0
        %7177 = vmatmul.mubr.f32.gmra.mrb[0].mxu0 %v7101
        %v7178 = vpop.f32.mrb[0].mxu0
        %v7179 = vadd.f32 0.0, %v7178
        %v7180 = vpop.f32.mrb[0].mxu0
        %7181 = vmatprep.mubr.f32.mxu0 0.0
        %7182 = vmatmul.mubr.f32.gmra.mrb[0].mxu0 %v7104
        %v7183 = vpop.f32.mrb[0].mxu0
        %v7184 = vadd.f32 0.0, %v7183
        %v7185 = vpop.f32.mrb[0].mxu0
        %7186 = vmatprep.mubr.f32.mxu0 0.0
        %7187 = vmatmul.mubr.f32.gmra.mrb[0].mxu0 %v7107
        %v7188 = vpop.f32.mrb[0].mxu0
        %v7189 = vadd.f32 0.0, %v7188
        %v7190 = vpop.f32.mrb[0].mxu0
        %7191 = vmatprep.mubr.f32.mxu0 0.0
        %7192 = vmatmul.mubr.f32.gmra.mrb[0].mxu0 %v7110
        %v7193 = vpop.f32.mrb[0].mxu0
        %v7194 = vadd.f32 0.0, %v7193
        %v7195 = vpop.f32.mrb[0].mxu0
        %7196 = vdwg.mxu0
        %v7197 = vadd.f32 %v7091, %v7179
        %v7198 = vadd.f32 %v7092, %v7184
        %v7199 = vadd.f32 %v7093, %v7189
        %v7200 = vadd.f32 %v7094, %v7194
        %s7201 = scalar_lea.vmem %s4, 480
        %v7202 = vld [vmem:[%s7201] sm:$0xff]
        %v7203 = vld [vmem:[%s7201 + $0x8] sm:$0xff]
        %v7204 = vld [vmem:[%s7201 + $0x10] sm:$0xff]
        %v7205 = vld [vmem:[%s7201 + $0x18] sm:$0xff]
        %v7207 = vsel %vm4974, %v7202, 0
        %v7210 = vsel %vm4974, %v7203, 0
        %v7213 = vsel %vm4974, %v7204, 0
        %v7216 = vsel %vm4974, %v7205, 0
        %7218 = vmatprep.subr.mxu0 0.0
        %7219 = vmatpush1.msra.mxu0 %v6875
        %7220 = vmatprep.subr.mxu0 0.0
        %7221 = vmatpush1.msra.mxu0 %v6881
        %7222 = vmatprep.subr.mxu0 0.0
        %7223 = vmatpush1.msra.mxu0 0.0
        %7224 = vmatprep.subr.mxu0 0.0
        %7225 = vmatpush1.msra.mxu0 0.0
        %7226 = vmatprep.subr.mxu0 0.0
        %7227 = vmatpush1.msra.mxu0 0.0
        %7228 = vmatprep.subr.mxu0 0.0
        %7229 = vmatpush1.msra.mxu0 0.0
        %7230 = vmatprep.subr.mxu0 0.0
        %7231 = vmatpush1.msra.mxu0 0.0
        %7232 = vmatprep.subr.mxu0 0.0
        %7233 = vmatpush1.msra.mxu0 0.0
        %7234 = vmatprep.subr.mxu0 0.0
        %7235 = vmatpush1.msra.mxu0 0.0
        %7236 = vmatprep.subr.mxu0 0.0
        %7237 = vmatpush1.msra.mxu0 0.0
        %7238 = vmatprep.subr.mxu0 0.0
        %7239 = vmatpush1.msra.mxu0 0.0
        %7240 = vmatprep.subr.mxu0 0.0
        %7241 = vmatpush1.msra.mxu0 0.0
        %7242 = vmatprep.subr.mxu0 0.0
        %7243 = vmatpush1.msra.mxu0 0.0
        %7244 = vmatprep.subr.mxu0 0.0
        %7245 = vmatpush1.msra.mxu0 0.0
        %7246 = vmatprep.subr.mxu0 0.0
        %7247 = vmatpush1.msra.mxu0 0.0
        %7248 = vmatprep.subr.mxu0 0.0
        %7249 = vmatpush1.msra.mxu0 0.0
        %7250 = vmatprep.subr.mxu0 0.0
        %7251 = vmatpush1.msra.mxu0 0.0
        %7252 = vmatprep.subr.mxu0 0.0
        %7253 = vmatpush1.msra.mxu0 0.0
        %7254 = vmatprep.subr.mxu0 0.0
        %7255 = vmatpush1.msra.mxu0 0.0
        %7256 = vmatprep.subr.mxu0 0.0
        %7257 = vmatpush1.msra.mxu0 0.0
        %7258 = vmatprep.subr.mxu0 0.0
        %7259 = vmatpush1.msra.mxu0 0.0
        %7260 = vmatprep.subr.mxu0 0.0
        %7261 = vmatpush1.msra.mxu0 0.0
        %7262 = vmatprep.subr.mxu0 0.0
        %7263 = vmatpush1.msra.mxu0 0.0
        %7264 = vmatprep.subr.mxu0 0.0
        %7265 = vmatpush1.msra.mxu0 0.0
        %7266 = vmatprep.subr.mxu0 0.0
        %7267 = vmatpush1.msra.mxu0 0.0
        %7268 = vmatprep.subr.mxu0 0.0
        %7269 = vmatpush1.msra.mxu0 0.0
        %7270 = vmatprep.subr.mxu0 0.0
        %7271 = vmatpush1.msra.mxu0 0.0
        %7272 = vmatprep.subr.mxu0 0.0
        %7273 = vmatpush1.msra.mxu0 0.0
        %7274 = vmatprep.subr.mxu0 0.0
        %7275 = vmatpush1.msra.mxu0 0.0
        %7276 = vmatprep.subr.mxu0 0.0
        %7277 = vmatpush1.msra.mxu0 0.0
        %7278 = vmatprep.subr.mxu0 0.0
        %7279 = vmatpush1.msra.mxu0 0.0
        %7280 = vmatprep.subr.mxu0 0.0
        %7281 = vmatpush1.msra.mxu0 0.0
        %7282 = vmatprep.mubr.f32.mxu0 0.0
        %7283 = vmatmul.mubr.f32.gmra.mrb[0].mxu0 %v7207
        %v7284 = vpop.f32.mrb[0].mxu0
        %v7285 = vadd.f32 0.0, %v7284
        %v7286 = vpop.f32.mrb[0].mxu0
        %7287 = vmatprep.mubr.f32.mxu0 0.0
        %7288 = vmatmul.mubr.f32.gmra.mrb[0].mxu0 %v7210
        %v7289 = vpop.f32.mrb[0].mxu0
        %v7290 = vadd.f32 0.0, %v7289
        %v7291 = vpop.f32.mrb[0].mxu0
        %7292 = vmatprep.mubr.f32.mxu0 0.0
        %7293 = vmatmul.mubr.f32.gmra.mrb[0].mxu0 %v7213
        %v7294 = vpop.f32.mrb[0].mxu0
        %v7295 = vadd.f32 0.0, %v7294
        %v7296 = vpop.f32.mrb[0].mxu0
        %7297 = vmatprep.mubr.f32.mxu0 0.0
        %7298 = vmatmul.mubr.f32.gmra.mrb[0].mxu0 %v7216
        %v7299 = vpop.f32.mrb[0].mxu0
        %v7300 = vadd.f32 0.0, %v7299
        %v7301 = vpop.f32.mrb[0].mxu0
        %7302 = vdwg.mxu0
        %v7303 = vadd.f32 %v7197, %v7285
        %v7304 = vadd.f32 %v7198, %v7290
        %v7305 = vadd.f32 %v7199, %v7295
        %v7306 = vadd.f32 %v7200, %v7300
        %7307 = vadd.xlane.f32.xlu0 %v7303
        %v7308 = vpop.xlane.xlu0 %7307
        %7309 = vadd.xlane.f32.xlu0 %v7304
        %v7310 = vpop.xlane.xlu0 %7309
        %7311 = vadd.xlane.f32.xlu0 %v7305
        %v7312 = vpop.xlane.xlu0 %7311
        %7313 = vadd.xlane.f32.xlu0 %v7306
        %v7314 = vpop.xlane.xlu0 %7313
        %v7315 = vmul.f32 %v7308, 0.0625
        %v7316 = vmul.f32 %v7310, 0.0625
        %v7317 = vmul.f32 %v7312, 0.0625
        %v7318 = vmul.f32 %v7314, 0.0625
        %v7319 = vmul.f32 %v7303, %v7303
        %v7320 = vmul.f32 %v7304, %v7304
        %v7321 = vmul.f32 %v7305, %v7305
        %v7322 = vmul.f32 %v7306, %v7306
        %7323 = vadd.xlane.f32.xlu0 %v7319
        %v7324 = vpop.xlane.xlu0 %7323
        %7325 = vadd.xlane.f32.xlu0 %v7320
        %v7326 = vpop.xlane.xlu0 %7325
        %7327 = vadd.xlane.f32.xlu0 %v7321
        %v7328 = vpop.xlane.xlu0 %7327
        %7329 = vadd.xlane.f32.xlu0 %v7322
        %v7330 = vpop.xlane.xlu0 %7329
        %v7331 = vmul.f32 %v7324, 0.0625
        %v7332 = vmul.f32 %v7326, 0.0625
        %v7333 = vmul.f32 %v7328, 0.0625
        %v7334 = vmul.f32 %v7330, 0.0625
        %v7335 = vmul.f32 %v7315, %v7315
        %v7336 = vmul.f32 %v7316, %v7316
        %v7337 = vmul.f32 %v7317, %v7317
        %v7338 = vmul.f32 %v7318, %v7318
        %v7339 = vsub.f32 %v7331, %v7335
        %v7340 = vsub.f32 %v7332, %v7336
        %v7341 = vsub.f32 %v7333, %v7337
        %v7342 = vsub.f32 %v7334, %v7338
        %v7343 = vmax.f32 %v7339, 0.0
        %v7344 = vmax.f32 %v7340, 0.0
        %v7345 = vmax.f32 %v7341, 0.0
        %v7346 = vmax.f32 %v7342, 0.0
        %v7347 = vsub.f32 %v7303, %v7315
        %v7348 = vsub.f32 %v7304, %v7316
        %v7349 = vsub.f32 %v7305, %v7317
        %v7350 = vsub.f32 %v7306, %v7318
        %v7351 = vadd.f32 %v7343, 1e-05
        %v7352 = vadd.f32 %v7344, 1e-05
        %v7353 = vadd.f32 %v7345, 1e-05
        %v7354 = vadd.f32 %v7346, 1e-05
        %v7355 = vrsqrt.pop %v7351
        %v7356 = vrsqrt.pop %v7352
        %v7357 = vrsqrt.pop %v7353
        %v7358 = vrsqrt.pop %v7354
        %v7359 = vmul.f32 %v7347, %v7355
        %v7360 = vmul.f32 %v7348, %v7356
        %v7361 = vmul.f32 %v7349, %v7357
        %v7362 = vmul.f32 %v7350, %v7358
        %vm7363 = vcmp.ge.f32.partialorder %v7359, 0.0
        %vm7364 = vcmp.ge.f32.partialorder %v7360, 0.0
        %vm7365 = vcmp.ge.f32.partialorder %v7361, 0.0
        %vm7366 = vcmp.ge.f32.partialorder %v7362, 0.0
        %v7367 = vmul.f32 %v7359, 0.2
        %v7368 = vmul.f32 %v7360, 0.2
        %v7369 = vmul.f32 %v7361, 0.2
        %v7370 = vmul.f32 %v7362, 0.2
        %v7371 = vsel %vm7363, %v7359, %v7367
        %v7372 = vsel %vm7364, %v7360, %v7368
        %v7373 = vsel %vm7365, %v7361, %v7369
        %v7374 = vsel %vm7366, %v7362, %v7370
        %v7375 = vld [vmem:[%s5] sm:$0xff]
        %v7376 = vld [vmem:[%s5 + $0x8] sm:$0xff]
        %v7377 = vld [vmem:[%s5 + $0x10] sm:$0xff]
        %v7378 = vld [vmem:[%s5 + $0x18] sm:$0xff]
        %v7379 = vld [vmem:[%s5 + $0x20] sm:$0x1f]
        %v7380 = vld [vmem:[%s5 + $0x25] sm:$0x1]
        %v7381 = vmul.f32 %v7371, %v7375
        %v7382 = vmul.f32 %v7372, %v7376
        %v7383 = vmul.f32 %v7373, %v7377
        %v7384 = vmul.f32 %v7374, %v7378
        %7385 = vadd.xlane.f32.xlu0 %v7381
        %v7386 = vpop.xlane.xlu0 %7385
        %7387 = vadd.xlane.f32.xlu0 %v7382
        %v7388 = vpop.xlane.xlu0 %7387
        %7389 = vadd.xlane.f32.xlu0 %v7383
        %v7390 = vpop.xlane.xlu0 %7389
        %7391 = vadd.xlane.f32.xlu0 %v7384
        %v7392 = vpop.xlane.xlu0 %7391
        %vm7393 = vcmask 261120
        %v7395 = vsel %vm7393, %v7380, 0
        %7397 = vmatprep.subr.mxu0 0.0
        %7398 = vmatpush1.msra.mxu0 %v7386
        %7399 = vmatprep.subr.mxu0 0.0
        %7400 = vmatpush1.msra.mxu0 %v7388
        %7401 = vmatprep.subr.mxu0 0.0
        %7402 = vmatpush1.msra.mxu0 %v7390
        %7403 = vmatprep.subr.mxu0 0.0
        %7404 = vmatpush1.msra.mxu0 %v7392
        %7405 = vmatprep.subr.mxu0 0.0
        %7406 = vmatpush1.msra.mxu0 0.0
        %7407 = vmatprep.subr.mxu0 0.0
        %7408 = vmatpush1.msra.mxu0 0.0
        %7409 = vmatprep.subr.mxu0 0.0
        %7410 = vmatpush1.msra.mxu0 0.0
        %7411 = vmatprep.subr.mxu0 0.0
        %7412 = vmatpush1.msra.mxu0 0.0
        %7413 = vmatprep.subr.mxu0 0.0
        %7414 = vmatpush1.msra.mxu0 0.0
        %7415 = vmatprep.subr.mxu0 0.0
        %7416 = vmatpush1.msra.mxu0 0.0
        %7417 = vmatprep.subr.mxu0 0.0
        %7418 = vmatpush1.msra.mxu0 0.0
        %7419 = vmatprep.subr.mxu0 0.0
        %7420 = vmatpush1.msra.mxu0 0.0
        %7421 = vmatprep.subr.mxu0 0.0
        %7422 = vmatpush1.msra.mxu0 0.0
        %7423 = vmatprep.subr.mxu0 0.0
        %7424 = vmatpush1.msra.mxu0 0.0
        %7425 = vmatprep.subr.mxu0 0.0
        %7426 = vmatpush1.msra.mxu0 0.0
        %7427 = vmatprep.subr.mxu0 0.0
        %7428 = vmatpush1.msra.mxu0 0.0
        %7429 = vmatprep.subr.mxu0 0.0
        %7430 = vmatpush1.msra.mxu0 0.0
        %7431 = vmatprep.subr.mxu0 0.0
        %7432 = vmatpush1.msra.mxu0 0.0
        %7433 = vmatprep.subr.mxu0 0.0
        %7434 = vmatpush1.msra.mxu0 0.0
        %7435 = vmatprep.subr.mxu0 0.0
        %7436 = vmatpush1.msra.mxu0 0.0
        %7437 = vmatprep.subr.mxu0 0.0
        %7438 = vmatpush1.msra.mxu0 0.0
        %7439 = vmatprep.subr.mxu0 0.0
        %7440 = vmatpush1.msra.mxu0 0.0
        %7441 = vmatprep.subr.mxu0 0.0
        %7442 = vmatpush1.msra.mxu0 0.0
        %7443 = vmatprep.subr.mxu0 0.0
        %7444 = vmatpush1.msra.mxu0 0.0
        %7445 = vmatprep.subr.mxu0 0.0
        %7446 = vmatpush1.msra.mxu0 0.0
        %7447 = vmatprep.subr.mxu0 0.0
        %7448 = vmatpush1.msra.mxu0 0.0
        %7449 = vmatprep.subr.mxu0 0.0
        %7450 = vmatpush1.msra.mxu0 0.0
        %7451 = vmatprep.subr.mxu0 0.0
        %7452 = vmatpush1.msra.mxu0 0.0
        %7453 = vmatprep.subr.mxu0 0.0
        %7454 = vmatpush1.msra.mxu0 0.0
        %7455 = vmatprep.subr.mxu0 0.0
        %7456 = vmatpush1.msra.mxu0 0.0
        %7457 = vmatprep.subr.mxu0 0.0
        %7458 = vmatpush1.msra.mxu0 0.0
        %7459 = vmatprep.subr.mxu0 0.0
        %7460 = vmatpush1.msra.mxu0 0.0
        %7461 = vmatprep.mubr.f32.mxu0 0.0
        %7462 = vmatmul.mubr.f32.gmra.mrb[0].mxu0 %v7395
        %v7463 = vpop.f32.mrb[0].mxu0
        %v7464 = vadd.f32 0.0, %v7463
        %v7465 = vpop.f32.mrb[0].mxu0
        %7466 = vdwg.mxu0
        %7468 = vset.pattern.permute.xlu0 0
        %7469 = vperm.xlu0 %7468, %v7464
        %v7470 = vpop.permute.xlu0 %7469
        %v7472 = vmul.f32 %v7470, %v7379
        %7474 = vset.pattern.permute.xlu0 0
        %7475 = vperm.xlu0 %7474, %v264
        %v7476 = vpop.permute.xlu0 %7475
        %v7479 = vunpack.c.l.s4 839922192
        %v7480 = vunpack.c.0.s8 %v7479
        %v7481 = vlaneseq
        %v7482 = vshrl.u32 %v7481, 7
        %v7483 = vsub.s32 %v7480, %v7482
        %v7484 = vrot.slane %v7476, %v7483
        %v7486 = vrot.slane %v7379, 5
        %v7487 = vrot.slane %v7486, 4
        %v7489 = vmul.f32 %v7484, %v7487
        %v7490 = vadd.f32 %v7472, %v7489
        %v7491 = vrot.slane %v7379, 2
        %v7493 = vadd.f32 %v7490, %v7491
        %v7494 = vrot.slane %v7379, 3
        %v7496 = vmul.f32 %v7493, %v7494
        %vm7497 = vcmask 253952
        %v7498 = vsel %vm7497, %v7496, 0.0
        %7499 = vadd.xlane.f32.xlu0 %v7498
        %v7500 = vpop.xlane.xlu0 %7499
        %v7501 = vrot.slane %v7379, 4
        %v7503 = vadd.f32 %v7500, %v7501
        %vm7504 = vcmask 0
        %7505 = vst.msk [vmem:[%s262] sm:$0x1] %vm7504, %v7503
        %p7506 = scmp.lt.s32.totalorder %s18, 1
        %s7507 = scalar_select %p7506, %s18, 1
        %s7508 = scalar_lea.vmem %s6, %s7507
        // Predicated region
        $region49: #{discriminator_forward.1} parent=43 // pred_check
          %p7509 = pneg %p167
        $region50: #{discriminator_forward.1} parent=43 // pred_check_branch
          %7511 = sbr.rel (%p7509) target = $region52
        $region51: #{discriminator_forward.1} parent=43 // pred_region
          _
        $region52: #{discriminator_forward.1} parent=43 // pred_fallthru
          _
      $region44: #{discriminator_forward.1} parent=5 // pred_fallthru
        _
      %p7512 = scmp.le.s32.totalorder 2, %s13
      // Predicated region
      $region53: #{discriminator_forward.1} parent=5 // pred_check
        %p7513 = pneg %p7512
      $region54: #{discriminator_forward.1} parent=5 // pred_check_branch
        %7515 = sbr.rel (%p7513) target = $region56
      $region55: #{discriminator_forward.1} parent=5 // pred_region
        %s7516 = ssub.s32 %s13, 2
        // Predicated region
        $region57: #{discriminator_forward.1} parent=55 // pred_check
          %p7517 = pneg %p173
        $region58: #{discriminator_forward.1} parent=55 // pred_check_branch
          %7519 = sbr.rel (%p7517) target = $region60
        $region59: #{discriminator_forward.1} parent=55 // pred_region
          %p7520 = scmp.lt.s32.totalorder %s19, 1
          %s7521 = scalar_select %p7520, %s19, 1
          %s7522 = scalar_lea.vmem %s6, %s7521
        $region60: #{discriminator_forward.1} parent=55 // pred_fallthru
          _
      $region56: #{discriminator_forward.1} parent=5 // pred_fallthru
        _
    $region6: #{discriminator_forward.1} parent=1 // loop_footer
      %s17 = sadd.s32 1, %s13
    $region7: #{discriminator_forward.1} parent=1 // loop_footer_branch
      %12 = sbr.rel target = $region3
    $region8: #{discriminator_forward.1} parent=1 // loop_exit
      _
    %7523 = vsyncpa [#allocation3], 1
    %s7524 = scalar_lea.sflag [#allocation3], 1
    %7525 = vsyncpa %s7524, 1

</llo_original>
